<compile_context>
chip_gen: v7x
topology: tpu7x:2x2x1
jax: 0.10.0
libtpu: 0.0.40
codegen_flags: <defaults>
</compile_context>

<pallas_src>
import math

import jax
import jax.numpy as jnp
from jax.experimental import pallas as pl
from jax.experimental.pallas import tpu as pltpu

K = 3        # Conv2d kernel_size (padding=1 -> "same" spatial size)
POOL = 2     # MaxPool2d(pool_size)
LANES = 128

_ACTIVATIONS = {
    "ReLU": lambda v: jnp.maximum(v, 0.0),
    "Tanh": jnp.tanh,
    "Sigmoid": jax.nn.sigmoid,
    # PyTorch nn.GELU defaults to the exact (erf) form.
    "GELU": lambda v: jax.nn.gelu(v, approximate=False),
}
# max(act(x)) == act(max(x)) for monotone non-decreasing act, and the per-channel
# bias is constant within a pool window, so pool -> bias -> act is exact for these.
_MONOTONE = {"ReLU", "Tanh", "Sigmoid"}


def _make_kernel(activation: str, pool: int):
    act = _ACTIVATIONS[activation]
    pool_first = activation in _MONOTONE

    def conv_act_pool_kernel(x_ref, w_ref, b_ref, o_ref, xp_ref):
        # x_ref : (Nb, H, W, Cin)      bf16 NHWC input block
        # w_ref : (Kpad, Cpad)         bf16 weights; rows zero-padded KKC->Kpad,
        #                              cols (Cout) zero-padded to Cpad (lane-dense)
        # b_ref : (1, Cpad)            f32 bias, zero-padded
        # o_ref : (Nb, Ho, Wo, Cpad)   f32 lane-dense output block
        # xp_ref: (Nb, H+2, W+2, Cin)  VMEM scratch holding the zero-padded input
        Nb, H, W, Cin = x_ref.shape
        _, Ho, Wo, Cpad = o_ref.shape
        Kpad = w_ref.shape[0]
        KKC = K * K * Cin

        # ---- padding=1, done entirely in VMEM (no extra wrapper HBM pass) ----
        xp_ref[...] = jnp.zeros_like(xp_ref)
        xp_ref[:, 1:H + 1, 1:W + 1, :] = x_ref[...]

        # ---- im2col built VMEM-locally: 9 shifted taps + zero lane-pad ----
        taps = [xp_ref[:, kh:kh + H, kw:kw + W, :]
                for kh in range(K) for kw in range(K)]
        if Kpad > KKC:
            taps.append(jnp.zeros((Nb, H, W, Kpad - KKC), dtype=xp_ref.dtype))
        # (Nb, H, W, Kpad) -> (Nb*H*W, Kpad); layout-preserving (W % 8 == 0, 128 lanes).
        patches = jnp.concatenate(taps, axis=-1).reshape(Nb * H * W, Kpad)

        # ---- single fused bf16 MXU matmul, f32 accumulate ----
        acc = jnp.dot(patches, w_ref[...], preferred_element_type=jnp.float32)

        # ---- MaxPool(pool): pool over W (adjacent rows), then over H (Wo apart) ----
        # TODO(synk): swap the sublane-splitting (rows, pool, Cpad) reshape for a
        #             strided/roll formulation; minor today (XLU has slack).
        def maxpool(a):                                 # a: (Nb*H*W, Cpad)
            a = a.reshape(Nb * H * Wo, pool, Cpad)
            a = jnp.max(a, axis=1)                      # (Nb*H*Wo, Cpad)
            a = a.reshape(Nb * Ho, pool, Wo, Cpad)
            a = jnp.max(a, axis=1)                      # (Nb*Ho, Wo, Cpad)
            return a

        bvec = b_ref[...].astype(jnp.float32)           # (1, Cpad)
        if pool_first:
            # pool -> bias -> act: pool^2 x fewer VPU adds / EUP transcendentals.
            out = act(maxpool(acc) + bvec.reshape(1, 1, Cpad))
        else:
            out = maxpool(act(acc + bvec))

        o_ref[...] = out.reshape(Nb, Ho, Wo, Cpad).astype(o_ref.dtype)

    return conv_act_pool_kernel


def conv_act_pool(x_nchw, weight, bias, activation="ReLU", pool=POOL):
    """Conv2d(padding=1) -> activation -> MaxPool2d(pool). NCHW in/out (module parity)."""
    N, Cin, H, W = x_nchw.shape
    Cout = weight.shape[0]
    assert weight.shape == (Cout, Cin, K, K)
    assert H % pool == 0 and W % pool == 0

    KKC = K * K * Cin
    Kpad = LANES * pl.cdiv(KKC, LANES)      # lane-dense contraction dim
    Cpad = LANES * pl.cdiv(Cout, LANES)     # lane-dense output channels
    Ho, Wo = H // pool, W // pool

    # ---- wrapper glue (one cheap pass each; module interface is NCHW) ----
    # NCHW -> NHWC + bf16 cast (halves input DMA bytes; full-rate MXU operands).
    x = jnp.transpose(x_nchw, (0, 2, 3, 1)).astype(jnp.bfloat16)
    # weight OIHW -> (kh, kw, ci, co) -> (KKC, Cout); zero-pad KKC->Kpad, Cout->Cpad.
    w_mat = jnp.transpose(weight, (2, 3, 1, 0)).reshape(KKC, Cout)
    w_mat = jnp.pad(w_mat, ((0, Kpad - KKC), (0, Cpad - Cout))).astype(jnp.bfloat16)
    b_mat = jnp.pad(bias, (0, Cpad - Cout)).reshape(1, Cpad).astype(jnp.float32)

    # ---- grid: single step unless the per-step MXU work dwarfs the ~0.35us/step
    # cost (v5e/v6e are single-TC: a 2-step grid is pure serial overhead; the 2-way
    # split only pays on v7x's dual TC when compute-bound). Split only for even N
    # so no padded/wasted batch work.
    flops = 2 * N * H * W * Kpad * Cpad
    grid_n = 2 if (N % 2 == 0 and flops >= int(4e8)) else 1
    Nb = N // grid_n

    act_elems = N * Ho * Wo * Cpad if activation in _MONOTONE else N * H * W * Cpad
    cost = pl.CostEstimate(
        flops=int(flops),
        transcendentals=0 if activation == "ReLU" else int(act_elems),
        bytes_accessed=int(x.size * 2 + w_mat.size * 2 + b_mat.size * 4
                           + N * Ho * Wo * Cpad * 4),
    )

    out_nhwc = pl.pallas_call(
        _make_kernel(activation, pool),
        out_shape=jax.ShapeDtypeStruct((N, Ho, Wo, Cpad), jnp.float32),
        grid=(grid_n,),
        in_specs=[
            pl.BlockSpec((Nb, H, W, Cin), lambda n: (n, 0, 0, 0)),
            pl.BlockSpec((Kpad, Cpad), lambda n: (0, 0)),
            pl.BlockSpec((1, Cpad), lambda n: (0, 0)),
        ],
        out_specs=pl.BlockSpec((Nb, Ho, Wo, Cpad), lambda n: (n, 0, 0, 0)),
        scratch_shapes=[pltpu.VMEM((Nb, H + 2, W + 2, Cin), jnp.bfloat16)],
        compiler_params=pltpu.CompilerParams(
            dimension_semantics=("parallel",),
            vmem_limit_bytes=32 * 1024 * 1024),
        cost_estimate=cost,
    )(x, w_mat, b_mat)

    out_nhwc = out_nhwc[:, :, :, :Cout]              # strip channel pad
    return jnp.transpose(out_nhwc, (0, 3, 1, 2))     # NHWC -> NCHW


def _reference(x_nchw, weight, bias, activation):
    """Pure-JAX f32 reference for correctness checking."""
    y = jax.lax.conv_general_dilated(
        x_nchw, weight, window_strides=(1, 1), padding=((1, 1), (1, 1)),
        dimension_numbers=("NCHW", "OIHW", "NCHW"),
        precision=jax.lax.Precision.HIGHEST)
    y = y + bias.reshape(1, -1, 1, 1)
    y = _ACTIVATIONS[activation](y)
    N, C, H, W = y.shape
    y = y.reshape(N, C, H // POOL, POOL, W // POOL, POOL)
    return jnp.max(y, axis=(3, 5))


if __name__ == "__main__":
    # convActPool(in_channel=4, out_channel=8, kernel_size=3, pool_size=2, activation="ReLU")
    in_channel, out_channel = 4, 8
    N, H, W = 2, 16, 16

    key = jax.random.PRNGKey(0)
    kx, kw, kb = jax.random.split(key, 3)

    x = jax.random.normal(kx, (N, in_channel, H, W), dtype=jnp.float32)

    # PyTorch Conv2d default init: U(-bound, bound), bound = 1/sqrt(fan_in)
    fan_in = in_channel * K * K
    bound = 1.0 / math.sqrt(fan_in)
    weight = jax.random.uniform(kw, (out_channel, in_channel, K, K),
                                minval=-bound, maxval=bound, dtype=jnp.float32)
    bias = jax.random.uniform(kb, (out_channel,),
                              minval=-bound, maxval=bound, dtype=jnp.float32)

    out = jax.block_until_ready(conv_act_pool(x, weight, bias, activation="ReLU"))
    assert out.shape == (N, out_channel, H // POOL, W // POOL), out.shape

    ref = jax.block_until_ready(_reference(x, weight, bias, "ReLU"))
    # bf16 MXU operands (f32 accumulate) vs. f32 HIGHEST-precision reference.
    max_err = float(jnp.max(jnp.abs(out - ref)))
    assert jnp.allclose(out, ref, rtol=2e-2, atol=2e-2), max_err

    print("KERNEL_OK")
</pallas_src>

<mosaic_0001>
module attributes {stable_mosaic.version = 11 : i64} {
  func.func @conv_act_pool_kernel(%arg0: i32, %arg1: memref<2x16x16x4xbf16, #tpu.memory_space<vmem>>, %arg2: memref<128x128xbf16, #tpu.memory_space<vmem>>, %arg3: memref<1x128xf32, #tpu.memory_space<vmem>>, %arg4: memref<2x8x8x128xf32, #tpu.memory_space<vmem>>, %arg5: memref<2x18x18x4xbf16, #tpu.memory_space<vmem>>) attributes {dimension_semantics = [#tpu.dimension_semantics<parallel>], iteration_bounds = array<i64: 1>, scalar_prefetch = 0 : i64, scratch_operands = 1 : i64, tpu.core_type = #tpu.core_type<tc>, window_params = [{transform_indices = @transform_0, window_bounds = array<i64: 2, 16, 16, 4>}, {pipeline_mode = #tpu.pipeline_mode<synchronous>, transform_indices = @transform_1, window_bounds = array<i64: 128, 128>}, {pipeline_mode = #tpu.pipeline_mode<synchronous>, transform_indices = @transform_2, window_bounds = array<i64: 1, 128>}, {transform_indices = @transform_3, window_bounds = array<i64: 2, 8, 8, 128>}]} {
    %cst = arith.constant 0.000000e+00 : bf16
    %0 = vector.broadcast %cst : bf16 to vector<2x18x18x4xbf16>
    %c0 = arith.constant 0 : index
    %c0_0 = arith.constant 0 : index
    %c0_1 = arith.constant 0 : index
    %c0_2 = arith.constant 0 : index
    %1 = vector.load %arg5[%c0, %c0_0, %c0_1, %c0_2] : memref<2x18x18x4xbf16, #tpu.memory_space<vmem>>, vector<2x18x18x4xbf16>
    tpu.vector_store %arg5[%c0, %c0_0, %c0_1, %c0_2], %0 {strides = array<i32>} : memref<2x18x18x4xbf16, #tpu.memory_space<vmem>>, vector<2x18x18x4xbf16>,
    %c0_3 = arith.constant 0 : index
    %c0_4 = arith.constant 0 : index
    %c0_5 = arith.constant 0 : index
    %c0_6 = arith.constant 0 : index
    %2 = vector.load %arg1[%c0_3, %c0_4, %c0_5, %c0_6] : memref<2x16x16x4xbf16, #tpu.memory_space<vmem>>, vector<2x16x16x4xbf16>
    %c0_7 = arith.constant 0 : index
    %c1 = arith.constant 1 : index
    %c1_8 = arith.constant 1 : index
    %c0_9 = arith.constant 0 : index
    %3 = vector.load %arg5[%c0_7, %c1, %c1_8, %c0_9] : memref<2x18x18x4xbf16, #tpu.memory_space<vmem>>, vector<2x16x16x4xbf16>
    tpu.vector_store %arg5[%c0_7, %c1, %c1_8, %c0_9], %2 {strides = array<i32>} : memref<2x18x18x4xbf16, #tpu.memory_space<vmem>>, vector<2x16x16x4xbf16>,
    %c0_10 = arith.constant 0 : index
    %c0_11 = arith.constant 0 : index
    %c0_12 = arith.constant 0 : index
    %c0_13 = arith.constant 0 : index
    %4 = vector.load %arg5[%c0_10, %c0_11, %c0_12, %c0_13] : memref<2x18x18x4xbf16, #tpu.memory_space<vmem>>, vector<2x16x16x4xbf16>
    %c0_14 = arith.constant 0 : index
    %c0_15 = arith.constant 0 : index
    %c1_16 = arith.constant 1 : index
    %c0_17 = arith.constant 0 : index
    %5 = vector.load %arg5[%c0_14, %c0_15, %c1_16, %c0_17] : memref<2x18x18x4xbf16, #tpu.memory_space<vmem>>, vector<2x16x16x4xbf16>
    %c0_18 = arith.constant 0 : index
    %c0_19 = arith.constant 0 : index
    %c2 = arith.constant 2 : index
    %c0_20 = arith.constant 0 : index
    %6 = vector.load %arg5[%c0_18, %c0_19, %c2, %c0_20] : memref<2x18x18x4xbf16, #tpu.memory_space<vmem>>, vector<2x16x16x4xbf16>
    %c0_21 = arith.constant 0 : index
    %c1_22 = arith.constant 1 : index
    %c0_23 = arith.constant 0 : index
    %c0_24 = arith.constant 0 : index
    %7 = vector.load %arg5[%c0_21, %c1_22, %c0_23, %c0_24] : memref<2x18x18x4xbf16, #tpu.memory_space<vmem>>, vector<2x16x16x4xbf16>
    %c0_25 = arith.constant 0 : index
    %c1_26 = arith.constant 1 : index
    %c1_27 = arith.constant 1 : index
    %c0_28 = arith.constant 0 : index
    %8 = vector.load %arg5[%c0_25, %c1_26, %c1_27, %c0_28] : memref<2x18x18x4xbf16, #tpu.memory_space<vmem>>, vector<2x16x16x4xbf16>
    %c0_29 = arith.constant 0 : index
    %c1_30 = arith.constant 1 : index
    %c2_31 = arith.constant 2 : index
    %c0_32 = arith.constant 0 : index
    %9 = vector.load %arg5[%c0_29, %c1_30, %c2_31, %c0_32] : memref<2x18x18x4xbf16, #tpu.memory_space<vmem>>, vector<2x16x16x4xbf16>
    %c0_33 = arith.constant 0 : index
    %c2_34 = arith.constant 2 : index
    %c0_35 = arith.constant 0 : index
    %c0_36 = arith.constant 0 : index
    %10 = vector.load %arg5[%c0_33, %c2_34, %c0_35, %c0_36] : memref<2x18x18x4xbf16, #tpu.memory_space<vmem>>, vector<2x16x16x4xbf16>
    %c0_37 = arith.constant 0 : index
    %c2_38 = arith.constant 2 : index
    %c1_39 = arith.constant 1 : index
    %c0_40 = arith.constant 0 : index
    %11 = vector.load %arg5[%c0_37, %c2_38, %c1_39, %c0_40] : memref<2x18x18x4xbf16, #tpu.memory_space<vmem>>, vector<2x16x16x4xbf16>
    %c0_41 = arith.constant 0 : index
    %c2_42 = arith.constant 2 : index
    %c2_43 = arith.constant 2 : index
    %c0_44 = arith.constant 0 : index
    %12 = vector.load %arg5[%c0_41, %c2_42, %c2_43, %c0_44] : memref<2x18x18x4xbf16, #tpu.memory_space<vmem>>, vector<2x16x16x4xbf16>
    %cst_45 = arith.constant 0.000000e+00 : bf16
    %13 = vector.broadcast %cst_45 : bf16 to vector<2x16x16x92xbf16>
    %14 = tpu.concatenate %4, %5, %6, %7, %8, %9, %10, %11, %12, %13 in 3 : vector<2x16x16x4xbf16>, vector<2x16x16x4xbf16>, vector<2x16x16x4xbf16>, vector<2x16x16x4xbf16>, vector<2x16x16x4xbf16>, vector<2x16x16x4xbf16>, vector<2x16x16x4xbf16>, vector<2x16x16x4xbf16>, vector<2x16x16x4xbf16>, vector<2x16x16x92xbf16> -> vector<2x16x16x128xbf16>
    %15 = vector.shape_cast %14 : vector<2x16x16x128xbf16> to vector<512x128xbf16>
    %c0_46 = arith.constant 0 : index
    %c0_47 = arith.constant 0 : index
    %16 = vector.load %arg2[%c0_46, %c0_47] : memref<128x128xbf16, #tpu.memory_space<vmem>>, vector<128x128xbf16>
    %cst_48 = arith.constant dense<0.000000e+00> : vector<512x128xf32>
    %17 = tpu.matmul %15, %16, %cst_48 {dimension_numbers = #tpu.dot_dimension_numbers<[1], [0], [0], [1], [0, 0, 1, 1], [], []>} : vector<512x128xbf16>, vector<128x128xbf16>, vector<512x128xf32> -> vector<512x128xf32>
    %c0_49 = arith.constant 0 : index
    %c0_50 = arith.constant 0 : index
    %18 = vector.load %arg3[%c0_49, %c0_50] : memref<1x128xf32, #tpu.memory_space<vmem>>, vector<1x128xf32>
    %19 = vector.shape_cast %17 : vector<512x128xf32> to vector<256x2x128xf32>
    %cst_51 = arith.constant dense<0xFF800000> : vector<256x128xf32>
    %20 = vector.multi_reduction <maximumf>, %19, %cst_51 [1] : vector<256x2x128xf32> to vector<256x128xf32>
    %21 = vector.shape_cast %20 : vector<256x128xf32> to vector<16x2x8x128xf32>
    %cst_52 = arith.constant dense<0xFF800000> : vector<16x8x128xf32>
    %22 = vector.multi_reduction <maximumf>, %21, %cst_52 [1] : vector<16x2x8x128xf32> to vector<16x8x128xf32>
    %23 = vector.shape_cast %18 : vector<1x128xf32> to vector<1x1x128xf32>
    %24 = vector.broadcast %23 : vector<1x1x128xf32> to vector<16x8x128xf32>
    %25 = arith.addf %22, %24 : vector<16x8x128xf32>
    %cst_53 = arith.constant 0.000000e+00 : f32
    %26 = vector.broadcast %cst_53 : f32 to vector<16x8x128xf32>
    %27 = arith.maximumf %25, %26 : vector<16x8x128xf32>
    %28 = vector.shape_cast %27 : vector<16x8x128xf32> to vector<2x8x8x128xf32>
    %c0_54 = arith.constant 0 : index
    %c0_55 = arith.constant 0 : index
    %c0_56 = arith.constant 0 : index
    %c0_57 = arith.constant 0 : index
    %29 = vector.load %arg4[%c0_54, %c0_55, %c0_56, %c0_57] : memref<2x8x8x128xf32, #tpu.memory_space<vmem>>, vector<2x8x8x128xf32>
    tpu.vector_store %arg4[%c0_54, %c0_55, %c0_56, %c0_57], %28 {strides = array<i32>} : memref<2x8x8x128xf32, #tpu.memory_space<vmem>>, vector<2x8x8x128xf32>,
    return
  }
  func.func @transform_0(%arg0: i32) -> (i32, i32, i32, i32) {
    %c0_i32 = arith.constant 0 : i32
    %c0_i32_0 = arith.constant 0 : i32
    %c0_i32_1 = arith.constant 0 : i32
    %c0_i32_2 = arith.constant 0 : i32
    return %arg0, %c0_i32, %c0_i32_0, %c0_i32_1 : i32, i32, i32, i32
  }
  func.func @transform_1(%arg0: i32) -> (i32, i32) {
    %c0_i32 = arith.constant 0 : i32
    %c0_i32_0 = arith.constant 0 : i32
    %c0_i32_1 = arith.constant 0 : i32
    return %c0_i32, %c0_i32_0 : i32, i32
  }
  func.func @transform_2(%arg0: i32) -> (i32, i32) {
    %c0_i32 = arith.constant 0 : i32
    %c0_i32_0 = arith.constant 0 : i32
    %c0_i32_1 = arith.constant 0 : i32
    return %c0_i32, %c0_i32_0 : i32, i32
  }
  func.func @transform_3(%arg0: i32) -> (i32, i32, i32, i32) {
    %c0_i32 = arith.constant 0 : i32
    %c0_i32_0 = arith.constant 0 : i32
    %c0_i32_1 = arith.constant 0 : i32
    %c0_i32_2 = arith.constant 0 : i32
    return %arg0, %c0_i32, %c0_i32_0, %c0_i32_1 : i32, i32, i32, i32
  }
}

</mosaic_0001>

<llo_original>
// kernel: tpu_custom_call.1
$region0: #{tpu_custom_call.1}
  #allocation0 [shape = 'u32[]', space=smem, size = 0x4, offset = 0x4, fixed_abs, tag = 'smem constant byte address 0x4 - core index']
  #allocation1 [shape = 'u32[144,128]{1,0:T(1,128)}', space=vmem, size = 0x12000, scoped, tag = 'internal scratch']
  #allocation2 [shape = 'bf16[2,18,18,4]{3,2,1,0:T(8,128)(2,1)}', space=vmem, size = 0x36000, scoped, tag = 'scratch operand']
  %s0 = inlined_call_operand.vmem [shape: bf16[2,16,16,4], index: 0, kind: input, shape index: {}]
  %s1 = inlined_call_operand.vmem [shape: bf16[128,128], index: 1, kind: input, shape index: {}]
  %s2 = inlined_call_operand.vmem [shape: f32[1,128], index: 2, kind: input, shape index: {}]
  %s3 = inlined_call_operand.hbm [shape: f32[2,8,8,128], index: 3, kind: output, shape index: {}]
  %s4 = sld [smem:[#allocation0]]
  $region22: #{tpu_custom_call.1} parent=0
    _
  %s6 = ssub.s32 1, %s4
  %s7 = scalar_select 0, %s6, %s4
  $region1: #{tpu_custom_call.1} parent=0
    #allocation3 [shape = 'u8[65536]{0}', space=vmem, size = 0x10000, scoped, tag = 'output window, operand 0, single buffered']
    #allocation4 [shape = 's32[1]{0}', space=sflag, size = 0x4, scoped, tag = 'scoped memory for tpu_custom_call.1']
    %8 = vsyncpa [#allocation4], 0
    // Predicated region
    $region2: #{tpu_custom_call.1} parent=1 // pred_check
      _
    $region3: #{tpu_custom_call.1} parent=1 // pred_check_branch
      %10 = sbr.rel (0) target = $region5
    $region4: #{tpu_custom_call.1} parent=1 // pred_region
      _
    $region5: #{tpu_custom_call.1} parent=1 // pred_fallthru
      _
    // Predicated region
    $region6: #{tpu_custom_call.1} parent=1 // pred_check
      _
    $region7: #{tpu_custom_call.1} parent=1 // pred_check_branch
      %12 = sbr.rel (0) target = $region9
    $region8: #{tpu_custom_call.1} parent=1 // pred_region
      _
    $region9: #{tpu_custom_call.1} parent=1 // pred_fallthru
      _
    // Predicated region
    $region10: #{tpu_custom_call.1} parent=1 // pred_check
      _
    $region11: #{tpu_custom_call.1} parent=1 // pred_check_branch
      %14 = sbr.rel (0) target = $region13
    $region12: #{tpu_custom_call.1} parent=1 // pred_region
      _
    $region13: #{tpu_custom_call.1} parent=1 // pred_fallthru
      _
    %vm16 = vcmask 27648
    %17 = vst.msk [vmem:[#allocation2] sm:$0xf] %vm16, 0
    %18 = vst.msk [vmem:[#allocation2 + $0x4] sm:$0xf] %vm16, 0
    %vm19 = vcmask 24576
    %20 = vst.msk [vmem:[#allocation2 + $0x8] sm:$0x1] %vm19, 0
    %21 = vst.msk [vmem:[#allocation2 + $0xc] sm:$0xf] %vm16, 0
    %22 = vst.msk [vmem:[#allocation2 + $0x10] sm:$0xf] %vm16, 0
    %23 = vst.msk [vmem:[#allocation2 + $0x14] sm:$0x1] %vm19, 0
    %24 = vst.msk [vmem:[#allocation2 + $0x18] sm:$0xf] %vm16, 0
    %25 = vst.msk [vmem:[#allocation2 + $0x1c] sm:$0xf] %vm16, 0
    %26 = vst.msk [vmem:[#allocation2 + $0x20] sm:$0x1] %vm19, 0
    %27 = vst.msk [vmem:[#allocation2 + $0x24] sm:$0xf] %vm16, 0
    %28 = vst.msk [vmem:[#allocation2 + $0x28] sm:$0xf] %vm16, 0
    %29 = vst.msk [vmem:[#allocation2 + $0x2c] sm:$0x1] %vm19, 0
    %30 = vst.msk [vmem:[#allocation2 + $0x30] sm:$0xf] %vm16, 0
    %31 = vst.msk [vmem:[#allocation2 + $0x34] sm:$0xf] %vm16, 0
    %32 = vst.msk [vmem:[#allocation2 + $0x38] sm:$0x1] %vm19, 0
    %33 = vst.msk [vmem:[#allocation2 + $0x3c] sm:$0xf] %vm16, 0
    %34 = vst.msk [vmem:[#allocation2 + $0x40] sm:$0xf] %vm16, 0
    %35 = vst.msk [vmem:[#allocation2 + $0x44] sm:$0x1] %vm19, 0
    %36 = vst.msk [vmem:[#allocation2 + $0x48] sm:$0xf] %vm16, 0
    %37 = vst.msk [vmem:[#allocation2 + $0x4c] sm:$0xf] %vm16, 0
    %38 = vst.msk [vmem:[#allocation2 + $0x50] sm:$0x1] %vm19, 0
    %39 = vst.msk [vmem:[#allocation2 + $0x54] sm:$0xf] %vm16, 0
    %40 = vst.msk [vmem:[#allocation2 + $0x58] sm:$0xf] %vm16, 0
    %41 = vst.msk [vmem:[#allocation2 + $0x5c] sm:$0x1] %vm19, 0
    %42 = vst.msk [vmem:[#allocation2 + $0x60] sm:$0xf] %vm16, 0
    %43 = vst.msk [vmem:[#allocation2 + $0x64] sm:$0xf] %vm16, 0
    %44 = vst.msk [vmem:[#allocation2 + $0x68] sm:$0x1] %vm19, 0
    %45 = vst.msk [vmem:[#allocation2 + $0x6c] sm:$0xf] %vm16, 0
    %46 = vst.msk [vmem:[#allocation2 + $0x70] sm:$0xf] %vm16, 0
    %47 = vst.msk [vmem:[#allocation2 + $0x74] sm:$0x1] %vm19, 0
    %48 = vst.msk [vmem:[#allocation2 + $0x78] sm:$0xf] %vm16, 0
    %49 = vst.msk [vmem:[#allocation2 + $0x7c] sm:$0xf] %vm16, 0
    %50 = vst.msk [vmem:[#allocation2 + $0x80] sm:$0x1] %vm19, 0
    %51 = vst.msk [vmem:[#allocation2 + $0x84] sm:$0xf] %vm16, 0
    %52 = vst.msk [vmem:[#allocation2 + $0x88] sm:$0xf] %vm16, 0
    %53 = vst.msk [vmem:[#allocation2 + $0x8c] sm:$0x1] %vm19, 0
    %54 = vst.msk [vmem:[#allocation2 + $0x90] sm:$0xf] %vm16, 0
    %55 = vst.msk [vmem:[#allocation2 + $0x94] sm:$0xf] %vm16, 0
    %56 = vst.msk [vmem:[#allocation2 + $0x98] sm:$0x1] %vm19, 0
    %57 = vst.msk [vmem:[#allocation2 + $0x9c] sm:$0xf] %vm16, 0
    %58 = vst.msk [vmem:[#allocation2 + $0xa0] sm:$0xf] %vm16, 0
    %59 = vst.msk [vmem:[#allocation2 + $0xa4] sm:$0x1] %vm19, 0
    %60 = vst.msk [vmem:[#allocation2 + $0xa8] sm:$0xf] %vm16, 0
    %61 = vst.msk [vmem:[#allocation2 + $0xac] sm:$0xf] %vm16, 0
    %62 = vst.msk [vmem:[#allocation2 + $0xb0] sm:$0x1] %vm19, 0
    %63 = vst.msk [vmem:[#allocation2 + $0xb4] sm:$0xf] %vm16, 0
    %64 = vst.msk [vmem:[#allocation2 + $0xb8] sm:$0xf] %vm16, 0
    %65 = vst.msk [vmem:[#allocation2 + $0xbc] sm:$0x1] %vm19, 0
    %66 = vst.msk [vmem:[#allocation2 + $0xc0] sm:$0xf] %vm16, 0
    %67 = vst.msk [vmem:[#allocation2 + $0xc4] sm:$0xf] %vm16, 0
    %68 = vst.msk [vmem:[#allocation2 + $0xc8] sm:$0x1] %vm19, 0
    %69 = vst.msk [vmem:[#allocation2 + $0xcc] sm:$0xf] %vm16, 0
    %70 = vst.msk [vmem:[#allocation2 + $0xd0] sm:$0xf] %vm16, 0
    %71 = vst.msk [vmem:[#allocation2 + $0xd4] sm:$0x1] %vm19, 0
    %72 = vst.msk [vmem:[#allocation2 + $0xd8] sm:$0xf] %vm16, 0
    %73 = vst.msk [vmem:[#allocation2 + $0xdc] sm:$0xf] %vm16, 0
    %74 = vst.msk [vmem:[#allocation2 + $0xe0] sm:$0x1] %vm19, 0
    %75 = vst.msk [vmem:[#allocation2 + $0xe4] sm:$0xf] %vm16, 0
    %76 = vst.msk [vmem:[#allocation2 + $0xe8] sm:$0xf] %vm16, 0
    %77 = vst.msk [vmem:[#allocation2 + $0xec] sm:$0x1] %vm19, 0
    %78 = vst.msk [vmem:[#allocation2 + $0xf0] sm:$0xf] %vm16, 0
    %79 = vst.msk [vmem:[#allocation2 + $0xf4] sm:$0xf] %vm16, 0
    %80 = vst.msk [vmem:[#allocation2 + $0xf8] sm:$0x1] %vm19, 0
    %81 = vst.msk [vmem:[#allocation2 + $0xfc] sm:$0xf] %vm16, 0
    %82 = vst.msk [vmem:[#allocation2 + $0x100] sm:$0xf] %vm16, 0
    %83 = vst.msk [vmem:[#allocation2 + $0x104] sm:$0x1] %vm19, 0
    %84 = vst.msk [vmem:[#allocation2 + $0x108] sm:$0xf] %vm16, 0
    %85 = vst.msk [vmem:[#allocation2 + $0x10c] sm:$0xf] %vm16, 0
    %86 = vst.msk [vmem:[#allocation2 + $0x110] sm:$0x1] %vm19, 0
    %87 = vst.msk [vmem:[#allocation2 + $0x114] sm:$0xf] %vm16, 0
    %88 = vst.msk [vmem:[#allocation2 + $0x118] sm:$0xf] %vm16, 0
    %89 = vst.msk [vmem:[#allocation2 + $0x11c] sm:$0x1] %vm19, 0
    %90 = vst.msk [vmem:[#allocation2 + $0x120] sm:$0xf] %vm16, 0
    %91 = vst.msk [vmem:[#allocation2 + $0x124] sm:$0xf] %vm16, 0
    %92 = vst.msk [vmem:[#allocation2 + $0x128] sm:$0x1] %vm19, 0
    %93 = vst.msk [vmem:[#allocation2 + $0x12c] sm:$0xf] %vm16, 0
    %94 = vst.msk [vmem:[#allocation2 + $0x130] sm:$0xf] %vm16, 0
    %95 = vst.msk [vmem:[#allocation2 + $0x134] sm:$0x1] %vm19, 0
    %96 = vst.msk [vmem:[#allocation2 + $0x138] sm:$0xf] %vm16, 0
    %97 = vst.msk [vmem:[#allocation2 + $0x13c] sm:$0xf] %vm16, 0
    %98 = vst.msk [vmem:[#allocation2 + $0x140] sm:$0x1] %vm19, 0
    %99 = vst.msk [vmem:[#allocation2 + $0x144] sm:$0xf] %vm16, 0
    %100 = vst.msk [vmem:[#allocation2 + $0x148] sm:$0xf] %vm16, 0
    %101 = vst.msk [vmem:[#allocation2 + $0x14c] sm:$0x1] %vm19, 0
    %102 = vst.msk [vmem:[#allocation2 + $0x150] sm:$0xf] %vm16, 0
    %103 = vst.msk [vmem:[#allocation2 + $0x154] sm:$0xf] %vm16, 0
    %104 = vst.msk [vmem:[#allocation2 + $0x158] sm:$0x1] %vm19, 0
    %105 = vst.msk [vmem:[#allocation2 + $0x15c] sm:$0xf] %vm16, 0
    %106 = vst.msk [vmem:[#allocation2 + $0x160] sm:$0xf] %vm16, 0
    %107 = vst.msk [vmem:[#allocation2 + $0x164] sm:$0x1] %vm19, 0
    %108 = vst.msk [vmem:[#allocation2 + $0x168] sm:$0xf] %vm16, 0
    %109 = vst.msk [vmem:[#allocation2 + $0x16c] sm:$0xf] %vm16, 0
    %110 = vst.msk [vmem:[#allocation2 + $0x170] sm:$0x1] %vm19, 0
    %111 = vst.msk [vmem:[#allocation2 + $0x174] sm:$0xf] %vm16, 0
    %112 = vst.msk [vmem:[#allocation2 + $0x178] sm:$0xf] %vm16, 0
    %113 = vst.msk [vmem:[#allocation2 + $0x17c] sm:$0x1] %vm19, 0
    %114 = vst.msk [vmem:[#allocation2 + $0x180] sm:$0xf] %vm16, 0
    %115 = vst.msk [vmem:[#allocation2 + $0x184] sm:$0xf] %vm16, 0
    %116 = vst.msk [vmem:[#allocation2 + $0x188] sm:$0x1] %vm19, 0
    %117 = vst.msk [vmem:[#allocation2 + $0x18c] sm:$0xf] %vm16, 0
    %118 = vst.msk [vmem:[#allocation2 + $0x190] sm:$0xf] %vm16, 0
    %119 = vst.msk [vmem:[#allocation2 + $0x194] sm:$0x1] %vm19, 0
    %120 = vst.msk [vmem:[#allocation2 + $0x198] sm:$0xf] %vm16, 0
    %121 = vst.msk [vmem:[#allocation2 + $0x19c] sm:$0xf] %vm16, 0
    %122 = vst.msk [vmem:[#allocation2 + $0x1a0] sm:$0x1] %vm19, 0
    %123 = vst.msk [vmem:[#allocation2 + $0x1a4] sm:$0xf] %vm16, 0
    %124 = vst.msk [vmem:[#allocation2 + $0x1a8] sm:$0xf] %vm16, 0
    %125 = vst.msk [vmem:[#allocation2 + $0x1ac] sm:$0x1] %vm19, 0
    %v126 = vld [vmem:[%s0] sm:$0xf]
    %v127 = vld [vmem:[%s0 + $0x4] sm:$0xf]
    %v128 = vld [vmem:[%s0 + $0x8] sm:$0xf]
    %v129 = vld [vmem:[%s0 + $0xc] sm:$0xf]
    %v130 = vld [vmem:[%s0 + $0x10] sm:$0xf]
    %v131 = vld [vmem:[%s0 + $0x14] sm:$0xf]
    %v132 = vld [vmem:[%s0 + $0x18] sm:$0xf]
    %v133 = vld [vmem:[%s0 + $0x1c] sm:$0xf]
    %v134 = vld [vmem:[%s0 + $0x20] sm:$0xf]
    %v135 = vld [vmem:[%s0 + $0x24] sm:$0xf]
    %v136 = vld [vmem:[%s0 + $0x28] sm:$0xf]
    %v137 = vld [vmem:[%s0 + $0x2c] sm:$0xf]
    %v138 = vld [vmem:[%s0 + $0x30] sm:$0xf]
    %v139 = vld [vmem:[%s0 + $0x34] sm:$0xf]
    %v140 = vld [vmem:[%s0 + $0x38] sm:$0xf]
    %v141 = vld [vmem:[%s0 + $0x3c] sm:$0xf]
    %v142 = vld [vmem:[%s0 + $0x40] sm:$0xf]
    %v143 = vld [vmem:[%s0 + $0x44] sm:$0xf]
    %v144 = vld [vmem:[%s0 + $0x48] sm:$0xf]
    %v145 = vld [vmem:[%s0 + $0x4c] sm:$0xf]
    %v146 = vld [vmem:[%s0 + $0x50] sm:$0xf]
    %v147 = vld [vmem:[%s0 + $0x54] sm:$0xf]
    %v148 = vld [vmem:[%s0 + $0x58] sm:$0xf]
    %v149 = vld [vmem:[%s0 + $0x5c] sm:$0xf]
    %v150 = vld [vmem:[%s0 + $0x60] sm:$0xf]
    %v151 = vld [vmem:[%s0 + $0x64] sm:$0xf]
    %v152 = vld [vmem:[%s0 + $0x68] sm:$0xf]
    %v153 = vld [vmem:[%s0 + $0x6c] sm:$0xf]
    %v154 = vld [vmem:[%s0 + $0x70] sm:$0xf]
    %v155 = vld [vmem:[%s0 + $0x74] sm:$0xf]
    %v156 = vld [vmem:[%s0 + $0x78] sm:$0xf]
    %v157 = vld [vmem:[%s0 + $0x7c] sm:$0xf]
    %v158 = vld [vmem:[%s0 + $0x80] sm:$0xf]
    %v159 = vld [vmem:[%s0 + $0x84] sm:$0xf]
    %v160 = vld [vmem:[%s0 + $0x88] sm:$0xf]
    %v161 = vld [vmem:[%s0 + $0x8c] sm:$0xf]
    %v162 = vld [vmem:[%s0 + $0x90] sm:$0xf]
    %v163 = vld [vmem:[%s0 + $0x94] sm:$0xf]
    %v164 = vld [vmem:[%s0 + $0x98] sm:$0xf]
    %v165 = vld [vmem:[%s0 + $0x9c] sm:$0xf]
    %v166 = vld [vmem:[%s0 + $0xa0] sm:$0xf]
    %v167 = vld [vmem:[%s0 + $0xa4] sm:$0xf]
    %v168 = vld [vmem:[%s0 + $0xa8] sm:$0xf]
    %v169 = vld [vmem:[%s0 + $0xac] sm:$0xf]
    %v170 = vld [vmem:[%s0 + $0xb0] sm:$0xf]
    %v171 = vld [vmem:[%s0 + $0xb4] sm:$0xf]
    %v172 = vld [vmem:[%s0 + $0xb8] sm:$0xf]
    %v173 = vld [vmem:[%s0 + $0xbc] sm:$0xf]
    %v174 = vld [vmem:[%s0 + $0xc0] sm:$0xf]
    %v175 = vld [vmem:[%s0 + $0xc4] sm:$0xf]
    %v176 = vld [vmem:[%s0 + $0xc8] sm:$0xf]
    %v177 = vld [vmem:[%s0 + $0xcc] sm:$0xf]
    %v178 = vld [vmem:[%s0 + $0xd0] sm:$0xf]
    %v179 = vld [vmem:[%s0 + $0xd4] sm:$0xf]
    %v180 = vld [vmem:[%s0 + $0xd8] sm:$0xf]
    %v181 = vld [vmem:[%s0 + $0xdc] sm:$0xf]
    %v182 = vld [vmem:[%s0 + $0xe0] sm:$0xf]
    %v183 = vld [vmem:[%s0 + $0xe4] sm:$0xf]
    %v184 = vld [vmem:[%s0 + $0xe8] sm:$0xf]
    %v185 = vld [vmem:[%s0 + $0xec] sm:$0xf]
    %v186 = vld [vmem:[%s0 + $0xf0] sm:$0xf]
    %v187 = vld [vmem:[%s0 + $0xf4] sm:$0xf]
    %v188 = vld [vmem:[%s0 + $0xf8] sm:$0xf]
    %v189 = vld [vmem:[%s0 + $0xfc] sm:$0xf]
    %vm190 = vsmask.f32 256
    %vm191 = vsmask.f32 4368
    %vm192 = vmor %vm190, %vm191
    %v194 = vshrl.u32 %v126, 16
    %v196 = vrot.slane %v194, 7
    %v197 = vshll.u32 %v126, 16
    %v199 = vor.u32 %v196, %v197
    %v200 = vrot.slane %v196, 4
    %v202 = vshrl.u32 %v127, 16
    %v204 = vrot.slane %v202, 7
    %v205 = vshll.u32 %v127, 16
    %v207 = vor.u32 %v204, %v205
    %v208 = vsel %vm192, %v200, %v207
    %v209 = vrot.slane %v204, 4
    %v211 = vshrl.u32 %v128, 16
    %v213 = vrot.slane %v211, 7
    %v214 = vshll.u32 %v128, 16
    %v216 = vor.u32 %v213, %v214
    %v217 = vrot.slane %v213, 4
    %v219 = vshrl.u32 %v129, 16
    %v221 = vrot.slane %v219, 7
    %v222 = vshll.u32 %v129, 16
    %v224 = vor.u32 %v221, %v222
    %v225 = vsel %vm192, %v217, %v224
    %v226 = vrot.slane %v221, 4
    %v228 = vshrl.u32 %v130, 16
    %v230 = vrot.slane %v228, 7
    %v231 = vshll.u32 %v130, 16
    %v233 = vor.u32 %v230, %v231
    %v234 = vrot.slane %v230, 4
    %v236 = vshrl.u32 %v131, 16
    %v238 = vrot.slane %v236, 7
    %v239 = vshll.u32 %v131, 16
    %v241 = vor.u32 %v238, %v239
    %v242 = vsel %vm192, %v234, %v241
    %v243 = vrot.slane %v238, 4
    %v245 = vshrl.u32 %v132, 16
    %v247 = vrot.slane %v245, 7
    %v248 = vshll.u32 %v132, 16
    %v250 = vor.u32 %v247, %v248
    %v251 = vrot.slane %v247, 4
    %v253 = vshrl.u32 %v133, 16
    %v255 = vrot.slane %v253, 7
    %v256 = vshll.u32 %v133, 16
    %v258 = vor.u32 %v255, %v256
    %v259 = vsel %vm192, %v251, %v258
    %v260 = vrot.slane %v255, 4
    %v262 = vshrl.u32 %v134, 16
    %v264 = vrot.slane %v262, 7
    %v265 = vshll.u32 %v134, 16
    %v267 = vor.u32 %v264, %v265
    %v268 = vrot.slane %v264, 4
    %v270 = vshrl.u32 %v135, 16
    %v272 = vrot.slane %v270, 7
    %v273 = vshll.u32 %v135, 16
    %v275 = vor.u32 %v272, %v273
    %v276 = vsel %vm192, %v268, %v275
    %v277 = vrot.slane %v272, 4
    %v279 = vshrl.u32 %v136, 16
    %v281 = vrot.slane %v279, 7
    %v282 = vshll.u32 %v136, 16
    %v284 = vor.u32 %v281, %v282
    %v285 = vrot.slane %v281, 4
    %v287 = vshrl.u32 %v137, 16
    %v289 = vrot.slane %v287, 7
    %v290 = vshll.u32 %v137, 16
    %v292 = vor.u32 %v289, %v290
    %v293 = vsel %vm192, %v285, %v292
    %v294 = vrot.slane %v289, 4
    %v296 = vshrl.u32 %v138, 16
    %v298 = vrot.slane %v296, 7
    %v299 = vshll.u32 %v138, 16
    %v301 = vor.u32 %v298, %v299
    %v302 = vrot.slane %v298, 4
    %v304 = vshrl.u32 %v139, 16
    %v306 = vrot.slane %v304, 7
    %v307 = vshll.u32 %v139, 16
    %v309 = vor.u32 %v306, %v307
    %v310 = vsel %vm192, %v302, %v309
    %v311 = vrot.slane %v306, 4
    %v313 = vshrl.u32 %v140, 16
    %v315 = vrot.slane %v313, 7
    %v316 = vshll.u32 %v140, 16
    %v318 = vor.u32 %v315, %v316
    %v319 = vrot.slane %v315, 4
    %v321 = vshrl.u32 %v141, 16
    %v323 = vrot.slane %v321, 7
    %v324 = vshll.u32 %v141, 16
    %v326 = vor.u32 %v323, %v324
    %v327 = vsel %vm192, %v319, %v326
    %v328 = vrot.slane %v323, 4
    %v330 = vshrl.u32 %v142, 16
    %v332 = vrot.slane %v330, 7
    %v333 = vshll.u32 %v142, 16
    %v335 = vor.u32 %v332, %v333
    %v336 = vrot.slane %v332, 4
    %v338 = vshrl.u32 %v143, 16
    %v340 = vrot.slane %v338, 7
    %v341 = vshll.u32 %v143, 16
    %v343 = vor.u32 %v340, %v341
    %v344 = vsel %vm192, %v336, %v343
    %v345 = vrot.slane %v340, 4
    %v347 = vshrl.u32 %v144, 16
    %v349 = vrot.slane %v347, 7
    %v350 = vshll.u32 %v144, 16
    %v352 = vor.u32 %v349, %v350
    %v353 = vrot.slane %v349, 4
    %v355 = vshrl.u32 %v145, 16
    %v357 = vrot.slane %v355, 7
    %v358 = vshll.u32 %v145, 16
    %v360 = vor.u32 %v357, %v358
    %v361 = vsel %vm192, %v353, %v360
    %v362 = vrot.slane %v357, 4
    %v364 = vshrl.u32 %v146, 16
    %v366 = vrot.slane %v364, 7
    %v367 = vshll.u32 %v146, 16
    %v369 = vor.u32 %v366, %v367
    %v370 = vrot.slane %v366, 4
    %v372 = vshrl.u32 %v147, 16
    %v374 = vrot.slane %v372, 7
    %v375 = vshll.u32 %v147, 16
    %v377 = vor.u32 %v374, %v375
    %v378 = vsel %vm192, %v370, %v377
    %v379 = vrot.slane %v374, 4
    %v381 = vshrl.u32 %v148, 16
    %v383 = vrot.slane %v381, 7
    %v384 = vshll.u32 %v148, 16
    %v386 = vor.u32 %v383, %v384
    %v387 = vrot.slane %v383, 4
    %v389 = vshrl.u32 %v149, 16
    %v391 = vrot.slane %v389, 7
    %v392 = vshll.u32 %v149, 16
    %v394 = vor.u32 %v391, %v392
    %v395 = vsel %vm192, %v387, %v394
    %v396 = vrot.slane %v391, 4
    %v398 = vshrl.u32 %v150, 16
    %v400 = vrot.slane %v398, 7
    %v401 = vshll.u32 %v150, 16
    %v403 = vor.u32 %v400, %v401
    %v404 = vrot.slane %v400, 4
    %v406 = vshrl.u32 %v151, 16
    %v408 = vrot.slane %v406, 7
    %v409 = vshll.u32 %v151, 16
    %v411 = vor.u32 %v408, %v409
    %v412 = vsel %vm192, %v404, %v411
    %v413 = vrot.slane %v408, 4
    %v415 = vshrl.u32 %v152, 16
    %v417 = vrot.slane %v415, 7
    %v418 = vshll.u32 %v152, 16
    %v420 = vor.u32 %v417, %v418
    %v421 = vrot.slane %v417, 4
    %v423 = vshrl.u32 %v153, 16
    %v425 = vrot.slane %v423, 7
    %v426 = vshll.u32 %v153, 16
    %v428 = vor.u32 %v425, %v426
    %v429 = vsel %vm192, %v421, %v428
    %v430 = vrot.slane %v425, 4
    %v432 = vshrl.u32 %v154, 16
    %v434 = vrot.slane %v432, 7
    %v435 = vshll.u32 %v154, 16
    %v437 = vor.u32 %v434, %v435
    %v438 = vrot.slane %v434, 4
    %v440 = vshrl.u32 %v155, 16
    %v442 = vrot.slane %v440, 7
    %v443 = vshll.u32 %v155, 16
    %v445 = vor.u32 %v442, %v443
    %v446 = vsel %vm192, %v438, %v445
    %v447 = vrot.slane %v442, 4
    %v449 = vshrl.u32 %v156, 16
    %v451 = vrot.slane %v449, 7
    %v452 = vshll.u32 %v156, 16
    %v454 = vor.u32 %v451, %v452
    %v455 = vrot.slane %v451, 4
    %v457 = vshrl.u32 %v157, 16
    %v459 = vrot.slane %v457, 7
    %v460 = vshll.u32 %v157, 16
    %v462 = vor.u32 %v459, %v460
    %v463 = vsel %vm192, %v455, %v462
    %v464 = vrot.slane %v459, 4
    %v466 = vshrl.u32 %v158, 16
    %v468 = vrot.slane %v466, 7
    %v469 = vshll.u32 %v158, 16
    %v471 = vor.u32 %v468, %v469
    %v472 = vrot.slane %v468, 4
    %v474 = vshrl.u32 %v159, 16
    %v476 = vrot.slane %v474, 7
    %v477 = vshll.u32 %v159, 16
    %v479 = vor.u32 %v476, %v477
    %v480 = vsel %vm192, %v472, %v479
    %v481 = vrot.slane %v476, 4
    %v483 = vshrl.u32 %v160, 16
    %v485 = vrot.slane %v483, 7
    %v486 = vshll.u32 %v160, 16
    %v488 = vor.u32 %v485, %v486
    %v489 = vrot.slane %v485, 4
    %v491 = vshrl.u32 %v161, 16
    %v493 = vrot.slane %v491, 7
    %v494 = vshll.u32 %v161, 16
    %v496 = vor.u32 %v493, %v494
    %v497 = vsel %vm192, %v489, %v496
    %v498 = vrot.slane %v493, 4
    %v500 = vshrl.u32 %v162, 16
    %v502 = vrot.slane %v500, 7
    %v503 = vshll.u32 %v162, 16
    %v505 = vor.u32 %v502, %v503
    %v506 = vrot.slane %v502, 4
    %v508 = vshrl.u32 %v163, 16
    %v510 = vrot.slane %v508, 7
    %v511 = vshll.u32 %v163, 16
    %v513 = vor.u32 %v510, %v511
    %v514 = vsel %vm192, %v506, %v513
    %v515 = vrot.slane %v510, 4
    %v517 = vshrl.u32 %v164, 16
    %v519 = vrot.slane %v517, 7
    %v520 = vshll.u32 %v164, 16
    %v522 = vor.u32 %v519, %v520
    %v523 = vrot.slane %v519, 4
    %v525 = vshrl.u32 %v165, 16
    %v527 = vrot.slane %v525, 7
    %v528 = vshll.u32 %v165, 16
    %v530 = vor.u32 %v527, %v528
    %v531 = vsel %vm192, %v523, %v530
    %v532 = vrot.slane %v527, 4
    %v534 = vshrl.u32 %v166, 16
    %v536 = vrot.slane %v534, 7
    %v537 = vshll.u32 %v166, 16
    %v539 = vor.u32 %v536, %v537
    %v540 = vrot.slane %v536, 4
    %v542 = vshrl.u32 %v167, 16
    %v544 = vrot.slane %v542, 7
    %v545 = vshll.u32 %v167, 16
    %v547 = vor.u32 %v544, %v545
    %v548 = vsel %vm192, %v540, %v547
    %v549 = vrot.slane %v544, 4
    %v551 = vshrl.u32 %v168, 16
    %v553 = vrot.slane %v551, 7
    %v554 = vshll.u32 %v168, 16
    %v556 = vor.u32 %v553, %v554
    %v557 = vrot.slane %v553, 4
    %v559 = vshrl.u32 %v169, 16
    %v561 = vrot.slane %v559, 7
    %v562 = vshll.u32 %v169, 16
    %v564 = vor.u32 %v561, %v562
    %v565 = vsel %vm192, %v557, %v564
    %v566 = vrot.slane %v561, 4
    %v568 = vshrl.u32 %v170, 16
    %v570 = vrot.slane %v568, 7
    %v571 = vshll.u32 %v170, 16
    %v573 = vor.u32 %v570, %v571
    %v574 = vrot.slane %v570, 4
    %v576 = vshrl.u32 %v171, 16
    %v578 = vrot.slane %v576, 7
    %v579 = vshll.u32 %v171, 16
    %v581 = vor.u32 %v578, %v579
    %v582 = vsel %vm192, %v574, %v581
    %v583 = vrot.slane %v578, 4
    %v585 = vshrl.u32 %v172, 16
    %v587 = vrot.slane %v585, 7
    %v588 = vshll.u32 %v172, 16
    %v590 = vor.u32 %v587, %v588
    %v591 = vrot.slane %v587, 4
    %v593 = vshrl.u32 %v173, 16
    %v595 = vrot.slane %v593, 7
    %v596 = vshll.u32 %v173, 16
    %v598 = vor.u32 %v595, %v596
    %v599 = vsel %vm192, %v591, %v598
    %v600 = vrot.slane %v595, 4
    %v602 = vshrl.u32 %v174, 16
    %v604 = vrot.slane %v602, 7
    %v605 = vshll.u32 %v174, 16
    %v607 = vor.u32 %v604, %v605
    %v608 = vrot.slane %v604, 4
    %v610 = vshrl.u32 %v175, 16
    %v612 = vrot.slane %v610, 7
    %v613 = vshll.u32 %v175, 16
    %v615 = vor.u32 %v612, %v613
    %v616 = vsel %vm192, %v608, %v615
    %v617 = vrot.slane %v612, 4
    %v619 = vshrl.u32 %v176, 16
    %v621 = vrot.slane %v619, 7
    %v622 = vshll.u32 %v176, 16
    %v624 = vor.u32 %v621, %v622
    %v625 = vrot.slane %v621, 4
    %v627 = vshrl.u32 %v177, 16
    %v629 = vrot.slane %v627, 7
    %v630 = vshll.u32 %v177, 16
    %v632 = vor.u32 %v629, %v630
    %v633 = vsel %vm192, %v625, %v632
    %v634 = vrot.slane %v629, 4
    %v636 = vshrl.u32 %v178, 16
    %v638 = vrot.slane %v636, 7
    %v639 = vshll.u32 %v178, 16
    %v641 = vor.u32 %v638, %v639
    %v642 = vrot.slane %v638, 4
    %v644 = vshrl.u32 %v179, 16
    %v646 = vrot.slane %v644, 7
    %v647 = vshll.u32 %v179, 16
    %v649 = vor.u32 %v646, %v647
    %v650 = vsel %vm192, %v642, %v649
    %v651 = vrot.slane %v646, 4
    %v653 = vshrl.u32 %v180, 16
    %v655 = vrot.slane %v653, 7
    %v656 = vshll.u32 %v180, 16
    %v658 = vor.u32 %v655, %v656
    %v659 = vrot.slane %v655, 4
    %v661 = vshrl.u32 %v181, 16
    %v663 = vrot.slane %v661, 7
    %v664 = vshll.u32 %v181, 16
    %v666 = vor.u32 %v663, %v664
    %v667 = vsel %vm192, %v659, %v666
    %v668 = vrot.slane %v663, 4
    %v670 = vshrl.u32 %v182, 16
    %v672 = vrot.slane %v670, 7
    %v673 = vshll.u32 %v182, 16
    %v675 = vor.u32 %v672, %v673
    %v676 = vrot.slane %v672, 4
    %v678 = vshrl.u32 %v183, 16
    %v680 = vrot.slane %v678, 7
    %v681 = vshll.u32 %v183, 16
    %v683 = vor.u32 %v680, %v681
    %v684 = vsel %vm192, %v676, %v683
    %v685 = vrot.slane %v680, 4
    %v687 = vshrl.u32 %v184, 16
    %v689 = vrot.slane %v687, 7
    %v690 = vshll.u32 %v184, 16
    %v692 = vor.u32 %v689, %v690
    %v693 = vrot.slane %v689, 4
    %v695 = vshrl.u32 %v185, 16
    %v697 = vrot.slane %v695, 7
    %v698 = vshll.u32 %v185, 16
    %v700 = vor.u32 %v697, %v698
    %v701 = vsel %vm192, %v693, %v700
    %v702 = vrot.slane %v697, 4
    %v704 = vshrl.u32 %v186, 16
    %v706 = vrot.slane %v704, 7
    %v707 = vshll.u32 %v186, 16
    %v709 = vor.u32 %v706, %v707
    %v710 = vrot.slane %v706, 4
    %v712 = vshrl.u32 %v187, 16
    %v714 = vrot.slane %v712, 7
    %v715 = vshll.u32 %v187, 16
    %v717 = vor.u32 %v714, %v715
    %v718 = vsel %vm192, %v710, %v717
    %v719 = vrot.slane %v714, 4
    %v721 = vshrl.u32 %v188, 16
    %v723 = vrot.slane %v721, 7
    %v724 = vshll.u32 %v188, 16
    %v726 = vor.u32 %v723, %v724
    %v727 = vrot.slane %v723, 4
    %v729 = vshrl.u32 %v189, 16
    %v731 = vrot.slane %v729, 7
    %v732 = vshll.u32 %v189, 16
    %v734 = vor.u32 %v731, %v732
    %v735 = vsel %vm192, %v727, %v734
    %v736 = vrot.slane %v731, 4
    %s833 = scalar_lea.vmem [#allocation2], 12
    %vm834 = vcmask 27648
    %vm835 = vsmask.f32 7938
    %vm836 = vmand %vm834, %vm835
    %v837 = vld [vmem:[%s833] sm:$0xf]
    %v838 = vsel %vm836, %v199, %v837
    %839 = vst [vmem:[%s833] sm:$0xf] %v838
    %840 = vst.msk [vmem:[%s833 + $0x4] sm:$0xf] %vm16, %v208
    %vm841 = vcmask 24576
    %vm842 = vmand %vm841, %vm190
    %v843 = vld [vmem:[%s833 + $0x8] sm:$0x1]
    %v844 = vsel %vm842, %v209, %v843
    %845 = vst [vmem:[%s833 + $0x8] sm:$0x1] %v844
    %v846 = vld [vmem:[%s833 + $0xc] sm:$0xf]
    %v847 = vsel %vm836, %v216, %v846
    %848 = vst [vmem:[%s833 + $0xc] sm:$0xf] %v847
    %849 = vst.msk [vmem:[%s833 + $0x10] sm:$0xf] %vm16, %v225
    %v850 = vld [vmem:[%s833 + $0x14] sm:$0x1]
    %v851 = vsel %vm842, %v226, %v850
    %852 = vst [vmem:[%s833 + $0x14] sm:$0x1] %v851
    %v853 = vld [vmem:[%s833 + $0x18] sm:$0xf]
    %v854 = vsel %vm836, %v233, %v853
    %855 = vst [vmem:[%s833 + $0x18] sm:$0xf] %v854
    %856 = vst.msk [vmem:[%s833 + $0x1c] sm:$0xf] %vm16, %v242
    %v857 = vld [vmem:[%s833 + $0x20] sm:$0x1]
    %v858 = vsel %vm842, %v243, %v857
    %859 = vst [vmem:[%s833 + $0x20] sm:$0x1] %v858
    %v860 = vld [vmem:[%s833 + $0x24] sm:$0xf]
    %v861 = vsel %vm836, %v250, %v860
    %862 = vst [vmem:[%s833 + $0x24] sm:$0xf] %v861
    %863 = vst.msk [vmem:[%s833 + $0x28] sm:$0xf] %vm16, %v259
    %v864 = vld [vmem:[%s833 + $0x2c] sm:$0x1]
    %v865 = vsel %vm842, %v260, %v864
    %866 = vst [vmem:[%s833 + $0x2c] sm:$0x1] %v865
    %v867 = vld [vmem:[%s833 + $0x30] sm:$0xf]
    %v868 = vsel %vm836, %v267, %v867
    %869 = vst [vmem:[%s833 + $0x30] sm:$0xf] %v868
    %870 = vst.msk [vmem:[%s833 + $0x34] sm:$0xf] %vm16, %v276
    %v871 = vld [vmem:[%s833 + $0x38] sm:$0x1]
    %v872 = vsel %vm842, %v277, %v871
    %873 = vst [vmem:[%s833 + $0x38] sm:$0x1] %v872
    %v874 = vld [vmem:[%s833 + $0x3c] sm:$0xf]
    %v875 = vsel %vm836, %v284, %v874
    %876 = vst [vmem:[%s833 + $0x3c] sm:$0xf] %v875
    %877 = vst.msk [vmem:[%s833 + $0x40] sm:$0xf] %vm16, %v293
    %v878 = vld [vmem:[%s833 + $0x44] sm:$0x1]
    %v879 = vsel %vm842, %v294, %v878
    %880 = vst [vmem:[%s833 + $0x44] sm:$0x1] %v879
    %v881 = vld [vmem:[%s833 + $0x48] sm:$0xf]
    %v882 = vsel %vm836, %v301, %v881
    %883 = vst [vmem:[%s833 + $0x48] sm:$0xf] %v882
    %884 = vst.msk [vmem:[%s833 + $0x4c] sm:$0xf] %vm16, %v310
    %v885 = vld [vmem:[%s833 + $0x50] sm:$0x1]
    %v886 = vsel %vm842, %v311, %v885
    %887 = vst [vmem:[%s833 + $0x50] sm:$0x1] %v886
    %v888 = vld [vmem:[%s833 + $0x54] sm:$0xf]
    %v889 = vsel %vm836, %v318, %v888
    %890 = vst [vmem:[%s833 + $0x54] sm:$0xf] %v889
    %891 = vst.msk [vmem:[%s833 + $0x58] sm:$0xf] %vm16, %v327
    %v892 = vld [vmem:[%s833 + $0x5c] sm:$0x1]
    %v893 = vsel %vm842, %v328, %v892
    %894 = vst [vmem:[%s833 + $0x5c] sm:$0x1] %v893
    %v895 = vld [vmem:[%s833 + $0x60] sm:$0xf]
    %v896 = vsel %vm836, %v335, %v895
    %897 = vst [vmem:[%s833 + $0x60] sm:$0xf] %v896
    %898 = vst.msk [vmem:[%s833 + $0x64] sm:$0xf] %vm16, %v344
    %v899 = vld [vmem:[%s833 + $0x68] sm:$0x1]
    %v900 = vsel %vm842, %v345, %v899
    %901 = vst [vmem:[%s833 + $0x68] sm:$0x1] %v900
    %v902 = vld [vmem:[%s833 + $0x6c] sm:$0xf]
    %v903 = vsel %vm836, %v352, %v902
    %904 = vst [vmem:[%s833 + $0x6c] sm:$0xf] %v903
    %905 = vst.msk [vmem:[%s833 + $0x70] sm:$0xf] %vm16, %v361
    %v906 = vld [vmem:[%s833 + $0x74] sm:$0x1]
    %v907 = vsel %vm842, %v362, %v906
    %908 = vst [vmem:[%s833 + $0x74] sm:$0x1] %v907
    %v909 = vld [vmem:[%s833 + $0x78] sm:$0xf]
    %v910 = vsel %vm836, %v369, %v909
    %911 = vst [vmem:[%s833 + $0x78] sm:$0xf] %v910
    %912 = vst.msk [vmem:[%s833 + $0x7c] sm:$0xf] %vm16, %v378
    %v913 = vld [vmem:[%s833 + $0x80] sm:$0x1]
    %v914 = vsel %vm842, %v379, %v913
    %915 = vst [vmem:[%s833 + $0x80] sm:$0x1] %v914
    %v916 = vld [vmem:[%s833 + $0x84] sm:$0xf]
    %v917 = vsel %vm836, %v386, %v916
    %918 = vst [vmem:[%s833 + $0x84] sm:$0xf] %v917
    %919 = vst.msk [vmem:[%s833 + $0x88] sm:$0xf] %vm16, %v395
    %v920 = vld [vmem:[%s833 + $0x8c] sm:$0x1]
    %v921 = vsel %vm842, %v396, %v920
    %922 = vst [vmem:[%s833 + $0x8c] sm:$0x1] %v921
    %v923 = vld [vmem:[%s833 + $0x90] sm:$0xf]
    %v924 = vsel %vm836, %v403, %v923
    %925 = vst [vmem:[%s833 + $0x90] sm:$0xf] %v924
    %926 = vst.msk [vmem:[%s833 + $0x94] sm:$0xf] %vm16, %v412
    %v927 = vld [vmem:[%s833 + $0x98] sm:$0x1]
    %v928 = vsel %vm842, %v413, %v927
    %929 = vst [vmem:[%s833 + $0x98] sm:$0x1] %v928
    %v930 = vld [vmem:[%s833 + $0x9c] sm:$0xf]
    %v931 = vsel %vm836, %v420, %v930
    %932 = vst [vmem:[%s833 + $0x9c] sm:$0xf] %v931
    %933 = vst.msk [vmem:[%s833 + $0xa0] sm:$0xf] %vm16, %v429
    %v934 = vld [vmem:[%s833 + $0xa4] sm:$0x1]
    %v935 = vsel %vm842, %v430, %v934
    %936 = vst [vmem:[%s833 + $0xa4] sm:$0x1] %v935
    %v937 = vld [vmem:[%s833 + $0xa8] sm:$0xf]
    %v938 = vsel %vm836, %v437, %v937
    %939 = vst [vmem:[%s833 + $0xa8] sm:$0xf] %v938
    %940 = vst.msk [vmem:[%s833 + $0xac] sm:$0xf] %vm16, %v446
    %v941 = vld [vmem:[%s833 + $0xb0] sm:$0x1]
    %v942 = vsel %vm842, %v447, %v941
    %943 = vst [vmem:[%s833 + $0xb0] sm:$0x1] %v942
    %v944 = vld [vmem:[%s833 + $0xb4] sm:$0xf]
    %v945 = vsel %vm836, %v454, %v944
    %946 = vst [vmem:[%s833 + $0xb4] sm:$0xf] %v945
    %947 = vst.msk [vmem:[%s833 + $0xb8] sm:$0xf] %vm16, %v463
    %v948 = vld [vmem:[%s833 + $0xbc] sm:$0x1]
    %v949 = vsel %vm842, %v464, %v948
    %950 = vst [vmem:[%s833 + $0xbc] sm:$0x1] %v949
    %v951 = vld [vmem:[%s833 + $0xd8] sm:$0xf]
    %v952 = vsel %vm836, %v471, %v951
    %953 = vst [vmem:[%s833 + $0xd8] sm:$0xf] %v952
    %954 = vst.msk [vmem:[%s833 + $0xdc] sm:$0xf] %vm16, %v480
    %v955 = vld [vmem:[%s833 + $0xe0] sm:$0x1]
    %v956 = vsel %vm842, %v481, %v955
    %957 = vst [vmem:[%s833 + $0xe0] sm:$0x1] %v956
    %v958 = vld [vmem:[%s833 + $0xe4] sm:$0xf]
    %v959 = vsel %vm836, %v488, %v958
    %960 = vst [vmem:[%s833 + $0xe4] sm:$0xf] %v959
    %961 = vst.msk [vmem:[%s833 + $0xe8] sm:$0xf] %vm16, %v497
    %v962 = vld [vmem:[%s833 + $0xec] sm:$0x1]
    %v963 = vsel %vm842, %v498, %v962
    %964 = vst [vmem:[%s833 + $0xec] sm:$0x1] %v963
    %v965 = vld [vmem:[%s833 + $0xf0] sm:$0xf]
    %v966 = vsel %vm836, %v505, %v965
    %967 = vst [vmem:[%s833 + $0xf0] sm:$0xf] %v966
    %968 = vst.msk [vmem:[%s833 + $0xf4] sm:$0xf] %vm16, %v514
    %v969 = vld [vmem:[%s833 + $0xf8] sm:$0x1]
    %v970 = vsel %vm842, %v515, %v969
    %971 = vst [vmem:[%s833 + $0xf8] sm:$0x1] %v970
    %v972 = vld [vmem:[%s833 + $0xfc] sm:$0xf]
    %v973 = vsel %vm836, %v522, %v972
    %974 = vst [vmem:[%s833 + $0xfc] sm:$0xf] %v973
    %975 = vst.msk [vmem:[%s833 + $0x100] sm:$0xf] %vm16, %v531
    %v976 = vld [vmem:[%s833 + $0x104] sm:$0x1]
    %v977 = vsel %vm842, %v532, %v976
    %978 = vst [vmem:[%s833 + $0x104] sm:$0x1] %v977
    %v979 = vld [vmem:[%s833 + $0x108] sm:$0xf]
    %v980 = vsel %vm836, %v539, %v979
    %981 = vst [vmem:[%s833 + $0x108] sm:$0xf] %v980
    %982 = vst.msk [vmem:[%s833 + $0x10c] sm:$0xf] %vm16, %v548
    %v983 = vld [vmem:[%s833 + $0x110] sm:$0x1]
    %v984 = vsel %vm842, %v549, %v983
    %985 = vst [vmem:[%s833 + $0x110] sm:$0x1] %v984
    %v986 = vld [vmem:[%s833 + $0x114] sm:$0xf]
    %v987 = vsel %vm836, %v556, %v986
    %988 = vst [vmem:[%s833 + $0x114] sm:$0xf] %v987
    %989 = vst.msk [vmem:[%s833 + $0x118] sm:$0xf] %vm16, %v565
    %v990 = vld [vmem:[%s833 + $0x11c] sm:$0x1]
    %v991 = vsel %vm842, %v566, %v990
    %992 = vst [vmem:[%s833 + $0x11c] sm:$0x1] %v991
    %v993 = vld [vmem:[%s833 + $0x120] sm:$0xf]
    %v994 = vsel %vm836, %v573, %v993
    %995 = vst [vmem:[%s833 + $0x120] sm:$0xf] %v994
    %996 = vst.msk [vmem:[%s833 + $0x124] sm:$0xf] %vm16, %v582
    %v997 = vld [vmem:[%s833 + $0x128] sm:$0x1]
    %v998 = vsel %vm842, %v583, %v997
    %999 = vst [vmem:[%s833 + $0x128] sm:$0x1] %v998
    %v1000 = vld [vmem:[%s833 + $0x12c] sm:$0xf]
    %v1001 = vsel %vm836, %v590, %v1000
    %1002 = vst [vmem:[%s833 + $0x12c] sm:$0xf] %v1001
    %1003 = vst.msk [vmem:[%s833 + $0x130] sm:$0xf] %vm16, %v599
    %v1004 = vld [vmem:[%s833 + $0x134] sm:$0x1]
    %v1005 = vsel %vm842, %v600, %v1004
    %1006 = vst [vmem:[%s833 + $0x134] sm:$0x1] %v1005
    %v1007 = vld [vmem:[%s833 + $0x138] sm:$0xf]
    %v1008 = vsel %vm836, %v607, %v1007
    %1009 = vst [vmem:[%s833 + $0x138] sm:$0xf] %v1008
    %1010 = vst.msk [vmem:[%s833 + $0x13c] sm:$0xf] %vm16, %v616
    %v1011 = vld [vmem:[%s833 + $0x140] sm:$0x1]
    %v1012 = vsel %vm842, %v617, %v1011
    %1013 = vst [vmem:[%s833 + $0x140] sm:$0x1] %v1012
    %v1014 = vld [vmem:[%s833 + $0x144] sm:$0xf]
    %v1015 = vsel %vm836, %v624, %v1014
    %1016 = vst [vmem:[%s833 + $0x144] sm:$0xf] %v1015
    %1017 = vst.msk [vmem:[%s833 + $0x148] sm:$0xf] %vm16, %v633
    %v1018 = vld [vmem:[%s833 + $0x14c] sm:$0x1]
    %v1019 = vsel %vm842, %v634, %v1018
    %1020 = vst [vmem:[%s833 + $0x14c] sm:$0x1] %v1019
    %v1021 = vld [vmem:[%s833 + $0x150] sm:$0xf]
    %v1022 = vsel %vm836, %v641, %v1021
    %1023 = vst [vmem:[%s833 + $0x150] sm:$0xf] %v1022
    %1024 = vst.msk [vmem:[%s833 + $0x154] sm:$0xf] %vm16, %v650
    %v1025 = vld [vmem:[%s833 + $0x158] sm:$0x1]
    %v1026 = vsel %vm842, %v651, %v1025
    %1027 = vst [vmem:[%s833 + $0x158] sm:$0x1] %v1026
    %v1028 = vld [vmem:[%s833 + $0x15c] sm:$0xf]
    %v1029 = vsel %vm836, %v658, %v1028
    %1030 = vst [vmem:[%s833 + $0x15c] sm:$0xf] %v1029
    %1031 = vst.msk [vmem:[%s833 + $0x160] sm:$0xf] %vm16, %v667
    %v1032 = vld [vmem:[%s833 + $0x164] sm:$0x1]
    %v1033 = vsel %vm842, %v668, %v1032
    %1034 = vst [vmem:[%s833 + $0x164] sm:$0x1] %v1033
    %v1035 = vld [vmem:[%s833 + $0x168] sm:$0xf]
    %v1036 = vsel %vm836, %v675, %v1035
    %1037 = vst [vmem:[%s833 + $0x168] sm:$0xf] %v1036
    %1038 = vst.msk [vmem:[%s833 + $0x16c] sm:$0xf] %vm16, %v684
    %v1039 = vld [vmem:[%s833 + $0x170] sm:$0x1]
    %v1040 = vsel %vm842, %v685, %v1039
    %1041 = vst [vmem:[%s833 + $0x170] sm:$0x1] %v1040
    %v1042 = vld [vmem:[%s833 + $0x174] sm:$0xf]
    %v1043 = vsel %vm836, %v692, %v1042
    %1044 = vst [vmem:[%s833 + $0x174] sm:$0xf] %v1043
    %1045 = vst.msk [vmem:[%s833 + $0x178] sm:$0xf] %vm16, %v701
    %v1046 = vld [vmem:[%s833 + $0x17c] sm:$0x1]
    %v1047 = vsel %vm842, %v702, %v1046
    %1048 = vst [vmem:[%s833 + $0x17c] sm:$0x1] %v1047
    %v1049 = vld [vmem:[%s833 + $0x180] sm:$0xf]
    %v1050 = vsel %vm836, %v709, %v1049
    %1051 = vst [vmem:[%s833 + $0x180] sm:$0xf] %v1050
    %1052 = vst.msk [vmem:[%s833 + $0x184] sm:$0xf] %vm16, %v718
    %v1053 = vld [vmem:[%s833 + $0x188] sm:$0x1]
    %v1054 = vsel %vm842, %v719, %v1053
    %1055 = vst [vmem:[%s833 + $0x188] sm:$0x1] %v1054
    %v1056 = vld [vmem:[%s833 + $0x18c] sm:$0xf]
    %v1057 = vsel %vm836, %v726, %v1056
    %1058 = vst [vmem:[%s833 + $0x18c] sm:$0xf] %v1057
    %1059 = vst.msk [vmem:[%s833 + $0x190] sm:$0xf] %vm16, %v735
    %v1060 = vld [vmem:[%s833 + $0x194] sm:$0x1]
    %v1061 = vsel %vm842, %v736, %v1060
    %1062 = vst [vmem:[%s833 + $0x194] sm:$0x1] %v1061
    %v1063 = vld [vmem:[#allocation2] sm:$0xf]
    %v1064 = vld [vmem:[#allocation2 + $0x4] sm:$0xf]
    %v1065 = vld [vmem:[#allocation2 + $0xc] sm:$0xf]
    %v1066 = vld [vmem:[#allocation2 + $0x10] sm:$0xf]
    %v1067 = vld [vmem:[#allocation2 + $0x18] sm:$0xf]
    %v1068 = vld [vmem:[#allocation2 + $0x1c] sm:$0xf]
    %v1069 = vld [vmem:[#allocation2 + $0x24] sm:$0xf]
    %v1070 = vld [vmem:[#allocation2 + $0x28] sm:$0xf]
    %v1071 = vld [vmem:[#allocation2 + $0x30] sm:$0xf]
    %v1072 = vld [vmem:[#allocation2 + $0x34] sm:$0xf]
    %v1073 = vld [vmem:[#allocation2 + $0x3c] sm:$0xf]
    %v1074 = vld [vmem:[#allocation2 + $0x40] sm:$0xf]
    %v1075 = vld [vmem:[#allocation2 + $0x48] sm:$0xf]
    %v1076 = vld [vmem:[#allocation2 + $0x4c] sm:$0xf]
    %v1077 = vld [vmem:[#allocation2 + $0x54] sm:$0xf]
    %v1078 = vld [vmem:[#allocation2 + $0x58] sm:$0xf]
    %v1079 = vld [vmem:[#allocation2 + $0x60] sm:$0xf]
    %v1080 = vld [vmem:[#allocation2 + $0x64] sm:$0xf]
    %v1081 = vld [vmem:[#allocation2 + $0x6c] sm:$0xf]
    %v1082 = vld [vmem:[#allocation2 + $0x70] sm:$0xf]
    %v1083 = vld [vmem:[#allocation2 + $0x78] sm:$0xf]
    %v1084 = vld [vmem:[#allocation2 + $0x7c] sm:$0xf]
    %v1085 = vld [vmem:[#allocation2 + $0x84] sm:$0xf]
    %v1086 = vld [vmem:[#allocation2 + $0x88] sm:$0xf]
    %v1087 = vld [vmem:[#allocation2 + $0x90] sm:$0xf]
    %v1088 = vld [vmem:[#allocation2 + $0x94] sm:$0xf]
    %v1089 = vld [vmem:[#allocation2 + $0x9c] sm:$0xf]
    %v1090 = vld [vmem:[#allocation2 + $0xa0] sm:$0xf]
    %v1091 = vld [vmem:[#allocation2 + $0xa8] sm:$0xf]
    %v1092 = vld [vmem:[#allocation2 + $0xac] sm:$0xf]
    %v1093 = vld [vmem:[#allocation2 + $0xb4] sm:$0xf]
    %v1094 = vld [vmem:[#allocation2 + $0xb8] sm:$0xf]
    %v1095 = vld [vmem:[#allocation2 + $0xd8] sm:$0xf]
    %v1096 = vld [vmem:[#allocation2 + $0xdc] sm:$0xf]
    %v1097 = vld [vmem:[#allocation2 + $0xe4] sm:$0xf]
    %v1098 = vld [vmem:[#allocation2 + $0xe8] sm:$0xf]
    %v1099 = vld [vmem:[#allocation2 + $0xf0] sm:$0xf]
    %v1100 = vld [vmem:[#allocation2 + $0xf4] sm:$0xf]
    %v1101 = vld [vmem:[#allocation2 + $0xfc] sm:$0xf]
    %v1102 = vld [vmem:[#allocation2 + $0x100] sm:$0xf]
    %v1103 = vld [vmem:[#allocation2 + $0x108] sm:$0xf]
    %v1104 = vld [vmem:[#allocation2 + $0x10c] sm:$0xf]
    %v1105 = vld [vmem:[#allocation2 + $0x114] sm:$0xf]
    %v1106 = vld [vmem:[#allocation2 + $0x118] sm:$0xf]
    %v1107 = vld [vmem:[#allocation2 + $0x120] sm:$0xf]
    %v1108 = vld [vmem:[#allocation2 + $0x124] sm:$0xf]
    %v1109 = vld [vmem:[#allocation2 + $0x12c] sm:$0xf]
    %v1110 = vld [vmem:[#allocation2 + $0x130] sm:$0xf]
    %v1111 = vld [vmem:[#allocation2 + $0x138] sm:$0xf]
    %v1112 = vld [vmem:[#allocation2 + $0x13c] sm:$0xf]
    %v1113 = vld [vmem:[#allocation2 + $0x144] sm:$0xf]
    %v1114 = vld [vmem:[#allocation2 + $0x148] sm:$0xf]
    %v1115 = vld [vmem:[#allocation2 + $0x150] sm:$0xf]
    %v1116 = vld [vmem:[#allocation2 + $0x154] sm:$0xf]
    %v1117 = vld [vmem:[#allocation2 + $0x15c] sm:$0xf]
    %v1118 = vld [vmem:[#allocation2 + $0x160] sm:$0xf]
    %v1119 = vld [vmem:[#allocation2 + $0x168] sm:$0xf]
    %v1120 = vld [vmem:[#allocation2 + $0x16c] sm:$0xf]
    %v1121 = vld [vmem:[#allocation2 + $0x174] sm:$0xf]
    %v1122 = vld [vmem:[#allocation2 + $0x178] sm:$0xf]
    %v1123 = vld [vmem:[#allocation2 + $0x180] sm:$0xf]
    %v1124 = vld [vmem:[#allocation2 + $0x184] sm:$0xf]
    %v1125 = vld [vmem:[#allocation2 + $0x18c] sm:$0xf]
    %v1126 = vld [vmem:[#allocation2 + $0x190] sm:$0xf]
    %v1127 = vld [vmem:[#allocation2 + $0x8] sm:$0x1]
    %v1128 = vld [vmem:[#allocation2 + $0x14] sm:$0x1]
    %v1129 = vld [vmem:[#allocation2 + $0x20] sm:$0x1]
    %v1130 = vld [vmem:[#allocation2 + $0x2c] sm:$0x1]
    %v1131 = vld [vmem:[#allocation2 + $0x38] sm:$0x1]
    %v1132 = vld [vmem:[#allocation2 + $0x44] sm:$0x1]
    %v1133 = vld [vmem:[#allocation2 + $0x50] sm:$0x1]
    %v1134 = vld [vmem:[#allocation2 + $0x5c] sm:$0x1]
    %v1135 = vld [vmem:[#allocation2 + $0x68] sm:$0x1]
    %v1136 = vld [vmem:[#allocation2 + $0x74] sm:$0x1]
    %v1137 = vld [vmem:[#allocation2 + $0x80] sm:$0x1]
    %v1138 = vld [vmem:[#allocation2 + $0x8c] sm:$0x1]
    %v1139 = vld [vmem:[#allocation2 + $0x98] sm:$0x1]
    %v1140 = vld [vmem:[#allocation2 + $0xa4] sm:$0x1]
    %v1141 = vld [vmem:[#allocation2 + $0xb0] sm:$0x1]
    %v1142 = vld [vmem:[#allocation2 + $0xbc] sm:$0x1]
    %v1143 = vld [vmem:[#allocation2 + $0xe0] sm:$0x1]
    %v1144 = vld [vmem:[#allocation2 + $0xec] sm:$0x1]
    %v1145 = vld [vmem:[#allocation2 + $0xf8] sm:$0x1]
    %v1146 = vld [vmem:[#allocation2 + $0x104] sm:$0x1]
    %v1147 = vld [vmem:[#allocation2 + $0x110] sm:$0x1]
    %v1148 = vld [vmem:[#allocation2 + $0x11c] sm:$0x1]
    %v1149 = vld [vmem:[#allocation2 + $0x128] sm:$0x1]
    %v1150 = vld [vmem:[#allocation2 + $0x134] sm:$0x1]
    %v1151 = vld [vmem:[#allocation2 + $0x140] sm:$0x1]
    %v1152 = vld [vmem:[#allocation2 + $0x14c] sm:$0x1]
    %v1153 = vld [vmem:[#allocation2 + $0x158] sm:$0x1]
    %v1154 = vld [vmem:[#allocation2 + $0x164] sm:$0x1]
    %v1155 = vld [vmem:[#allocation2 + $0x170] sm:$0x1]
    %v1156 = vld [vmem:[#allocation2 + $0x17c] sm:$0x1]
    %v1157 = vld [vmem:[#allocation2 + $0x188] sm:$0x1]
    %v1158 = vld [vmem:[#allocation2 + $0x194] sm:$0x1]
    %v1159 = vld [vmem:[#allocation2] sm:$0xe]
    %v1160 = vld [vmem:[#allocation2 + $0xc] sm:$0xe]
    %v1161 = vld [vmem:[#allocation2 + $0x18] sm:$0xe]
    %v1162 = vld [vmem:[#allocation2 + $0x24] sm:$0xe]
    %v1163 = vld [vmem:[#allocation2 + $0x30] sm:$0xe]
    %v1164 = vld [vmem:[#allocation2 + $0x3c] sm:$0xe]
    %v1165 = vld [vmem:[#allocation2 + $0x48] sm:$0xe]
    %v1166 = vld [vmem:[#allocation2 + $0x54] sm:$0xe]
    %v1167 = vld [vmem:[#allocation2 + $0x60] sm:$0xe]
    %v1168 = vld [vmem:[#allocation2 + $0x6c] sm:$0xe]
    %v1169 = vld [vmem:[#allocation2 + $0x78] sm:$0xe]
    %v1170 = vld [vmem:[#allocation2 + $0x84] sm:$0xe]
    %v1171 = vld [vmem:[#allocation2 + $0x90] sm:$0xe]
    %v1172 = vld [vmem:[#allocation2 + $0x9c] sm:$0xe]
    %v1173 = vld [vmem:[#allocation2 + $0xa8] sm:$0xe]
    %v1174 = vld [vmem:[#allocation2 + $0xb4] sm:$0xe]
    %v1175 = vld [vmem:[#allocation2 + $0xd8] sm:$0xe]
    %v1176 = vld [vmem:[#allocation2 + $0xe4] sm:$0xe]
    %v1177 = vld [vmem:[#allocation2 + $0xf0] sm:$0xe]
    %v1178 = vld [vmem:[#allocation2 + $0xfc] sm:$0xe]
    %v1179 = vld [vmem:[#allocation2 + $0x108] sm:$0xe]
    %v1180 = vld [vmem:[#allocation2 + $0x114] sm:$0xe]
    %v1181 = vld [vmem:[#allocation2 + $0x120] sm:$0xe]
    %v1182 = vld [vmem:[#allocation2 + $0x12c] sm:$0xe]
    %v1183 = vld [vmem:[#allocation2 + $0x138] sm:$0xe]
    %v1184 = vld [vmem:[#allocation2 + $0x144] sm:$0xe]
    %v1185 = vld [vmem:[#allocation2 + $0x150] sm:$0xe]
    %v1186 = vld [vmem:[#allocation2 + $0x15c] sm:$0xe]
    %v1187 = vld [vmem:[#allocation2 + $0x168] sm:$0xe]
    %v1188 = vld [vmem:[#allocation2 + $0x174] sm:$0xe]
    %v1189 = vld [vmem:[#allocation2 + $0x180] sm:$0xe]
    %v1190 = vld [vmem:[#allocation2 + $0x18c] sm:$0xe]
    %v1191 = vld [vmem:[%s833] sm:$0xf]
    %v1192 = vld [vmem:[%s833 + $0x4] sm:$0xf]
    %v1193 = vld [vmem:[%s833 + $0xc] sm:$0xf]
    %v1194 = vld [vmem:[%s833 + $0x10] sm:$0xf]
    %v1195 = vld [vmem:[%s833 + $0x18] sm:$0xf]
    %v1196 = vld [vmem:[%s833 + $0x1c] sm:$0xf]
    %v1197 = vld [vmem:[%s833 + $0x24] sm:$0xf]
    %v1198 = vld [vmem:[%s833 + $0x28] sm:$0xf]
    %v1199 = vld [vmem:[%s833 + $0x30] sm:$0xf]
    %v1200 = vld [vmem:[%s833 + $0x34] sm:$0xf]
    %v1201 = vld [vmem:[%s833 + $0x3c] sm:$0xf]
    %v1202 = vld [vmem:[%s833 + $0x40] sm:$0xf]
    %v1203 = vld [vmem:[%s833 + $0x48] sm:$0xf]
    %v1204 = vld [vmem:[%s833 + $0x4c] sm:$0xf]
    %v1205 = vld [vmem:[%s833 + $0x54] sm:$0xf]
    %v1206 = vld [vmem:[%s833 + $0x58] sm:$0xf]
    %v1207 = vld [vmem:[%s833 + $0x60] sm:$0xf]
    %v1208 = vld [vmem:[%s833 + $0x64] sm:$0xf]
    %v1209 = vld [vmem:[%s833 + $0x6c] sm:$0xf]
    %v1210 = vld [vmem:[%s833 + $0x70] sm:$0xf]
    %v1211 = vld [vmem:[%s833 + $0x78] sm:$0xf]
    %v1212 = vld [vmem:[%s833 + $0x7c] sm:$0xf]
    %v1213 = vld [vmem:[%s833 + $0x84] sm:$0xf]
    %v1214 = vld [vmem:[%s833 + $0x88] sm:$0xf]
    %v1215 = vld [vmem:[%s833 + $0x90] sm:$0xf]
    %v1216 = vld [vmem:[%s833 + $0x94] sm:$0xf]
    %v1217 = vld [vmem:[%s833 + $0x9c] sm:$0xf]
    %v1218 = vld [vmem:[%s833 + $0xa0] sm:$0xf]
    %v1219 = vld [vmem:[%s833 + $0xa8] sm:$0xf]
    %v1220 = vld [vmem:[%s833 + $0xac] sm:$0xf]
    %v1221 = vld [vmem:[%s833 + $0xb4] sm:$0xf]
    %v1222 = vld [vmem:[%s833 + $0xb8] sm:$0xf]
    %v1223 = vld [vmem:[%s833 + $0xd8] sm:$0xf]
    %v1224 = vld [vmem:[%s833 + $0xdc] sm:$0xf]
    %v1225 = vld [vmem:[%s833 + $0xe4] sm:$0xf]
    %v1226 = vld [vmem:[%s833 + $0xe8] sm:$0xf]
    %v1227 = vld [vmem:[%s833 + $0xf0] sm:$0xf]
    %v1228 = vld [vmem:[%s833 + $0xf4] sm:$0xf]
    %v1229 = vld [vmem:[%s833 + $0xfc] sm:$0xf]
    %v1230 = vld [vmem:[%s833 + $0x100] sm:$0xf]
    %v1231 = vld [vmem:[%s833 + $0x108] sm:$0xf]
    %v1232 = vld [vmem:[%s833 + $0x10c] sm:$0xf]
    %v1233 = vld [vmem:[%s833 + $0x114] sm:$0xf]
    %v1234 = vld [vmem:[%s833 + $0x118] sm:$0xf]
    %v1235 = vld [vmem:[%s833 + $0x120] sm:$0xf]
    %v1236 = vld [vmem:[%s833 + $0x124] sm:$0xf]
    %v1237 = vld [vmem:[%s833 + $0x12c] sm:$0xf]
    %v1238 = vld [vmem:[%s833 + $0x130] sm:$0xf]
    %v1239 = vld [vmem:[%s833 + $0x138] sm:$0xf]
    %v1240 = vld [vmem:[%s833 + $0x13c] sm:$0xf]
    %v1241 = vld [vmem:[%s833 + $0x144] sm:$0xf]
    %v1242 = vld [vmem:[%s833 + $0x148] sm:$0xf]
    %v1243 = vld [vmem:[%s833 + $0x150] sm:$0xf]
    %v1244 = vld [vmem:[%s833 + $0x154] sm:$0xf]
    %v1245 = vld [vmem:[%s833 + $0x15c] sm:$0xf]
    %v1246 = vld [vmem:[%s833 + $0x160] sm:$0xf]
    %v1247 = vld [vmem:[%s833 + $0x168] sm:$0xf]
    %v1248 = vld [vmem:[%s833 + $0x16c] sm:$0xf]
    %v1249 = vld [vmem:[%s833 + $0x174] sm:$0xf]
    %v1250 = vld [vmem:[%s833 + $0x178] sm:$0xf]
    %v1251 = vld [vmem:[%s833 + $0x180] sm:$0xf]
    %v1252 = vld [vmem:[%s833 + $0x184] sm:$0xf]
    %v1253 = vld [vmem:[%s833 + $0x18c] sm:$0xf]
    %v1254 = vld [vmem:[%s833 + $0x190] sm:$0xf]
    %v1255 = vld [vmem:[%s833 + $0x8] sm:$0x1]
    %v1256 = vld [vmem:[%s833 + $0x14] sm:$0x1]
    %v1257 = vld [vmem:[%s833 + $0x20] sm:$0x1]
    %v1258 = vld [vmem:[%s833 + $0x2c] sm:$0x1]
    %v1259 = vld [vmem:[%s833 + $0x38] sm:$0x1]
    %v1260 = vld [vmem:[%s833 + $0x44] sm:$0x1]
    %v1261 = vld [vmem:[%s833 + $0x50] sm:$0x1]
    %v1262 = vld [vmem:[%s833 + $0x5c] sm:$0x1]
    %v1263 = vld [vmem:[%s833 + $0x68] sm:$0x1]
    %v1264 = vld [vmem:[%s833 + $0x74] sm:$0x1]
    %v1265 = vld [vmem:[%s833 + $0x80] sm:$0x1]
    %v1266 = vld [vmem:[%s833 + $0x8c] sm:$0x1]
    %v1267 = vld [vmem:[%s833 + $0x98] sm:$0x1]
    %v1268 = vld [vmem:[%s833 + $0xa4] sm:$0x1]
    %v1269 = vld [vmem:[%s833 + $0xb0] sm:$0x1]
    %v1270 = vld [vmem:[%s833 + $0xbc] sm:$0x1]
    %v1271 = vld [vmem:[%s833 + $0xe0] sm:$0x1]
    %v1272 = vld [vmem:[%s833 + $0xec] sm:$0x1]
    %v1273 = vld [vmem:[%s833 + $0xf8] sm:$0x1]
    %v1274 = vld [vmem:[%s833 + $0x104] sm:$0x1]
    %v1275 = vld [vmem:[%s833 + $0x110] sm:$0x1]
    %v1276 = vld [vmem:[%s833 + $0x11c] sm:$0x1]
    %v1277 = vld [vmem:[%s833 + $0x128] sm:$0x1]
    %v1278 = vld [vmem:[%s833 + $0x134] sm:$0x1]
    %v1279 = vld [vmem:[%s833 + $0x140] sm:$0x1]
    %v1280 = vld [vmem:[%s833 + $0x14c] sm:$0x1]
    %v1281 = vld [vmem:[%s833 + $0x158] sm:$0x1]
    %v1282 = vld [vmem:[%s833 + $0x164] sm:$0x1]
    %v1283 = vld [vmem:[%s833 + $0x170] sm:$0x1]
    %v1284 = vld [vmem:[%s833 + $0x17c] sm:$0x1]
    %v1285 = vld [vmem:[%s833 + $0x188] sm:$0x1]
    %v1286 = vld [vmem:[%s833 + $0x194] sm:$0x1]
    %v1287 = vld [vmem:[%s833] sm:$0xe]
    %v1288 = vld [vmem:[%s833 + $0xc] sm:$0xe]
    %v1289 = vld [vmem:[%s833 + $0x18] sm:$0xe]
    %v1290 = vld [vmem:[%s833 + $0x24] sm:$0xe]
    %v1291 = vld [vmem:[%s833 + $0x30] sm:$0xe]
    %v1292 = vld [vmem:[%s833 + $0x3c] sm:$0xe]
    %v1293 = vld [vmem:[%s833 + $0x48] sm:$0xe]
    %v1294 = vld [vmem:[%s833 + $0x54] sm:$0xe]
    %v1295 = vld [vmem:[%s833 + $0x60] sm:$0xe]
    %v1296 = vld [vmem:[%s833 + $0x6c] sm:$0xe]
    %v1297 = vld [vmem:[%s833 + $0x78] sm:$0xe]
    %v1298 = vld [vmem:[%s833 + $0x84] sm:$0xe]
    %v1299 = vld [vmem:[%s833 + $0x90] sm:$0xe]
    %v1300 = vld [vmem:[%s833 + $0x9c] sm:$0xe]
    %v1301 = vld [vmem:[%s833 + $0xa8] sm:$0xe]
    %v1302 = vld [vmem:[%s833 + $0xb4] sm:$0xe]
    %v1303 = vld [vmem:[%s833 + $0xd8] sm:$0xe]
    %v1304 = vld [vmem:[%s833 + $0xe4] sm:$0xe]
    %v1305 = vld [vmem:[%s833 + $0xf0] sm:$0xe]
    %v1306 = vld [vmem:[%s833 + $0xfc] sm:$0xe]
    %v1307 = vld [vmem:[%s833 + $0x108] sm:$0xe]
    %v1308 = vld [vmem:[%s833 + $0x114] sm:$0xe]
    %v1309 = vld [vmem:[%s833 + $0x120] sm:$0xe]
    %v1310 = vld [vmem:[%s833 + $0x12c] sm:$0xe]
    %v1311 = vld [vmem:[%s833 + $0x138] sm:$0xe]
    %v1312 = vld [vmem:[%s833 + $0x144] sm:$0xe]
    %v1313 = vld [vmem:[%s833 + $0x150] sm:$0xe]
    %v1314 = vld [vmem:[%s833 + $0x15c] sm:$0xe]
    %v1315 = vld [vmem:[%s833 + $0x168] sm:$0xe]
    %v1316 = vld [vmem:[%s833 + $0x174] sm:$0xe]
    %v1317 = vld [vmem:[%s833 + $0x180] sm:$0xe]
    %v1318 = vld [vmem:[%s833 + $0x18c] sm:$0xe]
    %s1319 = scalar_lea.vmem [#allocation2], 24
    %v1320 = vld [vmem:[%s1319] sm:$0xf]
    %v1321 = vld [vmem:[%s1319 + $0x4] sm:$0xf]
    %v1322 = vld [vmem:[%s1319 + $0xc] sm:$0xf]
    %v1323 = vld [vmem:[%s1319 + $0x10] sm:$0xf]
    %v1324 = vld [vmem:[%s1319 + $0x18] sm:$0xf]
    %v1325 = vld [vmem:[%s1319 + $0x1c] sm:$0xf]
    %v1326 = vld [vmem:[%s1319 + $0x24] sm:$0xf]
    %v1327 = vld [vmem:[%s1319 + $0x28] sm:$0xf]
    %v1328 = vld [vmem:[%s1319 + $0x30] sm:$0xf]
    %v1329 = vld [vmem:[%s1319 + $0x34] sm:$0xf]
    %v1330 = vld [vmem:[%s1319 + $0x3c] sm:$0xf]
    %v1331 = vld [vmem:[%s1319 + $0x40] sm:$0xf]
    %v1332 = vld [vmem:[%s1319 + $0x48] sm:$0xf]
    %v1333 = vld [vmem:[%s1319 + $0x4c] sm:$0xf]
    %v1334 = vld [vmem:[%s1319 + $0x54] sm:$0xf]
    %v1335 = vld [vmem:[%s1319 + $0x58] sm:$0xf]
    %v1336 = vld [vmem:[%s1319 + $0x60] sm:$0xf]
    %v1337 = vld [vmem:[%s1319 + $0x64] sm:$0xf]
    %v1338 = vld [vmem:[%s1319 + $0x6c] sm:$0xf]
    %v1339 = vld [vmem:[%s1319 + $0x70] sm:$0xf]
    %v1340 = vld [vmem:[%s1319 + $0x78] sm:$0xf]
    %v1341 = vld [vmem:[%s1319 + $0x7c] sm:$0xf]
    %v1342 = vld [vmem:[%s1319 + $0x84] sm:$0xf]
    %v1343 = vld [vmem:[%s1319 + $0x88] sm:$0xf]
    %v1344 = vld [vmem:[%s1319 + $0x90] sm:$0xf]
    %v1345 = vld [vmem:[%s1319 + $0x94] sm:$0xf]
    %v1346 = vld [vmem:[%s1319 + $0x9c] sm:$0xf]
    %v1347 = vld [vmem:[%s1319 + $0xa0] sm:$0xf]
    %v1348 = vld [vmem:[%s1319 + $0xa8] sm:$0xf]
    %v1349 = vld [vmem:[%s1319 + $0xac] sm:$0xf]
    %v1350 = vld [vmem:[%s1319 + $0xb4] sm:$0xf]
    %v1351 = vld [vmem:[%s1319 + $0xb8] sm:$0xf]
    %v1352 = vld [vmem:[%s1319 + $0xd8] sm:$0xf]
    %v1353 = vld [vmem:[%s1319 + $0xdc] sm:$0xf]
    %v1354 = vld [vmem:[%s1319 + $0xe4] sm:$0xf]
    %v1355 = vld [vmem:[%s1319 + $0xe8] sm:$0xf]
    %v1356 = vld [vmem:[%s1319 + $0xf0] sm:$0xf]
    %v1357 = vld [vmem:[%s1319 + $0xf4] sm:$0xf]
    %v1358 = vld [vmem:[%s1319 + $0xfc] sm:$0xf]
    %v1359 = vld [vmem:[%s1319 + $0x100] sm:$0xf]
    %v1360 = vld [vmem:[%s1319 + $0x108] sm:$0xf]
    %v1361 = vld [vmem:[%s1319 + $0x10c] sm:$0xf]
    %v1362 = vld [vmem:[%s1319 + $0x114] sm:$0xf]
    %v1363 = vld [vmem:[%s1319 + $0x118] sm:$0xf]
    %v1364 = vld [vmem:[%s1319 + $0x120] sm:$0xf]
    %v1365 = vld [vmem:[%s1319 + $0x124] sm:$0xf]
    %v1366 = vld [vmem:[%s1319 + $0x12c] sm:$0xf]
    %v1367 = vld [vmem:[%s1319 + $0x130] sm:$0xf]
    %v1368 = vld [vmem:[%s1319 + $0x138] sm:$0xf]
    %v1369 = vld [vmem:[%s1319 + $0x13c] sm:$0xf]
    %v1370 = vld [vmem:[%s1319 + $0x144] sm:$0xf]
    %v1371 = vld [vmem:[%s1319 + $0x148] sm:$0xf]
    %v1372 = vld [vmem:[%s1319 + $0x150] sm:$0xf]
    %v1373 = vld [vmem:[%s1319 + $0x154] sm:$0xf]
    %v1374 = vld [vmem:[%s1319 + $0x15c] sm:$0xf]
    %v1375 = vld [vmem:[%s1319 + $0x160] sm:$0xf]
    %v1376 = vld [vmem:[%s1319 + $0x168] sm:$0xf]
    %v1377 = vld [vmem:[%s1319 + $0x16c] sm:$0xf]
    %v1378 = vld [vmem:[%s1319 + $0x174] sm:$0xf]
    %v1379 = vld [vmem:[%s1319 + $0x178] sm:$0xf]
    %v1380 = vld [vmem:[%s1319 + $0x180] sm:$0xf]
    %v1381 = vld [vmem:[%s1319 + $0x184] sm:$0xf]
    %v1382 = vld [vmem:[%s1319 + $0x18c] sm:$0xf]
    %v1383 = vld [vmem:[%s1319 + $0x190] sm:$0xf]
    %v1384 = vld [vmem:[%s1319 + $0x8] sm:$0x1]
    %v1385 = vld [vmem:[%s1319 + $0x14] sm:$0x1]
    %v1386 = vld [vmem:[%s1319 + $0x20] sm:$0x1]
    %v1387 = vld [vmem:[%s1319 + $0x2c] sm:$0x1]
    %v1388 = vld [vmem:[%s1319 + $0x38] sm:$0x1]
    %v1389 = vld [vmem:[%s1319 + $0x44] sm:$0x1]
    %v1390 = vld [vmem:[%s1319 + $0x50] sm:$0x1]
    %v1391 = vld [vmem:[%s1319 + $0x5c] sm:$0x1]
    %v1392 = vld [vmem:[%s1319 + $0x68] sm:$0x1]
    %v1393 = vld [vmem:[%s1319 + $0x74] sm:$0x1]
    %v1394 = vld [vmem:[%s1319 + $0x80] sm:$0x1]
    %v1395 = vld [vmem:[%s1319 + $0x8c] sm:$0x1]
    %v1396 = vld [vmem:[%s1319 + $0x98] sm:$0x1]
    %v1397 = vld [vmem:[%s1319 + $0xa4] sm:$0x1]
    %v1398 = vld [vmem:[%s1319 + $0xb0] sm:$0x1]
    %v1399 = vld [vmem:[%s1319 + $0xbc] sm:$0x1]
    %v1400 = vld [vmem:[%s1319 + $0xe0] sm:$0x1]
    %v1401 = vld [vmem:[%s1319 + $0xec] sm:$0x1]
    %v1402 = vld [vmem:[%s1319 + $0xf8] sm:$0x1]
    %v1403 = vld [vmem:[%s1319 + $0x104] sm:$0x1]
    %v1404 = vld [vmem:[%s1319 + $0x110] sm:$0x1]
    %v1405 = vld [vmem:[%s1319 + $0x11c] sm:$0x1]
    %v1406 = vld [vmem:[%s1319 + $0x128] sm:$0x1]
    %v1407 = vld [vmem:[%s1319 + $0x134] sm:$0x1]
    %v1408 = vld [vmem:[%s1319 + $0x140] sm:$0x1]
    %v1409 = vld [vmem:[%s1319 + $0x14c] sm:$0x1]
    %v1410 = vld [vmem:[%s1319 + $0x158] sm:$0x1]
    %v1411 = vld [vmem:[%s1319 + $0x164] sm:$0x1]
    %v1412 = vld [vmem:[%s1319 + $0x170] sm:$0x1]
    %v1413 = vld [vmem:[%s1319 + $0x17c] sm:$0x1]
    %v1414 = vld [vmem:[%s1319 + $0x188] sm:$0x1]
    %v1415 = vld [vmem:[%s1319 + $0x194] sm:$0x1]
    %v1416 = vld [vmem:[%s1319] sm:$0xe]
    %v1417 = vld [vmem:[%s1319 + $0xc] sm:$0xe]
    %v1418 = vld [vmem:[%s1319 + $0x18] sm:$0xe]
    %v1419 = vld [vmem:[%s1319 + $0x24] sm:$0xe]
    %v1420 = vld [vmem:[%s1319 + $0x30] sm:$0xe]
    %v1421 = vld [vmem:[%s1319 + $0x3c] sm:$0xe]
    %v1422 = vld [vmem:[%s1319 + $0x48] sm:$0xe]
    %v1423 = vld [vmem:[%s1319 + $0x54] sm:$0xe]
    %v1424 = vld [vmem:[%s1319 + $0x60] sm:$0xe]
    %v1425 = vld [vmem:[%s1319 + $0x6c] sm:$0xe]
    %v1426 = vld [vmem:[%s1319 + $0x78] sm:$0xe]
    %v1427 = vld [vmem:[%s1319 + $0x84] sm:$0xe]
    %v1428 = vld [vmem:[%s1319 + $0x90] sm:$0xe]
    %v1429 = vld [vmem:[%s1319 + $0x9c] sm:$0xe]
    %v1430 = vld [vmem:[%s1319 + $0xa8] sm:$0xe]
    %v1431 = vld [vmem:[%s1319 + $0xb4] sm:$0xe]
    %v1432 = vld [vmem:[%s1319 + $0xd8] sm:$0xe]
    %v1433 = vld [vmem:[%s1319 + $0xe4] sm:$0xe]
    %v1434 = vld [vmem:[%s1319 + $0xf0] sm:$0xe]
    %v1435 = vld [vmem:[%s1319 + $0xfc] sm:$0xe]
    %v1436 = vld [vmem:[%s1319 + $0x108] sm:$0xe]
    %v1437 = vld [vmem:[%s1319 + $0x114] sm:$0xe]
    %v1438 = vld [vmem:[%s1319 + $0x120] sm:$0xe]
    %v1439 = vld [vmem:[%s1319 + $0x12c] sm:$0xe]
    %v1440 = vld [vmem:[%s1319 + $0x138] sm:$0xe]
    %v1441 = vld [vmem:[%s1319 + $0x144] sm:$0xe]
    %v1442 = vld [vmem:[%s1319 + $0x150] sm:$0xe]
    %v1443 = vld [vmem:[%s1319 + $0x15c] sm:$0xe]
    %v1444 = vld [vmem:[%s1319 + $0x168] sm:$0xe]
    %v1445 = vld [vmem:[%s1319 + $0x174] sm:$0xe]
    %v1446 = vld [vmem:[%s1319 + $0x180] sm:$0xe]
    %v1447 = vld [vmem:[%s1319 + $0x18c] sm:$0xe]
    %v1512 = vunpack.c.l.b16 %v1063
    %v1513 = vunpack.c.l.b16 %v1064
    %v1514 = vunpack.c.l.b16 %v1065
    %v1515 = vunpack.c.l.b16 %v1066
    %v1516 = vunpack.c.l.b16 %v1067
    %v1517 = vunpack.c.l.b16 %v1068
    %v1518 = vunpack.c.l.b16 %v1069
    %v1519 = vunpack.c.l.b16 %v1070
    %v1520 = vunpack.c.l.b16 %v1071
    %v1521 = vunpack.c.l.b16 %v1072
    %v1522 = vunpack.c.l.b16 %v1073
    %v1523 = vunpack.c.l.b16 %v1074
    %v1524 = vunpack.c.l.b16 %v1075
    %v1525 = vunpack.c.l.b16 %v1076
    %v1526 = vunpack.c.l.b16 %v1077
    %v1527 = vunpack.c.l.b16 %v1078
    %v1528 = vunpack.c.l.b16 %v1079
    %v1529 = vunpack.c.l.b16 %v1080
    %v1530 = vunpack.c.l.b16 %v1081
    %v1531 = vunpack.c.l.b16 %v1082
    %v1532 = vunpack.c.l.b16 %v1083
    %v1533 = vunpack.c.l.b16 %v1084
    %v1534 = vunpack.c.l.b16 %v1085
    %v1535 = vunpack.c.l.b16 %v1086
    %v1536 = vunpack.c.l.b16 %v1087
    %v1537 = vunpack.c.l.b16 %v1088
    %v1538 = vunpack.c.l.b16 %v1089
    %v1539 = vunpack.c.l.b16 %v1090
    %v1540 = vunpack.c.l.b16 %v1091
    %v1541 = vunpack.c.l.b16 %v1092
    %v1542 = vunpack.c.l.b16 %v1093
    %v1543 = vunpack.c.l.b16 %v1094
    %v1544 = vunpack.c.l.b16 %v1095
    %v1545 = vunpack.c.l.b16 %v1096
    %v1546 = vunpack.c.l.b16 %v1097
    %v1547 = vunpack.c.l.b16 %v1098
    %v1548 = vunpack.c.l.b16 %v1099
    %v1549 = vunpack.c.l.b16 %v1100
    %v1550 = vunpack.c.l.b16 %v1101
    %v1551 = vunpack.c.l.b16 %v1102
    %v1552 = vunpack.c.l.b16 %v1103
    %v1553 = vunpack.c.l.b16 %v1104
    %v1554 = vunpack.c.l.b16 %v1105
    %v1555 = vunpack.c.l.b16 %v1106
    %v1556 = vunpack.c.l.b16 %v1107
    %v1557 = vunpack.c.l.b16 %v1108
    %v1558 = vunpack.c.l.b16 %v1109
    %v1559 = vunpack.c.l.b16 %v1110
    %v1560 = vunpack.c.l.b16 %v1111
    %v1561 = vunpack.c.l.b16 %v1112
    %v1562 = vunpack.c.l.b16 %v1113
    %v1563 = vunpack.c.l.b16 %v1114
    %v1564 = vunpack.c.l.b16 %v1115
    %v1565 = vunpack.c.l.b16 %v1116
    %v1566 = vunpack.c.l.b16 %v1117
    %v1567 = vunpack.c.l.b16 %v1118
    %v1568 = vunpack.c.l.b16 %v1119
    %v1569 = vunpack.c.l.b16 %v1120
    %v1570 = vunpack.c.l.b16 %v1121
    %v1571 = vunpack.c.l.b16 %v1122
    %v1572 = vunpack.c.l.b16 %v1123
    %v1573 = vunpack.c.l.b16 %v1124
    %v1574 = vunpack.c.l.b16 %v1125
    %v1575 = vunpack.c.l.b16 %v1126
    %v1576 = vpack.c.b16 %v1513, %v1512
    %v1577 = vpack.c.b16 %v1515, %v1514
    %v1578 = vpack.c.b16 %v1517, %v1516
    %v1579 = vpack.c.b16 %v1519, %v1518
    %v1580 = vpack.c.b16 %v1521, %v1520
    %v1581 = vpack.c.b16 %v1523, %v1522
    %v1582 = vpack.c.b16 %v1525, %v1524
    %v1583 = vpack.c.b16 %v1527, %v1526
    %v1584 = vpack.c.b16 %v1529, %v1528
    %v1585 = vpack.c.b16 %v1531, %v1530
    %v1586 = vpack.c.b16 %v1533, %v1532
    %v1587 = vpack.c.b16 %v1535, %v1534
    %v1588 = vpack.c.b16 %v1537, %v1536
    %v1589 = vpack.c.b16 %v1539, %v1538
    %v1590 = vpack.c.b16 %v1541, %v1540
    %v1591 = vpack.c.b16 %v1543, %v1542
    %v1592 = vpack.c.b16 %v1545, %v1544
    %v1593 = vpack.c.b16 %v1547, %v1546
    %v1594 = vpack.c.b16 %v1549, %v1548
    %v1595 = vpack.c.b16 %v1551, %v1550
    %v1596 = vpack.c.b16 %v1553, %v1552
    %v1597 = vpack.c.b16 %v1555, %v1554
    %v1598 = vpack.c.b16 %v1557, %v1556
    %v1599 = vpack.c.b16 %v1559, %v1558
    %v1600 = vpack.c.b16 %v1561, %v1560
    %v1601 = vpack.c.b16 %v1563, %v1562
    %v1602 = vpack.c.b16 %v1565, %v1564
    %v1603 = vpack.c.b16 %v1567, %v1566
    %v1604 = vpack.c.b16 %v1569, %v1568
    %v1605 = vpack.c.b16 %v1571, %v1570
    %v1606 = vpack.c.b16 %v1573, %v1572
    %v1607 = vpack.c.b16 %v1575, %v1574
    %v1640 = vunpack.c.l.b16 %v1127
    %v1641 = vunpack.c.l.b16 %v1128
    %v1642 = vunpack.c.l.b16 %v1129
    %v1643 = vunpack.c.l.b16 %v1130
    %v1644 = vunpack.c.l.b16 %v1131
    %v1645 = vunpack.c.l.b16 %v1132
    %v1646 = vunpack.c.l.b16 %v1133
    %v1647 = vunpack.c.l.b16 %v1134
    %v1648 = vunpack.c.l.b16 %v1135
    %v1649 = vunpack.c.l.b16 %v1136
    %v1650 = vunpack.c.l.b16 %v1137
    %v1651 = vunpack.c.l.b16 %v1138
    %v1652 = vunpack.c.l.b16 %v1139
    %v1653 = vunpack.c.l.b16 %v1140
    %v1654 = vunpack.c.l.b16 %v1141
    %v1655 = vunpack.c.l.b16 %v1142
    %v1656 = vunpack.c.l.b16 %v1143
    %v1657 = vunpack.c.l.b16 %v1144
    %v1658 = vunpack.c.l.b16 %v1145
    %v1659 = vunpack.c.l.b16 %v1146
    %v1660 = vunpack.c.l.b16 %v1147
    %v1661 = vunpack.c.l.b16 %v1148
    %v1662 = vunpack.c.l.b16 %v1149
    %v1663 = vunpack.c.l.b16 %v1150
    %v1664 = vunpack.c.l.b16 %v1151
    %v1665 = vunpack.c.l.b16 %v1152
    %v1666 = vunpack.c.l.b16 %v1153
    %v1667 = vunpack.c.l.b16 %v1154
    %v1668 = vunpack.c.l.b16 %v1155
    %v1669 = vunpack.c.l.b16 %v1156
    %v1670 = vunpack.c.l.b16 %v1157
    %v1671 = vunpack.c.l.b16 %v1158
    %v1672 = vpack.c.b16 %v1640, %v1640
    %v1673 = vpack.c.b16 %v1641, %v1641
    %v1674 = vpack.c.b16 %v1642, %v1642
    %v1675 = vpack.c.b16 %v1643, %v1643
    %v1676 = vpack.c.b16 %v1644, %v1644
    %v1677 = vpack.c.b16 %v1645, %v1645
    %v1678 = vpack.c.b16 %v1646, %v1646
    %v1679 = vpack.c.b16 %v1647, %v1647
    %v1680 = vpack.c.b16 %v1648, %v1648
    %v1681 = vpack.c.b16 %v1649, %v1649
    %v1682 = vpack.c.b16 %v1650, %v1650
    %v1683 = vpack.c.b16 %v1651, %v1651
    %v1684 = vpack.c.b16 %v1652, %v1652
    %v1685 = vpack.c.b16 %v1653, %v1653
    %v1686 = vpack.c.b16 %v1654, %v1654
    %v1687 = vpack.c.b16 %v1655, %v1655
    %v1688 = vpack.c.b16 %v1656, %v1656
    %v1689 = vpack.c.b16 %v1657, %v1657
    %v1690 = vpack.c.b16 %v1658, %v1658
    %v1691 = vpack.c.b16 %v1659, %v1659
    %v1692 = vpack.c.b16 %v1660, %v1660
    %v1693 = vpack.c.b16 %v1661, %v1661
    %v1694 = vpack.c.b16 %v1662, %v1662
    %v1695 = vpack.c.b16 %v1663, %v1663
    %v1696 = vpack.c.b16 %v1664, %v1664
    %v1697 = vpack.c.b16 %v1665, %v1665
    %v1698 = vpack.c.b16 %v1666, %v1666
    %v1699 = vpack.c.b16 %v1667, %v1667
    %v1700 = vpack.c.b16 %v1668, %v1668
    %v1701 = vpack.c.b16 %v1669, %v1669
    %v1702 = vpack.c.b16 %v1670, %v1670
    %v1703 = vpack.c.b16 %v1671, %v1671
    %vm1704 = vsmask.f32 7424
    %v1706 = vshrl.u32 %v1576, 16
    %v1708 = vshll.u32 %v1576, 16
    %v1710 = vrot.slane %v1708, 1
    %v1711 = vor.u32 %v1706, %v1710
    %v1713 = vshll.u32 %v1672, 16
    %v1715 = vrot.slane %v1713, 1
    %v1716 = vsel %vm1704, %v1711, %v1715
    %v1718 = vshrl.u32 %v1577, 16
    %v1720 = vshll.u32 %v1577, 16
    %v1722 = vrot.slane %v1720, 1
    %v1723 = vor.u32 %v1718, %v1722
    %v1725 = vshll.u32 %v1673, 16
    %v1727 = vrot.slane %v1725, 1
    %v1728 = vsel %vm1704, %v1723, %v1727
    %v1730 = vshrl.u32 %v1578, 16
    %v1732 = vshll.u32 %v1578, 16
    %v1734 = vrot.slane %v1732, 1
    %v1735 = vor.u32 %v1730, %v1734
    %v1737 = vshll.u32 %v1674, 16
    %v1739 = vrot.slane %v1737, 1
    %v1740 = vsel %vm1704, %v1735, %v1739
    %v1742 = vshrl.u32 %v1579, 16
    %v1744 = vshll.u32 %v1579, 16
    %v1746 = vrot.slane %v1744, 1
    %v1747 = vor.u32 %v1742, %v1746
    %v1749 = vshll.u32 %v1675, 16
    %v1751 = vrot.slane %v1749, 1
    %v1752 = vsel %vm1704, %v1747, %v1751
    %v1754 = vshrl.u32 %v1580, 16
    %v1756 = vshll.u32 %v1580, 16
    %v1758 = vrot.slane %v1756, 1
    %v1759 = vor.u32 %v1754, %v1758
    %v1761 = vshll.u32 %v1676, 16
    %v1763 = vrot.slane %v1761, 1
    %v1764 = vsel %vm1704, %v1759, %v1763
    %v1766 = vshrl.u32 %v1581, 16
    %v1768 = vshll.u32 %v1581, 16
    %v1770 = vrot.slane %v1768, 1
    %v1771 = vor.u32 %v1766, %v1770
    %v1773 = vshll.u32 %v1677, 16
    %v1775 = vrot.slane %v1773, 1
    %v1776 = vsel %vm1704, %v1771, %v1775
    %v1778 = vshrl.u32 %v1582, 16
    %v1780 = vshll.u32 %v1582, 16
    %v1782 = vrot.slane %v1780, 1
    %v1783 = vor.u32 %v1778, %v1782
    %v1785 = vshll.u32 %v1678, 16
    %v1787 = vrot.slane %v1785, 1
    %v1788 = vsel %vm1704, %v1783, %v1787
    %v1790 = vshrl.u32 %v1583, 16
    %v1792 = vshll.u32 %v1583, 16
    %v1794 = vrot.slane %v1792, 1
    %v1795 = vor.u32 %v1790, %v1794
    %v1797 = vshll.u32 %v1679, 16
    %v1799 = vrot.slane %v1797, 1
    %v1800 = vsel %vm1704, %v1795, %v1799
    %v1802 = vshrl.u32 %v1584, 16
    %v1804 = vshll.u32 %v1584, 16
    %v1806 = vrot.slane %v1804, 1
    %v1807 = vor.u32 %v1802, %v1806
    %v1809 = vshll.u32 %v1680, 16
    %v1811 = vrot.slane %v1809, 1
    %v1812 = vsel %vm1704, %v1807, %v1811
    %v1814 = vshrl.u32 %v1585, 16
    %v1816 = vshll.u32 %v1585, 16
    %v1818 = vrot.slane %v1816, 1
    %v1819 = vor.u32 %v1814, %v1818
    %v1821 = vshll.u32 %v1681, 16
    %v1823 = vrot.slane %v1821, 1
    %v1824 = vsel %vm1704, %v1819, %v1823
    %v1826 = vshrl.u32 %v1586, 16
    %v1828 = vshll.u32 %v1586, 16
    %v1830 = vrot.slane %v1828, 1
    %v1831 = vor.u32 %v1826, %v1830
    %v1833 = vshll.u32 %v1682, 16
    %v1835 = vrot.slane %v1833, 1
    %v1836 = vsel %vm1704, %v1831, %v1835
    %v1838 = vshrl.u32 %v1587, 16
    %v1840 = vshll.u32 %v1587, 16
    %v1842 = vrot.slane %v1840, 1
    %v1843 = vor.u32 %v1838, %v1842
    %v1845 = vshll.u32 %v1683, 16
    %v1847 = vrot.slane %v1845, 1
    %v1848 = vsel %vm1704, %v1843, %v1847
    %v1850 = vshrl.u32 %v1588, 16
    %v1852 = vshll.u32 %v1588, 16
    %v1854 = vrot.slane %v1852, 1
    %v1855 = vor.u32 %v1850, %v1854
    %v1857 = vshll.u32 %v1684, 16
    %v1859 = vrot.slane %v1857, 1
    %v1860 = vsel %vm1704, %v1855, %v1859
    %v1862 = vshrl.u32 %v1589, 16
    %v1864 = vshll.u32 %v1589, 16
    %v1866 = vrot.slane %v1864, 1
    %v1867 = vor.u32 %v1862, %v1866
    %v1869 = vshll.u32 %v1685, 16
    %v1871 = vrot.slane %v1869, 1
    %v1872 = vsel %vm1704, %v1867, %v1871
    %v1874 = vshrl.u32 %v1590, 16
    %v1876 = vshll.u32 %v1590, 16
    %v1878 = vrot.slane %v1876, 1
    %v1879 = vor.u32 %v1874, %v1878
    %v1881 = vshll.u32 %v1686, 16
    %v1883 = vrot.slane %v1881, 1
    %v1884 = vsel %vm1704, %v1879, %v1883
    %v1886 = vshrl.u32 %v1591, 16
    %v1888 = vshll.u32 %v1591, 16
    %v1890 = vrot.slane %v1888, 1
    %v1891 = vor.u32 %v1886, %v1890
    %v1893 = vshll.u32 %v1687, 16
    %v1895 = vrot.slane %v1893, 1
    %v1896 = vsel %vm1704, %v1891, %v1895
    %v1898 = vshrl.u32 %v1592, 16
    %v1900 = vshll.u32 %v1592, 16
    %v1902 = vrot.slane %v1900, 1
    %v1903 = vor.u32 %v1898, %v1902
    %v1905 = vshll.u32 %v1688, 16
    %v1907 = vrot.slane %v1905, 1
    %v1908 = vsel %vm1704, %v1903, %v1907
    %v1910 = vshrl.u32 %v1593, 16
    %v1912 = vshll.u32 %v1593, 16
    %v1914 = vrot.slane %v1912, 1
    %v1915 = vor.u32 %v1910, %v1914
    %v1917 = vshll.u32 %v1689, 16
    %v1919 = vrot.slane %v1917, 1
    %v1920 = vsel %vm1704, %v1915, %v1919
    %v1922 = vshrl.u32 %v1594, 16
    %v1924 = vshll.u32 %v1594, 16
    %v1926 = vrot.slane %v1924, 1
    %v1927 = vor.u32 %v1922, %v1926
    %v1929 = vshll.u32 %v1690, 16
    %v1931 = vrot.slane %v1929, 1
    %v1932 = vsel %vm1704, %v1927, %v1931
    %v1934 = vshrl.u32 %v1595, 16
    %v1936 = vshll.u32 %v1595, 16
    %v1938 = vrot.slane %v1936, 1
    %v1939 = vor.u32 %v1934, %v1938
    %v1941 = vshll.u32 %v1691, 16
    %v1943 = vrot.slane %v1941, 1
    %v1944 = vsel %vm1704, %v1939, %v1943
    %v1946 = vshrl.u32 %v1596, 16
    %v1948 = vshll.u32 %v1596, 16
    %v1950 = vrot.slane %v1948, 1
    %v1951 = vor.u32 %v1946, %v1950
    %v1953 = vshll.u32 %v1692, 16
    %v1955 = vrot.slane %v1953, 1
    %v1956 = vsel %vm1704, %v1951, %v1955
    %v1958 = vshrl.u32 %v1597, 16
    %v1960 = vshll.u32 %v1597, 16
    %v1962 = vrot.slane %v1960, 1
    %v1963 = vor.u32 %v1958, %v1962
    %v1965 = vshll.u32 %v1693, 16
    %v1967 = vrot.slane %v1965, 1
    %v1968 = vsel %vm1704, %v1963, %v1967
    %v1970 = vshrl.u32 %v1598, 16
    %v1972 = vshll.u32 %v1598, 16
    %v1974 = vrot.slane %v1972, 1
    %v1975 = vor.u32 %v1970, %v1974
    %v1977 = vshll.u32 %v1694, 16
    %v1979 = vrot.slane %v1977, 1
    %v1980 = vsel %vm1704, %v1975, %v1979
    %v1982 = vshrl.u32 %v1599, 16
    %v1984 = vshll.u32 %v1599, 16
    %v1986 = vrot.slane %v1984, 1
    %v1987 = vor.u32 %v1982, %v1986
    %v1989 = vshll.u32 %v1695, 16
    %v1991 = vrot.slane %v1989, 1
    %v1992 = vsel %vm1704, %v1987, %v1991
    %v1994 = vshrl.u32 %v1600, 16
    %v1996 = vshll.u32 %v1600, 16
    %v1998 = vrot.slane %v1996, 1
    %v1999 = vor.u32 %v1994, %v1998
    %v2001 = vshll.u32 %v1696, 16
    %v2003 = vrot.slane %v2001, 1
    %v2004 = vsel %vm1704, %v1999, %v2003
    %v2006 = vshrl.u32 %v1601, 16
    %v2008 = vshll.u32 %v1601, 16
    %v2010 = vrot.slane %v2008, 1
    %v2011 = vor.u32 %v2006, %v2010
    %v2013 = vshll.u32 %v1697, 16
    %v2015 = vrot.slane %v2013, 1
    %v2016 = vsel %vm1704, %v2011, %v2015
    %v2018 = vshrl.u32 %v1602, 16
    %v2020 = vshll.u32 %v1602, 16
    %v2022 = vrot.slane %v2020, 1
    %v2023 = vor.u32 %v2018, %v2022
    %v2025 = vshll.u32 %v1698, 16
    %v2027 = vrot.slane %v2025, 1
    %v2028 = vsel %vm1704, %v2023, %v2027
    %v2030 = vshrl.u32 %v1603, 16
    %v2032 = vshll.u32 %v1603, 16
    %v2034 = vrot.slane %v2032, 1
    %v2035 = vor.u32 %v2030, %v2034
    %v2037 = vshll.u32 %v1699, 16
    %v2039 = vrot.slane %v2037, 1
    %v2040 = vsel %vm1704, %v2035, %v2039
    %v2042 = vshrl.u32 %v1604, 16
    %v2044 = vshll.u32 %v1604, 16
    %v2046 = vrot.slane %v2044, 1
    %v2047 = vor.u32 %v2042, %v2046
    %v2049 = vshll.u32 %v1700, 16
    %v2051 = vrot.slane %v2049, 1
    %v2052 = vsel %vm1704, %v2047, %v2051
    %v2054 = vshrl.u32 %v1605, 16
    %v2056 = vshll.u32 %v1605, 16
    %v2058 = vrot.slane %v2056, 1
    %v2059 = vor.u32 %v2054, %v2058
    %v2061 = vshll.u32 %v1701, 16
    %v2063 = vrot.slane %v2061, 1
    %v2064 = vsel %vm1704, %v2059, %v2063
    %v2066 = vshrl.u32 %v1606, 16
    %v2068 = vshll.u32 %v1606, 16
    %v2070 = vrot.slane %v2068, 1
    %v2071 = vor.u32 %v2066, %v2070
    %v2073 = vshll.u32 %v1702, 16
    %v2075 = vrot.slane %v2073, 1
    %v2076 = vsel %vm1704, %v2071, %v2075
    %v2078 = vshrl.u32 %v1607, 16
    %v2080 = vshll.u32 %v1607, 16
    %v2082 = vrot.slane %v2080, 1
    %v2083 = vor.u32 %v2078, %v2082
    %v2085 = vshll.u32 %v1703, 16
    %v2087 = vrot.slane %v2085, 1
    %v2088 = vsel %vm1704, %v2083, %v2087
    %2089 = vrot.lane.b32.xlu0 %v1716, 4
    %v2090 = vpop.permute.xlu0 %2089
    %2091 = vrot.lane.b32.xlu0 %v1728, 4
    %v2092 = vpop.permute.xlu0 %2091
    %2093 = vrot.lane.b32.xlu0 %v1740, 4
    %v2094 = vpop.permute.xlu0 %2093
    %2095 = vrot.lane.b32.xlu0 %v1752, 4
    %v2096 = vpop.permute.xlu0 %2095
    %2097 = vrot.lane.b32.xlu0 %v1764, 4
    %v2098 = vpop.permute.xlu0 %2097
    %2099 = vrot.lane.b32.xlu0 %v1776, 4
    %v2100 = vpop.permute.xlu0 %2099
    %2101 = vrot.lane.b32.xlu0 %v1788, 4
    %v2102 = vpop.permute.xlu0 %2101
    %2103 = vrot.lane.b32.xlu0 %v1800, 4
    %v2104 = vpop.permute.xlu0 %2103
    %2105 = vrot.lane.b32.xlu0 %v1812, 4
    %v2106 = vpop.permute.xlu0 %2105
    %2107 = vrot.lane.b32.xlu0 %v1824, 4
    %v2108 = vpop.permute.xlu0 %2107
    %2109 = vrot.lane.b32.xlu0 %v1836, 4
    %v2110 = vpop.permute.xlu0 %2109
    %2111 = vrot.lane.b32.xlu0 %v1848, 4
    %v2112 = vpop.permute.xlu0 %2111
    %2113 = vrot.lane.b32.xlu0 %v1860, 4
    %v2114 = vpop.permute.xlu0 %2113
    %2115 = vrot.lane.b32.xlu0 %v1872, 4
    %v2116 = vpop.permute.xlu0 %2115
    %2117 = vrot.lane.b32.xlu0 %v1884, 4
    %v2118 = vpop.permute.xlu0 %2117
    %2119 = vrot.lane.b32.xlu0 %v1896, 4
    %v2120 = vpop.permute.xlu0 %2119
    %2121 = vrot.lane.b32.xlu0 %v1908, 4
    %v2122 = vpop.permute.xlu0 %2121
    %2123 = vrot.lane.b32.xlu0 %v1920, 4
    %v2124 = vpop.permute.xlu0 %2123
    %2125 = vrot.lane.b32.xlu0 %v1932, 4
    %v2126 = vpop.permute.xlu0 %2125
    %2127 = vrot.lane.b32.xlu0 %v1944, 4
    %v2128 = vpop.permute.xlu0 %2127
    %2129 = vrot.lane.b32.xlu0 %v1956, 4
    %v2130 = vpop.permute.xlu0 %2129
    %2131 = vrot.lane.b32.xlu0 %v1968, 4
    %v2132 = vpop.permute.xlu0 %2131
    %2133 = vrot.lane.b32.xlu0 %v1980, 4
    %v2134 = vpop.permute.xlu0 %2133
    %2135 = vrot.lane.b32.xlu0 %v1992, 4
    %v2136 = vpop.permute.xlu0 %2135
    %2137 = vrot.lane.b32.xlu0 %v2004, 4
    %v2138 = vpop.permute.xlu0 %2137
    %2139 = vrot.lane.b32.xlu0 %v2016, 4
    %v2140 = vpop.permute.xlu0 %2139
    %2141 = vrot.lane.b32.xlu0 %v2028, 4
    %v2142 = vpop.permute.xlu0 %2141
    %2143 = vrot.lane.b32.xlu0 %v2040, 4
    %v2144 = vpop.permute.xlu0 %2143
    %2145 = vrot.lane.b32.xlu0 %v2052, 4
    %v2146 = vpop.permute.xlu0 %2145
    %2147 = vrot.lane.b32.xlu0 %v2064, 4
    %v2148 = vpop.permute.xlu0 %2147
    %2149 = vrot.lane.b32.xlu0 %v2076, 4
    %v2150 = vpop.permute.xlu0 %2149
    %2151 = vrot.lane.b32.xlu0 %v2088, 4
    %v2152 = vpop.permute.xlu0 %2151
    %v2185 = vunpack.c.l.b16 %v1159
    %v2186 = vunpack.c.l.b16 %v1160
    %v2187 = vunpack.c.l.b16 %v1161
    %v2188 = vunpack.c.l.b16 %v1162
    %v2189 = vunpack.c.l.b16 %v1163
    %v2190 = vunpack.c.l.b16 %v1164
    %v2191 = vunpack.c.l.b16 %v1165
    %v2192 = vunpack.c.l.b16 %v1166
    %v2193 = vunpack.c.l.b16 %v1167
    %v2194 = vunpack.c.l.b16 %v1168
    %v2195 = vunpack.c.l.b16 %v1169
    %v2196 = vunpack.c.l.b16 %v1170
    %v2197 = vunpack.c.l.b16 %v1171
    %v2198 = vunpack.c.l.b16 %v1172
    %v2199 = vunpack.c.l.b16 %v1173
    %v2200 = vunpack.c.l.b16 %v1174
    %v2201 = vunpack.c.l.b16 %v1175
    %v2202 = vunpack.c.l.b16 %v1176
    %v2203 = vunpack.c.l.b16 %v1177
    %v2204 = vunpack.c.l.b16 %v1178
    %v2205 = vunpack.c.l.b16 %v1179
    %v2206 = vunpack.c.l.b16 %v1180
    %v2207 = vunpack.c.l.b16 %v1181
    %v2208 = vunpack.c.l.b16 %v1182
    %v2209 = vunpack.c.l.b16 %v1183
    %v2210 = vunpack.c.l.b16 %v1184
    %v2211 = vunpack.c.l.b16 %v1185
    %v2212 = vunpack.c.l.b16 %v1186
    %v2213 = vunpack.c.l.b16 %v1187
    %v2214 = vunpack.c.l.b16 %v1188
    %v2215 = vunpack.c.l.b16 %v1189
    %v2216 = vunpack.c.l.b16 %v1190
    %v2217 = vpack.c.b16 %v1513, %v2185
    %v2218 = vpack.c.b16 %v1515, %v2186
    %v2219 = vpack.c.b16 %v1517, %v2187
    %v2220 = vpack.c.b16 %v1519, %v2188
    %v2221 = vpack.c.b16 %v1521, %v2189
    %v2222 = vpack.c.b16 %v1523, %v2190
    %v2223 = vpack.c.b16 %v1525, %v2191
    %v2224 = vpack.c.b16 %v1527, %v2192
    %v2225 = vpack.c.b16 %v1529, %v2193
    %v2226 = vpack.c.b16 %v1531, %v2194
    %v2227 = vpack.c.b16 %v1533, %v2195
    %v2228 = vpack.c.b16 %v1535, %v2196
    %v2229 = vpack.c.b16 %v1537, %v2197
    %v2230 = vpack.c.b16 %v1539, %v2198
    %v2231 = vpack.c.b16 %v1541, %v2199
    %v2232 = vpack.c.b16 %v1543, %v2200
    %v2233 = vpack.c.b16 %v1545, %v2201
    %v2234 = vpack.c.b16 %v1547, %v2202
    %v2235 = vpack.c.b16 %v1549, %v2203
    %v2236 = vpack.c.b16 %v1551, %v2204
    %v2237 = vpack.c.b16 %v1553, %v2205
    %v2238 = vpack.c.b16 %v1555, %v2206
    %v2239 = vpack.c.b16 %v1557, %v2207
    %v2240 = vpack.c.b16 %v1559, %v2208
    %v2241 = vpack.c.b16 %v1561, %v2209
    %v2242 = vpack.c.b16 %v1563, %v2210
    %v2243 = vpack.c.b16 %v1565, %v2211
    %v2244 = vpack.c.b16 %v1567, %v2212
    %v2245 = vpack.c.b16 %v1569, %v2213
    %v2246 = vpack.c.b16 %v1571, %v2214
    %v2247 = vpack.c.b16 %v1573, %v2215
    %v2248 = vpack.c.b16 %v1575, %v2216
    %vm2249 = vcmask 1046528
    %v2250 = vrot.slane %v2217, 1
    %v2251 = vrot.slane %v1672, 1
    %v2252 = vsel %vm2249, %v2250, %v2251
    %v2253 = vrot.slane %v2218, 1
    %v2254 = vrot.slane %v1673, 1
    %v2255 = vsel %vm2249, %v2253, %v2254
    %v2256 = vrot.slane %v2219, 1
    %v2257 = vrot.slane %v1674, 1
    %v2258 = vsel %vm2249, %v2256, %v2257
    %v2259 = vrot.slane %v2220, 1
    %v2260 = vrot.slane %v1675, 1
    %v2261 = vsel %vm2249, %v2259, %v2260
    %v2262 = vrot.slane %v2221, 1
    %v2263 = vrot.slane %v1676, 1
    %v2264 = vsel %vm2249, %v2262, %v2263
    %v2265 = vrot.slane %v2222, 1
    %v2266 = vrot.slane %v1677, 1
    %v2267 = vsel %vm2249, %v2265, %v2266
    %v2268 = vrot.slane %v2223, 1
    %v2269 = vrot.slane %v1678, 1
    %v2270 = vsel %vm2249, %v2268, %v2269
    %v2271 = vrot.slane %v2224, 1
    %v2272 = vrot.slane %v1679, 1
    %v2273 = vsel %vm2249, %v2271, %v2272
    %v2274 = vrot.slane %v2225, 1
    %v2275 = vrot.slane %v1680, 1
    %v2276 = vsel %vm2249, %v2274, %v2275
    %v2277 = vrot.slane %v2226, 1
    %v2278 = vrot.slane %v1681, 1
    %v2279 = vsel %vm2249, %v2277, %v2278
    %v2280 = vrot.slane %v2227, 1
    %v2281 = vrot.slane %v1682, 1
    %v2282 = vsel %vm2249, %v2280, %v2281
    %v2283 = vrot.slane %v2228, 1
    %v2284 = vrot.slane %v1683, 1
    %v2285 = vsel %vm2249, %v2283, %v2284
    %v2286 = vrot.slane %v2229, 1
    %v2287 = vrot.slane %v1684, 1
    %v2288 = vsel %vm2249, %v2286, %v2287
    %v2289 = vrot.slane %v2230, 1
    %v2290 = vrot.slane %v1685, 1
    %v2291 = vsel %vm2249, %v2289, %v2290
    %v2292 = vrot.slane %v2231, 1
    %v2293 = vrot.slane %v1686, 1
    %v2294 = vsel %vm2249, %v2292, %v2293
    %v2295 = vrot.slane %v2232, 1
    %v2296 = vrot.slane %v1687, 1
    %v2297 = vsel %vm2249, %v2295, %v2296
    %v2298 = vrot.slane %v2233, 1
    %v2299 = vrot.slane %v1688, 1
    %v2300 = vsel %vm2249, %v2298, %v2299
    %v2301 = vrot.slane %v2234, 1
    %v2302 = vrot.slane %v1689, 1
    %v2303 = vsel %vm2249, %v2301, %v2302
    %v2304 = vrot.slane %v2235, 1
    %v2305 = vrot.slane %v1690, 1
    %v2306 = vsel %vm2249, %v2304, %v2305
    %v2307 = vrot.slane %v2236, 1
    %v2308 = vrot.slane %v1691, 1
    %v2309 = vsel %vm2249, %v2307, %v2308
    %v2310 = vrot.slane %v2237, 1
    %v2311 = vrot.slane %v1692, 1
    %v2312 = vsel %vm2249, %v2310, %v2311
    %v2313 = vrot.slane %v2238, 1
    %v2314 = vrot.slane %v1693, 1
    %v2315 = vsel %vm2249, %v2313, %v2314
    %v2316 = vrot.slane %v2239, 1
    %v2317 = vrot.slane %v1694, 1
    %v2318 = vsel %vm2249, %v2316, %v2317
    %v2319 = vrot.slane %v2240, 1
    %v2320 = vrot.slane %v1695, 1
    %v2321 = vsel %vm2249, %v2319, %v2320
    %v2322 = vrot.slane %v2241, 1
    %v2323 = vrot.slane %v1696, 1
    %v2324 = vsel %vm2249, %v2322, %v2323
    %v2325 = vrot.slane %v2242, 1
    %v2326 = vrot.slane %v1697, 1
    %v2327 = vsel %vm2249, %v2325, %v2326
    %v2328 = vrot.slane %v2243, 1
    %v2329 = vrot.slane %v1698, 1
    %v2330 = vsel %vm2249, %v2328, %v2329
    %v2331 = vrot.slane %v2244, 1
    %v2332 = vrot.slane %v1699, 1
    %v2333 = vsel %vm2249, %v2331, %v2332
    %v2334 = vrot.slane %v2245, 1
    %v2335 = vrot.slane %v1700, 1
    %v2336 = vsel %vm2249, %v2334, %v2335
    %v2337 = vrot.slane %v2246, 1
    %v2338 = vrot.slane %v1701, 1
    %v2339 = vsel %vm2249, %v2337, %v2338
    %v2340 = vrot.slane %v2247, 1
    %v2341 = vrot.slane %v1702, 1
    %v2342 = vsel %vm2249, %v2340, %v2341
    %v2343 = vrot.slane %v2248, 1
    %v2344 = vrot.slane %v1703, 1
    %v2345 = vsel %vm2249, %v2343, %v2344
    %2346 = vrot.lane.b32.xlu0 %v2252, 8
    %v2347 = vpop.permute.xlu0 %2346
    %2348 = vrot.lane.b32.xlu0 %v2255, 8
    %v2349 = vpop.permute.xlu0 %2348
    %2350 = vrot.lane.b32.xlu0 %v2258, 8
    %v2351 = vpop.permute.xlu0 %2350
    %2352 = vrot.lane.b32.xlu0 %v2261, 8
    %v2353 = vpop.permute.xlu0 %2352
    %2354 = vrot.lane.b32.xlu0 %v2264, 8
    %v2355 = vpop.permute.xlu0 %2354
    %2356 = vrot.lane.b32.xlu0 %v2267, 8
    %v2357 = vpop.permute.xlu0 %2356
    %2358 = vrot.lane.b32.xlu0 %v2270, 8
    %v2359 = vpop.permute.xlu0 %2358
    %2360 = vrot.lane.b32.xlu0 %v2273, 8
    %v2361 = vpop.permute.xlu0 %2360
    %2362 = vrot.lane.b32.xlu0 %v2276, 8
    %v2363 = vpop.permute.xlu0 %2362
    %2364 = vrot.lane.b32.xlu0 %v2279, 8
    %v2365 = vpop.permute.xlu0 %2364
    %2366 = vrot.lane.b32.xlu0 %v2282, 8
    %v2367 = vpop.permute.xlu0 %2366
    %2368 = vrot.lane.b32.xlu0 %v2285, 8
    %v2369 = vpop.permute.xlu0 %2368
    %2370 = vrot.lane.b32.xlu0 %v2288, 8
    %v2371 = vpop.permute.xlu0 %2370
    %2372 = vrot.lane.b32.xlu0 %v2291, 8
    %v2373 = vpop.permute.xlu0 %2372
    %2374 = vrot.lane.b32.xlu0 %v2294, 8
    %v2375 = vpop.permute.xlu0 %2374
    %2376 = vrot.lane.b32.xlu0 %v2297, 8
    %v2377 = vpop.permute.xlu0 %2376
    %2378 = vrot.lane.b32.xlu0 %v2300, 8
    %v2379 = vpop.permute.xlu0 %2378
    %2380 = vrot.lane.b32.xlu0 %v2303, 8
    %v2381 = vpop.permute.xlu0 %2380
    %2382 = vrot.lane.b32.xlu0 %v2306, 8
    %v2383 = vpop.permute.xlu0 %2382
    %2384 = vrot.lane.b32.xlu0 %v2309, 8
    %v2385 = vpop.permute.xlu0 %2384
    %2386 = vrot.lane.b32.xlu0 %v2312, 8
    %v2387 = vpop.permute.xlu0 %2386
    %2388 = vrot.lane.b32.xlu0 %v2315, 8
    %v2389 = vpop.permute.xlu0 %2388
    %2390 = vrot.lane.b32.xlu0 %v2318, 8
    %v2391 = vpop.permute.xlu0 %2390
    %2392 = vrot.lane.b32.xlu0 %v2321, 8
    %v2393 = vpop.permute.xlu0 %2392
    %2394 = vrot.lane.b32.xlu0 %v2324, 8
    %v2395 = vpop.permute.xlu0 %2394
    %2396 = vrot.lane.b32.xlu0 %v2327, 8
    %v2397 = vpop.permute.xlu0 %2396
    %2398 = vrot.lane.b32.xlu0 %v2330, 8
    %v2399 = vpop.permute.xlu0 %2398
    %2400 = vrot.lane.b32.xlu0 %v2333, 8
    %v2401 = vpop.permute.xlu0 %2400
    %2402 = vrot.lane.b32.xlu0 %v2336, 8
    %v2403 = vpop.permute.xlu0 %2402
    %2404 = vrot.lane.b32.xlu0 %v2339, 8
    %v2405 = vpop.permute.xlu0 %2404
    %2406 = vrot.lane.b32.xlu0 %v2342, 8
    %v2407 = vpop.permute.xlu0 %2406
    %2408 = vrot.lane.b32.xlu0 %v2345, 8
    %v2409 = vpop.permute.xlu0 %2408
    %v2474 = vunpack.c.l.b16 %v1191
    %v2475 = vunpack.c.l.b16 %v1192
    %v2476 = vunpack.c.l.b16 %v1193
    %v2477 = vunpack.c.l.b16 %v1194
    %v2478 = vunpack.c.l.b16 %v1195
    %v2479 = vunpack.c.l.b16 %v1196
    %v2480 = vunpack.c.l.b16 %v1197
    %v2481 = vunpack.c.l.b16 %v1198
    %v2482 = vunpack.c.l.b16 %v1199
    %v2483 = vunpack.c.l.b16 %v1200
    %v2484 = vunpack.c.l.b16 %v1201
    %v2485 = vunpack.c.l.b16 %v1202
    %v2486 = vunpack.c.l.b16 %v1203
    %v2487 = vunpack.c.l.b16 %v1204
    %v2488 = vunpack.c.l.b16 %v1205
    %v2489 = vunpack.c.l.b16 %v1206
    %v2490 = vunpack.c.l.b16 %v1207
    %v2491 = vunpack.c.l.b16 %v1208
    %v2492 = vunpack.c.l.b16 %v1209
    %v2493 = vunpack.c.l.b16 %v1210
    %v2494 = vunpack.c.l.b16 %v1211
    %v2495 = vunpack.c.l.b16 %v1212
    %v2496 = vunpack.c.l.b16 %v1213
    %v2497 = vunpack.c.l.b16 %v1214
    %v2498 = vunpack.c.l.b16 %v1215
    %v2499 = vunpack.c.l.b16 %v1216
    %v2500 = vunpack.c.l.b16 %v1217
    %v2501 = vunpack.c.l.b16 %v1218
    %v2502 = vunpack.c.l.b16 %v1219
    %v2503 = vunpack.c.l.b16 %v1220
    %v2504 = vunpack.c.l.b16 %v1221
    %v2505 = vunpack.c.l.b16 %v1222
    %v2506 = vunpack.c.l.b16 %v1223
    %v2507 = vunpack.c.l.b16 %v1224
    %v2508 = vunpack.c.l.b16 %v1225
    %v2509 = vunpack.c.l.b16 %v1226
    %v2510 = vunpack.c.l.b16 %v1227
    %v2511 = vunpack.c.l.b16 %v1228
    %v2512 = vunpack.c.l.b16 %v1229
    %v2513 = vunpack.c.l.b16 %v1230
    %v2514 = vunpack.c.l.b16 %v1231
    %v2515 = vunpack.c.l.b16 %v1232
    %v2516 = vunpack.c.l.b16 %v1233
    %v2517 = vunpack.c.l.b16 %v1234
    %v2518 = vunpack.c.l.b16 %v1235
    %v2519 = vunpack.c.l.b16 %v1236
    %v2520 = vunpack.c.l.b16 %v1237
    %v2521 = vunpack.c.l.b16 %v1238
    %v2522 = vunpack.c.l.b16 %v1239
    %v2523 = vunpack.c.l.b16 %v1240
    %v2524 = vunpack.c.l.b16 %v1241
    %v2525 = vunpack.c.l.b16 %v1242
    %v2526 = vunpack.c.l.b16 %v1243
    %v2527 = vunpack.c.l.b16 %v1244
    %v2528 = vunpack.c.l.b16 %v1245
    %v2529 = vunpack.c.l.b16 %v1246
    %v2530 = vunpack.c.l.b16 %v1247
    %v2531 = vunpack.c.l.b16 %v1248
    %v2532 = vunpack.c.l.b16 %v1249
    %v2533 = vunpack.c.l.b16 %v1250
    %v2534 = vunpack.c.l.b16 %v1251
    %v2535 = vunpack.c.l.b16 %v1252
    %v2536 = vunpack.c.l.b16 %v1253
    %v2537 = vunpack.c.l.b16 %v1254
    %v2538 = vpack.c.b16 %v2475, %v2474
    %v2539 = vpack.c.b16 %v2477, %v2476
    %v2540 = vpack.c.b16 %v2479, %v2478
    %v2541 = vpack.c.b16 %v2481, %v2480
    %v2542 = vpack.c.b16 %v2483, %v2482
    %v2543 = vpack.c.b16 %v2485, %v2484
    %v2544 = vpack.c.b16 %v2487, %v2486
    %v2545 = vpack.c.b16 %v2489, %v2488
    %v2546 = vpack.c.b16 %v2491, %v2490
    %v2547 = vpack.c.b16 %v2493, %v2492
    %v2548 = vpack.c.b16 %v2495, %v2494
    %v2549 = vpack.c.b16 %v2497, %v2496
    %v2550 = vpack.c.b16 %v2499, %v2498
    %v2551 = vpack.c.b16 %v2501, %v2500
    %v2552 = vpack.c.b16 %v2503, %v2502
    %v2553 = vpack.c.b16 %v2505, %v2504
    %v2554 = vpack.c.b16 %v2507, %v2506
    %v2555 = vpack.c.b16 %v2509, %v2508
    %v2556 = vpack.c.b16 %v2511, %v2510
    %v2557 = vpack.c.b16 %v2513, %v2512
    %v2558 = vpack.c.b16 %v2515, %v2514
    %v2559 = vpack.c.b16 %v2517, %v2516
    %v2560 = vpack.c.b16 %v2519, %v2518
    %v2561 = vpack.c.b16 %v2521, %v2520
    %v2562 = vpack.c.b16 %v2523, %v2522
    %v2563 = vpack.c.b16 %v2525, %v2524
    %v2564 = vpack.c.b16 %v2527, %v2526
    %v2565 = vpack.c.b16 %v2529, %v2528
    %v2566 = vpack.c.b16 %v2531, %v2530
    %v2567 = vpack.c.b16 %v2533, %v2532
    %v2568 = vpack.c.b16 %v2535, %v2534
    %v2569 = vpack.c.b16 %v2537, %v2536
    %2570 = vrot.lane.b32.xlu0 %v2538, 12
    %v2571 = vpop.permute.xlu0 %2570
    %2572 = vrot.lane.b32.xlu0 %v2539, 12
    %v2573 = vpop.permute.xlu0 %2572
    %2574 = vrot.lane.b32.xlu0 %v2540, 12
    %v2575 = vpop.permute.xlu0 %2574
    %2576 = vrot.lane.b32.xlu0 %v2541, 12
    %v2577 = vpop.permute.xlu0 %2576
    %2578 = vrot.lane.b32.xlu0 %v2542, 12
    %v2579 = vpop.permute.xlu0 %2578
    %2580 = vrot.lane.b32.xlu0 %v2543, 12
    %v2581 = vpop.permute.xlu0 %2580
    %2582 = vrot.lane.b32.xlu0 %v2544, 12
    %v2583 = vpop.permute.xlu0 %2582
    %2584 = vrot.lane.b32.xlu0 %v2545, 12
    %v2585 = vpop.permute.xlu0 %2584
    %2586 = vrot.lane.b32.xlu0 %v2546, 12
    %v2587 = vpop.permute.xlu0 %2586
    %2588 = vrot.lane.b32.xlu0 %v2547, 12
    %v2589 = vpop.permute.xlu0 %2588
    %2590 = vrot.lane.b32.xlu0 %v2548, 12
    %v2591 = vpop.permute.xlu0 %2590
    %2592 = vrot.lane.b32.xlu0 %v2549, 12
    %v2593 = vpop.permute.xlu0 %2592
    %2594 = vrot.lane.b32.xlu0 %v2550, 12
    %v2595 = vpop.permute.xlu0 %2594
    %2596 = vrot.lane.b32.xlu0 %v2551, 12
    %v2597 = vpop.permute.xlu0 %2596
    %2598 = vrot.lane.b32.xlu0 %v2552, 12
    %v2599 = vpop.permute.xlu0 %2598
    %2600 = vrot.lane.b32.xlu0 %v2553, 12
    %v2601 = vpop.permute.xlu0 %2600
    %2602 = vrot.lane.b32.xlu0 %v2554, 12
    %v2603 = vpop.permute.xlu0 %2602
    %2604 = vrot.lane.b32.xlu0 %v2555, 12
    %v2605 = vpop.permute.xlu0 %2604
    %2606 = vrot.lane.b32.xlu0 %v2556, 12
    %v2607 = vpop.permute.xlu0 %2606
    %2608 = vrot.lane.b32.xlu0 %v2557, 12
    %v2609 = vpop.permute.xlu0 %2608
    %2610 = vrot.lane.b32.xlu0 %v2558, 12
    %v2611 = vpop.permute.xlu0 %2610
    %2612 = vrot.lane.b32.xlu0 %v2559, 12
    %v2613 = vpop.permute.xlu0 %2612
    %2614 = vrot.lane.b32.xlu0 %v2560, 12
    %v2615 = vpop.permute.xlu0 %2614
    %2616 = vrot.lane.b32.xlu0 %v2561, 12
    %v2617 = vpop.permute.xlu0 %2616
    %2618 = vrot.lane.b32.xlu0 %v2562, 12
    %v2619 = vpop.permute.xlu0 %2618
    %2620 = vrot.lane.b32.xlu0 %v2563, 12
    %v2621 = vpop.permute.xlu0 %2620
    %2622 = vrot.lane.b32.xlu0 %v2564, 12
    %v2623 = vpop.permute.xlu0 %2622
    %2624 = vrot.lane.b32.xlu0 %v2565, 12
    %v2625 = vpop.permute.xlu0 %2624
    %2626 = vrot.lane.b32.xlu0 %v2566, 12
    %v2627 = vpop.permute.xlu0 %2626
    %2628 = vrot.lane.b32.xlu0 %v2567, 12
    %v2629 = vpop.permute.xlu0 %2628
    %2630 = vrot.lane.b32.xlu0 %v2568, 12
    %v2631 = vpop.permute.xlu0 %2630
    %2632 = vrot.lane.b32.xlu0 %v2569, 12
    %v2633 = vpop.permute.xlu0 %2632
    %v2666 = vunpack.c.l.b16 %v1255
    %v2667 = vunpack.c.l.b16 %v1256
    %v2668 = vunpack.c.l.b16 %v1257
    %v2669 = vunpack.c.l.b16 %v1258
    %v2670 = vunpack.c.l.b16 %v1259
    %v2671 = vunpack.c.l.b16 %v1260
    %v2672 = vunpack.c.l.b16 %v1261
    %v2673 = vunpack.c.l.b16 %v1262
    %v2674 = vunpack.c.l.b16 %v1263
    %v2675 = vunpack.c.l.b16 %v1264
    %v2676 = vunpack.c.l.b16 %v1265
    %v2677 = vunpack.c.l.b16 %v1266
    %v2678 = vunpack.c.l.b16 %v1267
    %v2679 = vunpack.c.l.b16 %v1268
    %v2680 = vunpack.c.l.b16 %v1269
    %v2681 = vunpack.c.l.b16 %v1270
    %v2682 = vunpack.c.l.b16 %v1271
    %v2683 = vunpack.c.l.b16 %v1272
    %v2684 = vunpack.c.l.b16 %v1273
    %v2685 = vunpack.c.l.b16 %v1274
    %v2686 = vunpack.c.l.b16 %v1275
    %v2687 = vunpack.c.l.b16 %v1276
    %v2688 = vunpack.c.l.b16 %v1277
    %v2689 = vunpack.c.l.b16 %v1278
    %v2690 = vunpack.c.l.b16 %v1279
    %v2691 = vunpack.c.l.b16 %v1280
    %v2692 = vunpack.c.l.b16 %v1281
    %v2693 = vunpack.c.l.b16 %v1282
    %v2694 = vunpack.c.l.b16 %v1283
    %v2695 = vunpack.c.l.b16 %v1284
    %v2696 = vunpack.c.l.b16 %v1285
    %v2697 = vunpack.c.l.b16 %v1286
    %v2698 = vpack.c.b16 %v2666, %v2666
    %v2699 = vpack.c.b16 %v2667, %v2667
    %v2700 = vpack.c.b16 %v2668, %v2668
    %v2701 = vpack.c.b16 %v2669, %v2669
    %v2702 = vpack.c.b16 %v2670, %v2670
    %v2703 = vpack.c.b16 %v2671, %v2671
    %v2704 = vpack.c.b16 %v2672, %v2672
    %v2705 = vpack.c.b16 %v2673, %v2673
    %v2706 = vpack.c.b16 %v2674, %v2674
    %v2707 = vpack.c.b16 %v2675, %v2675
    %v2708 = vpack.c.b16 %v2676, %v2676
    %v2709 = vpack.c.b16 %v2677, %v2677
    %v2710 = vpack.c.b16 %v2678, %v2678
    %v2711 = vpack.c.b16 %v2679, %v2679
    %v2712 = vpack.c.b16 %v2680, %v2680
    %v2713 = vpack.c.b16 %v2681, %v2681
    %v2714 = vpack.c.b16 %v2682, %v2682
    %v2715 = vpack.c.b16 %v2683, %v2683
    %v2716 = vpack.c.b16 %v2684, %v2684
    %v2717 = vpack.c.b16 %v2685, %v2685
    %v2718 = vpack.c.b16 %v2686, %v2686
    %v2719 = vpack.c.b16 %v2687, %v2687
    %v2720 = vpack.c.b16 %v2688, %v2688
    %v2721 = vpack.c.b16 %v2689, %v2689
    %v2722 = vpack.c.b16 %v2690, %v2690
    %v2723 = vpack.c.b16 %v2691, %v2691
    %v2724 = vpack.c.b16 %v2692, %v2692
    %v2725 = vpack.c.b16 %v2693, %v2693
    %v2726 = vpack.c.b16 %v2694, %v2694
    %v2727 = vpack.c.b16 %v2695, %v2695
    %v2728 = vpack.c.b16 %v2696, %v2696
    %v2729 = vpack.c.b16 %v2697, %v2697
    %v2731 = vshrl.u32 %v2538, 16
    %v2733 = vshll.u32 %v2538, 16
    %v2735 = vrot.slane %v2733, 1
    %v2736 = vor.u32 %v2731, %v2735
    %v2738 = vshll.u32 %v2698, 16
    %v2740 = vrot.slane %v2738, 1
    %v2741 = vsel %vm1704, %v2736, %v2740
    %v2743 = vshrl.u32 %v2539, 16
    %v2745 = vshll.u32 %v2539, 16
    %v2747 = vrot.slane %v2745, 1
    %v2748 = vor.u32 %v2743, %v2747
    %v2750 = vshll.u32 %v2699, 16
    %v2752 = vrot.slane %v2750, 1
    %v2753 = vsel %vm1704, %v2748, %v2752
    %v2755 = vshrl.u32 %v2540, 16
    %v2757 = vshll.u32 %v2540, 16
    %v2759 = vrot.slane %v2757, 1
    %v2760 = vor.u32 %v2755, %v2759
    %v2762 = vshll.u32 %v2700, 16
    %v2764 = vrot.slane %v2762, 1
    %v2765 = vsel %vm1704, %v2760, %v2764
    %v2767 = vshrl.u32 %v2541, 16
    %v2769 = vshll.u32 %v2541, 16
    %v2771 = vrot.slane %v2769, 1
    %v2772 = vor.u32 %v2767, %v2771
    %v2774 = vshll.u32 %v2701, 16
    %v2776 = vrot.slane %v2774, 1
    %v2777 = vsel %vm1704, %v2772, %v2776
    %v2779 = vshrl.u32 %v2542, 16
    %v2781 = vshll.u32 %v2542, 16
    %v2783 = vrot.slane %v2781, 1
    %v2784 = vor.u32 %v2779, %v2783
    %v2786 = vshll.u32 %v2702, 16
    %v2788 = vrot.slane %v2786, 1
    %v2789 = vsel %vm1704, %v2784, %v2788
    %v2791 = vshrl.u32 %v2543, 16
    %v2793 = vshll.u32 %v2543, 16
    %v2795 = vrot.slane %v2793, 1
    %v2796 = vor.u32 %v2791, %v2795
    %v2798 = vshll.u32 %v2703, 16
    %v2800 = vrot.slane %v2798, 1
    %v2801 = vsel %vm1704, %v2796, %v2800
    %v2803 = vshrl.u32 %v2544, 16
    %v2805 = vshll.u32 %v2544, 16
    %v2807 = vrot.slane %v2805, 1
    %v2808 = vor.u32 %v2803, %v2807
    %v2810 = vshll.u32 %v2704, 16
    %v2812 = vrot.slane %v2810, 1
    %v2813 = vsel %vm1704, %v2808, %v2812
    %v2815 = vshrl.u32 %v2545, 16
    %v2817 = vshll.u32 %v2545, 16
    %v2819 = vrot.slane %v2817, 1
    %v2820 = vor.u32 %v2815, %v2819
    %v2822 = vshll.u32 %v2705, 16
    %v2824 = vrot.slane %v2822, 1
    %v2825 = vsel %vm1704, %v2820, %v2824
    %v2827 = vshrl.u32 %v2546, 16
    %v2829 = vshll.u32 %v2546, 16
    %v2831 = vrot.slane %v2829, 1
    %v2832 = vor.u32 %v2827, %v2831
    %v2834 = vshll.u32 %v2706, 16
    %v2836 = vrot.slane %v2834, 1
    %v2837 = vsel %vm1704, %v2832, %v2836
    %v2839 = vshrl.u32 %v2547, 16
    %v2841 = vshll.u32 %v2547, 16
    %v2843 = vrot.slane %v2841, 1
    %v2844 = vor.u32 %v2839, %v2843
    %v2846 = vshll.u32 %v2707, 16
    %v2848 = vrot.slane %v2846, 1
    %v2849 = vsel %vm1704, %v2844, %v2848
    %v2851 = vshrl.u32 %v2548, 16
    %v2853 = vshll.u32 %v2548, 16
    %v2855 = vrot.slane %v2853, 1
    %v2856 = vor.u32 %v2851, %v2855
    %v2858 = vshll.u32 %v2708, 16
    %v2860 = vrot.slane %v2858, 1
    %v2861 = vsel %vm1704, %v2856, %v2860
    %v2863 = vshrl.u32 %v2549, 16
    %v2865 = vshll.u32 %v2549, 16
    %v2867 = vrot.slane %v2865, 1
    %v2868 = vor.u32 %v2863, %v2867
    %v2870 = vshll.u32 %v2709, 16
    %v2872 = vrot.slane %v2870, 1
    %v2873 = vsel %vm1704, %v2868, %v2872
    %v2875 = vshrl.u32 %v2550, 16
    %v2877 = vshll.u32 %v2550, 16
    %v2879 = vrot.slane %v2877, 1
    %v2880 = vor.u32 %v2875, %v2879
    %v2882 = vshll.u32 %v2710, 16
    %v2884 = vrot.slane %v2882, 1
    %v2885 = vsel %vm1704, %v2880, %v2884
    %v2887 = vshrl.u32 %v2551, 16
    %v2889 = vshll.u32 %v2551, 16
    %v2891 = vrot.slane %v2889, 1
    %v2892 = vor.u32 %v2887, %v2891
    %v2894 = vshll.u32 %v2711, 16
    %v2896 = vrot.slane %v2894, 1
    %v2897 = vsel %vm1704, %v2892, %v2896
    %v2899 = vshrl.u32 %v2552, 16
    %v2901 = vshll.u32 %v2552, 16
    %v2903 = vrot.slane %v2901, 1
    %v2904 = vor.u32 %v2899, %v2903
    %v2906 = vshll.u32 %v2712, 16
    %v2908 = vrot.slane %v2906, 1
    %v2909 = vsel %vm1704, %v2904, %v2908
    %v2911 = vshrl.u32 %v2553, 16
    %v2913 = vshll.u32 %v2553, 16
    %v2915 = vrot.slane %v2913, 1
    %v2916 = vor.u32 %v2911, %v2915
    %v2918 = vshll.u32 %v2713, 16
    %v2920 = vrot.slane %v2918, 1
    %v2921 = vsel %vm1704, %v2916, %v2920
    %v2923 = vshrl.u32 %v2554, 16
    %v2925 = vshll.u32 %v2554, 16
    %v2927 = vrot.slane %v2925, 1
    %v2928 = vor.u32 %v2923, %v2927
    %v2930 = vshll.u32 %v2714, 16
    %v2932 = vrot.slane %v2930, 1
    %v2933 = vsel %vm1704, %v2928, %v2932
    %v2935 = vshrl.u32 %v2555, 16
    %v2937 = vshll.u32 %v2555, 16
    %v2939 = vrot.slane %v2937, 1
    %v2940 = vor.u32 %v2935, %v2939
    %v2942 = vshll.u32 %v2715, 16
    %v2944 = vrot.slane %v2942, 1
    %v2945 = vsel %vm1704, %v2940, %v2944
    %v2947 = vshrl.u32 %v2556, 16
    %v2949 = vshll.u32 %v2556, 16
    %v2951 = vrot.slane %v2949, 1
    %v2952 = vor.u32 %v2947, %v2951
    %v2954 = vshll.u32 %v2716, 16
    %v2956 = vrot.slane %v2954, 1
    %v2957 = vsel %vm1704, %v2952, %v2956
    %v2959 = vshrl.u32 %v2557, 16
    %v2961 = vshll.u32 %v2557, 16
    %v2963 = vrot.slane %v2961, 1
    %v2964 = vor.u32 %v2959, %v2963
    %v2966 = vshll.u32 %v2717, 16
    %v2968 = vrot.slane %v2966, 1
    %v2969 = vsel %vm1704, %v2964, %v2968
    %v2971 = vshrl.u32 %v2558, 16
    %v2973 = vshll.u32 %v2558, 16
    %v2975 = vrot.slane %v2973, 1
    %v2976 = vor.u32 %v2971, %v2975
    %v2978 = vshll.u32 %v2718, 16
    %v2980 = vrot.slane %v2978, 1
    %v2981 = vsel %vm1704, %v2976, %v2980
    %v2983 = vshrl.u32 %v2559, 16
    %v2985 = vshll.u32 %v2559, 16
    %v2987 = vrot.slane %v2985, 1
    %v2988 = vor.u32 %v2983, %v2987
    %v2990 = vshll.u32 %v2719, 16
    %v2992 = vrot.slane %v2990, 1
    %v2993 = vsel %vm1704, %v2988, %v2992
    %v2995 = vshrl.u32 %v2560, 16
    %v2997 = vshll.u32 %v2560, 16
    %v2999 = vrot.slane %v2997, 1
    %v3000 = vor.u32 %v2995, %v2999
    %v3002 = vshll.u32 %v2720, 16
    %v3004 = vrot.slane %v3002, 1
    %v3005 = vsel %vm1704, %v3000, %v3004
    %v3007 = vshrl.u32 %v2561, 16
    %v3009 = vshll.u32 %v2561, 16
    %v3011 = vrot.slane %v3009, 1
    %v3012 = vor.u32 %v3007, %v3011
    %v3014 = vshll.u32 %v2721, 16
    %v3016 = vrot.slane %v3014, 1
    %v3017 = vsel %vm1704, %v3012, %v3016
    %v3019 = vshrl.u32 %v2562, 16
    %v3021 = vshll.u32 %v2562, 16
    %v3023 = vrot.slane %v3021, 1
    %v3024 = vor.u32 %v3019, %v3023
    %v3026 = vshll.u32 %v2722, 16
    %v3028 = vrot.slane %v3026, 1
    %v3029 = vsel %vm1704, %v3024, %v3028
    %v3031 = vshrl.u32 %v2563, 16
    %v3033 = vshll.u32 %v2563, 16
    %v3035 = vrot.slane %v3033, 1
    %v3036 = vor.u32 %v3031, %v3035
    %v3038 = vshll.u32 %v2723, 16
    %v3040 = vrot.slane %v3038, 1
    %v3041 = vsel %vm1704, %v3036, %v3040
    %v3043 = vshrl.u32 %v2564, 16
    %v3045 = vshll.u32 %v2564, 16
    %v3047 = vrot.slane %v3045, 1
    %v3048 = vor.u32 %v3043, %v3047
    %v3050 = vshll.u32 %v2724, 16
    %v3052 = vrot.slane %v3050, 1
    %v3053 = vsel %vm1704, %v3048, %v3052
    %v3055 = vshrl.u32 %v2565, 16
    %v3057 = vshll.u32 %v2565, 16
    %v3059 = vrot.slane %v3057, 1
    %v3060 = vor.u32 %v3055, %v3059
    %v3062 = vshll.u32 %v2725, 16
    %v3064 = vrot.slane %v3062, 1
    %v3065 = vsel %vm1704, %v3060, %v3064
    %v3067 = vshrl.u32 %v2566, 16
    %v3069 = vshll.u32 %v2566, 16
    %v3071 = vrot.slane %v3069, 1
    %v3072 = vor.u32 %v3067, %v3071
    %v3074 = vshll.u32 %v2726, 16
    %v3076 = vrot.slane %v3074, 1
    %v3077 = vsel %vm1704, %v3072, %v3076
    %v3079 = vshrl.u32 %v2567, 16
    %v3081 = vshll.u32 %v2567, 16
    %v3083 = vrot.slane %v3081, 1
    %v3084 = vor.u32 %v3079, %v3083
    %v3086 = vshll.u32 %v2727, 16
    %v3088 = vrot.slane %v3086, 1
    %v3089 = vsel %vm1704, %v3084, %v3088
    %v3091 = vshrl.u32 %v2568, 16
    %v3093 = vshll.u32 %v2568, 16
    %v3095 = vrot.slane %v3093, 1
    %v3096 = vor.u32 %v3091, %v3095
    %v3098 = vshll.u32 %v2728, 16
    %v3100 = vrot.slane %v3098, 1
    %v3101 = vsel %vm1704, %v3096, %v3100
    %v3103 = vshrl.u32 %v2569, 16
    %v3105 = vshll.u32 %v2569, 16
    %v3107 = vrot.slane %v3105, 1
    %v3108 = vor.u32 %v3103, %v3107
    %v3110 = vshll.u32 %v2729, 16
    %v3112 = vrot.slane %v3110, 1
    %v3113 = vsel %vm1704, %v3108, %v3112
    %3114 = vrot.lane.b32.xlu0 %v2741, 16
    %v3115 = vpop.permute.xlu0 %3114
    %3116 = vrot.lane.b32.xlu0 %v2753, 16
    %v3117 = vpop.permute.xlu0 %3116
    %3118 = vrot.lane.b32.xlu0 %v2765, 16
    %v3119 = vpop.permute.xlu0 %3118
    %3120 = vrot.lane.b32.xlu0 %v2777, 16
    %v3121 = vpop.permute.xlu0 %3120
    %3122 = vrot.lane.b32.xlu0 %v2789, 16
    %v3123 = vpop.permute.xlu0 %3122
    %3124 = vrot.lane.b32.xlu0 %v2801, 16
    %v3125 = vpop.permute.xlu0 %3124
    %3126 = vrot.lane.b32.xlu0 %v2813, 16
    %v3127 = vpop.permute.xlu0 %3126
    %3128 = vrot.lane.b32.xlu0 %v2825, 16
    %v3129 = vpop.permute.xlu0 %3128
    %3130 = vrot.lane.b32.xlu0 %v2837, 16
    %v3131 = vpop.permute.xlu0 %3130
    %3132 = vrot.lane.b32.xlu0 %v2849, 16
    %v3133 = vpop.permute.xlu0 %3132
    %3134 = vrot.lane.b32.xlu0 %v2861, 16
    %v3135 = vpop.permute.xlu0 %3134
    %3136 = vrot.lane.b32.xlu0 %v2873, 16
    %v3137 = vpop.permute.xlu0 %3136
    %3138 = vrot.lane.b32.xlu0 %v2885, 16
    %v3139 = vpop.permute.xlu0 %3138
    %3140 = vrot.lane.b32.xlu0 %v2897, 16
    %v3141 = vpop.permute.xlu0 %3140
    %3142 = vrot.lane.b32.xlu0 %v2909, 16
    %v3143 = vpop.permute.xlu0 %3142
    %3144 = vrot.lane.b32.xlu0 %v2921, 16
    %v3145 = vpop.permute.xlu0 %3144
    %3146 = vrot.lane.b32.xlu0 %v2933, 16
    %v3147 = vpop.permute.xlu0 %3146
    %3148 = vrot.lane.b32.xlu0 %v2945, 16
    %v3149 = vpop.permute.xlu0 %3148
    %3150 = vrot.lane.b32.xlu0 %v2957, 16
    %v3151 = vpop.permute.xlu0 %3150
    %3152 = vrot.lane.b32.xlu0 %v2969, 16
    %v3153 = vpop.permute.xlu0 %3152
    %3154 = vrot.lane.b32.xlu0 %v2981, 16
    %v3155 = vpop.permute.xlu0 %3154
    %3156 = vrot.lane.b32.xlu0 %v2993, 16
    %v3157 = vpop.permute.xlu0 %3156
    %3158 = vrot.lane.b32.xlu0 %v3005, 16
    %v3159 = vpop.permute.xlu0 %3158
    %3160 = vrot.lane.b32.xlu0 %v3017, 16
    %v3161 = vpop.permute.xlu0 %3160
    %3162 = vrot.lane.b32.xlu0 %v3029, 16
    %v3163 = vpop.permute.xlu0 %3162
    %3164 = vrot.lane.b32.xlu0 %v3041, 16
    %v3165 = vpop.permute.xlu0 %3164
    %3166 = vrot.lane.b32.xlu0 %v3053, 16
    %v3167 = vpop.permute.xlu0 %3166
    %3168 = vrot.lane.b32.xlu0 %v3065, 16
    %v3169 = vpop.permute.xlu0 %3168
    %3170 = vrot.lane.b32.xlu0 %v3077, 16
    %v3171 = vpop.permute.xlu0 %3170
    %3172 = vrot.lane.b32.xlu0 %v3089, 16
    %v3173 = vpop.permute.xlu0 %3172
    %3174 = vrot.lane.b32.xlu0 %v3101, 16
    %v3175 = vpop.permute.xlu0 %3174
    %3176 = vrot.lane.b32.xlu0 %v3113, 16
    %v3177 = vpop.permute.xlu0 %3176
    %v3210 = vunpack.c.l.b16 %v1287
    %v3211 = vunpack.c.l.b16 %v1288
    %v3212 = vunpack.c.l.b16 %v1289
    %v3213 = vunpack.c.l.b16 %v1290
    %v3214 = vunpack.c.l.b16 %v1291
    %v3215 = vunpack.c.l.b16 %v1292
    %v3216 = vunpack.c.l.b16 %v1293
    %v3217 = vunpack.c.l.b16 %v1294
    %v3218 = vunpack.c.l.b16 %v1295
    %v3219 = vunpack.c.l.b16 %v1296
    %v3220 = vunpack.c.l.b16 %v1297
    %v3221 = vunpack.c.l.b16 %v1298
    %v3222 = vunpack.c.l.b16 %v1299
    %v3223 = vunpack.c.l.b16 %v1300
    %v3224 = vunpack.c.l.b16 %v1301
    %v3225 = vunpack.c.l.b16 %v1302
    %v3226 = vunpack.c.l.b16 %v1303
    %v3227 = vunpack.c.l.b16 %v1304
    %v3228 = vunpack.c.l.b16 %v1305
    %v3229 = vunpack.c.l.b16 %v1306
    %v3230 = vunpack.c.l.b16 %v1307
    %v3231 = vunpack.c.l.b16 %v1308
    %v3232 = vunpack.c.l.b16 %v1309
    %v3233 = vunpack.c.l.b16 %v1310
    %v3234 = vunpack.c.l.b16 %v1311
    %v3235 = vunpack.c.l.b16 %v1312
    %v3236 = vunpack.c.l.b16 %v1313
    %v3237 = vunpack.c.l.b16 %v1314
    %v3238 = vunpack.c.l.b16 %v1315
    %v3239 = vunpack.c.l.b16 %v1316
    %v3240 = vunpack.c.l.b16 %v1317
    %v3241 = vunpack.c.l.b16 %v1318
    %v3242 = vpack.c.b16 %v2475, %v3210
    %v3243 = vpack.c.b16 %v2477, %v3211
    %v3244 = vpack.c.b16 %v2479, %v3212
    %v3245 = vpack.c.b16 %v2481, %v3213
    %v3246 = vpack.c.b16 %v2483, %v3214
    %v3247 = vpack.c.b16 %v2485, %v3215
    %v3248 = vpack.c.b16 %v2487, %v3216
    %v3249 = vpack.c.b16 %v2489, %v3217
    %v3250 = vpack.c.b16 %v2491, %v3218
    %v3251 = vpack.c.b16 %v2493, %v3219
    %v3252 = vpack.c.b16 %v2495, %v3220
    %v3253 = vpack.c.b16 %v2497, %v3221
    %v3254 = vpack.c.b16 %v2499, %v3222
    %v3255 = vpack.c.b16 %v2501, %v3223
    %v3256 = vpack.c.b16 %v2503, %v3224
    %v3257 = vpack.c.b16 %v2505, %v3225
    %v3258 = vpack.c.b16 %v2507, %v3226
    %v3259 = vpack.c.b16 %v2509, %v3227
    %v3260 = vpack.c.b16 %v2511, %v3228
    %v3261 = vpack.c.b16 %v2513, %v3229
    %v3262 = vpack.c.b16 %v2515, %v3230
    %v3263 = vpack.c.b16 %v2517, %v3231
    %v3264 = vpack.c.b16 %v2519, %v3232
    %v3265 = vpack.c.b16 %v2521, %v3233
    %v3266 = vpack.c.b16 %v2523, %v3234
    %v3267 = vpack.c.b16 %v2525, %v3235
    %v3268 = vpack.c.b16 %v2527, %v3236
    %v3269 = vpack.c.b16 %v2529, %v3237
    %v3270 = vpack.c.b16 %v2531, %v3238
    %v3271 = vpack.c.b16 %v2533, %v3239
    %v3272 = vpack.c.b16 %v2535, %v3240
    %v3273 = vpack.c.b16 %v2537, %v3241
    %v3274 = vrot.slane %v3242, 1
    %v3275 = vrot.slane %v2698, 1
    %v3276 = vsel %vm2249, %v3274, %v3275
    %v3277 = vrot.slane %v3243, 1
    %v3278 = vrot.slane %v2699, 1
    %v3279 = vsel %vm2249, %v3277, %v3278
    %v3280 = vrot.slane %v3244, 1
    %v3281 = vrot.slane %v2700, 1
    %v3282 = vsel %vm2249, %v3280, %v3281
    %v3283 = vrot.slane %v3245, 1
    %v3284 = vrot.slane %v2701, 1
    %v3285 = vsel %vm2249, %v3283, %v3284
    %v3286 = vrot.slane %v3246, 1
    %v3287 = vrot.slane %v2702, 1
    %v3288 = vsel %vm2249, %v3286, %v3287
    %v3289 = vrot.slane %v3247, 1
    %v3290 = vrot.slane %v2703, 1
    %v3291 = vsel %vm2249, %v3289, %v3290
    %v3292 = vrot.slane %v3248, 1
    %v3293 = vrot.slane %v2704, 1
    %v3294 = vsel %vm2249, %v3292, %v3293
    %v3295 = vrot.slane %v3249, 1
    %v3296 = vrot.slane %v2705, 1
    %v3297 = vsel %vm2249, %v3295, %v3296
    %v3298 = vrot.slane %v3250, 1
    %v3299 = vrot.slane %v2706, 1
    %v3300 = vsel %vm2249, %v3298, %v3299
    %v3301 = vrot.slane %v3251, 1
    %v3302 = vrot.slane %v2707, 1
    %v3303 = vsel %vm2249, %v3301, %v3302
    %v3304 = vrot.slane %v3252, 1
    %v3305 = vrot.slane %v2708, 1
    %v3306 = vsel %vm2249, %v3304, %v3305
    %v3307 = vrot.slane %v3253, 1
    %v3308 = vrot.slane %v2709, 1
    %v3309 = vsel %vm2249, %v3307, %v3308
    %v3310 = vrot.slane %v3254, 1
    %v3311 = vrot.slane %v2710, 1
    %v3312 = vsel %vm2249, %v3310, %v3311
    %v3313 = vrot.slane %v3255, 1
    %v3314 = vrot.slane %v2711, 1
    %v3315 = vsel %vm2249, %v3313, %v3314
    %v3316 = vrot.slane %v3256, 1
    %v3317 = vrot.slane %v2712, 1
    %v3318 = vsel %vm2249, %v3316, %v3317
    %v3319 = vrot.slane %v3257, 1
    %v3320 = vrot.slane %v2713, 1
    %v3321 = vsel %vm2249, %v3319, %v3320
    %v3322 = vrot.slane %v3258, 1
    %v3323 = vrot.slane %v2714, 1
    %v3324 = vsel %vm2249, %v3322, %v3323
    %v3325 = vrot.slane %v3259, 1
    %v3326 = vrot.slane %v2715, 1
    %v3327 = vsel %vm2249, %v3325, %v3326
    %v3328 = vrot.slane %v3260, 1
    %v3329 = vrot.slane %v2716, 1
    %v3330 = vsel %vm2249, %v3328, %v3329
    %v3331 = vrot.slane %v3261, 1
    %v3332 = vrot.slane %v2717, 1
    %v3333 = vsel %vm2249, %v3331, %v3332
    %v3334 = vrot.slane %v3262, 1
    %v3335 = vrot.slane %v2718, 1
    %v3336 = vsel %vm2249, %v3334, %v3335
    %v3337 = vrot.slane %v3263, 1
    %v3338 = vrot.slane %v2719, 1
    %v3339 = vsel %vm2249, %v3337, %v3338
    %v3340 = vrot.slane %v3264, 1
    %v3341 = vrot.slane %v2720, 1
    %v3342 = vsel %vm2249, %v3340, %v3341
    %v3343 = vrot.slane %v3265, 1
    %v3344 = vrot.slane %v2721, 1
    %v3345 = vsel %vm2249, %v3343, %v3344
    %v3346 = vrot.slane %v3266, 1
    %v3347 = vrot.slane %v2722, 1
    %v3348 = vsel %vm2249, %v3346, %v3347
    %v3349 = vrot.slane %v3267, 1
    %v3350 = vrot.slane %v2723, 1
    %v3351 = vsel %vm2249, %v3349, %v3350
    %v3352 = vrot.slane %v3268, 1
    %v3353 = vrot.slane %v2724, 1
    %v3354 = vsel %vm2249, %v3352, %v3353
    %v3355 = vrot.slane %v3269, 1
    %v3356 = vrot.slane %v2725, 1
    %v3357 = vsel %vm2249, %v3355, %v3356
    %v3358 = vrot.slane %v3270, 1
    %v3359 = vrot.slane %v2726, 1
    %v3360 = vsel %vm2249, %v3358, %v3359
    %v3361 = vrot.slane %v3271, 1
    %v3362 = vrot.slane %v2727, 1
    %v3363 = vsel %vm2249, %v3361, %v3362
    %v3364 = vrot.slane %v3272, 1
    %v3365 = vrot.slane %v2728, 1
    %v3366 = vsel %vm2249, %v3364, %v3365
    %v3367 = vrot.slane %v3273, 1
    %v3368 = vrot.slane %v2729, 1
    %v3369 = vsel %vm2249, %v3367, %v3368
    %3370 = vrot.lane.b32.xlu0 %v3276, 20
    %v3371 = vpop.permute.xlu0 %3370
    %3372 = vrot.lane.b32.xlu0 %v3279, 20
    %v3373 = vpop.permute.xlu0 %3372
    %3374 = vrot.lane.b32.xlu0 %v3282, 20
    %v3375 = vpop.permute.xlu0 %3374
    %3376 = vrot.lane.b32.xlu0 %v3285, 20
    %v3377 = vpop.permute.xlu0 %3376
    %3378 = vrot.lane.b32.xlu0 %v3288, 20
    %v3379 = vpop.permute.xlu0 %3378
    %3380 = vrot.lane.b32.xlu0 %v3291, 20
    %v3381 = vpop.permute.xlu0 %3380
    %3382 = vrot.lane.b32.xlu0 %v3294, 20
    %v3383 = vpop.permute.xlu0 %3382
    %3384 = vrot.lane.b32.xlu0 %v3297, 20
    %v3385 = vpop.permute.xlu0 %3384
    %3386 = vrot.lane.b32.xlu0 %v3300, 20
    %v3387 = vpop.permute.xlu0 %3386
    %3388 = vrot.lane.b32.xlu0 %v3303, 20
    %v3389 = vpop.permute.xlu0 %3388
    %3390 = vrot.lane.b32.xlu0 %v3306, 20
    %v3391 = vpop.permute.xlu0 %3390
    %3392 = vrot.lane.b32.xlu0 %v3309, 20
    %v3393 = vpop.permute.xlu0 %3392
    %3394 = vrot.lane.b32.xlu0 %v3312, 20
    %v3395 = vpop.permute.xlu0 %3394
    %3396 = vrot.lane.b32.xlu0 %v3315, 20
    %v3397 = vpop.permute.xlu0 %3396
    %3398 = vrot.lane.b32.xlu0 %v3318, 20
    %v3399 = vpop.permute.xlu0 %3398
    %3400 = vrot.lane.b32.xlu0 %v3321, 20
    %v3401 = vpop.permute.xlu0 %3400
    %3402 = vrot.lane.b32.xlu0 %v3324, 20
    %v3403 = vpop.permute.xlu0 %3402
    %3404 = vrot.lane.b32.xlu0 %v3327, 20
    %v3405 = vpop.permute.xlu0 %3404
    %3406 = vrot.lane.b32.xlu0 %v3330, 20
    %v3407 = vpop.permute.xlu0 %3406
    %3408 = vrot.lane.b32.xlu0 %v3333, 20
    %v3409 = vpop.permute.xlu0 %3408
    %3410 = vrot.lane.b32.xlu0 %v3336, 20
    %v3411 = vpop.permute.xlu0 %3410
    %3412 = vrot.lane.b32.xlu0 %v3339, 20
    %v3413 = vpop.permute.xlu0 %3412
    %3414 = vrot.lane.b32.xlu0 %v3342, 20
    %v3415 = vpop.permute.xlu0 %3414
    %3416 = vrot.lane.b32.xlu0 %v3345, 20
    %v3417 = vpop.permute.xlu0 %3416
    %3418 = vrot.lane.b32.xlu0 %v3348, 20
    %v3419 = vpop.permute.xlu0 %3418
    %3420 = vrot.lane.b32.xlu0 %v3351, 20
    %v3421 = vpop.permute.xlu0 %3420
    %3422 = vrot.lane.b32.xlu0 %v3354, 20
    %v3423 = vpop.permute.xlu0 %3422
    %3424 = vrot.lane.b32.xlu0 %v3357, 20
    %v3425 = vpop.permute.xlu0 %3424
    %3426 = vrot.lane.b32.xlu0 %v3360, 20
    %v3427 = vpop.permute.xlu0 %3426
    %3428 = vrot.lane.b32.xlu0 %v3363, 20
    %v3429 = vpop.permute.xlu0 %3428
    %3430 = vrot.lane.b32.xlu0 %v3366, 20
    %v3431 = vpop.permute.xlu0 %3430
    %3432 = vrot.lane.b32.xlu0 %v3369, 20
    %v3433 = vpop.permute.xlu0 %3432
    %v3498 = vunpack.c.l.b16 %v1320
    %v3499 = vunpack.c.l.b16 %v1321
    %v3500 = vunpack.c.l.b16 %v1322
    %v3501 = vunpack.c.l.b16 %v1323
    %v3502 = vunpack.c.l.b16 %v1324
    %v3503 = vunpack.c.l.b16 %v1325
    %v3504 = vunpack.c.l.b16 %v1326
    %v3505 = vunpack.c.l.b16 %v1327
    %v3506 = vunpack.c.l.b16 %v1328
    %v3507 = vunpack.c.l.b16 %v1329
    %v3508 = vunpack.c.l.b16 %v1330
    %v3509 = vunpack.c.l.b16 %v1331
    %v3510 = vunpack.c.l.b16 %v1332
    %v3511 = vunpack.c.l.b16 %v1333
    %v3512 = vunpack.c.l.b16 %v1334
    %v3513 = vunpack.c.l.b16 %v1335
    %v3514 = vunpack.c.l.b16 %v1336
    %v3515 = vunpack.c.l.b16 %v1337
    %v3516 = vunpack.c.l.b16 %v1338
    %v3517 = vunpack.c.l.b16 %v1339
    %v3518 = vunpack.c.l.b16 %v1340
    %v3519 = vunpack.c.l.b16 %v1341
    %v3520 = vunpack.c.l.b16 %v1342
    %v3521 = vunpack.c.l.b16 %v1343
    %v3522 = vunpack.c.l.b16 %v1344
    %v3523 = vunpack.c.l.b16 %v1345
    %v3524 = vunpack.c.l.b16 %v1346
    %v3525 = vunpack.c.l.b16 %v1347
    %v3526 = vunpack.c.l.b16 %v1348
    %v3527 = vunpack.c.l.b16 %v1349
    %v3528 = vunpack.c.l.b16 %v1350
    %v3529 = vunpack.c.l.b16 %v1351
    %v3530 = vunpack.c.l.b16 %v1352
    %v3531 = vunpack.c.l.b16 %v1353
    %v3532 = vunpack.c.l.b16 %v1354
    %v3533 = vunpack.c.l.b16 %v1355
    %v3534 = vunpack.c.l.b16 %v1356
    %v3535 = vunpack.c.l.b16 %v1357
    %v3536 = vunpack.c.l.b16 %v1358
    %v3537 = vunpack.c.l.b16 %v1359
    %v3538 = vunpack.c.l.b16 %v1360
    %v3539 = vunpack.c.l.b16 %v1361
    %v3540 = vunpack.c.l.b16 %v1362
    %v3541 = vunpack.c.l.b16 %v1363
    %v3542 = vunpack.c.l.b16 %v1364
    %v3543 = vunpack.c.l.b16 %v1365
    %v3544 = vunpack.c.l.b16 %v1366
    %v3545 = vunpack.c.l.b16 %v1367
    %v3546 = vunpack.c.l.b16 %v1368
    %v3547 = vunpack.c.l.b16 %v1369
    %v3548 = vunpack.c.l.b16 %v1370
    %v3549 = vunpack.c.l.b16 %v1371
    %v3550 = vunpack.c.l.b16 %v1372
    %v3551 = vunpack.c.l.b16 %v1373
    %v3552 = vunpack.c.l.b16 %v1374
    %v3553 = vunpack.c.l.b16 %v1375
    %v3554 = vunpack.c.l.b16 %v1376
    %v3555 = vunpack.c.l.b16 %v1377
    %v3556 = vunpack.c.l.b16 %v1378
    %v3557 = vunpack.c.l.b16 %v1379
    %v3558 = vunpack.c.l.b16 %v1380
    %v3559 = vunpack.c.l.b16 %v1381
    %v3560 = vunpack.c.l.b16 %v1382
    %v3561 = vunpack.c.l.b16 %v1383
    %v3562 = vpack.c.b16 %v3499, %v3498
    %v3563 = vpack.c.b16 %v3501, %v3500
    %v3564 = vpack.c.b16 %v3503, %v3502
    %v3565 = vpack.c.b16 %v3505, %v3504
    %v3566 = vpack.c.b16 %v3507, %v3506
    %v3567 = vpack.c.b16 %v3509, %v3508
    %v3568 = vpack.c.b16 %v3511, %v3510
    %v3569 = vpack.c.b16 %v3513, %v3512
    %v3570 = vpack.c.b16 %v3515, %v3514
    %v3571 = vpack.c.b16 %v3517, %v3516
    %v3572 = vpack.c.b16 %v3519, %v3518
    %v3573 = vpack.c.b16 %v3521, %v3520
    %v3574 = vpack.c.b16 %v3523, %v3522
    %v3575 = vpack.c.b16 %v3525, %v3524
    %v3576 = vpack.c.b16 %v3527, %v3526
    %v3577 = vpack.c.b16 %v3529, %v3528
    %v3578 = vpack.c.b16 %v3531, %v3530
    %v3579 = vpack.c.b16 %v3533, %v3532
    %v3580 = vpack.c.b16 %v3535, %v3534
    %v3581 = vpack.c.b16 %v3537, %v3536
    %v3582 = vpack.c.b16 %v3539, %v3538
    %v3583 = vpack.c.b16 %v3541, %v3540
    %v3584 = vpack.c.b16 %v3543, %v3542
    %v3585 = vpack.c.b16 %v3545, %v3544
    %v3586 = vpack.c.b16 %v3547, %v3546
    %v3587 = vpack.c.b16 %v3549, %v3548
    %v3588 = vpack.c.b16 %v3551, %v3550
    %v3589 = vpack.c.b16 %v3553, %v3552
    %v3590 = vpack.c.b16 %v3555, %v3554
    %v3591 = vpack.c.b16 %v3557, %v3556
    %v3592 = vpack.c.b16 %v3559, %v3558
    %v3593 = vpack.c.b16 %v3561, %v3560
    %3594 = vrot.lane.b32.xlu0 %v3562, 24
    %v3595 = vpop.permute.xlu0 %3594
    %3596 = vrot.lane.b32.xlu0 %v3563, 24
    %v3597 = vpop.permute.xlu0 %3596
    %3598 = vrot.lane.b32.xlu0 %v3564, 24
    %v3599 = vpop.permute.xlu0 %3598
    %3600 = vrot.lane.b32.xlu0 %v3565, 24
    %v3601 = vpop.permute.xlu0 %3600
    %3602 = vrot.lane.b32.xlu0 %v3566, 24
    %v3603 = vpop.permute.xlu0 %3602
    %3604 = vrot.lane.b32.xlu0 %v3567, 24
    %v3605 = vpop.permute.xlu0 %3604
    %3606 = vrot.lane.b32.xlu0 %v3568, 24
    %v3607 = vpop.permute.xlu0 %3606
    %3608 = vrot.lane.b32.xlu0 %v3569, 24
    %v3609 = vpop.permute.xlu0 %3608
    %3610 = vrot.lane.b32.xlu0 %v3570, 24
    %v3611 = vpop.permute.xlu0 %3610
    %3612 = vrot.lane.b32.xlu0 %v3571, 24
    %v3613 = vpop.permute.xlu0 %3612
    %3614 = vrot.lane.b32.xlu0 %v3572, 24
    %v3615 = vpop.permute.xlu0 %3614
    %3616 = vrot.lane.b32.xlu0 %v3573, 24
    %v3617 = vpop.permute.xlu0 %3616
    %3618 = vrot.lane.b32.xlu0 %v3574, 24
    %v3619 = vpop.permute.xlu0 %3618
    %3620 = vrot.lane.b32.xlu0 %v3575, 24
    %v3621 = vpop.permute.xlu0 %3620
    %3622 = vrot.lane.b32.xlu0 %v3576, 24
    %v3623 = vpop.permute.xlu0 %3622
    %3624 = vrot.lane.b32.xlu0 %v3577, 24
    %v3625 = vpop.permute.xlu0 %3624
    %3626 = vrot.lane.b32.xlu0 %v3578, 24
    %v3627 = vpop.permute.xlu0 %3626
    %3628 = vrot.lane.b32.xlu0 %v3579, 24
    %v3629 = vpop.permute.xlu0 %3628
    %3630 = vrot.lane.b32.xlu0 %v3580, 24
    %v3631 = vpop.permute.xlu0 %3630
    %3632 = vrot.lane.b32.xlu0 %v3581, 24
    %v3633 = vpop.permute.xlu0 %3632
    %3634 = vrot.lane.b32.xlu0 %v3582, 24
    %v3635 = vpop.permute.xlu0 %3634
    %3636 = vrot.lane.b32.xlu0 %v3583, 24
    %v3637 = vpop.permute.xlu0 %3636
    %3638 = vrot.lane.b32.xlu0 %v3584, 24
    %v3639 = vpop.permute.xlu0 %3638
    %3640 = vrot.lane.b32.xlu0 %v3585, 24
    %v3641 = vpop.permute.xlu0 %3640
    %3642 = vrot.lane.b32.xlu0 %v3586, 24
    %v3643 = vpop.permute.xlu0 %3642
    %3644 = vrot.lane.b32.xlu0 %v3587, 24
    %v3645 = vpop.permute.xlu0 %3644
    %3646 = vrot.lane.b32.xlu0 %v3588, 24
    %v3647 = vpop.permute.xlu0 %3646
    %3648 = vrot.lane.b32.xlu0 %v3589, 24
    %v3649 = vpop.permute.xlu0 %3648
    %3650 = vrot.lane.b32.xlu0 %v3590, 24
    %v3651 = vpop.permute.xlu0 %3650
    %3652 = vrot.lane.b32.xlu0 %v3591, 24
    %v3653 = vpop.permute.xlu0 %3652
    %3654 = vrot.lane.b32.xlu0 %v3592, 24
    %v3655 = vpop.permute.xlu0 %3654
    %3656 = vrot.lane.b32.xlu0 %v3593, 24
    %v3657 = vpop.permute.xlu0 %3656
    %v3690 = vunpack.c.l.b16 %v1384
    %v3691 = vunpack.c.l.b16 %v1385
    %v3692 = vunpack.c.l.b16 %v1386
    %v3693 = vunpack.c.l.b16 %v1387
    %v3694 = vunpack.c.l.b16 %v1388
    %v3695 = vunpack.c.l.b16 %v1389
    %v3696 = vunpack.c.l.b16 %v1390
    %v3697 = vunpack.c.l.b16 %v1391
    %v3698 = vunpack.c.l.b16 %v1392
    %v3699 = vunpack.c.l.b16 %v1393
    %v3700 = vunpack.c.l.b16 %v1394
    %v3701 = vunpack.c.l.b16 %v1395
    %v3702 = vunpack.c.l.b16 %v1396
    %v3703 = vunpack.c.l.b16 %v1397
    %v3704 = vunpack.c.l.b16 %v1398
    %v3705 = vunpack.c.l.b16 %v1399
    %v3706 = vunpack.c.l.b16 %v1400
    %v3707 = vunpack.c.l.b16 %v1401
    %v3708 = vunpack.c.l.b16 %v1402
    %v3709 = vunpack.c.l.b16 %v1403
    %v3710 = vunpack.c.l.b16 %v1404
    %v3711 = vunpack.c.l.b16 %v1405
    %v3712 = vunpack.c.l.b16 %v1406
    %v3713 = vunpack.c.l.b16 %v1407
    %v3714 = vunpack.c.l.b16 %v1408
    %v3715 = vunpack.c.l.b16 %v1409
    %v3716 = vunpack.c.l.b16 %v1410
    %v3717 = vunpack.c.l.b16 %v1411
    %v3718 = vunpack.c.l.b16 %v1412
    %v3719 = vunpack.c.l.b16 %v1413
    %v3720 = vunpack.c.l.b16 %v1414
    %v3721 = vunpack.c.l.b16 %v1415
    %v3722 = vpack.c.b16 %v3690, %v3690
    %v3723 = vpack.c.b16 %v3691, %v3691
    %v3724 = vpack.c.b16 %v3692, %v3692
    %v3725 = vpack.c.b16 %v3693, %v3693
    %v3726 = vpack.c.b16 %v3694, %v3694
    %v3727 = vpack.c.b16 %v3695, %v3695
    %v3728 = vpack.c.b16 %v3696, %v3696
    %v3729 = vpack.c.b16 %v3697, %v3697
    %v3730 = vpack.c.b16 %v3698, %v3698
    %v3731 = vpack.c.b16 %v3699, %v3699
    %v3732 = vpack.c.b16 %v3700, %v3700
    %v3733 = vpack.c.b16 %v3701, %v3701
    %v3734 = vpack.c.b16 %v3702, %v3702
    %v3735 = vpack.c.b16 %v3703, %v3703
    %v3736 = vpack.c.b16 %v3704, %v3704
    %v3737 = vpack.c.b16 %v3705, %v3705
    %v3738 = vpack.c.b16 %v3706, %v3706
    %v3739 = vpack.c.b16 %v3707, %v3707
    %v3740 = vpack.c.b16 %v3708, %v3708
    %v3741 = vpack.c.b16 %v3709, %v3709
    %v3742 = vpack.c.b16 %v3710, %v3710
    %v3743 = vpack.c.b16 %v3711, %v3711
    %v3744 = vpack.c.b16 %v3712, %v3712
    %v3745 = vpack.c.b16 %v3713, %v3713
    %v3746 = vpack.c.b16 %v3714, %v3714
    %v3747 = vpack.c.b16 %v3715, %v3715
    %v3748 = vpack.c.b16 %v3716, %v3716
    %v3749 = vpack.c.b16 %v3717, %v3717
    %v3750 = vpack.c.b16 %v3718, %v3718
    %v3751 = vpack.c.b16 %v3719, %v3719
    %v3752 = vpack.c.b16 %v3720, %v3720
    %v3753 = vpack.c.b16 %v3721, %v3721
    %v3755 = vshrl.u32 %v3562, 16
    %v3757 = vshll.u32 %v3562, 16
    %v3759 = vrot.slane %v3757, 1
    %v3760 = vor.u32 %v3755, %v3759
    %v3762 = vshll.u32 %v3722, 16
    %v3764 = vrot.slane %v3762, 1
    %v3765 = vsel %vm1704, %v3760, %v3764
    %v3767 = vshrl.u32 %v3563, 16
    %v3769 = vshll.u32 %v3563, 16
    %v3771 = vrot.slane %v3769, 1
    %v3772 = vor.u32 %v3767, %v3771
    %v3774 = vshll.u32 %v3723, 16
    %v3776 = vrot.slane %v3774, 1
    %v3777 = vsel %vm1704, %v3772, %v3776
    %v3779 = vshrl.u32 %v3564, 16
    %v3781 = vshll.u32 %v3564, 16
    %v3783 = vrot.slane %v3781, 1
    %v3784 = vor.u32 %v3779, %v3783
    %v3786 = vshll.u32 %v3724, 16
    %v3788 = vrot.slane %v3786, 1
    %v3789 = vsel %vm1704, %v3784, %v3788
    %v3791 = vshrl.u32 %v3565, 16
    %v3793 = vshll.u32 %v3565, 16
    %v3795 = vrot.slane %v3793, 1
    %v3796 = vor.u32 %v3791, %v3795
    %v3798 = vshll.u32 %v3725, 16
    %v3800 = vrot.slane %v3798, 1
    %v3801 = vsel %vm1704, %v3796, %v3800
    %v3803 = vshrl.u32 %v3566, 16
    %v3805 = vshll.u32 %v3566, 16
    %v3807 = vrot.slane %v3805, 1
    %v3808 = vor.u32 %v3803, %v3807
    %v3810 = vshll.u32 %v3726, 16
    %v3812 = vrot.slane %v3810, 1
    %v3813 = vsel %vm1704, %v3808, %v3812
    %v3815 = vshrl.u32 %v3567, 16
    %v3817 = vshll.u32 %v3567, 16
    %v3819 = vrot.slane %v3817, 1
    %v3820 = vor.u32 %v3815, %v3819
    %v3822 = vshll.u32 %v3727, 16
    %v3824 = vrot.slane %v3822, 1
    %v3825 = vsel %vm1704, %v3820, %v3824
    %v3827 = vshrl.u32 %v3568, 16
    %v3829 = vshll.u32 %v3568, 16
    %v3831 = vrot.slane %v3829, 1
    %v3832 = vor.u32 %v3827, %v3831
    %v3834 = vshll.u32 %v3728, 16
    %v3836 = vrot.slane %v3834, 1
    %v3837 = vsel %vm1704, %v3832, %v3836
    %v3839 = vshrl.u32 %v3569, 16
    %v3841 = vshll.u32 %v3569, 16
    %v3843 = vrot.slane %v3841, 1
    %v3844 = vor.u32 %v3839, %v3843
    %v3846 = vshll.u32 %v3729, 16
    %v3848 = vrot.slane %v3846, 1
    %v3849 = vsel %vm1704, %v3844, %v3848
    %v3851 = vshrl.u32 %v3570, 16
    %v3853 = vshll.u32 %v3570, 16
    %v3855 = vrot.slane %v3853, 1
    %v3856 = vor.u32 %v3851, %v3855
    %v3858 = vshll.u32 %v3730, 16
    %v3860 = vrot.slane %v3858, 1
    %v3861 = vsel %vm1704, %v3856, %v3860
    %v3863 = vshrl.u32 %v3571, 16
    %v3865 = vshll.u32 %v3571, 16
    %v3867 = vrot.slane %v3865, 1
    %v3868 = vor.u32 %v3863, %v3867
    %v3870 = vshll.u32 %v3731, 16
    %v3872 = vrot.slane %v3870, 1
    %v3873 = vsel %vm1704, %v3868, %v3872
    %v3875 = vshrl.u32 %v3572, 16
    %v3877 = vshll.u32 %v3572, 16
    %v3879 = vrot.slane %v3877, 1
    %v3880 = vor.u32 %v3875, %v3879
    %v3882 = vshll.u32 %v3732, 16
    %v3884 = vrot.slane %v3882, 1
    %v3885 = vsel %vm1704, %v3880, %v3884
    %v3887 = vshrl.u32 %v3573, 16
    %v3889 = vshll.u32 %v3573, 16
    %v3891 = vrot.slane %v3889, 1
    %v3892 = vor.u32 %v3887, %v3891
    %v3894 = vshll.u32 %v3733, 16
    %v3896 = vrot.slane %v3894, 1
    %v3897 = vsel %vm1704, %v3892, %v3896
    %v3899 = vshrl.u32 %v3574, 16
    %v3901 = vshll.u32 %v3574, 16
    %v3903 = vrot.slane %v3901, 1
    %v3904 = vor.u32 %v3899, %v3903
    %v3906 = vshll.u32 %v3734, 16
    %v3908 = vrot.slane %v3906, 1
    %v3909 = vsel %vm1704, %v3904, %v3908
    %v3911 = vshrl.u32 %v3575, 16
    %v3913 = vshll.u32 %v3575, 16
    %v3915 = vrot.slane %v3913, 1
    %v3916 = vor.u32 %v3911, %v3915
    %v3918 = vshll.u32 %v3735, 16
    %v3920 = vrot.slane %v3918, 1
    %v3921 = vsel %vm1704, %v3916, %v3920
    %v3923 = vshrl.u32 %v3576, 16
    %v3925 = vshll.u32 %v3576, 16
    %v3927 = vrot.slane %v3925, 1
    %v3928 = vor.u32 %v3923, %v3927
    %v3930 = vshll.u32 %v3736, 16
    %v3932 = vrot.slane %v3930, 1
    %v3933 = vsel %vm1704, %v3928, %v3932
    %v3935 = vshrl.u32 %v3577, 16
    %v3937 = vshll.u32 %v3577, 16
    %v3939 = vrot.slane %v3937, 1
    %v3940 = vor.u32 %v3935, %v3939
    %v3942 = vshll.u32 %v3737, 16
    %v3944 = vrot.slane %v3942, 1
    %v3945 = vsel %vm1704, %v3940, %v3944
    %v3947 = vshrl.u32 %v3578, 16
    %v3949 = vshll.u32 %v3578, 16
    %v3951 = vrot.slane %v3949, 1
    %v3952 = vor.u32 %v3947, %v3951
    %v3954 = vshll.u32 %v3738, 16
    %v3956 = vrot.slane %v3954, 1
    %v3957 = vsel %vm1704, %v3952, %v3956
    %v3959 = vshrl.u32 %v3579, 16
    %v3961 = vshll.u32 %v3579, 16
    %v3963 = vrot.slane %v3961, 1
    %v3964 = vor.u32 %v3959, %v3963
    %v3966 = vshll.u32 %v3739, 16
    %v3968 = vrot.slane %v3966, 1
    %v3969 = vsel %vm1704, %v3964, %v3968
    %v3971 = vshrl.u32 %v3580, 16
    %v3973 = vshll.u32 %v3580, 16
    %v3975 = vrot.slane %v3973, 1
    %v3976 = vor.u32 %v3971, %v3975
    %v3978 = vshll.u32 %v3740, 16
    %v3980 = vrot.slane %v3978, 1
    %v3981 = vsel %vm1704, %v3976, %v3980
    %v3983 = vshrl.u32 %v3581, 16
    %v3985 = vshll.u32 %v3581, 16
    %v3987 = vrot.slane %v3985, 1
    %v3988 = vor.u32 %v3983, %v3987
    %v3990 = vshll.u32 %v3741, 16
    %v3992 = vrot.slane %v3990, 1
    %v3993 = vsel %vm1704, %v3988, %v3992
    %v3995 = vshrl.u32 %v3582, 16
    %v3997 = vshll.u32 %v3582, 16
    %v3999 = vrot.slane %v3997, 1
    %v4000 = vor.u32 %v3995, %v3999
    %v4002 = vshll.u32 %v3742, 16
    %v4004 = vrot.slane %v4002, 1
    %v4005 = vsel %vm1704, %v4000, %v4004
    %v4007 = vshrl.u32 %v3583, 16
    %v4009 = vshll.u32 %v3583, 16
    %v4011 = vrot.slane %v4009, 1
    %v4012 = vor.u32 %v4007, %v4011
    %v4014 = vshll.u32 %v3743, 16
    %v4016 = vrot.slane %v4014, 1
    %v4017 = vsel %vm1704, %v4012, %v4016
    %v4019 = vshrl.u32 %v3584, 16
    %v4021 = vshll.u32 %v3584, 16
    %v4023 = vrot.slane %v4021, 1
    %v4024 = vor.u32 %v4019, %v4023
    %v4026 = vshll.u32 %v3744, 16
    %v4028 = vrot.slane %v4026, 1
    %v4029 = vsel %vm1704, %v4024, %v4028
    %v4031 = vshrl.u32 %v3585, 16
    %v4033 = vshll.u32 %v3585, 16
    %v4035 = vrot.slane %v4033, 1
    %v4036 = vor.u32 %v4031, %v4035
    %v4038 = vshll.u32 %v3745, 16
    %v4040 = vrot.slane %v4038, 1
    %v4041 = vsel %vm1704, %v4036, %v4040
    %v4043 = vshrl.u32 %v3586, 16
    %v4045 = vshll.u32 %v3586, 16
    %v4047 = vrot.slane %v4045, 1
    %v4048 = vor.u32 %v4043, %v4047
    %v4050 = vshll.u32 %v3746, 16
    %v4052 = vrot.slane %v4050, 1
    %v4053 = vsel %vm1704, %v4048, %v4052
    %v4055 = vshrl.u32 %v3587, 16
    %v4057 = vshll.u32 %v3587, 16
    %v4059 = vrot.slane %v4057, 1
    %v4060 = vor.u32 %v4055, %v4059
    %v4062 = vshll.u32 %v3747, 16
    %v4064 = vrot.slane %v4062, 1
    %v4065 = vsel %vm1704, %v4060, %v4064
    %v4067 = vshrl.u32 %v3588, 16
    %v4069 = vshll.u32 %v3588, 16
    %v4071 = vrot.slane %v4069, 1
    %v4072 = vor.u32 %v4067, %v4071
    %v4074 = vshll.u32 %v3748, 16
    %v4076 = vrot.slane %v4074, 1
    %v4077 = vsel %vm1704, %v4072, %v4076
    %v4079 = vshrl.u32 %v3589, 16
    %v4081 = vshll.u32 %v3589, 16
    %v4083 = vrot.slane %v4081, 1
    %v4084 = vor.u32 %v4079, %v4083
    %v4086 = vshll.u32 %v3749, 16
    %v4088 = vrot.slane %v4086, 1
    %v4089 = vsel %vm1704, %v4084, %v4088
    %v4091 = vshrl.u32 %v3590, 16
    %v4093 = vshll.u32 %v3590, 16
    %v4095 = vrot.slane %v4093, 1
    %v4096 = vor.u32 %v4091, %v4095
    %v4098 = vshll.u32 %v3750, 16
    %v4100 = vrot.slane %v4098, 1
    %v4101 = vsel %vm1704, %v4096, %v4100
    %v4103 = vshrl.u32 %v3591, 16
    %v4105 = vshll.u32 %v3591, 16
    %v4107 = vrot.slane %v4105, 1
    %v4108 = vor.u32 %v4103, %v4107
    %v4110 = vshll.u32 %v3751, 16
    %v4112 = vrot.slane %v4110, 1
    %v4113 = vsel %vm1704, %v4108, %v4112
    %v4115 = vshrl.u32 %v3592, 16
    %v4117 = vshll.u32 %v3592, 16
    %v4119 = vrot.slane %v4117, 1
    %v4120 = vor.u32 %v4115, %v4119
    %v4122 = vshll.u32 %v3752, 16
    %v4124 = vrot.slane %v4122, 1
    %v4125 = vsel %vm1704, %v4120, %v4124
    %v4127 = vshrl.u32 %v3593, 16
    %v4129 = vshll.u32 %v3593, 16
    %v4131 = vrot.slane %v4129, 1
    %v4132 = vor.u32 %v4127, %v4131
    %v4134 = vshll.u32 %v3753, 16
    %v4136 = vrot.slane %v4134, 1
    %v4137 = vsel %vm1704, %v4132, %v4136
    %4138 = vrot.lane.b32.xlu0 %v3765, 28
    %v4139 = vpop.permute.xlu0 %4138
    %4140 = vrot.lane.b32.xlu0 %v3777, 28
    %v4141 = vpop.permute.xlu0 %4140
    %4142 = vrot.lane.b32.xlu0 %v3789, 28
    %v4143 = vpop.permute.xlu0 %4142
    %4144 = vrot.lane.b32.xlu0 %v3801, 28
    %v4145 = vpop.permute.xlu0 %4144
    %4146 = vrot.lane.b32.xlu0 %v3813, 28
    %v4147 = vpop.permute.xlu0 %4146
    %4148 = vrot.lane.b32.xlu0 %v3825, 28
    %v4149 = vpop.permute.xlu0 %4148
    %4150 = vrot.lane.b32.xlu0 %v3837, 28
    %v4151 = vpop.permute.xlu0 %4150
    %4152 = vrot.lane.b32.xlu0 %v3849, 28
    %v4153 = vpop.permute.xlu0 %4152
    %4154 = vrot.lane.b32.xlu0 %v3861, 28
    %v4155 = vpop.permute.xlu0 %4154
    %4156 = vrot.lane.b32.xlu0 %v3873, 28
    %v4157 = vpop.permute.xlu0 %4156
    %4158 = vrot.lane.b32.xlu0 %v3885, 28
    %v4159 = vpop.permute.xlu0 %4158
    %4160 = vrot.lane.b32.xlu0 %v3897, 28
    %v4161 = vpop.permute.xlu0 %4160
    %4162 = vrot.lane.b32.xlu0 %v3909, 28
    %v4163 = vpop.permute.xlu0 %4162
    %4164 = vrot.lane.b32.xlu0 %v3921, 28
    %v4165 = vpop.permute.xlu0 %4164
    %4166 = vrot.lane.b32.xlu0 %v3933, 28
    %v4167 = vpop.permute.xlu0 %4166
    %4168 = vrot.lane.b32.xlu0 %v3945, 28
    %v4169 = vpop.permute.xlu0 %4168
    %4170 = vrot.lane.b32.xlu0 %v3957, 28
    %v4171 = vpop.permute.xlu0 %4170
    %4172 = vrot.lane.b32.xlu0 %v3969, 28
    %v4173 = vpop.permute.xlu0 %4172
    %4174 = vrot.lane.b32.xlu0 %v3981, 28
    %v4175 = vpop.permute.xlu0 %4174
    %4176 = vrot.lane.b32.xlu0 %v3993, 28
    %v4177 = vpop.permute.xlu0 %4176
    %4178 = vrot.lane.b32.xlu0 %v4005, 28
    %v4179 = vpop.permute.xlu0 %4178
    %4180 = vrot.lane.b32.xlu0 %v4017, 28
    %v4181 = vpop.permute.xlu0 %4180
    %4182 = vrot.lane.b32.xlu0 %v4029, 28
    %v4183 = vpop.permute.xlu0 %4182
    %4184 = vrot.lane.b32.xlu0 %v4041, 28
    %v4185 = vpop.permute.xlu0 %4184
    %4186 = vrot.lane.b32.xlu0 %v4053, 28
    %v4187 = vpop.permute.xlu0 %4186
    %4188 = vrot.lane.b32.xlu0 %v4065, 28
    %v4189 = vpop.permute.xlu0 %4188
    %4190 = vrot.lane.b32.xlu0 %v4077, 28
    %v4191 = vpop.permute.xlu0 %4190
    %4192 = vrot.lane.b32.xlu0 %v4089, 28
    %v4193 = vpop.permute.xlu0 %4192
    %4194 = vrot.lane.b32.xlu0 %v4101, 28
    %v4195 = vpop.permute.xlu0 %4194
    %4196 = vrot.lane.b32.xlu0 %v4113, 28
    %v4197 = vpop.permute.xlu0 %4196
    %4198 = vrot.lane.b32.xlu0 %v4125, 28
    %v4199 = vpop.permute.xlu0 %4198
    %4200 = vrot.lane.b32.xlu0 %v4137, 28
    %v4201 = vpop.permute.xlu0 %4200
    %v4234 = vunpack.c.l.b16 %v1416
    %v4235 = vunpack.c.l.b16 %v1417
    %v4236 = vunpack.c.l.b16 %v1418
    %v4237 = vunpack.c.l.b16 %v1419
    %v4238 = vunpack.c.l.b16 %v1420
    %v4239 = vunpack.c.l.b16 %v1421
    %v4240 = vunpack.c.l.b16 %v1422
    %v4241 = vunpack.c.l.b16 %v1423
    %v4242 = vunpack.c.l.b16 %v1424
    %v4243 = vunpack.c.l.b16 %v1425
    %v4244 = vunpack.c.l.b16 %v1426
    %v4245 = vunpack.c.l.b16 %v1427
    %v4246 = vunpack.c.l.b16 %v1428
    %v4247 = vunpack.c.l.b16 %v1429
    %v4248 = vunpack.c.l.b16 %v1430
    %v4249 = vunpack.c.l.b16 %v1431
    %v4250 = vunpack.c.l.b16 %v1432
    %v4251 = vunpack.c.l.b16 %v1433
    %v4252 = vunpack.c.l.b16 %v1434
    %v4253 = vunpack.c.l.b16 %v1435
    %v4254 = vunpack.c.l.b16 %v1436
    %v4255 = vunpack.c.l.b16 %v1437
    %v4256 = vunpack.c.l.b16 %v1438
    %v4257 = vunpack.c.l.b16 %v1439
    %v4258 = vunpack.c.l.b16 %v1440
    %v4259 = vunpack.c.l.b16 %v1441
    %v4260 = vunpack.c.l.b16 %v1442
    %v4261 = vunpack.c.l.b16 %v1443
    %v4262 = vunpack.c.l.b16 %v1444
    %v4263 = vunpack.c.l.b16 %v1445
    %v4264 = vunpack.c.l.b16 %v1446
    %v4265 = vunpack.c.l.b16 %v1447
    %v4266 = vpack.c.b16 %v3499, %v4234
    %v4267 = vpack.c.b16 %v3501, %v4235
    %v4268 = vpack.c.b16 %v3503, %v4236
    %v4269 = vpack.c.b16 %v3505, %v4237
    %v4270 = vpack.c.b16 %v3507, %v4238
    %v4271 = vpack.c.b16 %v3509, %v4239
    %v4272 = vpack.c.b16 %v3511, %v4240
    %v4273 = vpack.c.b16 %v3513, %v4241
    %v4274 = vpack.c.b16 %v3515, %v4242
    %v4275 = vpack.c.b16 %v3517, %v4243
    %v4276 = vpack.c.b16 %v3519, %v4244
    %v4277 = vpack.c.b16 %v3521, %v4245
    %v4278 = vpack.c.b16 %v3523, %v4246
    %v4279 = vpack.c.b16 %v3525, %v4247
    %v4280 = vpack.c.b16 %v3527, %v4248
    %v4281 = vpack.c.b16 %v3529, %v4249
    %v4282 = vpack.c.b16 %v3531, %v4250
    %v4283 = vpack.c.b16 %v3533, %v4251
    %v4284 = vpack.c.b16 %v3535, %v4252
    %v4285 = vpack.c.b16 %v3537, %v4253
    %v4286 = vpack.c.b16 %v3539, %v4254
    %v4287 = vpack.c.b16 %v3541, %v4255
    %v4288 = vpack.c.b16 %v3543, %v4256
    %v4289 = vpack.c.b16 %v3545, %v4257
    %v4290 = vpack.c.b16 %v3547, %v4258
    %v4291 = vpack.c.b16 %v3549, %v4259
    %v4292 = vpack.c.b16 %v3551, %v4260
    %v4293 = vpack.c.b16 %v3553, %v4261
    %v4294 = vpack.c.b16 %v3555, %v4262
    %v4295 = vpack.c.b16 %v3557, %v4263
    %v4296 = vpack.c.b16 %v3559, %v4264
    %v4297 = vpack.c.b16 %v3561, %v4265
    %v4298 = vrot.slane %v4266, 1
    %v4299 = vrot.slane %v3722, 1
    %v4300 = vsel %vm2249, %v4298, %v4299
    %v4301 = vrot.slane %v4267, 1
    %v4302 = vrot.slane %v3723, 1
    %v4303 = vsel %vm2249, %v4301, %v4302
    %v4304 = vrot.slane %v4268, 1
    %v4305 = vrot.slane %v3724, 1
    %v4306 = vsel %vm2249, %v4304, %v4305
    %v4307 = vrot.slane %v4269, 1
    %v4308 = vrot.slane %v3725, 1
    %v4309 = vsel %vm2249, %v4307, %v4308
    %v4310 = vrot.slane %v4270, 1
    %v4311 = vrot.slane %v3726, 1
    %v4312 = vsel %vm2249, %v4310, %v4311
    %v4313 = vrot.slane %v4271, 1
    %v4314 = vrot.slane %v3727, 1
    %v4315 = vsel %vm2249, %v4313, %v4314
    %v4316 = vrot.slane %v4272, 1
    %v4317 = vrot.slane %v3728, 1
    %v4318 = vsel %vm2249, %v4316, %v4317
    %v4319 = vrot.slane %v4273, 1
    %v4320 = vrot.slane %v3729, 1
    %v4321 = vsel %vm2249, %v4319, %v4320
    %v4322 = vrot.slane %v4274, 1
    %v4323 = vrot.slane %v3730, 1
    %v4324 = vsel %vm2249, %v4322, %v4323
    %v4325 = vrot.slane %v4275, 1
    %v4326 = vrot.slane %v3731, 1
    %v4327 = vsel %vm2249, %v4325, %v4326
    %v4328 = vrot.slane %v4276, 1
    %v4329 = vrot.slane %v3732, 1
    %v4330 = vsel %vm2249, %v4328, %v4329
    %v4331 = vrot.slane %v4277, 1
    %v4332 = vrot.slane %v3733, 1
    %v4333 = vsel %vm2249, %v4331, %v4332
    %v4334 = vrot.slane %v4278, 1
    %v4335 = vrot.slane %v3734, 1
    %v4336 = vsel %vm2249, %v4334, %v4335
    %v4337 = vrot.slane %v4279, 1
    %v4338 = vrot.slane %v3735, 1
    %v4339 = vsel %vm2249, %v4337, %v4338
    %v4340 = vrot.slane %v4280, 1
    %v4341 = vrot.slane %v3736, 1
    %v4342 = vsel %vm2249, %v4340, %v4341
    %v4343 = vrot.slane %v4281, 1
    %v4344 = vrot.slane %v3737, 1
    %v4345 = vsel %vm2249, %v4343, %v4344
    %v4346 = vrot.slane %v4282, 1
    %v4347 = vrot.slane %v3738, 1
    %v4348 = vsel %vm2249, %v4346, %v4347
    %v4349 = vrot.slane %v4283, 1
    %v4350 = vrot.slane %v3739, 1
    %v4351 = vsel %vm2249, %v4349, %v4350
    %v4352 = vrot.slane %v4284, 1
    %v4353 = vrot.slane %v3740, 1
    %v4354 = vsel %vm2249, %v4352, %v4353
    %v4355 = vrot.slane %v4285, 1
    %v4356 = vrot.slane %v3741, 1
    %v4357 = vsel %vm2249, %v4355, %v4356
    %v4358 = vrot.slane %v4286, 1
    %v4359 = vrot.slane %v3742, 1
    %v4360 = vsel %vm2249, %v4358, %v4359
    %v4361 = vrot.slane %v4287, 1
    %v4362 = vrot.slane %v3743, 1
    %v4363 = vsel %vm2249, %v4361, %v4362
    %v4364 = vrot.slane %v4288, 1
    %v4365 = vrot.slane %v3744, 1
    %v4366 = vsel %vm2249, %v4364, %v4365
    %v4367 = vrot.slane %v4289, 1
    %v4368 = vrot.slane %v3745, 1
    %v4369 = vsel %vm2249, %v4367, %v4368
    %v4370 = vrot.slane %v4290, 1
    %v4371 = vrot.slane %v3746, 1
    %v4372 = vsel %vm2249, %v4370, %v4371
    %v4373 = vrot.slane %v4291, 1
    %v4374 = vrot.slane %v3747, 1
    %v4375 = vsel %vm2249, %v4373, %v4374
    %v4376 = vrot.slane %v4292, 1
    %v4377 = vrot.slane %v3748, 1
    %v4378 = vsel %vm2249, %v4376, %v4377
    %v4379 = vrot.slane %v4293, 1
    %v4380 = vrot.slane %v3749, 1
    %v4381 = vsel %vm2249, %v4379, %v4380
    %v4382 = vrot.slane %v4294, 1
    %v4383 = vrot.slane %v3750, 1
    %v4384 = vsel %vm2249, %v4382, %v4383
    %v4385 = vrot.slane %v4295, 1
    %v4386 = vrot.slane %v3751, 1
    %v4387 = vsel %vm2249, %v4385, %v4386
    %v4388 = vrot.slane %v4296, 1
    %v4389 = vrot.slane %v3752, 1
    %v4390 = vsel %vm2249, %v4388, %v4389
    %v4391 = vrot.slane %v4297, 1
    %v4392 = vrot.slane %v3753, 1
    %v4393 = vsel %vm2249, %v4391, %v4392
    %4394 = vrot.lane.b32.xlu0 %v4300, 32
    %v4395 = vpop.permute.xlu0 %4394
    %4396 = vrot.lane.b32.xlu0 %v4303, 32
    %v4397 = vpop.permute.xlu0 %4396
    %4398 = vrot.lane.b32.xlu0 %v4306, 32
    %v4399 = vpop.permute.xlu0 %4398
    %4400 = vrot.lane.b32.xlu0 %v4309, 32
    %v4401 = vpop.permute.xlu0 %4400
    %4402 = vrot.lane.b32.xlu0 %v4312, 32
    %v4403 = vpop.permute.xlu0 %4402
    %4404 = vrot.lane.b32.xlu0 %v4315, 32
    %v4405 = vpop.permute.xlu0 %4404
    %4406 = vrot.lane.b32.xlu0 %v4318, 32
    %v4407 = vpop.permute.xlu0 %4406
    %4408 = vrot.lane.b32.xlu0 %v4321, 32
    %v4409 = vpop.permute.xlu0 %4408
    %4410 = vrot.lane.b32.xlu0 %v4324, 32
    %v4411 = vpop.permute.xlu0 %4410
    %4412 = vrot.lane.b32.xlu0 %v4327, 32
    %v4413 = vpop.permute.xlu0 %4412
    %4414 = vrot.lane.b32.xlu0 %v4330, 32
    %v4415 = vpop.permute.xlu0 %4414
    %4416 = vrot.lane.b32.xlu0 %v4333, 32
    %v4417 = vpop.permute.xlu0 %4416
    %4418 = vrot.lane.b32.xlu0 %v4336, 32
    %v4419 = vpop.permute.xlu0 %4418
    %4420 = vrot.lane.b32.xlu0 %v4339, 32
    %v4421 = vpop.permute.xlu0 %4420
    %4422 = vrot.lane.b32.xlu0 %v4342, 32
    %v4423 = vpop.permute.xlu0 %4422
    %4424 = vrot.lane.b32.xlu0 %v4345, 32
    %v4425 = vpop.permute.xlu0 %4424
    %4426 = vrot.lane.b32.xlu0 %v4348, 32
    %v4427 = vpop.permute.xlu0 %4426
    %4428 = vrot.lane.b32.xlu0 %v4351, 32
    %v4429 = vpop.permute.xlu0 %4428
    %4430 = vrot.lane.b32.xlu0 %v4354, 32
    %v4431 = vpop.permute.xlu0 %4430
    %4432 = vrot.lane.b32.xlu0 %v4357, 32
    %v4433 = vpop.permute.xlu0 %4432
    %4434 = vrot.lane.b32.xlu0 %v4360, 32
    %v4435 = vpop.permute.xlu0 %4434
    %4436 = vrot.lane.b32.xlu0 %v4363, 32
    %v4437 = vpop.permute.xlu0 %4436
    %4438 = vrot.lane.b32.xlu0 %v4366, 32
    %v4439 = vpop.permute.xlu0 %4438
    %4440 = vrot.lane.b32.xlu0 %v4369, 32
    %v4441 = vpop.permute.xlu0 %4440
    %4442 = vrot.lane.b32.xlu0 %v4372, 32
    %v4443 = vpop.permute.xlu0 %4442
    %4444 = vrot.lane.b32.xlu0 %v4375, 32
    %v4445 = vpop.permute.xlu0 %4444
    %4446 = vrot.lane.b32.xlu0 %v4378, 32
    %v4447 = vpop.permute.xlu0 %4446
    %4448 = vrot.lane.b32.xlu0 %v4381, 32
    %v4449 = vpop.permute.xlu0 %4448
    %4450 = vrot.lane.b32.xlu0 %v4384, 32
    %v4451 = vpop.permute.xlu0 %4450
    %4452 = vrot.lane.b32.xlu0 %v4387, 32
    %v4453 = vpop.permute.xlu0 %4452
    %4454 = vrot.lane.b32.xlu0 %v4390, 32
    %v4455 = vpop.permute.xlu0 %4454
    %4456 = vrot.lane.b32.xlu0 %v4393, 32
    %v4457 = vpop.permute.xlu0 %4456
    %vm4458 = vcmask 31744
    %v4460 = vsel %vm4458, %v1576, %v2090
    %v4462 = vsel %vm4458, %v1577, %v2092
    %v4464 = vsel %vm4458, %v1578, %v2094
    %v4466 = vsel %vm4458, %v1579, %v2096
    %v4468 = vsel %vm4458, %v1580, %v2098
    %v4470 = vsel %vm4458, %v1581, %v2100
    %v4472 = vsel %vm4458, %v1582, %v2102
    %v4474 = vsel %vm4458, %v1583, %v2104
    %v4476 = vsel %vm4458, %v1584, %v2106
    %v4478 = vsel %vm4458, %v1585, %v2108
    %v4480 = vsel %vm4458, %v1586, %v2110
    %v4482 = vsel %vm4458, %v1587, %v2112
    %v4484 = vsel %vm4458, %v1588, %v2114
    %v4486 = vsel %vm4458, %v1589, %v2116
    %v4488 = vsel %vm4458, %v1590, %v2118
    %v4490 = vsel %vm4458, %v1591, %v2120
    %v4492 = vsel %vm4458, %v1592, %v2122
    %v4494 = vsel %vm4458, %v1593, %v2124
    %v4496 = vsel %vm4458, %v1594, %v2126
    %v4498 = vsel %vm4458, %v1595, %v2128
    %v4500 = vsel %vm4458, %v1596, %v2130
    %v4502 = vsel %vm4458, %v1597, %v2132
    %v4504 = vsel %vm4458, %v1598, %v2134
    %v4506 = vsel %vm4458, %v1599, %v2136
    %v4508 = vsel %vm4458, %v1600, %v2138
    %v4510 = vsel %vm4458, %v1601, %v2140
    %v4512 = vsel %vm4458, %v1602, %v2142
    %v4514 = vsel %vm4458, %v1603, %v2144
    %v4516 = vsel %vm4458, %v1604, %v2146
    %v4518 = vsel %vm4458, %v1605, %v2148
    %v4520 = vsel %vm4458, %v1606, %v2150
    %v4522 = vsel %vm4458, %v1607, %v2152
    %vm4523 = vcmask 64512
    %v4525 = vsel %vm4523, %v4460, %v2347
    %v4527 = vsel %vm4523, %v4462, %v2349
    %v4529 = vsel %vm4523, %v4464, %v2351
    %v4531 = vsel %vm4523, %v4466, %v2353
    %v4533 = vsel %vm4523, %v4468, %v2355
    %v4535 = vsel %vm4523, %v4470, %v2357
    %v4537 = vsel %vm4523, %v4472, %v2359
    %v4539 = vsel %vm4523, %v4474, %v2361
    %v4541 = vsel %vm4523, %v4476, %v2363
    %v4543 = vsel %vm4523, %v4478, %v2365
    %v4545 = vsel %vm4523, %v4480, %v2367
    %v4547 = vsel %vm4523, %v4482, %v2369
    %v4549 = vsel %vm4523, %v4484, %v2371
    %v4551 = vsel %vm4523, %v4486, %v2373
    %v4553 = vsel %vm4523, %v4488, %v2375
    %v4555 = vsel %vm4523, %v4490, %v2377
    %v4557 = vsel %vm4523, %v4492, %v2379
    %v4559 = vsel %vm4523, %v4494, %v2381
    %v4561 = vsel %vm4523, %v4496, %v2383
    %v4563 = vsel %vm4523, %v4498, %v2385
    %v4565 = vsel %vm4523, %v4500, %v2387
    %v4567 = vsel %vm4523, %v4502, %v2389
    %v4569 = vsel %vm4523, %v4504, %v2391
    %v4571 = vsel %vm4523, %v4506, %v2393
    %v4573 = vsel %vm4523, %v4508, %v2395
    %v4575 = vsel %vm4523, %v4510, %v2397
    %v4577 = vsel %vm4523, %v4512, %v2399
    %v4579 = vsel %vm4523, %v4514, %v2401
    %v4581 = vsel %vm4523, %v4516, %v2403
    %v4583 = vsel %vm4523, %v4518, %v2405
    %v4585 = vsel %vm4523, %v4520, %v2407
    %v4587 = vsel %vm4523, %v4522, %v2409
    %vm4588 = vcmask 97280
    %v4590 = vsel %vm4588, %v4525, %v2571
    %v4592 = vsel %vm4588, %v4527, %v2573
    %v4594 = vsel %vm4588, %v4529, %v2575
    %v4596 = vsel %vm4588, %v4531, %v2577
    %v4598 = vsel %vm4588, %v4533, %v2579
    %v4600 = vsel %vm4588, %v4535, %v2581
    %v4602 = vsel %vm4588, %v4537, %v2583
    %v4604 = vsel %vm4588, %v4539, %v2585
    %v4606 = vsel %vm4588, %v4541, %v2587
    %v4608 = vsel %vm4588, %v4543, %v2589
    %v4610 = vsel %vm4588, %v4545, %v2591
    %v4612 = vsel %vm4588, %v4547, %v2593
    %v4614 = vsel %vm4588, %v4549, %v2595
    %v4616 = vsel %vm4588, %v4551, %v2597
    %v4618 = vsel %vm4588, %v4553, %v2599
    %v4620 = vsel %vm4588, %v4555, %v2601
    %v4622 = vsel %vm4588, %v4557, %v2603
    %v4624 = vsel %vm4588, %v4559, %v2605
    %v4626 = vsel %vm4588, %v4561, %v2607
    %v4628 = vsel %vm4588, %v4563, %v2609
    %v4630 = vsel %vm4588, %v4565, %v2611
    %v4632 = vsel %vm4588, %v4567, %v2613
    %v4634 = vsel %vm4588, %v4569, %v2615
    %v4636 = vsel %vm4588, %v4571, %v2617
    %v4638 = vsel %vm4588, %v4573, %v2619
    %v4640 = vsel %vm4588, %v4575, %v2621
    %v4642 = vsel %vm4588, %v4577, %v2623
    %v4644 = vsel %vm4588, %v4579, %v2625
    %v4646 = vsel %vm4588, %v4581, %v2627
    %v4648 = vsel %vm4588, %v4583, %v2629
    %v4650 = vsel %vm4588, %v4585, %v2631
    %v4652 = vsel %vm4588, %v4587, %v2633
    %vm4653 = vcmask 130048
    %v4655 = vsel %vm4653, %v4590, %v3115
    %v4657 = vsel %vm4653, %v4592, %v3117
    %v4659 = vsel %vm4653, %v4594, %v3119
    %v4661 = vsel %vm4653, %v4596, %v3121
    %v4663 = vsel %vm4653, %v4598, %v3123
    %v4665 = vsel %vm4653, %v4600, %v3125
    %v4667 = vsel %vm4653, %v4602, %v3127
    %v4669 = vsel %vm4653, %v4604, %v3129
    %v4671 = vsel %vm4653, %v4606, %v3131
    %v4673 = vsel %vm4653, %v4608, %v3133
    %v4675 = vsel %vm4653, %v4610, %v3135
    %v4677 = vsel %vm4653, %v4612, %v3137
    %v4679 = vsel %vm4653, %v4614, %v3139
    %v4681 = vsel %vm4653, %v4616, %v3141
    %v4683 = vsel %vm4653, %v4618, %v3143
    %v4685 = vsel %vm4653, %v4620, %v3145
    %v4687 = vsel %vm4653, %v4622, %v3147
    %v4689 = vsel %vm4653, %v4624, %v3149
    %v4691 = vsel %vm4653, %v4626, %v3151
    %v4693 = vsel %vm4653, %v4628, %v3153
    %v4695 = vsel %vm4653, %v4630, %v3155
    %v4697 = vsel %vm4653, %v4632, %v3157
    %v4699 = vsel %vm4653, %v4634, %v3159
    %v4701 = vsel %vm4653, %v4636, %v3161
    %v4703 = vsel %vm4653, %v4638, %v3163
    %v4705 = vsel %vm4653, %v4640, %v3165
    %v4707 = vsel %vm4653, %v4642, %v3167
    %v4709 = vsel %vm4653, %v4644, %v3169
    %v4711 = vsel %vm4653, %v4646, %v3171
    %v4713 = vsel %vm4653, %v4648, %v3173
    %v4715 = vsel %vm4653, %v4650, %v3175
    %v4717 = vsel %vm4653, %v4652, %v3177
    %vm4718 = vcmask 162816
    %v4720 = vsel %vm4718, %v4655, %v3371
    %v4722 = vsel %vm4718, %v4657, %v3373
    %v4724 = vsel %vm4718, %v4659, %v3375
    %v4726 = vsel %vm4718, %v4661, %v3377
    %v4728 = vsel %vm4718, %v4663, %v3379
    %v4730 = vsel %vm4718, %v4665, %v3381
    %v4732 = vsel %vm4718, %v4667, %v3383
    %v4734 = vsel %vm4718, %v4669, %v3385
    %v4736 = vsel %vm4718, %v4671, %v3387
    %v4738 = vsel %vm4718, %v4673, %v3389
    %v4740 = vsel %vm4718, %v4675, %v3391
    %v4742 = vsel %vm4718, %v4677, %v3393
    %v4744 = vsel %vm4718, %v4679, %v3395
    %v4746 = vsel %vm4718, %v4681, %v3397
    %v4748 = vsel %vm4718, %v4683, %v3399
    %v4750 = vsel %vm4718, %v4685, %v3401
    %v4752 = vsel %vm4718, %v4687, %v3403
    %v4754 = vsel %vm4718, %v4689, %v3405
    %v4756 = vsel %vm4718, %v4691, %v3407
    %v4758 = vsel %vm4718, %v4693, %v3409
    %v4760 = vsel %vm4718, %v4695, %v3411
    %v4762 = vsel %vm4718, %v4697, %v3413
    %v4764 = vsel %vm4718, %v4699, %v3415
    %v4766 = vsel %vm4718, %v4701, %v3417
    %v4768 = vsel %vm4718, %v4703, %v3419
    %v4770 = vsel %vm4718, %v4705, %v3421
    %v4772 = vsel %vm4718, %v4707, %v3423
    %v4774 = vsel %vm4718, %v4709, %v3425
    %v4776 = vsel %vm4718, %v4711, %v3427
    %v4778 = vsel %vm4718, %v4713, %v3429
    %v4780 = vsel %vm4718, %v4715, %v3431
    %v4782 = vsel %vm4718, %v4717, %v3433
    %vm4783 = vcmask 195584
    %v4785 = vsel %vm4783, %v4720, %v3595
    %v4787 = vsel %vm4783, %v4722, %v3597
    %v4789 = vsel %vm4783, %v4724, %v3599
    %v4791 = vsel %vm4783, %v4726, %v3601
    %v4793 = vsel %vm4783, %v4728, %v3603
    %v4795 = vsel %vm4783, %v4730, %v3605
    %v4797 = vsel %vm4783, %v4732, %v3607
    %v4799 = vsel %vm4783, %v4734, %v3609
    %v4801 = vsel %vm4783, %v4736, %v3611
    %v4803 = vsel %vm4783, %v4738, %v3613
    %v4805 = vsel %vm4783, %v4740, %v3615
    %v4807 = vsel %vm4783, %v4742, %v3617
    %v4809 = vsel %vm4783, %v4744, %v3619
    %v4811 = vsel %vm4783, %v4746, %v3621
    %v4813 = vsel %vm4783, %v4748, %v3623
    %v4815 = vsel %vm4783, %v4750, %v3625
    %v4817 = vsel %vm4783, %v4752, %v3627
    %v4819 = vsel %vm4783, %v4754, %v3629
    %v4821 = vsel %vm4783, %v4756, %v3631
    %v4823 = vsel %vm4783, %v4758, %v3633
    %v4825 = vsel %vm4783, %v4760, %v3635
    %v4827 = vsel %vm4783, %v4762, %v3637
    %v4829 = vsel %vm4783, %v4764, %v3639
    %v4831 = vsel %vm4783, %v4766, %v3641
    %v4833 = vsel %vm4783, %v4768, %v3643
    %v4835 = vsel %vm4783, %v4770, %v3645
    %v4837 = vsel %vm4783, %v4772, %v3647
    %v4839 = vsel %vm4783, %v4774, %v3649
    %v4841 = vsel %vm4783, %v4776, %v3651
    %v4843 = vsel %vm4783, %v4778, %v3653
    %v4845 = vsel %vm4783, %v4780, %v3655
    %v4847 = vsel %vm4783, %v4782, %v3657
    %vm4848 = vcmask 228352
    %v4850 = vsel %vm4848, %v4785, %v4139
    %v4852 = vsel %vm4848, %v4787, %v4141
    %v4854 = vsel %vm4848, %v4789, %v4143
    %v4856 = vsel %vm4848, %v4791, %v4145
    %v4858 = vsel %vm4848, %v4793, %v4147
    %v4860 = vsel %vm4848, %v4795, %v4149
    %v4862 = vsel %vm4848, %v4797, %v4151
    %v4864 = vsel %vm4848, %v4799, %v4153
    %v4866 = vsel %vm4848, %v4801, %v4155
    %v4868 = vsel %vm4848, %v4803, %v4157
    %v4870 = vsel %vm4848, %v4805, %v4159
    %v4872 = vsel %vm4848, %v4807, %v4161
    %v4874 = vsel %vm4848, %v4809, %v4163
    %v4876 = vsel %vm4848, %v4811, %v4165
    %v4878 = vsel %vm4848, %v4813, %v4167
    %v4880 = vsel %vm4848, %v4815, %v4169
    %v4882 = vsel %vm4848, %v4817, %v4171
    %v4884 = vsel %vm4848, %v4819, %v4173
    %v4886 = vsel %vm4848, %v4821, %v4175
    %v4888 = vsel %vm4848, %v4823, %v4177
    %v4890 = vsel %vm4848, %v4825, %v4179
    %v4892 = vsel %vm4848, %v4827, %v4181
    %v4894 = vsel %vm4848, %v4829, %v4183
    %v4896 = vsel %vm4848, %v4831, %v4185
    %v4898 = vsel %vm4848, %v4833, %v4187
    %v4900 = vsel %vm4848, %v4835, %v4189
    %v4902 = vsel %vm4848, %v4837, %v4191
    %v4904 = vsel %vm4848, %v4839, %v4193
    %v4906 = vsel %vm4848, %v4841, %v4195
    %v4908 = vsel %vm4848, %v4843, %v4197
    %v4910 = vsel %vm4848, %v4845, %v4199
    %v4912 = vsel %vm4848, %v4847, %v4201
    %vm4913 = vcmask 261120
    %v4915 = vsel %vm4913, %v4850, %v4395
    %v4917 = vsel %vm4913, %v4852, %v4397
    %v4919 = vsel %vm4913, %v4854, %v4399
    %v4921 = vsel %vm4913, %v4856, %v4401
    %v4923 = vsel %vm4913, %v4858, %v4403
    %v4925 = vsel %vm4913, %v4860, %v4405
    %v4927 = vsel %vm4913, %v4862, %v4407
    %v4929 = vsel %vm4913, %v4864, %v4409
    %v4931 = vsel %vm4913, %v4866, %v4411
    %v4933 = vsel %vm4913, %v4868, %v4413
    %v4935 = vsel %vm4913, %v4870, %v4415
    %v4937 = vsel %vm4913, %v4872, %v4417
    %v4939 = vsel %vm4913, %v4874, %v4419
    %v4941 = vsel %vm4913, %v4876, %v4421
    %v4943 = vsel %vm4913, %v4878, %v4423
    %v4945 = vsel %vm4913, %v4880, %v4425
    %v4947 = vsel %vm4913, %v4882, %v4427
    %v4949 = vsel %vm4913, %v4884, %v4429
    %v4951 = vsel %vm4913, %v4886, %v4431
    %v4953 = vsel %vm4913, %v4888, %v4433
    %v4955 = vsel %vm4913, %v4890, %v4435
    %v4957 = vsel %vm4913, %v4892, %v4437
    %v4959 = vsel %vm4913, %v4894, %v4439
    %v4961 = vsel %vm4913, %v4896, %v4441
    %v4963 = vsel %vm4913, %v4898, %v4443
    %v4965 = vsel %vm4913, %v4900, %v4445
    %v4967 = vsel %vm4913, %v4902, %v4447
    %v4969 = vsel %vm4913, %v4904, %v4449
    %v4971 = vsel %vm4913, %v4906, %v4451
    %v4973 = vsel %vm4913, %v4908, %v4453
    %v4975 = vsel %vm4913, %v4910, %v4455
    %v4977 = vsel %vm4913, %v4912, %v4457
    %vm4978 = vcmask 293888
    %v4980 = vsel %vm4978, %v4915, 0
    %v4982 = vsel %vm4978, %v4917, 0
    %v4984 = vsel %vm4978, %v4919, 0
    %v4986 = vsel %vm4978, %v4921, 0
    %v4988 = vsel %vm4978, %v4923, 0
    %v4990 = vsel %vm4978, %v4925, 0
    %v4992 = vsel %vm4978, %v4927, 0
    %v4994 = vsel %vm4978, %v4929, 0
    %v4996 = vsel %vm4978, %v4931, 0
    %v4998 = vsel %vm4978, %v4933, 0
    %v5000 = vsel %vm4978, %v4935, 0
    %v5002 = vsel %vm4978, %v4937, 0
    %v5004 = vsel %vm4978, %v4939, 0
    %v5006 = vsel %vm4978, %v4941, 0
    %v5008 = vsel %vm4978, %v4943, 0
    %v5010 = vsel %vm4978, %v4945, 0
    %v5012 = vsel %vm4978, %v4947, 0
    %v5014 = vsel %vm4978, %v4949, 0
    %v5016 = vsel %vm4978, %v4951, 0
    %v5018 = vsel %vm4978, %v4953, 0
    %v5020 = vsel %vm4978, %v4955, 0
    %v5022 = vsel %vm4978, %v4957, 0
    %v5024 = vsel %vm4978, %v4959, 0
    %v5026 = vsel %vm4978, %v4961, 0
    %v5028 = vsel %vm4978, %v4963, 0
    %v5030 = vsel %vm4978, %v4965, 0
    %v5032 = vsel %vm4978, %v4967, 0
    %v5034 = vsel %vm4978, %v4969, 0
    %v5036 = vsel %vm4978, %v4971, 0
    %v5038 = vsel %vm4978, %v4973, 0
    %v5040 = vsel %vm4978, %v4975, 0
    %v5042 = vsel %vm4978, %v4977, 0
    %v5044 = vld [vmem:[%s1] sm:$0xf]
    %v5045 = vld [vmem:[%s1 + $0x4] sm:$0xf]
    %v5046 = vld [vmem:[%s1 + $0x8] sm:$0xf]
    %v5047 = vld [vmem:[%s1 + $0xc] sm:$0xf]
    %v5048 = vld [vmem:[%s1 + $0x10] sm:$0xf]
    %v5049 = vld [vmem:[%s1 + $0x14] sm:$0xf]
    %v5050 = vld [vmem:[%s1 + $0x18] sm:$0xf]
    %v5051 = vld [vmem:[%s1 + $0x1c] sm:$0xf]
    %v5052 = vld [vmem:[%s1 + $0x20] sm:$0xf]
    %v5053 = vld [vmem:[%s1 + $0x24] sm:$0xf]
    %v5054 = vld [vmem:[%s1 + $0x28] sm:$0xf]
    %v5055 = vld [vmem:[%s1 + $0x2c] sm:$0xf]
    %v5056 = vld [vmem:[%s1 + $0x30] sm:$0xf]
    %v5057 = vld [vmem:[%s1 + $0x34] sm:$0xf]
    %v5058 = vld [vmem:[%s1 + $0x38] sm:$0xf]
    %v5059 = vld [vmem:[%s1 + $0x3c] sm:$0xf]
    %v5076 = vunpack.c.l.b16 %v5044
    %v5077 = vunpack.c.l.b16 %v5045
    %v5078 = vunpack.c.l.b16 %v5046
    %v5079 = vunpack.c.l.b16 %v5047
    %v5080 = vunpack.c.l.b16 %v5048
    %v5081 = vunpack.c.l.b16 %v5049
    %v5082 = vunpack.c.l.b16 %v5050
    %v5083 = vunpack.c.l.b16 %v5051
    %v5084 = vunpack.c.l.b16 %v5052
    %v5085 = vunpack.c.l.b16 %v5053
    %v5086 = vunpack.c.l.b16 %v5054
    %v5087 = vunpack.c.l.b16 %v5055
    %v5088 = vunpack.c.l.b16 %v5056
    %v5089 = vunpack.c.l.b16 %v5057
    %v5090 = vunpack.c.l.b16 %v5058
    %v5091 = vunpack.c.l.b16 %v5059
    %v5092 = vpack.c.b16 %v5077, %v5076
    %v5093 = vpack.c.b16 %v5079, %v5078
    %v5094 = vpack.c.b16 %v5081, %v5080
    %v5095 = vpack.c.b16 %v5083, %v5082
    %v5096 = vpack.c.b16 %v5085, %v5084
    %v5097 = vpack.c.b16 %v5087, %v5086
    %v5098 = vpack.c.b16 %v5089, %v5088
    %v5099 = vpack.c.b16 %v5091, %v5090
    %5108 = vmatprep.subr.bf16.mxu0 0
    %5109 = vmatpush1.bf16.msra.mxu0 %v5092
    %5110 = vmatprep.subr.bf16.mxu0 0
    %5111 = vmatpush1.bf16.msra.mxu0 %v5093
    %5112 = vmatprep.subr.bf16.mxu0 0
    %5113 = vmatpush1.bf16.msra.mxu0 %v5094
    %5114 = vmatprep.subr.bf16.mxu0 0
    %5115 = vmatpush1.bf16.msra.mxu0 %v5095
    %5116 = vmatprep.subr.bf16.mxu0 0
    %5117 = vmatpush1.bf16.msra.mxu0 %v5096
    %5118 = vmatprep.subr.bf16.mxu0 0
    %5119 = vmatpush1.bf16.msra.mxu0 %v5097
    %5120 = vmatprep.subr.bf16.mxu0 0
    %5121 = vmatpush1.bf16.msra.mxu0 %v5098
    %5122 = vmatprep.subr.bf16.mxu0 0
    %5123 = vmatpush1.bf16.msra.mxu0 %v5099
    %5124 = vmatprep.subr.bf16.mxu0 0
    %5125 = vmatpush1.bf16.msra.mxu0 0
    %5126 = vmatprep.subr.bf16.mxu0 0
    %5127 = vmatpush1.bf16.msra.mxu0 0
    %5128 = vmatprep.subr.bf16.mxu0 0
    %5129 = vmatpush1.bf16.msra.mxu0 0
    %5130 = vmatprep.subr.bf16.mxu0 0
    %5131 = vmatpush1.bf16.msra.mxu0 0
    %5132 = vmatprep.subr.bf16.mxu0 0
    %5133 = vmatpush1.bf16.msra.mxu0 0
    %5134 = vmatprep.subr.bf16.mxu0 0
    %5135 = vmatpush1.bf16.msra.mxu0 0
    %5136 = vmatprep.subr.bf16.mxu0 0
    %5137 = vmatpush1.bf16.msra.mxu0 0
    %5138 = vmatprep.subr.bf16.mxu0 0
    %5139 = vmatpush1.bf16.msra.mxu0 0
    %5140 = vmatprep.mubr.bf16.mxu0 0
    %5141 = vmatmul.mubr.bf16.gmra.mrb[0].mxu0 %v4980
    %v5142 = vpop.f32.mrb[0].mxu0
    %v5143 = vadd.f32 0.0, %v5142
    %v5144 = vpop.f32.mrb[0].mxu0
    %v5145 = vpop.f32.mrb[0].mxu0
    %v5146 = vadd.f32 0.0, %v5145
    %v5147 = vpop.f32.mrb[0].mxu0
    %5148 = vmatprep.mubr.bf16.mxu0 0
    %5149 = vmatmul.mubr.bf16.gmra.mrb[0].mxu0 %v4982
    %v5150 = vpop.f32.mrb[0].mxu0
    %v5151 = vadd.f32 0.0, %v5150
    %v5152 = vpop.f32.mrb[0].mxu0
    %v5153 = vpop.f32.mrb[0].mxu0
    %v5154 = vadd.f32 0.0, %v5153
    %v5155 = vpop.f32.mrb[0].mxu0
    %5156 = vmatprep.mubr.bf16.mxu0 0
    %5157 = vmatmul.mubr.bf16.gmra.mrb[0].mxu0 %v4984
    %v5158 = vpop.f32.mrb[0].mxu0
    %v5159 = vadd.f32 0.0, %v5158
    %v5160 = vpop.f32.mrb[0].mxu0
    %v5161 = vpop.f32.mrb[0].mxu0
    %v5162 = vadd.f32 0.0, %v5161
    %v5163 = vpop.f32.mrb[0].mxu0
    %5164 = vmatprep.mubr.bf16.mxu0 0
    %5165 = vmatmul.mubr.bf16.gmra.mrb[0].mxu0 %v4986
    %v5166 = vpop.f32.mrb[0].mxu0
    %v5167 = vadd.f32 0.0, %v5166
    %v5168 = vpop.f32.mrb[0].mxu0
    %v5169 = vpop.f32.mrb[0].mxu0
    %v5170 = vadd.f32 0.0, %v5169
    %v5171 = vpop.f32.mrb[0].mxu0
    %5172 = vmatprep.mubr.bf16.mxu0 0
    %5173 = vmatmul.mubr.bf16.gmra.mrb[0].mxu0 %v4988
    %v5174 = vpop.f32.mrb[0].mxu0
    %v5175 = vadd.f32 0.0, %v5174
    %v5176 = vpop.f32.mrb[0].mxu0
    %v5177 = vpop.f32.mrb[0].mxu0
    %v5178 = vadd.f32 0.0, %v5177
    %v5179 = vpop.f32.mrb[0].mxu0
    %5180 = vmatprep.mubr.bf16.mxu0 0
    %5181 = vmatmul.mubr.bf16.gmra.mrb[0].mxu0 %v4990
    %v5182 = vpop.f32.mrb[0].mxu0
    %v5183 = vadd.f32 0.0, %v5182
    %v5184 = vpop.f32.mrb[0].mxu0
    %v5185 = vpop.f32.mrb[0].mxu0
    %v5186 = vadd.f32 0.0, %v5185
    %v5187 = vpop.f32.mrb[0].mxu0
    %5188 = vmatprep.mubr.bf16.mxu0 0
    %5189 = vmatmul.mubr.bf16.gmra.mrb[0].mxu0 %v4992
    %v5190 = vpop.f32.mrb[0].mxu0
    %v5191 = vadd.f32 0.0, %v5190
    %v5192 = vpop.f32.mrb[0].mxu0
    %v5193 = vpop.f32.mrb[0].mxu0
    %v5194 = vadd.f32 0.0, %v5193
    %v5195 = vpop.f32.mrb[0].mxu0
    %5196 = vmatprep.mubr.bf16.mxu0 0
    %5197 = vmatmul.mubr.bf16.gmra.mrb[0].mxu0 %v4994
    %v5198 = vpop.f32.mrb[0].mxu0
    %v5199 = vadd.f32 0.0, %v5198
    %v5200 = vpop.f32.mrb[0].mxu0
    %v5201 = vpop.f32.mrb[0].mxu0
    %v5202 = vadd.f32 0.0, %v5201
    %v5203 = vpop.f32.mrb[0].mxu0
    %5204 = vmatprep.mubr.bf16.mxu0 0
    %5205 = vmatmul.mubr.bf16.gmra.mrb[0].mxu0 %v4996
    %v5206 = vpop.f32.mrb[0].mxu0
    %v5207 = vadd.f32 0.0, %v5206
    %v5208 = vpop.f32.mrb[0].mxu0
    %v5209 = vpop.f32.mrb[0].mxu0
    %v5210 = vadd.f32 0.0, %v5209
    %v5211 = vpop.f32.mrb[0].mxu0
    %5212 = vmatprep.mubr.bf16.mxu0 0
    %5213 = vmatmul.mubr.bf16.gmra.mrb[0].mxu0 %v4998
    %v5214 = vpop.f32.mrb[0].mxu0
    %v5215 = vadd.f32 0.0, %v5214
    %v5216 = vpop.f32.mrb[0].mxu0
    %v5217 = vpop.f32.mrb[0].mxu0
    %v5218 = vadd.f32 0.0, %v5217
    %v5219 = vpop.f32.mrb[0].mxu0
    %5220 = vmatprep.mubr.bf16.mxu0 0
    %5221 = vmatmul.mubr.bf16.gmra.mrb[0].mxu0 %v5000
    %v5222 = vpop.f32.mrb[0].mxu0
    %v5223 = vadd.f32 0.0, %v5222
    %v5224 = vpop.f32.mrb[0].mxu0
    %v5225 = vpop.f32.mrb[0].mxu0
    %v5226 = vadd.f32 0.0, %v5225
    %v5227 = vpop.f32.mrb[0].mxu0
    %5228 = vmatprep.mubr.bf16.mxu0 0
    %5229 = vmatmul.mubr.bf16.gmra.mrb[0].mxu0 %v5002
    %v5230 = vpop.f32.mrb[0].mxu0
    %v5231 = vadd.f32 0.0, %v5230
    %v5232 = vpop.f32.mrb[0].mxu0
    %v5233 = vpop.f32.mrb[0].mxu0
    %v5234 = vadd.f32 0.0, %v5233
    %v5235 = vpop.f32.mrb[0].mxu0
    %5236 = vmatprep.mubr.bf16.mxu0 0
    %5237 = vmatmul.mubr.bf16.gmra.mrb[0].mxu0 %v5004
    %v5238 = vpop.f32.mrb[0].mxu0
    %v5239 = vadd.f32 0.0, %v5238
    %v5240 = vpop.f32.mrb[0].mxu0
    %v5241 = vpop.f32.mrb[0].mxu0
    %v5242 = vadd.f32 0.0, %v5241
    %v5243 = vpop.f32.mrb[0].mxu0
    %5244 = vmatprep.mubr.bf16.mxu0 0
    %5245 = vmatmul.mubr.bf16.gmra.mrb[0].mxu0 %v5006
    %v5246 = vpop.f32.mrb[0].mxu0
    %v5247 = vadd.f32 0.0, %v5246
    %v5248 = vpop.f32.mrb[0].mxu0
    %v5249 = vpop.f32.mrb[0].mxu0
    %v5250 = vadd.f32 0.0, %v5249
    %v5251 = vpop.f32.mrb[0].mxu0
    %5252 = vmatprep.mubr.bf16.mxu0 0
    %5253 = vmatmul.mubr.bf16.gmra.mrb[0].mxu0 %v5008
    %v5254 = vpop.f32.mrb[0].mxu0
    %v5255 = vadd.f32 0.0, %v5254
    %v5256 = vpop.f32.mrb[0].mxu0
    %v5257 = vpop.f32.mrb[0].mxu0
    %v5258 = vadd.f32 0.0, %v5257
    %v5259 = vpop.f32.mrb[0].mxu0
    %5260 = vmatprep.mubr.bf16.mxu0 0
    %5261 = vmatmul.mubr.bf16.gmra.mrb[0].mxu0 %v5010
    %v5262 = vpop.f32.mrb[0].mxu0
    %v5263 = vadd.f32 0.0, %v5262
    %v5264 = vpop.f32.mrb[0].mxu0
    %v5265 = vpop.f32.mrb[0].mxu0
    %v5266 = vadd.f32 0.0, %v5265
    %v5267 = vpop.f32.mrb[0].mxu0
    %5268 = vmatprep.mubr.bf16.mxu0 0
    %5269 = vmatmul.mubr.bf16.gmra.mrb[0].mxu0 %v5012
    %v5270 = vpop.f32.mrb[0].mxu0
    %v5271 = vadd.f32 0.0, %v5270
    %v5272 = vpop.f32.mrb[0].mxu0
    %v5273 = vpop.f32.mrb[0].mxu0
    %v5274 = vadd.f32 0.0, %v5273
    %v5275 = vpop.f32.mrb[0].mxu0
    %5276 = vmatprep.mubr.bf16.mxu0 0
    %5277 = vmatmul.mubr.bf16.gmra.mrb[0].mxu0 %v5014
    %v5278 = vpop.f32.mrb[0].mxu0
    %v5279 = vadd.f32 0.0, %v5278
    %v5280 = vpop.f32.mrb[0].mxu0
    %v5281 = vpop.f32.mrb[0].mxu0
    %v5282 = vadd.f32 0.0, %v5281
    %v5283 = vpop.f32.mrb[0].mxu0
    %5284 = vmatprep.mubr.bf16.mxu0 0
    %5285 = vmatmul.mubr.bf16.gmra.mrb[0].mxu0 %v5016
    %v5286 = vpop.f32.mrb[0].mxu0
    %v5287 = vadd.f32 0.0, %v5286
    %v5288 = vpop.f32.mrb[0].mxu0
    %v5289 = vpop.f32.mrb[0].mxu0
    %v5290 = vadd.f32 0.0, %v5289
    %v5291 = vpop.f32.mrb[0].mxu0
    %5292 = vmatprep.mubr.bf16.mxu0 0
    %5293 = vmatmul.mubr.bf16.gmra.mrb[0].mxu0 %v5018
    %v5294 = vpop.f32.mrb[0].mxu0
    %v5295 = vadd.f32 0.0, %v5294
    %v5296 = vpop.f32.mrb[0].mxu0
    %v5297 = vpop.f32.mrb[0].mxu0
    %v5298 = vadd.f32 0.0, %v5297
    %v5299 = vpop.f32.mrb[0].mxu0
    %5300 = vmatprep.mubr.bf16.mxu0 0
    %5301 = vmatmul.mubr.bf16.gmra.mrb[0].mxu0 %v5020
    %v5302 = vpop.f32.mrb[0].mxu0
    %v5303 = vadd.f32 0.0, %v5302
    %v5304 = vpop.f32.mrb[0].mxu0
    %v5305 = vpop.f32.mrb[0].mxu0
    %v5306 = vadd.f32 0.0, %v5305
    %v5307 = vpop.f32.mrb[0].mxu0
    %5308 = vmatprep.mubr.bf16.mxu0 0
    %5309 = vmatmul.mubr.bf16.gmra.mrb[0].mxu0 %v5022
    %v5310 = vpop.f32.mrb[0].mxu0
    %v5311 = vadd.f32 0.0, %v5310
    %v5312 = vpop.f32.mrb[0].mxu0
    %v5313 = vpop.f32.mrb[0].mxu0
    %v5314 = vadd.f32 0.0, %v5313
    %v5315 = vpop.f32.mrb[0].mxu0
    %5316 = vmatprep.mubr.bf16.mxu0 0
    %5317 = vmatmul.mubr.bf16.gmra.mrb[0].mxu0 %v5024
    %v5318 = vpop.f32.mrb[0].mxu0
    %v5319 = vadd.f32 0.0, %v5318
    %v5320 = vpop.f32.mrb[0].mxu0
    %v5321 = vpop.f32.mrb[0].mxu0
    %v5322 = vadd.f32 0.0, %v5321
    %v5323 = vpop.f32.mrb[0].mxu0
    %5324 = vmatprep.mubr.bf16.mxu0 0
    %5325 = vmatmul.mubr.bf16.gmra.mrb[0].mxu0 %v5026
    %v5326 = vpop.f32.mrb[0].mxu0
    %v5327 = vadd.f32 0.0, %v5326
    %v5328 = vpop.f32.mrb[0].mxu0
    %v5329 = vpop.f32.mrb[0].mxu0
    %v5330 = vadd.f32 0.0, %v5329
    %v5331 = vpop.f32.mrb[0].mxu0
    %5332 = vmatprep.mubr.bf16.mxu0 0
    %5333 = vmatmul.mubr.bf16.gmra.mrb[0].mxu0 %v5028
    %v5334 = vpop.f32.mrb[0].mxu0
    %v5335 = vadd.f32 0.0, %v5334
    %v5336 = vpop.f32.mrb[0].mxu0
    %v5337 = vpop.f32.mrb[0].mxu0
    %v5338 = vadd.f32 0.0, %v5337
    %v5339 = vpop.f32.mrb[0].mxu0
    %5340 = vmatprep.mubr.bf16.mxu0 0
    %5341 = vmatmul.mubr.bf16.gmra.mrb[0].mxu0 %v5030
    %v5342 = vpop.f32.mrb[0].mxu0
    %v5343 = vadd.f32 0.0, %v5342
    %v5344 = vpop.f32.mrb[0].mxu0
    %v5345 = vpop.f32.mrb[0].mxu0
    %v5346 = vadd.f32 0.0, %v5345
    %v5347 = vpop.f32.mrb[0].mxu0
    %5348 = vmatprep.mubr.bf16.mxu0 0
    %5349 = vmatmul.mubr.bf16.gmra.mrb[0].mxu0 %v5032
    %v5350 = vpop.f32.mrb[0].mxu0
    %v5351 = vadd.f32 0.0, %v5350
    %v5352 = vpop.f32.mrb[0].mxu0
    %v5353 = vpop.f32.mrb[0].mxu0
    %v5354 = vadd.f32 0.0, %v5353
    %v5355 = vpop.f32.mrb[0].mxu0
    %5356 = vmatprep.mubr.bf16.mxu0 0
    %5357 = vmatmul.mubr.bf16.gmra.mrb[0].mxu0 %v5034
    %v5358 = vpop.f32.mrb[0].mxu0
    %v5359 = vadd.f32 0.0, %v5358
    %v5360 = vpop.f32.mrb[0].mxu0
    %v5361 = vpop.f32.mrb[0].mxu0
    %v5362 = vadd.f32 0.0, %v5361
    %v5363 = vpop.f32.mrb[0].mxu0
    %5364 = vmatprep.mubr.bf16.mxu0 0
    %5365 = vmatmul.mubr.bf16.gmra.mrb[0].mxu0 %v5036
    %v5366 = vpop.f32.mrb[0].mxu0
    %v5367 = vadd.f32 0.0, %v5366
    %v5368 = vpop.f32.mrb[0].mxu0
    %v5369 = vpop.f32.mrb[0].mxu0
    %v5370 = vadd.f32 0.0, %v5369
    %v5371 = vpop.f32.mrb[0].mxu0
    %5372 = vmatprep.mubr.bf16.mxu0 0
    %5373 = vmatmul.mubr.bf16.gmra.mrb[0].mxu0 %v5038
    %v5374 = vpop.f32.mrb[0].mxu0
    %v5375 = vadd.f32 0.0, %v5374
    %v5376 = vpop.f32.mrb[0].mxu0
    %v5377 = vpop.f32.mrb[0].mxu0
    %v5378 = vadd.f32 0.0, %v5377
    %v5379 = vpop.f32.mrb[0].mxu0
    %5380 = vmatprep.mubr.bf16.mxu0 0
    %5381 = vmatmul.mubr.bf16.gmra.mrb[0].mxu0 %v5040
    %v5382 = vpop.f32.mrb[0].mxu0
    %v5383 = vadd.f32 0.0, %v5382
    %v5384 = vpop.f32.mrb[0].mxu0
    %v5385 = vpop.f32.mrb[0].mxu0
    %v5386 = vadd.f32 0.0, %v5385
    %v5387 = vpop.f32.mrb[0].mxu0
    %5388 = vmatprep.mubr.bf16.mxu0 0
    %5389 = vmatmul.mubr.bf16.gmra.mrb[0].mxu0 %v5042
    %v5390 = vpop.f32.mrb[0].mxu0
    %v5391 = vadd.f32 0.0, %v5390
    %v5392 = vpop.f32.mrb[0].mxu0
    %v5393 = vpop.f32.mrb[0].mxu0
    %v5394 = vadd.f32 0.0, %v5393
    %v5395 = vpop.f32.mrb[0].mxu0
    %5396 = vdwg.mxu0
    %v5397 = vld [vmem:[%s2] sm:$0x1]
    %v5462 = vcombine.high %v5143, %v5143
    %v5464 = vunpack.c.l.s4 1983009808
    %v5465 = vunpack.c.0.s8 %v5464
    %v5466 = vlaneseq
    %v5467 = vshrl.u32 %v5466, 7
    %v5468 = vsub.s32 %v5465, %v5467
    %v5469 = vrot.slane %v5143, %v5468
    %v5471 = vunpack.c.l.s4 1983009808
    %v5472 = vunpack.c.0.s8 %v5471
    %v5473 = vlaneseq
    %v5474 = vshrl.u32 %v5473, 7
    %v5475 = vsub.s32 %v5472, %v5474
    %v5476 = vrot.slane %v5462, %v5475
    %v5477 = vcombine.high %v5469, %v5469
    %v5478 = vcombine.high %v5476, %v5476
    %v5479 = vcombine.high %v5146, %v5146
    %v5481 = vunpack.c.l.s4 1983009808
    %v5482 = vunpack.c.0.s8 %v5481
    %v5483 = vlaneseq
    %v5484 = vshrl.u32 %v5483, 7
    %v5485 = vsub.s32 %v5482, %v5484
    %v5486 = vrot.slane %v5146, %v5485
    %v5488 = vunpack.c.l.s4 1983009808
    %v5489 = vunpack.c.0.s8 %v5488
    %v5490 = vlaneseq
    %v5491 = vshrl.u32 %v5490, 7
    %v5492 = vsub.s32 %v5489, %v5491
    %v5493 = vrot.slane %v5479, %v5492
    %v5494 = vcombine.high %v5486, %v5486
    %v5495 = vcombine.high %v5493, %v5493
    %v5496 = vcombine.high %v5151, %v5151
    %v5498 = vunpack.c.l.s4 1983009808
    %v5499 = vunpack.c.0.s8 %v5498
    %v5500 = vlaneseq
    %v5501 = vshrl.u32 %v5500, 7
    %v5502 = vsub.s32 %v5499, %v5501
    %v5503 = vrot.slane %v5151, %v5502
    %v5505 = vunpack.c.l.s4 1983009808
    %v5506 = vunpack.c.0.s8 %v5505
    %v5507 = vlaneseq
    %v5508 = vshrl.u32 %v5507, 7
    %v5509 = vsub.s32 %v5506, %v5508
    %v5510 = vrot.slane %v5496, %v5509
    %v5511 = vcombine.high %v5503, %v5503
    %v5512 = vcombine.high %v5510, %v5510
    %v5513 = vcombine.high %v5154, %v5154
    %v5515 = vunpack.c.l.s4 1983009808
    %v5516 = vunpack.c.0.s8 %v5515
    %v5517 = vlaneseq
    %v5518 = vshrl.u32 %v5517, 7
    %v5519 = vsub.s32 %v5516, %v5518
    %v5520 = vrot.slane %v5154, %v5519
    %v5522 = vunpack.c.l.s4 1983009808
    %v5523 = vunpack.c.0.s8 %v5522
    %v5524 = vlaneseq
    %v5525 = vshrl.u32 %v5524, 7
    %v5526 = vsub.s32 %v5523, %v5525
    %v5527 = vrot.slane %v5513, %v5526
    %v5528 = vcombine.high %v5520, %v5520
    %v5529 = vcombine.high %v5527, %v5527
    %v5530 = vcombine.high %v5159, %v5159
    %v5532 = vunpack.c.l.s4 1983009808
    %v5533 = vunpack.c.0.s8 %v5532
    %v5534 = vlaneseq
    %v5535 = vshrl.u32 %v5534, 7
    %v5536 = vsub.s32 %v5533, %v5535
    %v5537 = vrot.slane %v5159, %v5536
    %v5539 = vunpack.c.l.s4 1983009808
    %v5540 = vunpack.c.0.s8 %v5539
    %v5541 = vlaneseq
    %v5542 = vshrl.u32 %v5541, 7
    %v5543 = vsub.s32 %v5540, %v5542
    %v5544 = vrot.slane %v5530, %v5543
    %v5545 = vcombine.high %v5537, %v5537
    %v5546 = vcombine.high %v5544, %v5544
    %v5547 = vcombine.high %v5162, %v5162
    %v5549 = vunpack.c.l.s4 1983009808
    %v5550 = vunpack.c.0.s8 %v5549
    %v5551 = vlaneseq
    %v5552 = vshrl.u32 %v5551, 7
    %v5553 = vsub.s32 %v5550, %v5552
    %v5554 = vrot.slane %v5162, %v5553
    %v5556 = vunpack.c.l.s4 1983009808
    %v5557 = vunpack.c.0.s8 %v5556
    %v5558 = vlaneseq
    %v5559 = vshrl.u32 %v5558, 7
    %v5560 = vsub.s32 %v5557, %v5559
    %v5561 = vrot.slane %v5547, %v5560
    %v5562 = vcombine.high %v5554, %v5554
    %v5563 = vcombine.high %v5561, %v5561
    %v5564 = vcombine.high %v5167, %v5167
    %v5566 = vunpack.c.l.s4 1983009808
    %v5567 = vunpack.c.0.s8 %v5566
    %v5568 = vlaneseq
    %v5569 = vshrl.u32 %v5568, 7
    %v5570 = vsub.s32 %v5567, %v5569
    %v5571 = vrot.slane %v5167, %v5570
    %v5573 = vunpack.c.l.s4 1983009808
    %v5574 = vunpack.c.0.s8 %v5573
    %v5575 = vlaneseq
    %v5576 = vshrl.u32 %v5575, 7
    %v5577 = vsub.s32 %v5574, %v5576
    %v5578 = vrot.slane %v5564, %v5577
    %v5579 = vcombine.high %v5571, %v5571
    %v5580 = vcombine.high %v5578, %v5578
    %v5581 = vcombine.high %v5170, %v5170
    %v5583 = vunpack.c.l.s4 1983009808
    %v5584 = vunpack.c.0.s8 %v5583
    %v5585 = vlaneseq
    %v5586 = vshrl.u32 %v5585, 7
    %v5587 = vsub.s32 %v5584, %v5586
    %v5588 = vrot.slane %v5170, %v5587
    %v5590 = vunpack.c.l.s4 1983009808
    %v5591 = vunpack.c.0.s8 %v5590
    %v5592 = vlaneseq
    %v5593 = vshrl.u32 %v5592, 7
    %v5594 = vsub.s32 %v5591, %v5593
    %v5595 = vrot.slane %v5581, %v5594
    %v5596 = vcombine.high %v5588, %v5588
    %v5597 = vcombine.high %v5595, %v5595
    %v5598 = vcombine.high %v5175, %v5175
    %v5600 = vunpack.c.l.s4 1983009808
    %v5601 = vunpack.c.0.s8 %v5600
    %v5602 = vlaneseq
    %v5603 = vshrl.u32 %v5602, 7
    %v5604 = vsub.s32 %v5601, %v5603
    %v5605 = vrot.slane %v5175, %v5604
    %v5607 = vunpack.c.l.s4 1983009808
    %v5608 = vunpack.c.0.s8 %v5607
    %v5609 = vlaneseq
    %v5610 = vshrl.u32 %v5609, 7
    %v5611 = vsub.s32 %v5608, %v5610
    %v5612 = vrot.slane %v5598, %v5611
    %v5613 = vcombine.high %v5605, %v5605
    %v5614 = vcombine.high %v5612, %v5612
    %v5615 = vcombine.high %v5178, %v5178
    %v5617 = vunpack.c.l.s4 1983009808
    %v5618 = vunpack.c.0.s8 %v5617
    %v5619 = vlaneseq
    %v5620 = vshrl.u32 %v5619, 7
    %v5621 = vsub.s32 %v5618, %v5620
    %v5622 = vrot.slane %v5178, %v5621
    %v5624 = vunpack.c.l.s4 1983009808
    %v5625 = vunpack.c.0.s8 %v5624
    %v5626 = vlaneseq
    %v5627 = vshrl.u32 %v5626, 7
    %v5628 = vsub.s32 %v5625, %v5627
    %v5629 = vrot.slane %v5615, %v5628
    %v5630 = vcombine.high %v5622, %v5622
    %v5631 = vcombine.high %v5629, %v5629
    %v5632 = vcombine.high %v5183, %v5183
    %v5634 = vunpack.c.l.s4 1983009808
    %v5635 = vunpack.c.0.s8 %v5634
    %v5636 = vlaneseq
    %v5637 = vshrl.u32 %v5636, 7
    %v5638 = vsub.s32 %v5635, %v5637
    %v5639 = vrot.slane %v5183, %v5638
    %v5641 = vunpack.c.l.s4 1983009808
    %v5642 = vunpack.c.0.s8 %v5641
    %v5643 = vlaneseq
    %v5644 = vshrl.u32 %v5643, 7
    %v5645 = vsub.s32 %v5642, %v5644
    %v5646 = vrot.slane %v5632, %v5645
    %v5647 = vcombine.high %v5639, %v5639
    %v5648 = vcombine.high %v5646, %v5646
    %v5649 = vcombine.high %v5186, %v5186
    %v5651 = vunpack.c.l.s4 1983009808
    %v5652 = vunpack.c.0.s8 %v5651
    %v5653 = vlaneseq
    %v5654 = vshrl.u32 %v5653, 7
    %v5655 = vsub.s32 %v5652, %v5654
    %v5656 = vrot.slane %v5186, %v5655
    %v5658 = vunpack.c.l.s4 1983009808
    %v5659 = vunpack.c.0.s8 %v5658
    %v5660 = vlaneseq
    %v5661 = vshrl.u32 %v5660, 7
    %v5662 = vsub.s32 %v5659, %v5661
    %v5663 = vrot.slane %v5649, %v5662
    %v5664 = vcombine.high %v5656, %v5656
    %v5665 = vcombine.high %v5663, %v5663
    %v5666 = vcombine.high %v5191, %v5191
    %v5668 = vunpack.c.l.s4 1983009808
    %v5669 = vunpack.c.0.s8 %v5668
    %v5670 = vlaneseq
    %v5671 = vshrl.u32 %v5670, 7
    %v5672 = vsub.s32 %v5669, %v5671
    %v5673 = vrot.slane %v5191, %v5672
    %v5675 = vunpack.c.l.s4 1983009808
    %v5676 = vunpack.c.0.s8 %v5675
    %v5677 = vlaneseq
    %v5678 = vshrl.u32 %v5677, 7
    %v5679 = vsub.s32 %v5676, %v5678
    %v5680 = vrot.slane %v5666, %v5679
    %v5681 = vcombine.high %v5673, %v5673
    %v5682 = vcombine.high %v5680, %v5680
    %v5683 = vcombine.high %v5194, %v5194
    %v5685 = vunpack.c.l.s4 1983009808
    %v5686 = vunpack.c.0.s8 %v5685
    %v5687 = vlaneseq
    %v5688 = vshrl.u32 %v5687, 7
    %v5689 = vsub.s32 %v5686, %v5688
    %v5690 = vrot.slane %v5194, %v5689
    %v5692 = vunpack.c.l.s4 1983009808
    %v5693 = vunpack.c.0.s8 %v5692
    %v5694 = vlaneseq
    %v5695 = vshrl.u32 %v5694, 7
    %v5696 = vsub.s32 %v5693, %v5695
    %v5697 = vrot.slane %v5683, %v5696
    %v5698 = vcombine.high %v5690, %v5690
    %v5699 = vcombine.high %v5697, %v5697
    %v5700 = vcombine.high %v5199, %v5199
    %v5702 = vunpack.c.l.s4 1983009808
    %v5703 = vunpack.c.0.s8 %v5702
    %v5704 = vlaneseq
    %v5705 = vshrl.u32 %v5704, 7
    %v5706 = vsub.s32 %v5703, %v5705
    %v5707 = vrot.slane %v5199, %v5706
    %v5709 = vunpack.c.l.s4 1983009808
    %v5710 = vunpack.c.0.s8 %v5709
    %v5711 = vlaneseq
    %v5712 = vshrl.u32 %v5711, 7
    %v5713 = vsub.s32 %v5710, %v5712
    %v5714 = vrot.slane %v5700, %v5713
    %v5715 = vcombine.high %v5707, %v5707
    %v5716 = vcombine.high %v5714, %v5714
    %v5717 = vcombine.high %v5202, %v5202
    %v5719 = vunpack.c.l.s4 1983009808
    %v5720 = vunpack.c.0.s8 %v5719
    %v5721 = vlaneseq
    %v5722 = vshrl.u32 %v5721, 7
    %v5723 = vsub.s32 %v5720, %v5722
    %v5724 = vrot.slane %v5202, %v5723
    %v5726 = vunpack.c.l.s4 1983009808
    %v5727 = vunpack.c.0.s8 %v5726
    %v5728 = vlaneseq
    %v5729 = vshrl.u32 %v5728, 7
    %v5730 = vsub.s32 %v5727, %v5729
    %v5731 = vrot.slane %v5717, %v5730
    %v5732 = vcombine.high %v5724, %v5724
    %v5733 = vcombine.high %v5731, %v5731
    %v5734 = vcombine.high %v5207, %v5207
    %v5736 = vunpack.c.l.s4 1983009808
    %v5737 = vunpack.c.0.s8 %v5736
    %v5738 = vlaneseq
    %v5739 = vshrl.u32 %v5738, 7
    %v5740 = vsub.s32 %v5737, %v5739
    %v5741 = vrot.slane %v5207, %v5740
    %v5743 = vunpack.c.l.s4 1983009808
    %v5744 = vunpack.c.0.s8 %v5743
    %v5745 = vlaneseq
    %v5746 = vshrl.u32 %v5745, 7
    %v5747 = vsub.s32 %v5744, %v5746
    %v5748 = vrot.slane %v5734, %v5747
    %v5749 = vcombine.high %v5741, %v5741
    %v5750 = vcombine.high %v5748, %v5748
    %v5751 = vcombine.high %v5210, %v5210
    %v5753 = vunpack.c.l.s4 1983009808
    %v5754 = vunpack.c.0.s8 %v5753
    %v5755 = vlaneseq
    %v5756 = vshrl.u32 %v5755, 7
    %v5757 = vsub.s32 %v5754, %v5756
    %v5758 = vrot.slane %v5210, %v5757
    %v5760 = vunpack.c.l.s4 1983009808
    %v5761 = vunpack.c.0.s8 %v5760
    %v5762 = vlaneseq
    %v5763 = vshrl.u32 %v5762, 7
    %v5764 = vsub.s32 %v5761, %v5763
    %v5765 = vrot.slane %v5751, %v5764
    %v5766 = vcombine.high %v5758, %v5758
    %v5767 = vcombine.high %v5765, %v5765
    %v5768 = vcombine.high %v5215, %v5215
    %v5770 = vunpack.c.l.s4 1983009808
    %v5771 = vunpack.c.0.s8 %v5770
    %v5772 = vlaneseq
    %v5773 = vshrl.u32 %v5772, 7
    %v5774 = vsub.s32 %v5771, %v5773
    %v5775 = vrot.slane %v5215, %v5774
    %v5777 = vunpack.c.l.s4 1983009808
    %v5778 = vunpack.c.0.s8 %v5777
    %v5779 = vlaneseq
    %v5780 = vshrl.u32 %v5779, 7
    %v5781 = vsub.s32 %v5778, %v5780
    %v5782 = vrot.slane %v5768, %v5781
    %v5783 = vcombine.high %v5775, %v5775
    %v5784 = vcombine.high %v5782, %v5782
    %v5785 = vcombine.high %v5218, %v5218
    %v5787 = vunpack.c.l.s4 1983009808
    %v5788 = vunpack.c.0.s8 %v5787
    %v5789 = vlaneseq
    %v5790 = vshrl.u32 %v5789, 7
    %v5791 = vsub.s32 %v5788, %v5790
    %v5792 = vrot.slane %v5218, %v5791
    %v5794 = vunpack.c.l.s4 1983009808
    %v5795 = vunpack.c.0.s8 %v5794
    %v5796 = vlaneseq
    %v5797 = vshrl.u32 %v5796, 7
    %v5798 = vsub.s32 %v5795, %v5797
    %v5799 = vrot.slane %v5785, %v5798
    %v5800 = vcombine.high %v5792, %v5792
    %v5801 = vcombine.high %v5799, %v5799
    %v5802 = vcombine.high %v5223, %v5223
    %v5804 = vunpack.c.l.s4 1983009808
    %v5805 = vunpack.c.0.s8 %v5804
    %v5806 = vlaneseq
    %v5807 = vshrl.u32 %v5806, 7
    %v5808 = vsub.s32 %v5805, %v5807
    %v5809 = vrot.slane %v5223, %v5808
    %v5811 = vunpack.c.l.s4 1983009808
    %v5812 = vunpack.c.0.s8 %v5811
    %v5813 = vlaneseq
    %v5814 = vshrl.u32 %v5813, 7
    %v5815 = vsub.s32 %v5812, %v5814
    %v5816 = vrot.slane %v5802, %v5815
    %v5817 = vcombine.high %v5809, %v5809
    %v5818 = vcombine.high %v5816, %v5816
    %v5819 = vcombine.high %v5226, %v5226
    %v5821 = vunpack.c.l.s4 1983009808
    %v5822 = vunpack.c.0.s8 %v5821
    %v5823 = vlaneseq
    %v5824 = vshrl.u32 %v5823, 7
    %v5825 = vsub.s32 %v5822, %v5824
    %v5826 = vrot.slane %v5226, %v5825
    %v5828 = vunpack.c.l.s4 1983009808
    %v5829 = vunpack.c.0.s8 %v5828
    %v5830 = vlaneseq
    %v5831 = vshrl.u32 %v5830, 7
    %v5832 = vsub.s32 %v5829, %v5831
    %v5833 = vrot.slane %v5819, %v5832
    %v5834 = vcombine.high %v5826, %v5826
    %v5835 = vcombine.high %v5833, %v5833
    %v5836 = vcombine.high %v5231, %v5231
    %v5838 = vunpack.c.l.s4 1983009808
    %v5839 = vunpack.c.0.s8 %v5838
    %v5840 = vlaneseq
    %v5841 = vshrl.u32 %v5840, 7
    %v5842 = vsub.s32 %v5839, %v5841
    %v5843 = vrot.slane %v5231, %v5842
    %v5845 = vunpack.c.l.s4 1983009808
    %v5846 = vunpack.c.0.s8 %v5845
    %v5847 = vlaneseq
    %v5848 = vshrl.u32 %v5847, 7
    %v5849 = vsub.s32 %v5846, %v5848
    %v5850 = vrot.slane %v5836, %v5849
    %v5851 = vcombine.high %v5843, %v5843
    %v5852 = vcombine.high %v5850, %v5850
    %v5853 = vcombine.high %v5234, %v5234
    %v5855 = vunpack.c.l.s4 1983009808
    %v5856 = vunpack.c.0.s8 %v5855
    %v5857 = vlaneseq
    %v5858 = vshrl.u32 %v5857, 7
    %v5859 = vsub.s32 %v5856, %v5858
    %v5860 = vrot.slane %v5234, %v5859
    %v5862 = vunpack.c.l.s4 1983009808
    %v5863 = vunpack.c.0.s8 %v5862
    %v5864 = vlaneseq
    %v5865 = vshrl.u32 %v5864, 7
    %v5866 = vsub.s32 %v5863, %v5865
    %v5867 = vrot.slane %v5853, %v5866
    %v5868 = vcombine.high %v5860, %v5860
    %v5869 = vcombine.high %v5867, %v5867
    %v5870 = vcombine.high %v5239, %v5239
    %v5872 = vunpack.c.l.s4 1983009808
    %v5873 = vunpack.c.0.s8 %v5872
    %v5874 = vlaneseq
    %v5875 = vshrl.u32 %v5874, 7
    %v5876 = vsub.s32 %v5873, %v5875
    %v5877 = vrot.slane %v5239, %v5876
    %v5879 = vunpack.c.l.s4 1983009808
    %v5880 = vunpack.c.0.s8 %v5879
    %v5881 = vlaneseq
    %v5882 = vshrl.u32 %v5881, 7
    %v5883 = vsub.s32 %v5880, %v5882
    %v5884 = vrot.slane %v5870, %v5883
    %v5885 = vcombine.high %v5877, %v5877
    %v5886 = vcombine.high %v5884, %v5884
    %v5887 = vcombine.high %v5242, %v5242
    %v5889 = vunpack.c.l.s4 1983009808
    %v5890 = vunpack.c.0.s8 %v5889
    %v5891 = vlaneseq
    %v5892 = vshrl.u32 %v5891, 7
    %v5893 = vsub.s32 %v5890, %v5892
    %v5894 = vrot.slane %v5242, %v5893
    %v5896 = vunpack.c.l.s4 1983009808
    %v5897 = vunpack.c.0.s8 %v5896
    %v5898 = vlaneseq
    %v5899 = vshrl.u32 %v5898, 7
    %v5900 = vsub.s32 %v5897, %v5899
    %v5901 = vrot.slane %v5887, %v5900
    %v5902 = vcombine.high %v5894, %v5894
    %v5903 = vcombine.high %v5901, %v5901
    %v5904 = vcombine.high %v5247, %v5247
    %v5906 = vunpack.c.l.s4 1983009808
    %v5907 = vunpack.c.0.s8 %v5906
    %v5908 = vlaneseq
    %v5909 = vshrl.u32 %v5908, 7
    %v5910 = vsub.s32 %v5907, %v5909
    %v5911 = vrot.slane %v5247, %v5910
    %v5913 = vunpack.c.l.s4 1983009808
    %v5914 = vunpack.c.0.s8 %v5913
    %v5915 = vlaneseq
    %v5916 = vshrl.u32 %v5915, 7
    %v5917 = vsub.s32 %v5914, %v5916
    %v5918 = vrot.slane %v5904, %v5917
    %v5919 = vcombine.high %v5911, %v5911
    %v5920 = vcombine.high %v5918, %v5918
    %v5921 = vcombine.high %v5250, %v5250
    %v5923 = vunpack.c.l.s4 1983009808
    %v5924 = vunpack.c.0.s8 %v5923
    %v5925 = vlaneseq
    %v5926 = vshrl.u32 %v5925, 7
    %v5927 = vsub.s32 %v5924, %v5926
    %v5928 = vrot.slane %v5250, %v5927
    %v5930 = vunpack.c.l.s4 1983009808
    %v5931 = vunpack.c.0.s8 %v5930
    %v5932 = vlaneseq
    %v5933 = vshrl.u32 %v5932, 7
    %v5934 = vsub.s32 %v5931, %v5933
    %v5935 = vrot.slane %v5921, %v5934
    %v5936 = vcombine.high %v5928, %v5928
    %v5937 = vcombine.high %v5935, %v5935
    %v5938 = vcombine.high %v5255, %v5255
    %v5940 = vunpack.c.l.s4 1983009808
    %v5941 = vunpack.c.0.s8 %v5940
    %v5942 = vlaneseq
    %v5943 = vshrl.u32 %v5942, 7
    %v5944 = vsub.s32 %v5941, %v5943
    %v5945 = vrot.slane %v5255, %v5944
    %v5947 = vunpack.c.l.s4 1983009808
    %v5948 = vunpack.c.0.s8 %v5947
    %v5949 = vlaneseq
    %v5950 = vshrl.u32 %v5949, 7
    %v5951 = vsub.s32 %v5948, %v5950
    %v5952 = vrot.slane %v5938, %v5951
    %v5953 = vcombine.high %v5945, %v5945
    %v5954 = vcombine.high %v5952, %v5952
    %v5955 = vcombine.high %v5258, %v5258
    %v5957 = vunpack.c.l.s4 1983009808
    %v5958 = vunpack.c.0.s8 %v5957
    %v5959 = vlaneseq
    %v5960 = vshrl.u32 %v5959, 7
    %v5961 = vsub.s32 %v5958, %v5960
    %v5962 = vrot.slane %v5258, %v5961
    %v5964 = vunpack.c.l.s4 1983009808
    %v5965 = vunpack.c.0.s8 %v5964
    %v5966 = vlaneseq
    %v5967 = vshrl.u32 %v5966, 7
    %v5968 = vsub.s32 %v5965, %v5967
    %v5969 = vrot.slane %v5955, %v5968
    %v5970 = vcombine.high %v5962, %v5962
    %v5971 = vcombine.high %v5969, %v5969
    %v5972 = vcombine.high %v5263, %v5263
    %v5974 = vunpack.c.l.s4 1983009808
    %v5975 = vunpack.c.0.s8 %v5974
    %v5976 = vlaneseq
    %v5977 = vshrl.u32 %v5976, 7
    %v5978 = vsub.s32 %v5975, %v5977
    %v5979 = vrot.slane %v5263, %v5978
    %v5981 = vunpack.c.l.s4 1983009808
    %v5982 = vunpack.c.0.s8 %v5981
    %v5983 = vlaneseq
    %v5984 = vshrl.u32 %v5983, 7
    %v5985 = vsub.s32 %v5982, %v5984
    %v5986 = vrot.slane %v5972, %v5985
    %v5987 = vcombine.high %v5979, %v5979
    %v5988 = vcombine.high %v5986, %v5986
    %v5989 = vcombine.high %v5266, %v5266
    %v5991 = vunpack.c.l.s4 1983009808
    %v5992 = vunpack.c.0.s8 %v5991
    %v5993 = vlaneseq
    %v5994 = vshrl.u32 %v5993, 7
    %v5995 = vsub.s32 %v5992, %v5994
    %v5996 = vrot.slane %v5266, %v5995
    %v5998 = vunpack.c.l.s4 1983009808
    %v5999 = vunpack.c.0.s8 %v5998
    %v6000 = vlaneseq
    %v6001 = vshrl.u32 %v6000, 7
    %v6002 = vsub.s32 %v5999, %v6001
    %v6003 = vrot.slane %v5989, %v6002
    %v6004 = vcombine.high %v5996, %v5996
    %v6005 = vcombine.high %v6003, %v6003
    %v6006 = vcombine.high %v5271, %v5271
    %v6008 = vunpack.c.l.s4 1983009808
    %v6009 = vunpack.c.0.s8 %v6008
    %v6010 = vlaneseq
    %v6011 = vshrl.u32 %v6010, 7
    %v6012 = vsub.s32 %v6009, %v6011
    %v6013 = vrot.slane %v5271, %v6012
    %v6015 = vunpack.c.l.s4 1983009808
    %v6016 = vunpack.c.0.s8 %v6015
    %v6017 = vlaneseq
    %v6018 = vshrl.u32 %v6017, 7
    %v6019 = vsub.s32 %v6016, %v6018
    %v6020 = vrot.slane %v6006, %v6019
    %v6021 = vcombine.high %v6013, %v6013
    %v6022 = vcombine.high %v6020, %v6020
    %v6023 = vcombine.high %v5274, %v5274
    %v6025 = vunpack.c.l.s4 1983009808
    %v6026 = vunpack.c.0.s8 %v6025
    %v6027 = vlaneseq
    %v6028 = vshrl.u32 %v6027, 7
    %v6029 = vsub.s32 %v6026, %v6028
    %v6030 = vrot.slane %v5274, %v6029
    %v6032 = vunpack.c.l.s4 1983009808
    %v6033 = vunpack.c.0.s8 %v6032
    %v6034 = vlaneseq
    %v6035 = vshrl.u32 %v6034, 7
    %v6036 = vsub.s32 %v6033, %v6035
    %v6037 = vrot.slane %v6023, %v6036
    %v6038 = vcombine.high %v6030, %v6030
    %v6039 = vcombine.high %v6037, %v6037
    %v6040 = vcombine.high %v5279, %v5279
    %v6042 = vunpack.c.l.s4 1983009808
    %v6043 = vunpack.c.0.s8 %v6042
    %v6044 = vlaneseq
    %v6045 = vshrl.u32 %v6044, 7
    %v6046 = vsub.s32 %v6043, %v6045
    %v6047 = vrot.slane %v5279, %v6046
    %v6049 = vunpack.c.l.s4 1983009808
    %v6050 = vunpack.c.0.s8 %v6049
    %v6051 = vlaneseq
    %v6052 = vshrl.u32 %v6051, 7
    %v6053 = vsub.s32 %v6050, %v6052
    %v6054 = vrot.slane %v6040, %v6053
    %v6055 = vcombine.high %v6047, %v6047
    %v6056 = vcombine.high %v6054, %v6054
    %v6057 = vcombine.high %v5282, %v5282
    %v6059 = vunpack.c.l.s4 1983009808
    %v6060 = vunpack.c.0.s8 %v6059
    %v6061 = vlaneseq
    %v6062 = vshrl.u32 %v6061, 7
    %v6063 = vsub.s32 %v6060, %v6062
    %v6064 = vrot.slane %v5282, %v6063
    %v6066 = vunpack.c.l.s4 1983009808
    %v6067 = vunpack.c.0.s8 %v6066
    %v6068 = vlaneseq
    %v6069 = vshrl.u32 %v6068, 7
    %v6070 = vsub.s32 %v6067, %v6069
    %v6071 = vrot.slane %v6057, %v6070
    %v6072 = vcombine.high %v6064, %v6064
    %v6073 = vcombine.high %v6071, %v6071
    %v6074 = vcombine.high %v5287, %v5287
    %v6076 = vunpack.c.l.s4 1983009808
    %v6077 = vunpack.c.0.s8 %v6076
    %v6078 = vlaneseq
    %v6079 = vshrl.u32 %v6078, 7
    %v6080 = vsub.s32 %v6077, %v6079
    %v6081 = vrot.slane %v5287, %v6080
    %v6083 = vunpack.c.l.s4 1983009808
    %v6084 = vunpack.c.0.s8 %v6083
    %v6085 = vlaneseq
    %v6086 = vshrl.u32 %v6085, 7
    %v6087 = vsub.s32 %v6084, %v6086
    %v6088 = vrot.slane %v6074, %v6087
    %v6089 = vcombine.high %v6081, %v6081
    %v6090 = vcombine.high %v6088, %v6088
    %v6091 = vcombine.high %v5290, %v5290
    %v6093 = vunpack.c.l.s4 1983009808
    %v6094 = vunpack.c.0.s8 %v6093
    %v6095 = vlaneseq
    %v6096 = vshrl.u32 %v6095, 7
    %v6097 = vsub.s32 %v6094, %v6096
    %v6098 = vrot.slane %v5290, %v6097
    %v6100 = vunpack.c.l.s4 1983009808
    %v6101 = vunpack.c.0.s8 %v6100
    %v6102 = vlaneseq
    %v6103 = vshrl.u32 %v6102, 7
    %v6104 = vsub.s32 %v6101, %v6103
    %v6105 = vrot.slane %v6091, %v6104
    %v6106 = vcombine.high %v6098, %v6098
    %v6107 = vcombine.high %v6105, %v6105
    %v6108 = vcombine.high %v5295, %v5295
    %v6110 = vunpack.c.l.s4 1983009808
    %v6111 = vunpack.c.0.s8 %v6110
    %v6112 = vlaneseq
    %v6113 = vshrl.u32 %v6112, 7
    %v6114 = vsub.s32 %v6111, %v6113
    %v6115 = vrot.slane %v5295, %v6114
    %v6117 = vunpack.c.l.s4 1983009808
    %v6118 = vunpack.c.0.s8 %v6117
    %v6119 = vlaneseq
    %v6120 = vshrl.u32 %v6119, 7
    %v6121 = vsub.s32 %v6118, %v6120
    %v6122 = vrot.slane %v6108, %v6121
    %v6123 = vcombine.high %v6115, %v6115
    %v6124 = vcombine.high %v6122, %v6122
    %v6125 = vcombine.high %v5298, %v5298
    %v6127 = vunpack.c.l.s4 1983009808
    %v6128 = vunpack.c.0.s8 %v6127
    %v6129 = vlaneseq
    %v6130 = vshrl.u32 %v6129, 7
    %v6131 = vsub.s32 %v6128, %v6130
    %v6132 = vrot.slane %v5298, %v6131
    %v6134 = vunpack.c.l.s4 1983009808
    %v6135 = vunpack.c.0.s8 %v6134
    %v6136 = vlaneseq
    %v6137 = vshrl.u32 %v6136, 7
    %v6138 = vsub.s32 %v6135, %v6137
    %v6139 = vrot.slane %v6125, %v6138
    %v6140 = vcombine.high %v6132, %v6132
    %v6141 = vcombine.high %v6139, %v6139
    %v6142 = vcombine.high %v5303, %v5303
    %v6144 = vunpack.c.l.s4 1983009808
    %v6145 = vunpack.c.0.s8 %v6144
    %v6146 = vlaneseq
    %v6147 = vshrl.u32 %v6146, 7
    %v6148 = vsub.s32 %v6145, %v6147
    %v6149 = vrot.slane %v5303, %v6148
    %v6151 = vunpack.c.l.s4 1983009808
    %v6152 = vunpack.c.0.s8 %v6151
    %v6153 = vlaneseq
    %v6154 = vshrl.u32 %v6153, 7
    %v6155 = vsub.s32 %v6152, %v6154
    %v6156 = vrot.slane %v6142, %v6155
    %v6157 = vcombine.high %v6149, %v6149
    %v6158 = vcombine.high %v6156, %v6156
    %v6159 = vcombine.high %v5306, %v5306
    %v6161 = vunpack.c.l.s4 1983009808
    %v6162 = vunpack.c.0.s8 %v6161
    %v6163 = vlaneseq
    %v6164 = vshrl.u32 %v6163, 7
    %v6165 = vsub.s32 %v6162, %v6164
    %v6166 = vrot.slane %v5306, %v6165
    %v6168 = vunpack.c.l.s4 1983009808
    %v6169 = vunpack.c.0.s8 %v6168
    %v6170 = vlaneseq
    %v6171 = vshrl.u32 %v6170, 7
    %v6172 = vsub.s32 %v6169, %v6171
    %v6173 = vrot.slane %v6159, %v6172
    %v6174 = vcombine.high %v6166, %v6166
    %v6175 = vcombine.high %v6173, %v6173
    %v6176 = vcombine.high %v5311, %v5311
    %v6178 = vunpack.c.l.s4 1983009808
    %v6179 = vunpack.c.0.s8 %v6178
    %v6180 = vlaneseq
    %v6181 = vshrl.u32 %v6180, 7
    %v6182 = vsub.s32 %v6179, %v6181
    %v6183 = vrot.slane %v5311, %v6182
    %v6185 = vunpack.c.l.s4 1983009808
    %v6186 = vunpack.c.0.s8 %v6185
    %v6187 = vlaneseq
    %v6188 = vshrl.u32 %v6187, 7
    %v6189 = vsub.s32 %v6186, %v6188
    %v6190 = vrot.slane %v6176, %v6189
    %v6191 = vcombine.high %v6183, %v6183
    %v6192 = vcombine.high %v6190, %v6190
    %v6193 = vcombine.high %v5314, %v5314
    %v6195 = vunpack.c.l.s4 1983009808
    %v6196 = vunpack.c.0.s8 %v6195
    %v6197 = vlaneseq
    %v6198 = vshrl.u32 %v6197, 7
    %v6199 = vsub.s32 %v6196, %v6198
    %v6200 = vrot.slane %v5314, %v6199
    %v6202 = vunpack.c.l.s4 1983009808
    %v6203 = vunpack.c.0.s8 %v6202
    %v6204 = vlaneseq
    %v6205 = vshrl.u32 %v6204, 7
    %v6206 = vsub.s32 %v6203, %v6205
    %v6207 = vrot.slane %v6193, %v6206
    %v6208 = vcombine.high %v6200, %v6200
    %v6209 = vcombine.high %v6207, %v6207
    %v6210 = vcombine.high %v5319, %v5319
    %v6212 = vunpack.c.l.s4 1983009808
    %v6213 = vunpack.c.0.s8 %v6212
    %v6214 = vlaneseq
    %v6215 = vshrl.u32 %v6214, 7
    %v6216 = vsub.s32 %v6213, %v6215
    %v6217 = vrot.slane %v5319, %v6216
    %v6219 = vunpack.c.l.s4 1983009808
    %v6220 = vunpack.c.0.s8 %v6219
    %v6221 = vlaneseq
    %v6222 = vshrl.u32 %v6221, 7
    %v6223 = vsub.s32 %v6220, %v6222
    %v6224 = vrot.slane %v6210, %v6223
    %v6225 = vcombine.high %v6217, %v6217
    %v6226 = vcombine.high %v6224, %v6224
    %v6227 = vcombine.high %v5322, %v5322
    %v6229 = vunpack.c.l.s4 1983009808
    %v6230 = vunpack.c.0.s8 %v6229
    %v6231 = vlaneseq
    %v6232 = vshrl.u32 %v6231, 7
    %v6233 = vsub.s32 %v6230, %v6232
    %v6234 = vrot.slane %v5322, %v6233
    %v6236 = vunpack.c.l.s4 1983009808
    %v6237 = vunpack.c.0.s8 %v6236
    %v6238 = vlaneseq
    %v6239 = vshrl.u32 %v6238, 7
    %v6240 = vsub.s32 %v6237, %v6239
    %v6241 = vrot.slane %v6227, %v6240
    %v6242 = vcombine.high %v6234, %v6234
    %v6243 = vcombine.high %v6241, %v6241
    %v6244 = vcombine.high %v5327, %v5327
    %v6246 = vunpack.c.l.s4 1983009808
    %v6247 = vunpack.c.0.s8 %v6246
    %v6248 = vlaneseq
    %v6249 = vshrl.u32 %v6248, 7
    %v6250 = vsub.s32 %v6247, %v6249
    %v6251 = vrot.slane %v5327, %v6250
    %v6253 = vunpack.c.l.s4 1983009808
    %v6254 = vunpack.c.0.s8 %v6253
    %v6255 = vlaneseq
    %v6256 = vshrl.u32 %v6255, 7
    %v6257 = vsub.s32 %v6254, %v6256
    %v6258 = vrot.slane %v6244, %v6257
    %v6259 = vcombine.high %v6251, %v6251
    %v6260 = vcombine.high %v6258, %v6258
    %v6261 = vcombine.high %v5330, %v5330
    %v6263 = vunpack.c.l.s4 1983009808
    %v6264 = vunpack.c.0.s8 %v6263
    %v6265 = vlaneseq
    %v6266 = vshrl.u32 %v6265, 7
    %v6267 = vsub.s32 %v6264, %v6266
    %v6268 = vrot.slane %v5330, %v6267
    %v6270 = vunpack.c.l.s4 1983009808
    %v6271 = vunpack.c.0.s8 %v6270
    %v6272 = vlaneseq
    %v6273 = vshrl.u32 %v6272, 7
    %v6274 = vsub.s32 %v6271, %v6273
    %v6275 = vrot.slane %v6261, %v6274
    %v6276 = vcombine.high %v6268, %v6268
    %v6277 = vcombine.high %v6275, %v6275
    %v6278 = vcombine.high %v5335, %v5335
    %v6280 = vunpack.c.l.s4 1983009808
    %v6281 = vunpack.c.0.s8 %v6280
    %v6282 = vlaneseq
    %v6283 = vshrl.u32 %v6282, 7
    %v6284 = vsub.s32 %v6281, %v6283
    %v6285 = vrot.slane %v5335, %v6284
    %v6287 = vunpack.c.l.s4 1983009808
    %v6288 = vunpack.c.0.s8 %v6287
    %v6289 = vlaneseq
    %v6290 = vshrl.u32 %v6289, 7
    %v6291 = vsub.s32 %v6288, %v6290
    %v6292 = vrot.slane %v6278, %v6291
    %v6293 = vcombine.high %v6285, %v6285
    %v6294 = vcombine.high %v6292, %v6292
    %v6295 = vcombine.high %v5338, %v5338
    %v6297 = vunpack.c.l.s4 1983009808
    %v6298 = vunpack.c.0.s8 %v6297
    %v6299 = vlaneseq
    %v6300 = vshrl.u32 %v6299, 7
    %v6301 = vsub.s32 %v6298, %v6300
    %v6302 = vrot.slane %v5338, %v6301
    %v6304 = vunpack.c.l.s4 1983009808
    %v6305 = vunpack.c.0.s8 %v6304
    %v6306 = vlaneseq
    %v6307 = vshrl.u32 %v6306, 7
    %v6308 = vsub.s32 %v6305, %v6307
    %v6309 = vrot.slane %v6295, %v6308
    %v6310 = vcombine.high %v6302, %v6302
    %v6311 = vcombine.high %v6309, %v6309
    %v6312 = vcombine.high %v5343, %v5343
    %v6314 = vunpack.c.l.s4 1983009808
    %v6315 = vunpack.c.0.s8 %v6314
    %v6316 = vlaneseq
    %v6317 = vshrl.u32 %v6316, 7
    %v6318 = vsub.s32 %v6315, %v6317
    %v6319 = vrot.slane %v5343, %v6318
    %v6321 = vunpack.c.l.s4 1983009808
    %v6322 = vunpack.c.0.s8 %v6321
    %v6323 = vlaneseq
    %v6324 = vshrl.u32 %v6323, 7
    %v6325 = vsub.s32 %v6322, %v6324
    %v6326 = vrot.slane %v6312, %v6325
    %v6327 = vcombine.high %v6319, %v6319
    %v6328 = vcombine.high %v6326, %v6326
    %v6329 = vcombine.high %v5346, %v5346
    %v6331 = vunpack.c.l.s4 1983009808
    %v6332 = vunpack.c.0.s8 %v6331
    %v6333 = vlaneseq
    %v6334 = vshrl.u32 %v6333, 7
    %v6335 = vsub.s32 %v6332, %v6334
    %v6336 = vrot.slane %v5346, %v6335
    %v6338 = vunpack.c.l.s4 1983009808
    %v6339 = vunpack.c.0.s8 %v6338
    %v6340 = vlaneseq
    %v6341 = vshrl.u32 %v6340, 7
    %v6342 = vsub.s32 %v6339, %v6341
    %v6343 = vrot.slane %v6329, %v6342
    %v6344 = vcombine.high %v6336, %v6336
    %v6345 = vcombine.high %v6343, %v6343
    %v6346 = vcombine.high %v5351, %v5351
    %v6348 = vunpack.c.l.s4 1983009808
    %v6349 = vunpack.c.0.s8 %v6348
    %v6350 = vlaneseq
    %v6351 = vshrl.u32 %v6350, 7
    %v6352 = vsub.s32 %v6349, %v6351
    %v6353 = vrot.slane %v5351, %v6352
    %v6355 = vunpack.c.l.s4 1983009808
    %v6356 = vunpack.c.0.s8 %v6355
    %v6357 = vlaneseq
    %v6358 = vshrl.u32 %v6357, 7
    %v6359 = vsub.s32 %v6356, %v6358
    %v6360 = vrot.slane %v6346, %v6359
    %v6361 = vcombine.high %v6353, %v6353
    %v6362 = vcombine.high %v6360, %v6360
    %v6363 = vcombine.high %v5354, %v5354
    %v6365 = vunpack.c.l.s4 1983009808
    %v6366 = vunpack.c.0.s8 %v6365
    %v6367 = vlaneseq
    %v6368 = vshrl.u32 %v6367, 7
    %v6369 = vsub.s32 %v6366, %v6368
    %v6370 = vrot.slane %v5354, %v6369
    %v6372 = vunpack.c.l.s4 1983009808
    %v6373 = vunpack.c.0.s8 %v6372
    %v6374 = vlaneseq
    %v6375 = vshrl.u32 %v6374, 7
    %v6376 = vsub.s32 %v6373, %v6375
    %v6377 = vrot.slane %v6363, %v6376
    %v6378 = vcombine.high %v6370, %v6370
    %v6379 = vcombine.high %v6377, %v6377
    %v6380 = vcombine.high %v5359, %v5359
    %v6382 = vunpack.c.l.s4 1983009808
    %v6383 = vunpack.c.0.s8 %v6382
    %v6384 = vlaneseq
    %v6385 = vshrl.u32 %v6384, 7
    %v6386 = vsub.s32 %v6383, %v6385
    %v6387 = vrot.slane %v5359, %v6386
    %v6389 = vunpack.c.l.s4 1983009808
    %v6390 = vunpack.c.0.s8 %v6389
    %v6391 = vlaneseq
    %v6392 = vshrl.u32 %v6391, 7
    %v6393 = vsub.s32 %v6390, %v6392
    %v6394 = vrot.slane %v6380, %v6393
    %v6395 = vcombine.high %v6387, %v6387
    %v6396 = vcombine.high %v6394, %v6394
    %v6397 = vcombine.high %v5362, %v5362
    %v6399 = vunpack.c.l.s4 1983009808
    %v6400 = vunpack.c.0.s8 %v6399
    %v6401 = vlaneseq
    %v6402 = vshrl.u32 %v6401, 7
    %v6403 = vsub.s32 %v6400, %v6402
    %v6404 = vrot.slane %v5362, %v6403
    %v6406 = vunpack.c.l.s4 1983009808
    %v6407 = vunpack.c.0.s8 %v6406
    %v6408 = vlaneseq
    %v6409 = vshrl.u32 %v6408, 7
    %v6410 = vsub.s32 %v6407, %v6409
    %v6411 = vrot.slane %v6397, %v6410
    %v6412 = vcombine.high %v6404, %v6404
    %v6413 = vcombine.high %v6411, %v6411
    %v6414 = vcombine.high %v5367, %v5367
    %v6416 = vunpack.c.l.s4 1983009808
    %v6417 = vunpack.c.0.s8 %v6416
    %v6418 = vlaneseq
    %v6419 = vshrl.u32 %v6418, 7
    %v6420 = vsub.s32 %v6417, %v6419
    %v6421 = vrot.slane %v5367, %v6420
    %v6423 = vunpack.c.l.s4 1983009808
    %v6424 = vunpack.c.0.s8 %v6423
    %v6425 = vlaneseq
    %v6426 = vshrl.u32 %v6425, 7
    %v6427 = vsub.s32 %v6424, %v6426
    %v6428 = vrot.slane %v6414, %v6427
    %v6429 = vcombine.high %v6421, %v6421
    %v6430 = vcombine.high %v6428, %v6428
    %v6431 = vcombine.high %v5370, %v5370
    %v6433 = vunpack.c.l.s4 1983009808
    %v6434 = vunpack.c.0.s8 %v6433
    %v6435 = vlaneseq
    %v6436 = vshrl.u32 %v6435, 7
    %v6437 = vsub.s32 %v6434, %v6436
    %v6438 = vrot.slane %v5370, %v6437
    %v6440 = vunpack.c.l.s4 1983009808
    %v6441 = vunpack.c.0.s8 %v6440
    %v6442 = vlaneseq
    %v6443 = vshrl.u32 %v6442, 7
    %v6444 = vsub.s32 %v6441, %v6443
    %v6445 = vrot.slane %v6431, %v6444
    %v6446 = vcombine.high %v6438, %v6438
    %v6447 = vcombine.high %v6445, %v6445
    %v6448 = vcombine.high %v5375, %v5375
    %v6450 = vunpack.c.l.s4 1983009808
    %v6451 = vunpack.c.0.s8 %v6450
    %v6452 = vlaneseq
    %v6453 = vshrl.u32 %v6452, 7
    %v6454 = vsub.s32 %v6451, %v6453
    %v6455 = vrot.slane %v5375, %v6454
    %v6457 = vunpack.c.l.s4 1983009808
    %v6458 = vunpack.c.0.s8 %v6457
    %v6459 = vlaneseq
    %v6460 = vshrl.u32 %v6459, 7
    %v6461 = vsub.s32 %v6458, %v6460
    %v6462 = vrot.slane %v6448, %v6461
    %v6463 = vcombine.high %v6455, %v6455
    %v6464 = vcombine.high %v6462, %v6462
    %v6465 = vcombine.high %v5378, %v5378
    %v6467 = vunpack.c.l.s4 1983009808
    %v6468 = vunpack.c.0.s8 %v6467
    %v6469 = vlaneseq
    %v6470 = vshrl.u32 %v6469, 7
    %v6471 = vsub.s32 %v6468, %v6470
    %v6472 = vrot.slane %v5378, %v6471
    %v6474 = vunpack.c.l.s4 1983009808
    %v6475 = vunpack.c.0.s8 %v6474
    %v6476 = vlaneseq
    %v6477 = vshrl.u32 %v6476, 7
    %v6478 = vsub.s32 %v6475, %v6477
    %v6479 = vrot.slane %v6465, %v6478
    %v6480 = vcombine.high %v6472, %v6472
    %v6481 = vcombine.high %v6479, %v6479
    %v6482 = vcombine.high %v5383, %v5383
    %v6484 = vunpack.c.l.s4 1983009808
    %v6485 = vunpack.c.0.s8 %v6484
    %v6486 = vlaneseq
    %v6487 = vshrl.u32 %v6486, 7
    %v6488 = vsub.s32 %v6485, %v6487
    %v6489 = vrot.slane %v5383, %v6488
    %v6491 = vunpack.c.l.s4 1983009808
    %v6492 = vunpack.c.0.s8 %v6491
    %v6493 = vlaneseq
    %v6494 = vshrl.u32 %v6493, 7
    %v6495 = vsub.s32 %v6492, %v6494
    %v6496 = vrot.slane %v6482, %v6495
    %v6497 = vcombine.high %v6489, %v6489
    %v6498 = vcombine.high %v6496, %v6496
    %v6499 = vcombine.high %v5386, %v5386
    %v6501 = vunpack.c.l.s4 1983009808
    %v6502 = vunpack.c.0.s8 %v6501
    %v6503 = vlaneseq
    %v6504 = vshrl.u32 %v6503, 7
    %v6505 = vsub.s32 %v6502, %v6504
    %v6506 = vrot.slane %v5386, %v6505
    %v6508 = vunpack.c.l.s4 1983009808
    %v6509 = vunpack.c.0.s8 %v6508
    %v6510 = vlaneseq
    %v6511 = vshrl.u32 %v6510, 7
    %v6512 = vsub.s32 %v6509, %v6511
    %v6513 = vrot.slane %v6499, %v6512
    %v6514 = vcombine.high %v6506, %v6506
    %v6515 = vcombine.high %v6513, %v6513
    %v6516 = vcombine.high %v5391, %v5391
    %v6518 = vunpack.c.l.s4 1983009808
    %v6519 = vunpack.c.0.s8 %v6518
    %v6520 = vlaneseq
    %v6521 = vshrl.u32 %v6520, 7
    %v6522 = vsub.s32 %v6519, %v6521
    %v6523 = vrot.slane %v5391, %v6522
    %v6525 = vunpack.c.l.s4 1983009808
    %v6526 = vunpack.c.0.s8 %v6525
    %v6527 = vlaneseq
    %v6528 = vshrl.u32 %v6527, 7
    %v6529 = vsub.s32 %v6526, %v6528
    %v6530 = vrot.slane %v6516, %v6529
    %v6531 = vcombine.high %v6523, %v6523
    %v6532 = vcombine.high %v6530, %v6530
    %v6533 = vcombine.high %v5394, %v5394
    %v6535 = vunpack.c.l.s4 1983009808
    %v6536 = vunpack.c.0.s8 %v6535
    %v6537 = vlaneseq
    %v6538 = vshrl.u32 %v6537, 7
    %v6539 = vsub.s32 %v6536, %v6538
    %v6540 = vrot.slane %v5394, %v6539
    %v6542 = vunpack.c.l.s4 1983009808
    %v6543 = vunpack.c.0.s8 %v6542
    %v6544 = vlaneseq
    %v6545 = vshrl.u32 %v6544, 7
    %v6546 = vsub.s32 %v6543, %v6545
    %v6547 = vrot.slane %v6533, %v6546
    %v6548 = vcombine.high %v6540, %v6540
    %v6549 = vcombine.high %v6547, %v6547
    %vm6806 = vcmask 1041408
    %v6807 = vsel %vm6806, %v5469, -inf
    %v6808 = vrot.slane %v6807, 4
    %v6809 = vmax.f32 %v6807, %v6808
    %v6810 = vrot.slane %v6809, 2
    %v6811 = vmax.f32 %v6809, %v6810
    %v6812 = vrot.slane %v6811, 1
    %v6813 = vmax.f32 %v6811, %v6812
    %v6814 = vsel %vm6806, %v5477, -inf
    %v6815 = vrot.slane %v6814, 4
    %v6816 = vmax.f32 %v6814, %v6815
    %v6817 = vrot.slane %v6816, 2
    %v6818 = vmax.f32 %v6816, %v6817
    %v6819 = vrot.slane %v6818, 1
    %v6820 = vmax.f32 %v6818, %v6819
    %v6821 = vsel %vm6806, %v5476, -inf
    %v6822 = vrot.slane %v6821, 4
    %v6823 = vmax.f32 %v6821, %v6822
    %v6824 = vrot.slane %v6823, 2
    %v6825 = vmax.f32 %v6823, %v6824
    %v6826 = vrot.slane %v6825, 1
    %v6827 = vmax.f32 %v6825, %v6826
    %v6828 = vsel %vm6806, %v5478, -inf
    %v6829 = vrot.slane %v6828, 4
    %v6830 = vmax.f32 %v6828, %v6829
    %v6831 = vrot.slane %v6830, 2
    %v6832 = vmax.f32 %v6830, %v6831
    %v6833 = vrot.slane %v6832, 1
    %v6834 = vmax.f32 %v6832, %v6833
    %v6835 = vsel %vm6806, %v5486, -inf
    %v6836 = vrot.slane %v6835, 4
    %v6837 = vmax.f32 %v6835, %v6836
    %v6838 = vrot.slane %v6837, 2
    %v6839 = vmax.f32 %v6837, %v6838
    %v6840 = vrot.slane %v6839, 1
    %v6841 = vmax.f32 %v6839, %v6840
    %v6842 = vsel %vm6806, %v5494, -inf
    %v6843 = vrot.slane %v6842, 4
    %v6844 = vmax.f32 %v6842, %v6843
    %v6845 = vrot.slane %v6844, 2
    %v6846 = vmax.f32 %v6844, %v6845
    %v6847 = vrot.slane %v6846, 1
    %v6848 = vmax.f32 %v6846, %v6847
    %v6849 = vsel %vm6806, %v5493, -inf
    %v6850 = vrot.slane %v6849, 4
    %v6851 = vmax.f32 %v6849, %v6850
    %v6852 = vrot.slane %v6851, 2
    %v6853 = vmax.f32 %v6851, %v6852
    %v6854 = vrot.slane %v6853, 1
    %v6855 = vmax.f32 %v6853, %v6854
    %v6856 = vsel %vm6806, %v5495, -inf
    %v6857 = vrot.slane %v6856, 4
    %v6858 = vmax.f32 %v6856, %v6857
    %v6859 = vrot.slane %v6858, 2
    %v6860 = vmax.f32 %v6858, %v6859
    %v6861 = vrot.slane %v6860, 1
    %v6862 = vmax.f32 %v6860, %v6861
    %v6863 = vsel %vm6806, %v5503, -inf
    %v6864 = vrot.slane %v6863, 4
    %v6865 = vmax.f32 %v6863, %v6864
    %v6866 = vrot.slane %v6865, 2
    %v6867 = vmax.f32 %v6865, %v6866
    %v6868 = vrot.slane %v6867, 1
    %v6869 = vmax.f32 %v6867, %v6868
    %v6870 = vsel %vm6806, %v5511, -inf
    %v6871 = vrot.slane %v6870, 4
    %v6872 = vmax.f32 %v6870, %v6871
    %v6873 = vrot.slane %v6872, 2
    %v6874 = vmax.f32 %v6872, %v6873
    %v6875 = vrot.slane %v6874, 1
    %v6876 = vmax.f32 %v6874, %v6875
    %v6877 = vsel %vm6806, %v5510, -inf
    %v6878 = vrot.slane %v6877, 4
    %v6879 = vmax.f32 %v6877, %v6878
    %v6880 = vrot.slane %v6879, 2
    %v6881 = vmax.f32 %v6879, %v6880
    %v6882 = vrot.slane %v6881, 1
    %v6883 = vmax.f32 %v6881, %v6882
    %v6884 = vsel %vm6806, %v5512, -inf
    %v6885 = vrot.slane %v6884, 4
    %v6886 = vmax.f32 %v6884, %v6885
    %v6887 = vrot.slane %v6886, 2
    %v6888 = vmax.f32 %v6886, %v6887
    %v6889 = vrot.slane %v6888, 1
    %v6890 = vmax.f32 %v6888, %v6889
    %v6891 = vsel %vm6806, %v5520, -inf
    %v6892 = vrot.slane %v6891, 4
    %v6893 = vmax.f32 %v6891, %v6892
    %v6894 = vrot.slane %v6893, 2
    %v6895 = vmax.f32 %v6893, %v6894
    %v6896 = vrot.slane %v6895, 1
    %v6897 = vmax.f32 %v6895, %v6896
    %v6898 = vsel %vm6806, %v5528, -inf
    %v6899 = vrot.slane %v6898, 4
    %v6900 = vmax.f32 %v6898, %v6899
    %v6901 = vrot.slane %v6900, 2
    %v6902 = vmax.f32 %v6900, %v6901
    %v6903 = vrot.slane %v6902, 1
    %v6904 = vmax.f32 %v6902, %v6903
    %v6905 = vsel %vm6806, %v5527, -inf
    %v6906 = vrot.slane %v6905, 4
    %v6907 = vmax.f32 %v6905, %v6906
    %v6908 = vrot.slane %v6907, 2
    %v6909 = vmax.f32 %v6907, %v6908
    %v6910 = vrot.slane %v6909, 1
    %v6911 = vmax.f32 %v6909, %v6910
    %v6912 = vsel %vm6806, %v5529, -inf
    %v6913 = vrot.slane %v6912, 4
    %v6914 = vmax.f32 %v6912, %v6913
    %v6915 = vrot.slane %v6914, 2
    %v6916 = vmax.f32 %v6914, %v6915
    %v6917 = vrot.slane %v6916, 1
    %v6918 = vmax.f32 %v6916, %v6917
    %v6919 = vsel %vm6806, %v5537, -inf
    %v6920 = vrot.slane %v6919, 4
    %v6921 = vmax.f32 %v6919, %v6920
    %v6922 = vrot.slane %v6921, 2
    %v6923 = vmax.f32 %v6921, %v6922
    %v6924 = vrot.slane %v6923, 1
    %v6925 = vmax.f32 %v6923, %v6924
    %v6926 = vsel %vm6806, %v5545, -inf
    %v6927 = vrot.slane %v6926, 4
    %v6928 = vmax.f32 %v6926, %v6927
    %v6929 = vrot.slane %v6928, 2
    %v6930 = vmax.f32 %v6928, %v6929
    %v6931 = vrot.slane %v6930, 1
    %v6932 = vmax.f32 %v6930, %v6931
    %v6933 = vsel %vm6806, %v5544, -inf
    %v6934 = vrot.slane %v6933, 4
    %v6935 = vmax.f32 %v6933, %v6934
    %v6936 = vrot.slane %v6935, 2
    %v6937 = vmax.f32 %v6935, %v6936
    %v6938 = vrot.slane %v6937, 1
    %v6939 = vmax.f32 %v6937, %v6938
    %v6940 = vsel %vm6806, %v5546, -inf
    %v6941 = vrot.slane %v6940, 4
    %v6942 = vmax.f32 %v6940, %v6941
    %v6943 = vrot.slane %v6942, 2
    %v6944 = vmax.f32 %v6942, %v6943
    %v6945 = vrot.slane %v6944, 1
    %v6946 = vmax.f32 %v6944, %v6945
    %v6947 = vsel %vm6806, %v5554, -inf
    %v6948 = vrot.slane %v6947, 4
    %v6949 = vmax.f32 %v6947, %v6948
    %v6950 = vrot.slane %v6949, 2
    %v6951 = vmax.f32 %v6949, %v6950
    %v6952 = vrot.slane %v6951, 1
    %v6953 = vmax.f32 %v6951, %v6952
    %v6954 = vsel %vm6806, %v5562, -inf
    %v6955 = vrot.slane %v6954, 4
    %v6956 = vmax.f32 %v6954, %v6955
    %v6957 = vrot.slane %v6956, 2
    %v6958 = vmax.f32 %v6956, %v6957
    %v6959 = vrot.slane %v6958, 1
    %v6960 = vmax.f32 %v6958, %v6959
    %v6961 = vsel %vm6806, %v5561, -inf
    %v6962 = vrot.slane %v6961, 4
    %v6963 = vmax.f32 %v6961, %v6962
    %v6964 = vrot.slane %v6963, 2
    %v6965 = vmax.f32 %v6963, %v6964
    %v6966 = vrot.slane %v6965, 1
    %v6967 = vmax.f32 %v6965, %v6966
    %v6968 = vsel %vm6806, %v5563, -inf
    %v6969 = vrot.slane %v6968, 4
    %v6970 = vmax.f32 %v6968, %v6969
    %v6971 = vrot.slane %v6970, 2
    %v6972 = vmax.f32 %v6970, %v6971
    %v6973 = vrot.slane %v6972, 1
    %v6974 = vmax.f32 %v6972, %v6973
    %v6975 = vsel %vm6806, %v5571, -inf
    %v6976 = vrot.slane %v6975, 4
    %v6977 = vmax.f32 %v6975, %v6976
    %v6978 = vrot.slane %v6977, 2
    %v6979 = vmax.f32 %v6977, %v6978
    %v6980 = vrot.slane %v6979, 1
    %v6981 = vmax.f32 %v6979, %v6980
    %v6982 = vsel %vm6806, %v5579, -inf
    %v6983 = vrot.slane %v6982, 4
    %v6984 = vmax.f32 %v6982, %v6983
    %v6985 = vrot.slane %v6984, 2
    %v6986 = vmax.f32 %v6984, %v6985
    %v6987 = vrot.slane %v6986, 1
    %v6988 = vmax.f32 %v6986, %v6987
    %v6989 = vsel %vm6806, %v5578, -inf
    %v6990 = vrot.slane %v6989, 4
    %v6991 = vmax.f32 %v6989, %v6990
    %v6992 = vrot.slane %v6991, 2
    %v6993 = vmax.f32 %v6991, %v6992
    %v6994 = vrot.slane %v6993, 1
    %v6995 = vmax.f32 %v6993, %v6994
    %v6996 = vsel %vm6806, %v5580, -inf
    %v6997 = vrot.slane %v6996, 4
    %v6998 = vmax.f32 %v6996, %v6997
    %v6999 = vrot.slane %v6998, 2
    %v7000 = vmax.f32 %v6998, %v6999
    %v7001 = vrot.slane %v7000, 1
    %v7002 = vmax.f32 %v7000, %v7001
    %v7003 = vsel %vm6806, %v5588, -inf
    %v7004 = vrot.slane %v7003, 4
    %v7005 = vmax.f32 %v7003, %v7004
    %v7006 = vrot.slane %v7005, 2
    %v7007 = vmax.f32 %v7005, %v7006
    %v7008 = vrot.slane %v7007, 1
    %v7009 = vmax.f32 %v7007, %v7008
    %v7010 = vsel %vm6806, %v5596, -inf
    %v7011 = vrot.slane %v7010, 4
    %v7012 = vmax.f32 %v7010, %v7011
    %v7013 = vrot.slane %v7012, 2
    %v7014 = vmax.f32 %v7012, %v7013
    %v7015 = vrot.slane %v7014, 1
    %v7016 = vmax.f32 %v7014, %v7015
    %v7017 = vsel %vm6806, %v5595, -inf
    %v7018 = vrot.slane %v7017, 4
    %v7019 = vmax.f32 %v7017, %v7018
    %v7020 = vrot.slane %v7019, 2
    %v7021 = vmax.f32 %v7019, %v7020
    %v7022 = vrot.slane %v7021, 1
    %v7023 = vmax.f32 %v7021, %v7022
    %v7024 = vsel %vm6806, %v5597, -inf
    %v7025 = vrot.slane %v7024, 4
    %v7026 = vmax.f32 %v7024, %v7025
    %v7027 = vrot.slane %v7026, 2
    %v7028 = vmax.f32 %v7026, %v7027
    %v7029 = vrot.slane %v7028, 1
    %v7030 = vmax.f32 %v7028, %v7029
    %v7031 = vsel %vm6806, %v5605, -inf
    %v7032 = vrot.slane %v7031, 4
    %v7033 = vmax.f32 %v7031, %v7032
    %v7034 = vrot.slane %v7033, 2
    %v7035 = vmax.f32 %v7033, %v7034
    %v7036 = vrot.slane %v7035, 1
    %v7037 = vmax.f32 %v7035, %v7036
    %v7038 = vsel %vm6806, %v5613, -inf
    %v7039 = vrot.slane %v7038, 4
    %v7040 = vmax.f32 %v7038, %v7039
    %v7041 = vrot.slane %v7040, 2
    %v7042 = vmax.f32 %v7040, %v7041
    %v7043 = vrot.slane %v7042, 1
    %v7044 = vmax.f32 %v7042, %v7043
    %v7045 = vsel %vm6806, %v5612, -inf
    %v7046 = vrot.slane %v7045, 4
    %v7047 = vmax.f32 %v7045, %v7046
    %v7048 = vrot.slane %v7047, 2
    %v7049 = vmax.f32 %v7047, %v7048
    %v7050 = vrot.slane %v7049, 1
    %v7051 = vmax.f32 %v7049, %v7050
    %v7052 = vsel %vm6806, %v5614, -inf
    %v7053 = vrot.slane %v7052, 4
    %v7054 = vmax.f32 %v7052, %v7053
    %v7055 = vrot.slane %v7054, 2
    %v7056 = vmax.f32 %v7054, %v7055
    %v7057 = vrot.slane %v7056, 1
    %v7058 = vmax.f32 %v7056, %v7057
    %v7059 = vsel %vm6806, %v5622, -inf
    %v7060 = vrot.slane %v7059, 4
    %v7061 = vmax.f32 %v7059, %v7060
    %v7062 = vrot.slane %v7061, 2
    %v7063 = vmax.f32 %v7061, %v7062
    %v7064 = vrot.slane %v7063, 1
    %v7065 = vmax.f32 %v7063, %v7064
    %v7066 = vsel %vm6806, %v5630, -inf
    %v7067 = vrot.slane %v7066, 4
    %v7068 = vmax.f32 %v7066, %v7067
    %v7069 = vrot.slane %v7068, 2
    %v7070 = vmax.f32 %v7068, %v7069
    %v7071 = vrot.slane %v7070, 1
    %v7072 = vmax.f32 %v7070, %v7071
    %v7073 = vsel %vm6806, %v5629, -inf
    %v7074 = vrot.slane %v7073, 4
    %v7075 = vmax.f32 %v7073, %v7074
    %v7076 = vrot.slane %v7075, 2
    %v7077 = vmax.f32 %v7075, %v7076
    %v7078 = vrot.slane %v7077, 1
    %v7079 = vmax.f32 %v7077, %v7078
    %v7080 = vsel %vm6806, %v5631, -inf
    %v7081 = vrot.slane %v7080, 4
    %v7082 = vmax.f32 %v7080, %v7081
    %v7083 = vrot.slane %v7082, 2
    %v7084 = vmax.f32 %v7082, %v7083
    %v7085 = vrot.slane %v7084, 1
    %v7086 = vmax.f32 %v7084, %v7085
    %v7087 = vsel %vm6806, %v5639, -inf
    %v7088 = vrot.slane %v7087, 4
    %v7089 = vmax.f32 %v7087, %v7088
    %v7090 = vrot.slane %v7089, 2
    %v7091 = vmax.f32 %v7089, %v7090
    %v7092 = vrot.slane %v7091, 1
    %v7093 = vmax.f32 %v7091, %v7092
    %v7094 = vsel %vm6806, %v5647, -inf
    %v7095 = vrot.slane %v7094, 4
    %v7096 = vmax.f32 %v7094, %v7095
    %v7097 = vrot.slane %v7096, 2
    %v7098 = vmax.f32 %v7096, %v7097
    %v7099 = vrot.slane %v7098, 1
    %v7100 = vmax.f32 %v7098, %v7099
    %v7101 = vsel %vm6806, %v5646, -inf
    %v7102 = vrot.slane %v7101, 4
    %v7103 = vmax.f32 %v7101, %v7102
    %v7104 = vrot.slane %v7103, 2
    %v7105 = vmax.f32 %v7103, %v7104
    %v7106 = vrot.slane %v7105, 1
    %v7107 = vmax.f32 %v7105, %v7106
    %v7108 = vsel %vm6806, %v5648, -inf
    %v7109 = vrot.slane %v7108, 4
    %v7110 = vmax.f32 %v7108, %v7109
    %v7111 = vrot.slane %v7110, 2
    %v7112 = vmax.f32 %v7110, %v7111
    %v7113 = vrot.slane %v7112, 1
    %v7114 = vmax.f32 %v7112, %v7113
    %v7115 = vsel %vm6806, %v5656, -inf
    %v7116 = vrot.slane %v7115, 4
    %v7117 = vmax.f32 %v7115, %v7116
    %v7118 = vrot.slane %v7117, 2
    %v7119 = vmax.f32 %v7117, %v7118
    %v7120 = vrot.slane %v7119, 1
    %v7121 = vmax.f32 %v7119, %v7120
    %v7122 = vsel %vm6806, %v5664, -inf
    %v7123 = vrot.slane %v7122, 4
    %v7124 = vmax.f32 %v7122, %v7123
    %v7125 = vrot.slane %v7124, 2
    %v7126 = vmax.f32 %v7124, %v7125
    %v7127 = vrot.slane %v7126, 1
    %v7128 = vmax.f32 %v7126, %v7127
    %v7129 = vsel %vm6806, %v5663, -inf
    %v7130 = vrot.slane %v7129, 4
    %v7131 = vmax.f32 %v7129, %v7130
    %v7132 = vrot.slane %v7131, 2
    %v7133 = vmax.f32 %v7131, %v7132
    %v7134 = vrot.slane %v7133, 1
    %v7135 = vmax.f32 %v7133, %v7134
    %v7136 = vsel %vm6806, %v5665, -inf
    %v7137 = vrot.slane %v7136, 4
    %v7138 = vmax.f32 %v7136, %v7137
    %v7139 = vrot.slane %v7138, 2
    %v7140 = vmax.f32 %v7138, %v7139
    %v7141 = vrot.slane %v7140, 1
    %v7142 = vmax.f32 %v7140, %v7141
    %v7143 = vsel %vm6806, %v5673, -inf
    %v7144 = vrot.slane %v7143, 4
    %v7145 = vmax.f32 %v7143, %v7144
    %v7146 = vrot.slane %v7145, 2
    %v7147 = vmax.f32 %v7145, %v7146
    %v7148 = vrot.slane %v7147, 1
    %v7149 = vmax.f32 %v7147, %v7148
    %v7150 = vsel %vm6806, %v5681, -inf
    %v7151 = vrot.slane %v7150, 4
    %v7152 = vmax.f32 %v7150, %v7151
    %v7153 = vrot.slane %v7152, 2
    %v7154 = vmax.f32 %v7152, %v7153
    %v7155 = vrot.slane %v7154, 1
    %v7156 = vmax.f32 %v7154, %v7155
    %v7157 = vsel %vm6806, %v5680, -inf
    %v7158 = vrot.slane %v7157, 4
    %v7159 = vmax.f32 %v7157, %v7158
    %v7160 = vrot.slane %v7159, 2
    %v7161 = vmax.f32 %v7159, %v7160
    %v7162 = vrot.slane %v7161, 1
    %v7163 = vmax.f32 %v7161, %v7162
    %v7164 = vsel %vm6806, %v5682, -inf
    %v7165 = vrot.slane %v7164, 4
    %v7166 = vmax.f32 %v7164, %v7165
    %v7167 = vrot.slane %v7166, 2
    %v7168 = vmax.f32 %v7166, %v7167
    %v7169 = vrot.slane %v7168, 1
    %v7170 = vmax.f32 %v7168, %v7169
    %v7171 = vsel %vm6806, %v5690, -inf
    %v7172 = vrot.slane %v7171, 4
    %v7173 = vmax.f32 %v7171, %v7172
    %v7174 = vrot.slane %v7173, 2
    %v7175 = vmax.f32 %v7173, %v7174
    %v7176 = vrot.slane %v7175, 1
    %v7177 = vmax.f32 %v7175, %v7176
    %v7178 = vsel %vm6806, %v5698, -inf
    %v7179 = vrot.slane %v7178, 4
    %v7180 = vmax.f32 %v7178, %v7179
    %v7181 = vrot.slane %v7180, 2
    %v7182 = vmax.f32 %v7180, %v7181
    %v7183 = vrot.slane %v7182, 1
    %v7184 = vmax.f32 %v7182, %v7183
    %v7185 = vsel %vm6806, %v5697, -inf
    %v7186 = vrot.slane %v7185, 4
    %v7187 = vmax.f32 %v7185, %v7186
    %v7188 = vrot.slane %v7187, 2
    %v7189 = vmax.f32 %v7187, %v7188
    %v7190 = vrot.slane %v7189, 1
    %v7191 = vmax.f32 %v7189, %v7190
    %v7192 = vsel %vm6806, %v5699, -inf
    %v7193 = vrot.slane %v7192, 4
    %v7194 = vmax.f32 %v7192, %v7193
    %v7195 = vrot.slane %v7194, 2
    %v7196 = vmax.f32 %v7194, %v7195
    %v7197 = vrot.slane %v7196, 1
    %v7198 = vmax.f32 %v7196, %v7197
    %v7199 = vsel %vm6806, %v5707, -inf
    %v7200 = vrot.slane %v7199, 4
    %v7201 = vmax.f32 %v7199, %v7200
    %v7202 = vrot.slane %v7201, 2
    %v7203 = vmax.f32 %v7201, %v7202
    %v7204 = vrot.slane %v7203, 1
    %v7205 = vmax.f32 %v7203, %v7204
    %v7206 = vsel %vm6806, %v5715, -inf
    %v7207 = vrot.slane %v7206, 4
    %v7208 = vmax.f32 %v7206, %v7207
    %v7209 = vrot.slane %v7208, 2
    %v7210 = vmax.f32 %v7208, %v7209
    %v7211 = vrot.slane %v7210, 1
    %v7212 = vmax.f32 %v7210, %v7211
    %v7213 = vsel %vm6806, %v5714, -inf
    %v7214 = vrot.slane %v7213, 4
    %v7215 = vmax.f32 %v7213, %v7214
    %v7216 = vrot.slane %v7215, 2
    %v7217 = vmax.f32 %v7215, %v7216
    %v7218 = vrot.slane %v7217, 1
    %v7219 = vmax.f32 %v7217, %v7218
    %v7220 = vsel %vm6806, %v5716, -inf
    %v7221 = vrot.slane %v7220, 4
    %v7222 = vmax.f32 %v7220, %v7221
    %v7223 = vrot.slane %v7222, 2
    %v7224 = vmax.f32 %v7222, %v7223
    %v7225 = vrot.slane %v7224, 1
    %v7226 = vmax.f32 %v7224, %v7225
    %v7227 = vsel %vm6806, %v5724, -inf
    %v7228 = vrot.slane %v7227, 4
    %v7229 = vmax.f32 %v7227, %v7228
    %v7230 = vrot.slane %v7229, 2
    %v7231 = vmax.f32 %v7229, %v7230
    %v7232 = vrot.slane %v7231, 1
    %v7233 = vmax.f32 %v7231, %v7232
    %v7234 = vsel %vm6806, %v5732, -inf
    %v7235 = vrot.slane %v7234, 4
    %v7236 = vmax.f32 %v7234, %v7235
    %v7237 = vrot.slane %v7236, 2
    %v7238 = vmax.f32 %v7236, %v7237
    %v7239 = vrot.slane %v7238, 1
    %v7240 = vmax.f32 %v7238, %v7239
    %v7241 = vsel %vm6806, %v5731, -inf
    %v7242 = vrot.slane %v7241, 4
    %v7243 = vmax.f32 %v7241, %v7242
    %v7244 = vrot.slane %v7243, 2
    %v7245 = vmax.f32 %v7243, %v7244
    %v7246 = vrot.slane %v7245, 1
    %v7247 = vmax.f32 %v7245, %v7246
    %v7248 = vsel %vm6806, %v5733, -inf
    %v7249 = vrot.slane %v7248, 4
    %v7250 = vmax.f32 %v7248, %v7249
    %v7251 = vrot.slane %v7250, 2
    %v7252 = vmax.f32 %v7250, %v7251
    %v7253 = vrot.slane %v7252, 1
    %v7254 = vmax.f32 %v7252, %v7253
    %v7255 = vsel %vm6806, %v5741, -inf
    %v7256 = vrot.slane %v7255, 4
    %v7257 = vmax.f32 %v7255, %v7256
    %v7258 = vrot.slane %v7257, 2
    %v7259 = vmax.f32 %v7257, %v7258
    %v7260 = vrot.slane %v7259, 1
    %v7261 = vmax.f32 %v7259, %v7260
    %v7262 = vsel %vm6806, %v5749, -inf
    %v7263 = vrot.slane %v7262, 4
    %v7264 = vmax.f32 %v7262, %v7263
    %v7265 = vrot.slane %v7264, 2
    %v7266 = vmax.f32 %v7264, %v7265
    %v7267 = vrot.slane %v7266, 1
    %v7268 = vmax.f32 %v7266, %v7267
    %v7269 = vsel %vm6806, %v5748, -inf
    %v7270 = vrot.slane %v7269, 4
    %v7271 = vmax.f32 %v7269, %v7270
    %v7272 = vrot.slane %v7271, 2
    %v7273 = vmax.f32 %v7271, %v7272
    %v7274 = vrot.slane %v7273, 1
    %v7275 = vmax.f32 %v7273, %v7274
    %v7276 = vsel %vm6806, %v5750, -inf
    %v7277 = vrot.slane %v7276, 4
    %v7278 = vmax.f32 %v7276, %v7277
    %v7279 = vrot.slane %v7278, 2
    %v7280 = vmax.f32 %v7278, %v7279
    %v7281 = vrot.slane %v7280, 1
    %v7282 = vmax.f32 %v7280, %v7281
    %v7283 = vsel %vm6806, %v5758, -inf
    %v7284 = vrot.slane %v7283, 4
    %v7285 = vmax.f32 %v7283, %v7284
    %v7286 = vrot.slane %v7285, 2
    %v7287 = vmax.f32 %v7285, %v7286
    %v7288 = vrot.slane %v7287, 1
    %v7289 = vmax.f32 %v7287, %v7288
    %v7290 = vsel %vm6806, %v5766, -inf
    %v7291 = vrot.slane %v7290, 4
    %v7292 = vmax.f32 %v7290, %v7291
    %v7293 = vrot.slane %v7292, 2
    %v7294 = vmax.f32 %v7292, %v7293
    %v7295 = vrot.slane %v7294, 1
    %v7296 = vmax.f32 %v7294, %v7295
    %v7297 = vsel %vm6806, %v5765, -inf
    %v7298 = vrot.slane %v7297, 4
    %v7299 = vmax.f32 %v7297, %v7298
    %v7300 = vrot.slane %v7299, 2
    %v7301 = vmax.f32 %v7299, %v7300
    %v7302 = vrot.slane %v7301, 1
    %v7303 = vmax.f32 %v7301, %v7302
    %v7304 = vsel %vm6806, %v5767, -inf
    %v7305 = vrot.slane %v7304, 4
    %v7306 = vmax.f32 %v7304, %v7305
    %v7307 = vrot.slane %v7306, 2
    %v7308 = vmax.f32 %v7306, %v7307
    %v7309 = vrot.slane %v7308, 1
    %v7310 = vmax.f32 %v7308, %v7309
    %v7311 = vsel %vm6806, %v5775, -inf
    %v7312 = vrot.slane %v7311, 4
    %v7313 = vmax.f32 %v7311, %v7312
    %v7314 = vrot.slane %v7313, 2
    %v7315 = vmax.f32 %v7313, %v7314
    %v7316 = vrot.slane %v7315, 1
    %v7317 = vmax.f32 %v7315, %v7316
    %v7318 = vsel %vm6806, %v5783, -inf
    %v7319 = vrot.slane %v7318, 4
    %v7320 = vmax.f32 %v7318, %v7319
    %v7321 = vrot.slane %v7320, 2
    %v7322 = vmax.f32 %v7320, %v7321
    %v7323 = vrot.slane %v7322, 1
    %v7324 = vmax.f32 %v7322, %v7323
    %v7325 = vsel %vm6806, %v5782, -inf
    %v7326 = vrot.slane %v7325, 4
    %v7327 = vmax.f32 %v7325, %v7326
    %v7328 = vrot.slane %v7327, 2
    %v7329 = vmax.f32 %v7327, %v7328
    %v7330 = vrot.slane %v7329, 1
    %v7331 = vmax.f32 %v7329, %v7330
    %v7332 = vsel %vm6806, %v5784, -inf
    %v7333 = vrot.slane %v7332, 4
    %v7334 = vmax.f32 %v7332, %v7333
    %v7335 = vrot.slane %v7334, 2
    %v7336 = vmax.f32 %v7334, %v7335
    %v7337 = vrot.slane %v7336, 1
    %v7338 = vmax.f32 %v7336, %v7337
    %v7339 = vsel %vm6806, %v5792, -inf
    %v7340 = vrot.slane %v7339, 4
    %v7341 = vmax.f32 %v7339, %v7340
    %v7342 = vrot.slane %v7341, 2
    %v7343 = vmax.f32 %v7341, %v7342
    %v7344 = vrot.slane %v7343, 1
    %v7345 = vmax.f32 %v7343, %v7344
    %v7346 = vsel %vm6806, %v5800, -inf
    %v7347 = vrot.slane %v7346, 4
    %v7348 = vmax.f32 %v7346, %v7347
    %v7349 = vrot.slane %v7348, 2
    %v7350 = vmax.f32 %v7348, %v7349
    %v7351 = vrot.slane %v7350, 1
    %v7352 = vmax.f32 %v7350, %v7351
    %v7353 = vsel %vm6806, %v5799, -inf
    %v7354 = vrot.slane %v7353, 4
    %v7355 = vmax.f32 %v7353, %v7354
    %v7356 = vrot.slane %v7355, 2
    %v7357 = vmax.f32 %v7355, %v7356
    %v7358 = vrot.slane %v7357, 1
    %v7359 = vmax.f32 %v7357, %v7358
    %v7360 = vsel %vm6806, %v5801, -inf
    %v7361 = vrot.slane %v7360, 4
    %v7362 = vmax.f32 %v7360, %v7361
    %v7363 = vrot.slane %v7362, 2
    %v7364 = vmax.f32 %v7362, %v7363
    %v7365 = vrot.slane %v7364, 1
    %v7366 = vmax.f32 %v7364, %v7365
    %v7367 = vsel %vm6806, %v5809, -inf
    %v7368 = vrot.slane %v7367, 4
    %v7369 = vmax.f32 %v7367, %v7368
    %v7370 = vrot.slane %v7369, 2
    %v7371 = vmax.f32 %v7369, %v7370
    %v7372 = vrot.slane %v7371, 1
    %v7373 = vmax.f32 %v7371, %v7372
    %v7374 = vsel %vm6806, %v5817, -inf
    %v7375 = vrot.slane %v7374, 4
    %v7376 = vmax.f32 %v7374, %v7375
    %v7377 = vrot.slane %v7376, 2
    %v7378 = vmax.f32 %v7376, %v7377
    %v7379 = vrot.slane %v7378, 1
    %v7380 = vmax.f32 %v7378, %v7379
    %v7381 = vsel %vm6806, %v5816, -inf
    %v7382 = vrot.slane %v7381, 4
    %v7383 = vmax.f32 %v7381, %v7382
    %v7384 = vrot.slane %v7383, 2
    %v7385 = vmax.f32 %v7383, %v7384
    %v7386 = vrot.slane %v7385, 1
    %v7387 = vmax.f32 %v7385, %v7386
    %v7388 = vsel %vm6806, %v5818, -inf
    %v7389 = vrot.slane %v7388, 4
    %v7390 = vmax.f32 %v7388, %v7389
    %v7391 = vrot.slane %v7390, 2
    %v7392 = vmax.f32 %v7390, %v7391
    %v7393 = vrot.slane %v7392, 1
    %v7394 = vmax.f32 %v7392, %v7393
    %v7395 = vsel %vm6806, %v5826, -inf
    %v7396 = vrot.slane %v7395, 4
    %v7397 = vmax.f32 %v7395, %v7396
    %v7398 = vrot.slane %v7397, 2
    %v7399 = vmax.f32 %v7397, %v7398
    %v7400 = vrot.slane %v7399, 1
    %v7401 = vmax.f32 %v7399, %v7400
    %v7402 = vsel %vm6806, %v5834, -inf
    %v7403 = vrot.slane %v7402, 4
    %v7404 = vmax.f32 %v7402, %v7403
    %v7405 = vrot.slane %v7404, 2
    %v7406 = vmax.f32 %v7404, %v7405
    %v7407 = vrot.slane %v7406, 1
    %v7408 = vmax.f32 %v7406, %v7407
    %v7409 = vsel %vm6806, %v5833, -inf
    %v7410 = vrot.slane %v7409, 4
    %v7411 = vmax.f32 %v7409, %v7410
    %v7412 = vrot.slane %v7411, 2
    %v7413 = vmax.f32 %v7411, %v7412
    %v7414 = vrot.slane %v7413, 1
    %v7415 = vmax.f32 %v7413, %v7414
    %v7416 = vsel %vm6806, %v5835, -inf
    %v7417 = vrot.slane %v7416, 4
    %v7418 = vmax.f32 %v7416, %v7417
    %v7419 = vrot.slane %v7418, 2
    %v7420 = vmax.f32 %v7418, %v7419
    %v7421 = vrot.slane %v7420, 1
    %v7422 = vmax.f32 %v7420, %v7421
    %v7423 = vsel %vm6806, %v5843, -inf
    %v7424 = vrot.slane %v7423, 4
    %v7425 = vmax.f32 %v7423, %v7424
    %v7426 = vrot.slane %v7425, 2
    %v7427 = vmax.f32 %v7425, %v7426
    %v7428 = vrot.slane %v7427, 1
    %v7429 = vmax.f32 %v7427, %v7428
    %v7430 = vsel %vm6806, %v5851, -inf
    %v7431 = vrot.slane %v7430, 4
    %v7432 = vmax.f32 %v7430, %v7431
    %v7433 = vrot.slane %v7432, 2
    %v7434 = vmax.f32 %v7432, %v7433
    %v7435 = vrot.slane %v7434, 1
    %v7436 = vmax.f32 %v7434, %v7435
    %v7437 = vsel %vm6806, %v5850, -inf
    %v7438 = vrot.slane %v7437, 4
    %v7439 = vmax.f32 %v7437, %v7438
    %v7440 = vrot.slane %v7439, 2
    %v7441 = vmax.f32 %v7439, %v7440
    %v7442 = vrot.slane %v7441, 1
    %v7443 = vmax.f32 %v7441, %v7442
    %v7444 = vsel %vm6806, %v5852, -inf
    %v7445 = vrot.slane %v7444, 4
    %v7446 = vmax.f32 %v7444, %v7445
    %v7447 = vrot.slane %v7446, 2
    %v7448 = vmax.f32 %v7446, %v7447
    %v7449 = vrot.slane %v7448, 1
    %v7450 = vmax.f32 %v7448, %v7449
    %v7451 = vsel %vm6806, %v5860, -inf
    %v7452 = vrot.slane %v7451, 4
    %v7453 = vmax.f32 %v7451, %v7452
    %v7454 = vrot.slane %v7453, 2
    %v7455 = vmax.f32 %v7453, %v7454
    %v7456 = vrot.slane %v7455, 1
    %v7457 = vmax.f32 %v7455, %v7456
    %v7458 = vsel %vm6806, %v5868, -inf
    %v7459 = vrot.slane %v7458, 4
    %v7460 = vmax.f32 %v7458, %v7459
    %v7461 = vrot.slane %v7460, 2
    %v7462 = vmax.f32 %v7460, %v7461
    %v7463 = vrot.slane %v7462, 1
    %v7464 = vmax.f32 %v7462, %v7463
    %v7465 = vsel %vm6806, %v5867, -inf
    %v7466 = vrot.slane %v7465, 4
    %v7467 = vmax.f32 %v7465, %v7466
    %v7468 = vrot.slane %v7467, 2
    %v7469 = vmax.f32 %v7467, %v7468
    %v7470 = vrot.slane %v7469, 1
    %v7471 = vmax.f32 %v7469, %v7470
    %v7472 = vsel %vm6806, %v5869, -inf
    %v7473 = vrot.slane %v7472, 4
    %v7474 = vmax.f32 %v7472, %v7473
    %v7475 = vrot.slane %v7474, 2
    %v7476 = vmax.f32 %v7474, %v7475
    %v7477 = vrot.slane %v7476, 1
    %v7478 = vmax.f32 %v7476, %v7477
    %v7479 = vsel %vm6806, %v5877, -inf
    %v7480 = vrot.slane %v7479, 4
    %v7481 = vmax.f32 %v7479, %v7480
    %v7482 = vrot.slane %v7481, 2
    %v7483 = vmax.f32 %v7481, %v7482
    %v7484 = vrot.slane %v7483, 1
    %v7485 = vmax.f32 %v7483, %v7484
    %v7486 = vsel %vm6806, %v5885, -inf
    %v7487 = vrot.slane %v7486, 4
    %v7488 = vmax.f32 %v7486, %v7487
    %v7489 = vrot.slane %v7488, 2
    %v7490 = vmax.f32 %v7488, %v7489
    %v7491 = vrot.slane %v7490, 1
    %v7492 = vmax.f32 %v7490, %v7491
    %v7493 = vsel %vm6806, %v5884, -inf
    %v7494 = vrot.slane %v7493, 4
    %v7495 = vmax.f32 %v7493, %v7494
    %v7496 = vrot.slane %v7495, 2
    %v7497 = vmax.f32 %v7495, %v7496
    %v7498 = vrot.slane %v7497, 1
    %v7499 = vmax.f32 %v7497, %v7498
    %v7500 = vsel %vm6806, %v5886, -inf
    %v7501 = vrot.slane %v7500, 4
    %v7502 = vmax.f32 %v7500, %v7501
    %v7503 = vrot.slane %v7502, 2
    %v7504 = vmax.f32 %v7502, %v7503
    %v7505 = vrot.slane %v7504, 1
    %v7506 = vmax.f32 %v7504, %v7505
    %v7507 = vsel %vm6806, %v5894, -inf
    %v7508 = vrot.slane %v7507, 4
    %v7509 = vmax.f32 %v7507, %v7508
    %v7510 = vrot.slane %v7509, 2
    %v7511 = vmax.f32 %v7509, %v7510
    %v7512 = vrot.slane %v7511, 1
    %v7513 = vmax.f32 %v7511, %v7512
    %v7514 = vsel %vm6806, %v5902, -inf
    %v7515 = vrot.slane %v7514, 4
    %v7516 = vmax.f32 %v7514, %v7515
    %v7517 = vrot.slane %v7516, 2
    %v7518 = vmax.f32 %v7516, %v7517
    %v7519 = vrot.slane %v7518, 1
    %v7520 = vmax.f32 %v7518, %v7519
    %v7521 = vsel %vm6806, %v5901, -inf
    %v7522 = vrot.slane %v7521, 4
    %v7523 = vmax.f32 %v7521, %v7522
    %v7524 = vrot.slane %v7523, 2
    %v7525 = vmax.f32 %v7523, %v7524
    %v7526 = vrot.slane %v7525, 1
    %v7527 = vmax.f32 %v7525, %v7526
    %v7528 = vsel %vm6806, %v5903, -inf
    %v7529 = vrot.slane %v7528, 4
    %v7530 = vmax.f32 %v7528, %v7529
    %v7531 = vrot.slane %v7530, 2
    %v7532 = vmax.f32 %v7530, %v7531
    %v7533 = vrot.slane %v7532, 1
    %v7534 = vmax.f32 %v7532, %v7533
    %v7535 = vsel %vm6806, %v5911, -inf
    %v7536 = vrot.slane %v7535, 4
    %v7537 = vmax.f32 %v7535, %v7536
    %v7538 = vrot.slane %v7537, 2
    %v7539 = vmax.f32 %v7537, %v7538
    %v7540 = vrot.slane %v7539, 1
    %v7541 = vmax.f32 %v7539, %v7540
    %v7542 = vsel %vm6806, %v5919, -inf
    %v7543 = vrot.slane %v7542, 4
    %v7544 = vmax.f32 %v7542, %v7543
    %v7545 = vrot.slane %v7544, 2
    %v7546 = vmax.f32 %v7544, %v7545
    %v7547 = vrot.slane %v7546, 1
    %v7548 = vmax.f32 %v7546, %v7547
    %v7549 = vsel %vm6806, %v5918, -inf
    %v7550 = vrot.slane %v7549, 4
    %v7551 = vmax.f32 %v7549, %v7550
    %v7552 = vrot.slane %v7551, 2
    %v7553 = vmax.f32 %v7551, %v7552
    %v7554 = vrot.slane %v7553, 1
    %v7555 = vmax.f32 %v7553, %v7554
    %v7556 = vsel %vm6806, %v5920, -inf
    %v7557 = vrot.slane %v7556, 4
    %v7558 = vmax.f32 %v7556, %v7557
    %v7559 = vrot.slane %v7558, 2
    %v7560 = vmax.f32 %v7558, %v7559
    %v7561 = vrot.slane %v7560, 1
    %v7562 = vmax.f32 %v7560, %v7561
    %v7563 = vsel %vm6806, %v5928, -inf
    %v7564 = vrot.slane %v7563, 4
    %v7565 = vmax.f32 %v7563, %v7564
    %v7566 = vrot.slane %v7565, 2
    %v7567 = vmax.f32 %v7565, %v7566
    %v7568 = vrot.slane %v7567, 1
    %v7569 = vmax.f32 %v7567, %v7568
    %v7570 = vsel %vm6806, %v5936, -inf
    %v7571 = vrot.slane %v7570, 4
    %v7572 = vmax.f32 %v7570, %v7571
    %v7573 = vrot.slane %v7572, 2
    %v7574 = vmax.f32 %v7572, %v7573
    %v7575 = vrot.slane %v7574, 1
    %v7576 = vmax.f32 %v7574, %v7575
    %v7577 = vsel %vm6806, %v5935, -inf
    %v7578 = vrot.slane %v7577, 4
    %v7579 = vmax.f32 %v7577, %v7578
    %v7580 = vrot.slane %v7579, 2
    %v7581 = vmax.f32 %v7579, %v7580
    %v7582 = vrot.slane %v7581, 1
    %v7583 = vmax.f32 %v7581, %v7582
    %v7584 = vsel %vm6806, %v5937, -inf
    %v7585 = vrot.slane %v7584, 4
    %v7586 = vmax.f32 %v7584, %v7585
    %v7587 = vrot.slane %v7586, 2
    %v7588 = vmax.f32 %v7586, %v7587
    %v7589 = vrot.slane %v7588, 1
    %v7590 = vmax.f32 %v7588, %v7589
    %v7591 = vsel %vm6806, %v5945, -inf
    %v7592 = vrot.slane %v7591, 4
    %v7593 = vmax.f32 %v7591, %v7592
    %v7594 = vrot.slane %v7593, 2
    %v7595 = vmax.f32 %v7593, %v7594
    %v7596 = vrot.slane %v7595, 1
    %v7597 = vmax.f32 %v7595, %v7596
    %v7598 = vsel %vm6806, %v5953, -inf
    %v7599 = vrot.slane %v7598, 4
    %v7600 = vmax.f32 %v7598, %v7599
    %v7601 = vrot.slane %v7600, 2
    %v7602 = vmax.f32 %v7600, %v7601
    %v7603 = vrot.slane %v7602, 1
    %v7604 = vmax.f32 %v7602, %v7603
    %v7605 = vsel %vm6806, %v5952, -inf
    %v7606 = vrot.slane %v7605, 4
    %v7607 = vmax.f32 %v7605, %v7606
    %v7608 = vrot.slane %v7607, 2
    %v7609 = vmax.f32 %v7607, %v7608
    %v7610 = vrot.slane %v7609, 1
    %v7611 = vmax.f32 %v7609, %v7610
    %v7612 = vsel %vm6806, %v5954, -inf
    %v7613 = vrot.slane %v7612, 4
    %v7614 = vmax.f32 %v7612, %v7613
    %v7615 = vrot.slane %v7614, 2
    %v7616 = vmax.f32 %v7614, %v7615
    %v7617 = vrot.slane %v7616, 1
    %v7618 = vmax.f32 %v7616, %v7617
    %v7619 = vsel %vm6806, %v5962, -inf
    %v7620 = vrot.slane %v7619, 4
    %v7621 = vmax.f32 %v7619, %v7620
    %v7622 = vrot.slane %v7621, 2
    %v7623 = vmax.f32 %v7621, %v7622
    %v7624 = vrot.slane %v7623, 1
    %v7625 = vmax.f32 %v7623, %v7624
    %v7626 = vsel %vm6806, %v5970, -inf
    %v7627 = vrot.slane %v7626, 4
    %v7628 = vmax.f32 %v7626, %v7627
    %v7629 = vrot.slane %v7628, 2
    %v7630 = vmax.f32 %v7628, %v7629
    %v7631 = vrot.slane %v7630, 1
    %v7632 = vmax.f32 %v7630, %v7631
    %v7633 = vsel %vm6806, %v5969, -inf
    %v7634 = vrot.slane %v7633, 4
    %v7635 = vmax.f32 %v7633, %v7634
    %v7636 = vrot.slane %v7635, 2
    %v7637 = vmax.f32 %v7635, %v7636
    %v7638 = vrot.slane %v7637, 1
    %v7639 = vmax.f32 %v7637, %v7638
    %v7640 = vsel %vm6806, %v5971, -inf
    %v7641 = vrot.slane %v7640, 4
    %v7642 = vmax.f32 %v7640, %v7641
    %v7643 = vrot.slane %v7642, 2
    %v7644 = vmax.f32 %v7642, %v7643
    %v7645 = vrot.slane %v7644, 1
    %v7646 = vmax.f32 %v7644, %v7645
    %v7647 = vsel %vm6806, %v5979, -inf
    %v7648 = vrot.slane %v7647, 4
    %v7649 = vmax.f32 %v7647, %v7648
    %v7650 = vrot.slane %v7649, 2
    %v7651 = vmax.f32 %v7649, %v7650
    %v7652 = vrot.slane %v7651, 1
    %v7653 = vmax.f32 %v7651, %v7652
    %v7654 = vsel %vm6806, %v5987, -inf
    %v7655 = vrot.slane %v7654, 4
    %v7656 = vmax.f32 %v7654, %v7655
    %v7657 = vrot.slane %v7656, 2
    %v7658 = vmax.f32 %v7656, %v7657
    %v7659 = vrot.slane %v7658, 1
    %v7660 = vmax.f32 %v7658, %v7659
    %v7661 = vsel %vm6806, %v5986, -inf
    %v7662 = vrot.slane %v7661, 4
    %v7663 = vmax.f32 %v7661, %v7662
    %v7664 = vrot.slane %v7663, 2
    %v7665 = vmax.f32 %v7663, %v7664
    %v7666 = vrot.slane %v7665, 1
    %v7667 = vmax.f32 %v7665, %v7666
    %v7668 = vsel %vm6806, %v5988, -inf
    %v7669 = vrot.slane %v7668, 4
    %v7670 = vmax.f32 %v7668, %v7669
    %v7671 = vrot.slane %v7670, 2
    %v7672 = vmax.f32 %v7670, %v7671
    %v7673 = vrot.slane %v7672, 1
    %v7674 = vmax.f32 %v7672, %v7673
    %v7675 = vsel %vm6806, %v5996, -inf
    %v7676 = vrot.slane %v7675, 4
    %v7677 = vmax.f32 %v7675, %v7676
    %v7678 = vrot.slane %v7677, 2
    %v7679 = vmax.f32 %v7677, %v7678
    %v7680 = vrot.slane %v7679, 1
    %v7681 = vmax.f32 %v7679, %v7680
    %v7682 = vsel %vm6806, %v6004, -inf
    %v7683 = vrot.slane %v7682, 4
    %v7684 = vmax.f32 %v7682, %v7683
    %v7685 = vrot.slane %v7684, 2
    %v7686 = vmax.f32 %v7684, %v7685
    %v7687 = vrot.slane %v7686, 1
    %v7688 = vmax.f32 %v7686, %v7687
    %v7689 = vsel %vm6806, %v6003, -inf
    %v7690 = vrot.slane %v7689, 4
    %v7691 = vmax.f32 %v7689, %v7690
    %v7692 = vrot.slane %v7691, 2
    %v7693 = vmax.f32 %v7691, %v7692
    %v7694 = vrot.slane %v7693, 1
    %v7695 = vmax.f32 %v7693, %v7694
    %v7696 = vsel %vm6806, %v6005, -inf
    %v7697 = vrot.slane %v7696, 4
    %v7698 = vmax.f32 %v7696, %v7697
    %v7699 = vrot.slane %v7698, 2
    %v7700 = vmax.f32 %v7698, %v7699
    %v7701 = vrot.slane %v7700, 1
    %v7702 = vmax.f32 %v7700, %v7701
    %v7703 = vsel %vm6806, %v6013, -inf
    %v7704 = vrot.slane %v7703, 4
    %v7705 = vmax.f32 %v7703, %v7704
    %v7706 = vrot.slane %v7705, 2
    %v7707 = vmax.f32 %v7705, %v7706
    %v7708 = vrot.slane %v7707, 1
    %v7709 = vmax.f32 %v7707, %v7708
    %v7710 = vsel %vm6806, %v6021, -inf
    %v7711 = vrot.slane %v7710, 4
    %v7712 = vmax.f32 %v7710, %v7711
    %v7713 = vrot.slane %v7712, 2
    %v7714 = vmax.f32 %v7712, %v7713
    %v7715 = vrot.slane %v7714, 1
    %v7716 = vmax.f32 %v7714, %v7715
    %v7717 = vsel %vm6806, %v6020, -inf
    %v7718 = vrot.slane %v7717, 4
    %v7719 = vmax.f32 %v7717, %v7718
    %v7720 = vrot.slane %v7719, 2
    %v7721 = vmax.f32 %v7719, %v7720
    %v7722 = vrot.slane %v7721, 1
    %v7723 = vmax.f32 %v7721, %v7722
    %v7724 = vsel %vm6806, %v6022, -inf
    %v7725 = vrot.slane %v7724, 4
    %v7726 = vmax.f32 %v7724, %v7725
    %v7727 = vrot.slane %v7726, 2
    %v7728 = vmax.f32 %v7726, %v7727
    %v7729 = vrot.slane %v7728, 1
    %v7730 = vmax.f32 %v7728, %v7729
    %v7731 = vsel %vm6806, %v6030, -inf
    %v7732 = vrot.slane %v7731, 4
    %v7733 = vmax.f32 %v7731, %v7732
    %v7734 = vrot.slane %v7733, 2
    %v7735 = vmax.f32 %v7733, %v7734
    %v7736 = vrot.slane %v7735, 1
    %v7737 = vmax.f32 %v7735, %v7736
    %v7738 = vsel %vm6806, %v6038, -inf
    %v7739 = vrot.slane %v7738, 4
    %v7740 = vmax.f32 %v7738, %v7739
    %v7741 = vrot.slane %v7740, 2
    %v7742 = vmax.f32 %v7740, %v7741
    %v7743 = vrot.slane %v7742, 1
    %v7744 = vmax.f32 %v7742, %v7743
    %v7745 = vsel %vm6806, %v6037, -inf
    %v7746 = vrot.slane %v7745, 4
    %v7747 = vmax.f32 %v7745, %v7746
    %v7748 = vrot.slane %v7747, 2
    %v7749 = vmax.f32 %v7747, %v7748
    %v7750 = vrot.slane %v7749, 1
    %v7751 = vmax.f32 %v7749, %v7750
    %v7752 = vsel %vm6806, %v6039, -inf
    %v7753 = vrot.slane %v7752, 4
    %v7754 = vmax.f32 %v7752, %v7753
    %v7755 = vrot.slane %v7754, 2
    %v7756 = vmax.f32 %v7754, %v7755
    %v7757 = vrot.slane %v7756, 1
    %v7758 = vmax.f32 %v7756, %v7757
    %v7759 = vsel %vm6806, %v6047, -inf
    %v7760 = vrot.slane %v7759, 4
    %v7761 = vmax.f32 %v7759, %v7760
    %v7762 = vrot.slane %v7761, 2
    %v7763 = vmax.f32 %v7761, %v7762
    %v7764 = vrot.slane %v7763, 1
    %v7765 = vmax.f32 %v7763, %v7764
    %v7766 = vsel %vm6806, %v6055, -inf
    %v7767 = vrot.slane %v7766, 4
    %v7768 = vmax.f32 %v7766, %v7767
    %v7769 = vrot.slane %v7768, 2
    %v7770 = vmax.f32 %v7768, %v7769
    %v7771 = vrot.slane %v7770, 1
    %v7772 = vmax.f32 %v7770, %v7771
    %v7773 = vsel %vm6806, %v6054, -inf
    %v7774 = vrot.slane %v7773, 4
    %v7775 = vmax.f32 %v7773, %v7774
    %v7776 = vrot.slane %v7775, 2
    %v7777 = vmax.f32 %v7775, %v7776
    %v7778 = vrot.slane %v7777, 1
    %v7779 = vmax.f32 %v7777, %v7778
    %v7780 = vsel %vm6806, %v6056, -inf
    %v7781 = vrot.slane %v7780, 4
    %v7782 = vmax.f32 %v7780, %v7781
    %v7783 = vrot.slane %v7782, 2
    %v7784 = vmax.f32 %v7782, %v7783
    %v7785 = vrot.slane %v7784, 1
    %v7786 = vmax.f32 %v7784, %v7785
    %v7787 = vsel %vm6806, %v6064, -inf
    %v7788 = vrot.slane %v7787, 4
    %v7789 = vmax.f32 %v7787, %v7788
    %v7790 = vrot.slane %v7789, 2
    %v7791 = vmax.f32 %v7789, %v7790
    %v7792 = vrot.slane %v7791, 1
    %v7793 = vmax.f32 %v7791, %v7792
    %v7794 = vsel %vm6806, %v6072, -inf
    %v7795 = vrot.slane %v7794, 4
    %v7796 = vmax.f32 %v7794, %v7795
    %v7797 = vrot.slane %v7796, 2
    %v7798 = vmax.f32 %v7796, %v7797
    %v7799 = vrot.slane %v7798, 1
    %v7800 = vmax.f32 %v7798, %v7799
    %v7801 = vsel %vm6806, %v6071, -inf
    %v7802 = vrot.slane %v7801, 4
    %v7803 = vmax.f32 %v7801, %v7802
    %v7804 = vrot.slane %v7803, 2
    %v7805 = vmax.f32 %v7803, %v7804
    %v7806 = vrot.slane %v7805, 1
    %v7807 = vmax.f32 %v7805, %v7806
    %v7808 = vsel %vm6806, %v6073, -inf
    %v7809 = vrot.slane %v7808, 4
    %v7810 = vmax.f32 %v7808, %v7809
    %v7811 = vrot.slane %v7810, 2
    %v7812 = vmax.f32 %v7810, %v7811
    %v7813 = vrot.slane %v7812, 1
    %v7814 = vmax.f32 %v7812, %v7813
    %v7815 = vsel %vm6806, %v6081, -inf
    %v7816 = vrot.slane %v7815, 4
    %v7817 = vmax.f32 %v7815, %v7816
    %v7818 = vrot.slane %v7817, 2
    %v7819 = vmax.f32 %v7817, %v7818
    %v7820 = vrot.slane %v7819, 1
    %v7821 = vmax.f32 %v7819, %v7820
    %v7822 = vsel %vm6806, %v6089, -inf
    %v7823 = vrot.slane %v7822, 4
    %v7824 = vmax.f32 %v7822, %v7823
    %v7825 = vrot.slane %v7824, 2
    %v7826 = vmax.f32 %v7824, %v7825
    %v7827 = vrot.slane %v7826, 1
    %v7828 = vmax.f32 %v7826, %v7827
    %v7829 = vsel %vm6806, %v6088, -inf
    %v7830 = vrot.slane %v7829, 4
    %v7831 = vmax.f32 %v7829, %v7830
    %v7832 = vrot.slane %v7831, 2
    %v7833 = vmax.f32 %v7831, %v7832
    %v7834 = vrot.slane %v7833, 1
    %v7835 = vmax.f32 %v7833, %v7834
    %v7836 = vsel %vm6806, %v6090, -inf
    %v7837 = vrot.slane %v7836, 4
    %v7838 = vmax.f32 %v7836, %v7837
    %v7839 = vrot.slane %v7838, 2
    %v7840 = vmax.f32 %v7838, %v7839
    %v7841 = vrot.slane %v7840, 1
    %v7842 = vmax.f32 %v7840, %v7841
    %v7843 = vsel %vm6806, %v6098, -inf
    %v7844 = vrot.slane %v7843, 4
    %v7845 = vmax.f32 %v7843, %v7844
    %v7846 = vrot.slane %v7845, 2
    %v7847 = vmax.f32 %v7845, %v7846
    %v7848 = vrot.slane %v7847, 1
    %v7849 = vmax.f32 %v7847, %v7848
    %v7850 = vsel %vm6806, %v6106, -inf
    %v7851 = vrot.slane %v7850, 4
    %v7852 = vmax.f32 %v7850, %v7851
    %v7853 = vrot.slane %v7852, 2
    %v7854 = vmax.f32 %v7852, %v7853
    %v7855 = vrot.slane %v7854, 1
    %v7856 = vmax.f32 %v7854, %v7855
    %v7857 = vsel %vm6806, %v6105, -inf
    %v7858 = vrot.slane %v7857, 4
    %v7859 = vmax.f32 %v7857, %v7858
    %v7860 = vrot.slane %v7859, 2
    %v7861 = vmax.f32 %v7859, %v7860
    %v7862 = vrot.slane %v7861, 1
    %v7863 = vmax.f32 %v7861, %v7862
    %v7864 = vsel %vm6806, %v6107, -inf
    %v7865 = vrot.slane %v7864, 4
    %v7866 = vmax.f32 %v7864, %v7865
    %v7867 = vrot.slane %v7866, 2
    %v7868 = vmax.f32 %v7866, %v7867
    %v7869 = vrot.slane %v7868, 1
    %v7870 = vmax.f32 %v7868, %v7869
    %v7871 = vsel %vm6806, %v6115, -inf
    %v7872 = vrot.slane %v7871, 4
    %v7873 = vmax.f32 %v7871, %v7872
    %v7874 = vrot.slane %v7873, 2
    %v7875 = vmax.f32 %v7873, %v7874
    %v7876 = vrot.slane %v7875, 1
    %v7877 = vmax.f32 %v7875, %v7876
    %v7878 = vsel %vm6806, %v6123, -inf
    %v7879 = vrot.slane %v7878, 4
    %v7880 = vmax.f32 %v7878, %v7879
    %v7881 = vrot.slane %v7880, 2
    %v7882 = vmax.f32 %v7880, %v7881
    %v7883 = vrot.slane %v7882, 1
    %v7884 = vmax.f32 %v7882, %v7883
    %v7885 = vsel %vm6806, %v6122, -inf
    %v7886 = vrot.slane %v7885, 4
    %v7887 = vmax.f32 %v7885, %v7886
    %v7888 = vrot.slane %v7887, 2
    %v7889 = vmax.f32 %v7887, %v7888
    %v7890 = vrot.slane %v7889, 1
    %v7891 = vmax.f32 %v7889, %v7890
    %v7892 = vsel %vm6806, %v6124, -inf
    %v7893 = vrot.slane %v7892, 4
    %v7894 = vmax.f32 %v7892, %v7893
    %v7895 = vrot.slane %v7894, 2
    %v7896 = vmax.f32 %v7894, %v7895
    %v7897 = vrot.slane %v7896, 1
    %v7898 = vmax.f32 %v7896, %v7897
    %v7899 = vsel %vm6806, %v6132, -inf
    %v7900 = vrot.slane %v7899, 4
    %v7901 = vmax.f32 %v7899, %v7900
    %v7902 = vrot.slane %v7901, 2
    %v7903 = vmax.f32 %v7901, %v7902
    %v7904 = vrot.slane %v7903, 1
    %v7905 = vmax.f32 %v7903, %v7904
    %v7906 = vsel %vm6806, %v6140, -inf
    %v7907 = vrot.slane %v7906, 4
    %v7908 = vmax.f32 %v7906, %v7907
    %v7909 = vrot.slane %v7908, 2
    %v7910 = vmax.f32 %v7908, %v7909
    %v7911 = vrot.slane %v7910, 1
    %v7912 = vmax.f32 %v7910, %v7911
    %v7913 = vsel %vm6806, %v6139, -inf
    %v7914 = vrot.slane %v7913, 4
    %v7915 = vmax.f32 %v7913, %v7914
    %v7916 = vrot.slane %v7915, 2
    %v7917 = vmax.f32 %v7915, %v7916
    %v7918 = vrot.slane %v7917, 1
    %v7919 = vmax.f32 %v7917, %v7918
    %v7920 = vsel %vm6806, %v6141, -inf
    %v7921 = vrot.slane %v7920, 4
    %v7922 = vmax.f32 %v7920, %v7921
    %v7923 = vrot.slane %v7922, 2
    %v7924 = vmax.f32 %v7922, %v7923
    %v7925 = vrot.slane %v7924, 1
    %v7926 = vmax.f32 %v7924, %v7925
    %v7927 = vsel %vm6806, %v6149, -inf
    %v7928 = vrot.slane %v7927, 4
    %v7929 = vmax.f32 %v7927, %v7928
    %v7930 = vrot.slane %v7929, 2
    %v7931 = vmax.f32 %v7929, %v7930
    %v7932 = vrot.slane %v7931, 1
    %v7933 = vmax.f32 %v7931, %v7932
    %v7934 = vsel %vm6806, %v6157, -inf
    %v7935 = vrot.slane %v7934, 4
    %v7936 = vmax.f32 %v7934, %v7935
    %v7937 = vrot.slane %v7936, 2
    %v7938 = vmax.f32 %v7936, %v7937
    %v7939 = vrot.slane %v7938, 1
    %v7940 = vmax.f32 %v7938, %v7939
    %v7941 = vsel %vm6806, %v6156, -inf
    %v7942 = vrot.slane %v7941, 4
    %v7943 = vmax.f32 %v7941, %v7942
    %v7944 = vrot.slane %v7943, 2
    %v7945 = vmax.f32 %v7943, %v7944
    %v7946 = vrot.slane %v7945, 1
    %v7947 = vmax.f32 %v7945, %v7946
    %v7948 = vsel %vm6806, %v6158, -inf
    %v7949 = vrot.slane %v7948, 4
    %v7950 = vmax.f32 %v7948, %v7949
    %v7951 = vrot.slane %v7950, 2
    %v7952 = vmax.f32 %v7950, %v7951
    %v7953 = vrot.slane %v7952, 1
    %v7954 = vmax.f32 %v7952, %v7953
    %v7955 = vsel %vm6806, %v6166, -inf
    %v7956 = vrot.slane %v7955, 4
    %v7957 = vmax.f32 %v7955, %v7956
    %v7958 = vrot.slane %v7957, 2
    %v7959 = vmax.f32 %v7957, %v7958
    %v7960 = vrot.slane %v7959, 1
    %v7961 = vmax.f32 %v7959, %v7960
    %v7962 = vsel %vm6806, %v6174, -inf
    %v7963 = vrot.slane %v7962, 4
    %v7964 = vmax.f32 %v7962, %v7963
    %v7965 = vrot.slane %v7964, 2
    %v7966 = vmax.f32 %v7964, %v7965
    %v7967 = vrot.slane %v7966, 1
    %v7968 = vmax.f32 %v7966, %v7967
    %v7969 = vsel %vm6806, %v6173, -inf
    %v7970 = vrot.slane %v7969, 4
    %v7971 = vmax.f32 %v7969, %v7970
    %v7972 = vrot.slane %v7971, 2
    %v7973 = vmax.f32 %v7971, %v7972
    %v7974 = vrot.slane %v7973, 1
    %v7975 = vmax.f32 %v7973, %v7974
    %v7976 = vsel %vm6806, %v6175, -inf
    %v7977 = vrot.slane %v7976, 4
    %v7978 = vmax.f32 %v7976, %v7977
    %v7979 = vrot.slane %v7978, 2
    %v7980 = vmax.f32 %v7978, %v7979
    %v7981 = vrot.slane %v7980, 1
    %v7982 = vmax.f32 %v7980, %v7981
    %v7983 = vsel %vm6806, %v6183, -inf
    %v7984 = vrot.slane %v7983, 4
    %v7985 = vmax.f32 %v7983, %v7984
    %v7986 = vrot.slane %v7985, 2
    %v7987 = vmax.f32 %v7985, %v7986
    %v7988 = vrot.slane %v7987, 1
    %v7989 = vmax.f32 %v7987, %v7988
    %v7990 = vsel %vm6806, %v6191, -inf
    %v7991 = vrot.slane %v7990, 4
    %v7992 = vmax.f32 %v7990, %v7991
    %v7993 = vrot.slane %v7992, 2
    %v7994 = vmax.f32 %v7992, %v7993
    %v7995 = vrot.slane %v7994, 1
    %v7996 = vmax.f32 %v7994, %v7995
    %v7997 = vsel %vm6806, %v6190, -inf
    %v7998 = vrot.slane %v7997, 4
    %v7999 = vmax.f32 %v7997, %v7998
    %v8000 = vrot.slane %v7999, 2
    %v8001 = vmax.f32 %v7999, %v8000
    %v8002 = vrot.slane %v8001, 1
    %v8003 = vmax.f32 %v8001, %v8002
    %v8004 = vsel %vm6806, %v6192, -inf
    %v8005 = vrot.slane %v8004, 4
    %v8006 = vmax.f32 %v8004, %v8005
    %v8007 = vrot.slane %v8006, 2
    %v8008 = vmax.f32 %v8006, %v8007
    %v8009 = vrot.slane %v8008, 1
    %v8010 = vmax.f32 %v8008, %v8009
    %v8011 = vsel %vm6806, %v6200, -inf
    %v8012 = vrot.slane %v8011, 4
    %v8013 = vmax.f32 %v8011, %v8012
    %v8014 = vrot.slane %v8013, 2
    %v8015 = vmax.f32 %v8013, %v8014
    %v8016 = vrot.slane %v8015, 1
    %v8017 = vmax.f32 %v8015, %v8016
    %v8018 = vsel %vm6806, %v6208, -inf
    %v8019 = vrot.slane %v8018, 4
    %v8020 = vmax.f32 %v8018, %v8019
    %v8021 = vrot.slane %v8020, 2
    %v8022 = vmax.f32 %v8020, %v8021
    %v8023 = vrot.slane %v8022, 1
    %v8024 = vmax.f32 %v8022, %v8023
    %v8025 = vsel %vm6806, %v6207, -inf
    %v8026 = vrot.slane %v8025, 4
    %v8027 = vmax.f32 %v8025, %v8026
    %v8028 = vrot.slane %v8027, 2
    %v8029 = vmax.f32 %v8027, %v8028
    %v8030 = vrot.slane %v8029, 1
    %v8031 = vmax.f32 %v8029, %v8030
    %v8032 = vsel %vm6806, %v6209, -inf
    %v8033 = vrot.slane %v8032, 4
    %v8034 = vmax.f32 %v8032, %v8033
    %v8035 = vrot.slane %v8034, 2
    %v8036 = vmax.f32 %v8034, %v8035
    %v8037 = vrot.slane %v8036, 1
    %v8038 = vmax.f32 %v8036, %v8037
    %v8039 = vsel %vm6806, %v6217, -inf
    %v8040 = vrot.slane %v8039, 4
    %v8041 = vmax.f32 %v8039, %v8040
    %v8042 = vrot.slane %v8041, 2
    %v8043 = vmax.f32 %v8041, %v8042
    %v8044 = vrot.slane %v8043, 1
    %v8045 = vmax.f32 %v8043, %v8044
    %v8046 = vsel %vm6806, %v6225, -inf
    %v8047 = vrot.slane %v8046, 4
    %v8048 = vmax.f32 %v8046, %v8047
    %v8049 = vrot.slane %v8048, 2
    %v8050 = vmax.f32 %v8048, %v8049
    %v8051 = vrot.slane %v8050, 1
    %v8052 = vmax.f32 %v8050, %v8051
    %v8053 = vsel %vm6806, %v6224, -inf
    %v8054 = vrot.slane %v8053, 4
    %v8055 = vmax.f32 %v8053, %v8054
    %v8056 = vrot.slane %v8055, 2
    %v8057 = vmax.f32 %v8055, %v8056
    %v8058 = vrot.slane %v8057, 1
    %v8059 = vmax.f32 %v8057, %v8058
    %v8060 = vsel %vm6806, %v6226, -inf
    %v8061 = vrot.slane %v8060, 4
    %v8062 = vmax.f32 %v8060, %v8061
    %v8063 = vrot.slane %v8062, 2
    %v8064 = vmax.f32 %v8062, %v8063
    %v8065 = vrot.slane %v8064, 1
    %v8066 = vmax.f32 %v8064, %v8065
    %v8067 = vsel %vm6806, %v6234, -inf
    %v8068 = vrot.slane %v8067, 4
    %v8069 = vmax.f32 %v8067, %v8068
    %v8070 = vrot.slane %v8069, 2
    %v8071 = vmax.f32 %v8069, %v8070
    %v8072 = vrot.slane %v8071, 1
    %v8073 = vmax.f32 %v8071, %v8072
    %v8074 = vsel %vm6806, %v6242, -inf
    %v8075 = vrot.slane %v8074, 4
    %v8076 = vmax.f32 %v8074, %v8075
    %v8077 = vrot.slane %v8076, 2
    %v8078 = vmax.f32 %v8076, %v8077
    %v8079 = vrot.slane %v8078, 1
    %v8080 = vmax.f32 %v8078, %v8079
    %v8081 = vsel %vm6806, %v6241, -inf
    %v8082 = vrot.slane %v8081, 4
    %v8083 = vmax.f32 %v8081, %v8082
    %v8084 = vrot.slane %v8083, 2
    %v8085 = vmax.f32 %v8083, %v8084
    %v8086 = vrot.slane %v8085, 1
    %v8087 = vmax.f32 %v8085, %v8086
    %v8088 = vsel %vm6806, %v6243, -inf
    %v8089 = vrot.slane %v8088, 4
    %v8090 = vmax.f32 %v8088, %v8089
    %v8091 = vrot.slane %v8090, 2
    %v8092 = vmax.f32 %v8090, %v8091
    %v8093 = vrot.slane %v8092, 1
    %v8094 = vmax.f32 %v8092, %v8093
    %v8095 = vsel %vm6806, %v6251, -inf
    %v8096 = vrot.slane %v8095, 4
    %v8097 = vmax.f32 %v8095, %v8096
    %v8098 = vrot.slane %v8097, 2
    %v8099 = vmax.f32 %v8097, %v8098
    %v8100 = vrot.slane %v8099, 1
    %v8101 = vmax.f32 %v8099, %v8100
    %v8102 = vsel %vm6806, %v6259, -inf
    %v8103 = vrot.slane %v8102, 4
    %v8104 = vmax.f32 %v8102, %v8103
    %v8105 = vrot.slane %v8104, 2
    %v8106 = vmax.f32 %v8104, %v8105
    %v8107 = vrot.slane %v8106, 1
    %v8108 = vmax.f32 %v8106, %v8107
    %v8109 = vsel %vm6806, %v6258, -inf
    %v8110 = vrot.slane %v8109, 4
    %v8111 = vmax.f32 %v8109, %v8110
    %v8112 = vrot.slane %v8111, 2
    %v8113 = vmax.f32 %v8111, %v8112
    %v8114 = vrot.slane %v8113, 1
    %v8115 = vmax.f32 %v8113, %v8114
    %v8116 = vsel %vm6806, %v6260, -inf
    %v8117 = vrot.slane %v8116, 4
    %v8118 = vmax.f32 %v8116, %v8117
    %v8119 = vrot.slane %v8118, 2
    %v8120 = vmax.f32 %v8118, %v8119
    %v8121 = vrot.slane %v8120, 1
    %v8122 = vmax.f32 %v8120, %v8121
    %v8123 = vsel %vm6806, %v6268, -inf
    %v8124 = vrot.slane %v8123, 4
    %v8125 = vmax.f32 %v8123, %v8124
    %v8126 = vrot.slane %v8125, 2
    %v8127 = vmax.f32 %v8125, %v8126
    %v8128 = vrot.slane %v8127, 1
    %v8129 = vmax.f32 %v8127, %v8128
    %v8130 = vsel %vm6806, %v6276, -inf
    %v8131 = vrot.slane %v8130, 4
    %v8132 = vmax.f32 %v8130, %v8131
    %v8133 = vrot.slane %v8132, 2
    %v8134 = vmax.f32 %v8132, %v8133
    %v8135 = vrot.slane %v8134, 1
    %v8136 = vmax.f32 %v8134, %v8135
    %v8137 = vsel %vm6806, %v6275, -inf
    %v8138 = vrot.slane %v8137, 4
    %v8139 = vmax.f32 %v8137, %v8138
    %v8140 = vrot.slane %v8139, 2
    %v8141 = vmax.f32 %v8139, %v8140
    %v8142 = vrot.slane %v8141, 1
    %v8143 = vmax.f32 %v8141, %v8142
    %v8144 = vsel %vm6806, %v6277, -inf
    %v8145 = vrot.slane %v8144, 4
    %v8146 = vmax.f32 %v8144, %v8145
    %v8147 = vrot.slane %v8146, 2
    %v8148 = vmax.f32 %v8146, %v8147
    %v8149 = vrot.slane %v8148, 1
    %v8150 = vmax.f32 %v8148, %v8149
    %v8151 = vsel %vm6806, %v6285, -inf
    %v8152 = vrot.slane %v8151, 4
    %v8153 = vmax.f32 %v8151, %v8152
    %v8154 = vrot.slane %v8153, 2
    %v8155 = vmax.f32 %v8153, %v8154
    %v8156 = vrot.slane %v8155, 1
    %v8157 = vmax.f32 %v8155, %v8156
    %v8158 = vsel %vm6806, %v6293, -inf
    %v8159 = vrot.slane %v8158, 4
    %v8160 = vmax.f32 %v8158, %v8159
    %v8161 = vrot.slane %v8160, 2
    %v8162 = vmax.f32 %v8160, %v8161
    %v8163 = vrot.slane %v8162, 1
    %v8164 = vmax.f32 %v8162, %v8163
    %v8165 = vsel %vm6806, %v6292, -inf
    %v8166 = vrot.slane %v8165, 4
    %v8167 = vmax.f32 %v8165, %v8166
    %v8168 = vrot.slane %v8167, 2
    %v8169 = vmax.f32 %v8167, %v8168
    %v8170 = vrot.slane %v8169, 1
    %v8171 = vmax.f32 %v8169, %v8170
    %v8172 = vsel %vm6806, %v6294, -inf
    %v8173 = vrot.slane %v8172, 4
    %v8174 = vmax.f32 %v8172, %v8173
    %v8175 = vrot.slane %v8174, 2
    %v8176 = vmax.f32 %v8174, %v8175
    %v8177 = vrot.slane %v8176, 1
    %v8178 = vmax.f32 %v8176, %v8177
    %v8179 = vsel %vm6806, %v6302, -inf
    %v8180 = vrot.slane %v8179, 4
    %v8181 = vmax.f32 %v8179, %v8180
    %v8182 = vrot.slane %v8181, 2
    %v8183 = vmax.f32 %v8181, %v8182
    %v8184 = vrot.slane %v8183, 1
    %v8185 = vmax.f32 %v8183, %v8184
    %v8186 = vsel %vm6806, %v6310, -inf
    %v8187 = vrot.slane %v8186, 4
    %v8188 = vmax.f32 %v8186, %v8187
    %v8189 = vrot.slane %v8188, 2
    %v8190 = vmax.f32 %v8188, %v8189
    %v8191 = vrot.slane %v8190, 1
    %v8192 = vmax.f32 %v8190, %v8191
    %v8193 = vsel %vm6806, %v6309, -inf
    %v8194 = vrot.slane %v8193, 4
    %v8195 = vmax.f32 %v8193, %v8194
    %v8196 = vrot.slane %v8195, 2
    %v8197 = vmax.f32 %v8195, %v8196
    %v8198 = vrot.slane %v8197, 1
    %v8199 = vmax.f32 %v8197, %v8198
    %v8200 = vsel %vm6806, %v6311, -inf
    %v8201 = vrot.slane %v8200, 4
    %v8202 = vmax.f32 %v8200, %v8201
    %v8203 = vrot.slane %v8202, 2
    %v8204 = vmax.f32 %v8202, %v8203
    %v8205 = vrot.slane %v8204, 1
    %v8206 = vmax.f32 %v8204, %v8205
    %v8207 = vsel %vm6806, %v6319, -inf
    %v8208 = vrot.slane %v8207, 4
    %v8209 = vmax.f32 %v8207, %v8208
    %v8210 = vrot.slane %v8209, 2
    %v8211 = vmax.f32 %v8209, %v8210
    %v8212 = vrot.slane %v8211, 1
    %v8213 = vmax.f32 %v8211, %v8212
    %v8214 = vsel %vm6806, %v6327, -inf
    %v8215 = vrot.slane %v8214, 4
    %v8216 = vmax.f32 %v8214, %v8215
    %v8217 = vrot.slane %v8216, 2
    %v8218 = vmax.f32 %v8216, %v8217
    %v8219 = vrot.slane %v8218, 1
    %v8220 = vmax.f32 %v8218, %v8219
    %v8221 = vsel %vm6806, %v6326, -inf
    %v8222 = vrot.slane %v8221, 4
    %v8223 = vmax.f32 %v8221, %v8222
    %v8224 = vrot.slane %v8223, 2
    %v8225 = vmax.f32 %v8223, %v8224
    %v8226 = vrot.slane %v8225, 1
    %v8227 = vmax.f32 %v8225, %v8226
    %v8228 = vsel %vm6806, %v6328, -inf
    %v8229 = vrot.slane %v8228, 4
    %v8230 = vmax.f32 %v8228, %v8229
    %v8231 = vrot.slane %v8230, 2
    %v8232 = vmax.f32 %v8230, %v8231
    %v8233 = vrot.slane %v8232, 1
    %v8234 = vmax.f32 %v8232, %v8233
    %v8235 = vsel %vm6806, %v6336, -inf
    %v8236 = vrot.slane %v8235, 4
    %v8237 = vmax.f32 %v8235, %v8236
    %v8238 = vrot.slane %v8237, 2
    %v8239 = vmax.f32 %v8237, %v8238
    %v8240 = vrot.slane %v8239, 1
    %v8241 = vmax.f32 %v8239, %v8240
    %v8242 = vsel %vm6806, %v6344, -inf
    %v8243 = vrot.slane %v8242, 4
    %v8244 = vmax.f32 %v8242, %v8243
    %v8245 = vrot.slane %v8244, 2
    %v8246 = vmax.f32 %v8244, %v8245
    %v8247 = vrot.slane %v8246, 1
    %v8248 = vmax.f32 %v8246, %v8247
    %v8249 = vsel %vm6806, %v6343, -inf
    %v8250 = vrot.slane %v8249, 4
    %v8251 = vmax.f32 %v8249, %v8250
    %v8252 = vrot.slane %v8251, 2
    %v8253 = vmax.f32 %v8251, %v8252
    %v8254 = vrot.slane %v8253, 1
    %v8255 = vmax.f32 %v8253, %v8254
    %v8256 = vsel %vm6806, %v6345, -inf
    %v8257 = vrot.slane %v8256, 4
    %v8258 = vmax.f32 %v8256, %v8257
    %v8259 = vrot.slane %v8258, 2
    %v8260 = vmax.f32 %v8258, %v8259
    %v8261 = vrot.slane %v8260, 1
    %v8262 = vmax.f32 %v8260, %v8261
    %v8263 = vsel %vm6806, %v6353, -inf
    %v8264 = vrot.slane %v8263, 4
    %v8265 = vmax.f32 %v8263, %v8264
    %v8266 = vrot.slane %v8265, 2
    %v8267 = vmax.f32 %v8265, %v8266
    %v8268 = vrot.slane %v8267, 1
    %v8269 = vmax.f32 %v8267, %v8268
    %v8270 = vsel %vm6806, %v6361, -inf
    %v8271 = vrot.slane %v8270, 4
    %v8272 = vmax.f32 %v8270, %v8271
    %v8273 = vrot.slane %v8272, 2
    %v8274 = vmax.f32 %v8272, %v8273
    %v8275 = vrot.slane %v8274, 1
    %v8276 = vmax.f32 %v8274, %v8275
    %v8277 = vsel %vm6806, %v6360, -inf
    %v8278 = vrot.slane %v8277, 4
    %v8279 = vmax.f32 %v8277, %v8278
    %v8280 = vrot.slane %v8279, 2
    %v8281 = vmax.f32 %v8279, %v8280
    %v8282 = vrot.slane %v8281, 1
    %v8283 = vmax.f32 %v8281, %v8282
    %v8284 = vsel %vm6806, %v6362, -inf
    %v8285 = vrot.slane %v8284, 4
    %v8286 = vmax.f32 %v8284, %v8285
    %v8287 = vrot.slane %v8286, 2
    %v8288 = vmax.f32 %v8286, %v8287
    %v8289 = vrot.slane %v8288, 1
    %v8290 = vmax.f32 %v8288, %v8289
    %v8291 = vsel %vm6806, %v6370, -inf
    %v8292 = vrot.slane %v8291, 4
    %v8293 = vmax.f32 %v8291, %v8292
    %v8294 = vrot.slane %v8293, 2
    %v8295 = vmax.f32 %v8293, %v8294
    %v8296 = vrot.slane %v8295, 1
    %v8297 = vmax.f32 %v8295, %v8296
    %v8298 = vsel %vm6806, %v6378, -inf
    %v8299 = vrot.slane %v8298, 4
    %v8300 = vmax.f32 %v8298, %v8299
    %v8301 = vrot.slane %v8300, 2
    %v8302 = vmax.f32 %v8300, %v8301
    %v8303 = vrot.slane %v8302, 1
    %v8304 = vmax.f32 %v8302, %v8303
    %v8305 = vsel %vm6806, %v6377, -inf
    %v8306 = vrot.slane %v8305, 4
    %v8307 = vmax.f32 %v8305, %v8306
    %v8308 = vrot.slane %v8307, 2
    %v8309 = vmax.f32 %v8307, %v8308
    %v8310 = vrot.slane %v8309, 1
    %v8311 = vmax.f32 %v8309, %v8310
    %v8312 = vsel %vm6806, %v6379, -inf
    %v8313 = vrot.slane %v8312, 4
    %v8314 = vmax.f32 %v8312, %v8313
    %v8315 = vrot.slane %v8314, 2
    %v8316 = vmax.f32 %v8314, %v8315
    %v8317 = vrot.slane %v8316, 1
    %v8318 = vmax.f32 %v8316, %v8317
    %v8319 = vsel %vm6806, %v6387, -inf
    %v8320 = vrot.slane %v8319, 4
    %v8321 = vmax.f32 %v8319, %v8320
    %v8322 = vrot.slane %v8321, 2
    %v8323 = vmax.f32 %v8321, %v8322
    %v8324 = vrot.slane %v8323, 1
    %v8325 = vmax.f32 %v8323, %v8324
    %v8326 = vsel %vm6806, %v6395, -inf
    %v8327 = vrot.slane %v8326, 4
    %v8328 = vmax.f32 %v8326, %v8327
    %v8329 = vrot.slane %v8328, 2
    %v8330 = vmax.f32 %v8328, %v8329
    %v8331 = vrot.slane %v8330, 1
    %v8332 = vmax.f32 %v8330, %v8331
    %v8333 = vsel %vm6806, %v6394, -inf
    %v8334 = vrot.slane %v8333, 4
    %v8335 = vmax.f32 %v8333, %v8334
    %v8336 = vrot.slane %v8335, 2
    %v8337 = vmax.f32 %v8335, %v8336
    %v8338 = vrot.slane %v8337, 1
    %v8339 = vmax.f32 %v8337, %v8338
    %v8340 = vsel %vm6806, %v6396, -inf
    %v8341 = vrot.slane %v8340, 4
    %v8342 = vmax.f32 %v8340, %v8341
    %v8343 = vrot.slane %v8342, 2
    %v8344 = vmax.f32 %v8342, %v8343
    %v8345 = vrot.slane %v8344, 1
    %v8346 = vmax.f32 %v8344, %v8345
    %v8347 = vsel %vm6806, %v6404, -inf
    %v8348 = vrot.slane %v8347, 4
    %v8349 = vmax.f32 %v8347, %v8348
    %v8350 = vrot.slane %v8349, 2
    %v8351 = vmax.f32 %v8349, %v8350
    %v8352 = vrot.slane %v8351, 1
    %v8353 = vmax.f32 %v8351, %v8352
    %v8354 = vsel %vm6806, %v6412, -inf
    %v8355 = vrot.slane %v8354, 4
    %v8356 = vmax.f32 %v8354, %v8355
    %v8357 = vrot.slane %v8356, 2
    %v8358 = vmax.f32 %v8356, %v8357
    %v8359 = vrot.slane %v8358, 1
    %v8360 = vmax.f32 %v8358, %v8359
    %v8361 = vsel %vm6806, %v6411, -inf
    %v8362 = vrot.slane %v8361, 4
    %v8363 = vmax.f32 %v8361, %v8362
    %v8364 = vrot.slane %v8363, 2
    %v8365 = vmax.f32 %v8363, %v8364
    %v8366 = vrot.slane %v8365, 1
    %v8367 = vmax.f32 %v8365, %v8366
    %v8368 = vsel %vm6806, %v6413, -inf
    %v8369 = vrot.slane %v8368, 4
    %v8370 = vmax.f32 %v8368, %v8369
    %v8371 = vrot.slane %v8370, 2
    %v8372 = vmax.f32 %v8370, %v8371
    %v8373 = vrot.slane %v8372, 1
    %v8374 = vmax.f32 %v8372, %v8373
    %v8375 = vsel %vm6806, %v6421, -inf
    %v8376 = vrot.slane %v8375, 4
    %v8377 = vmax.f32 %v8375, %v8376
    %v8378 = vrot.slane %v8377, 2
    %v8379 = vmax.f32 %v8377, %v8378
    %v8380 = vrot.slane %v8379, 1
    %v8381 = vmax.f32 %v8379, %v8380
    %v8382 = vsel %vm6806, %v6429, -inf
    %v8383 = vrot.slane %v8382, 4
    %v8384 = vmax.f32 %v8382, %v8383
    %v8385 = vrot.slane %v8384, 2
    %v8386 = vmax.f32 %v8384, %v8385
    %v8387 = vrot.slane %v8386, 1
    %v8388 = vmax.f32 %v8386, %v8387
    %v8389 = vsel %vm6806, %v6428, -inf
    %v8390 = vrot.slane %v8389, 4
    %v8391 = vmax.f32 %v8389, %v8390
    %v8392 = vrot.slane %v8391, 2
    %v8393 = vmax.f32 %v8391, %v8392
    %v8394 = vrot.slane %v8393, 1
    %v8395 = vmax.f32 %v8393, %v8394
    %v8396 = vsel %vm6806, %v6430, -inf
    %v8397 = vrot.slane %v8396, 4
    %v8398 = vmax.f32 %v8396, %v8397
    %v8399 = vrot.slane %v8398, 2
    %v8400 = vmax.f32 %v8398, %v8399
    %v8401 = vrot.slane %v8400, 1
    %v8402 = vmax.f32 %v8400, %v8401
    %v8403 = vsel %vm6806, %v6438, -inf
    %v8404 = vrot.slane %v8403, 4
    %v8405 = vmax.f32 %v8403, %v8404
    %v8406 = vrot.slane %v8405, 2
    %v8407 = vmax.f32 %v8405, %v8406
    %v8408 = vrot.slane %v8407, 1
    %v8409 = vmax.f32 %v8407, %v8408
    %v8410 = vsel %vm6806, %v6446, -inf
    %v8411 = vrot.slane %v8410, 4
    %v8412 = vmax.f32 %v8410, %v8411
    %v8413 = vrot.slane %v8412, 2
    %v8414 = vmax.f32 %v8412, %v8413
    %v8415 = vrot.slane %v8414, 1
    %v8416 = vmax.f32 %v8414, %v8415
    %v8417 = vsel %vm6806, %v6445, -inf
    %v8418 = vrot.slane %v8417, 4
    %v8419 = vmax.f32 %v8417, %v8418
    %v8420 = vrot.slane %v8419, 2
    %v8421 = vmax.f32 %v8419, %v8420
    %v8422 = vrot.slane %v8421, 1
    %v8423 = vmax.f32 %v8421, %v8422
    %v8424 = vsel %vm6806, %v6447, -inf
    %v8425 = vrot.slane %v8424, 4
    %v8426 = vmax.f32 %v8424, %v8425
    %v8427 = vrot.slane %v8426, 2
    %v8428 = vmax.f32 %v8426, %v8427
    %v8429 = vrot.slane %v8428, 1
    %v8430 = vmax.f32 %v8428, %v8429
    %v8431 = vsel %vm6806, %v6455, -inf
    %v8432 = vrot.slane %v8431, 4
    %v8433 = vmax.f32 %v8431, %v8432
    %v8434 = vrot.slane %v8433, 2
    %v8435 = vmax.f32 %v8433, %v8434
    %v8436 = vrot.slane %v8435, 1
    %v8437 = vmax.f32 %v8435, %v8436
    %v8438 = vsel %vm6806, %v6463, -inf
    %v8439 = vrot.slane %v8438, 4
    %v8440 = vmax.f32 %v8438, %v8439
    %v8441 = vrot.slane %v8440, 2
    %v8442 = vmax.f32 %v8440, %v8441
    %v8443 = vrot.slane %v8442, 1
    %v8444 = vmax.f32 %v8442, %v8443
    %v8445 = vsel %vm6806, %v6462, -inf
    %v8446 = vrot.slane %v8445, 4
    %v8447 = vmax.f32 %v8445, %v8446
    %v8448 = vrot.slane %v8447, 2
    %v8449 = vmax.f32 %v8447, %v8448
    %v8450 = vrot.slane %v8449, 1
    %v8451 = vmax.f32 %v8449, %v8450
    %v8452 = vsel %vm6806, %v6464, -inf
    %v8453 = vrot.slane %v8452, 4
    %v8454 = vmax.f32 %v8452, %v8453
    %v8455 = vrot.slane %v8454, 2
    %v8456 = vmax.f32 %v8454, %v8455
    %v8457 = vrot.slane %v8456, 1
    %v8458 = vmax.f32 %v8456, %v8457
    %v8459 = vsel %vm6806, %v6472, -inf
    %v8460 = vrot.slane %v8459, 4
    %v8461 = vmax.f32 %v8459, %v8460
    %v8462 = vrot.slane %v8461, 2
    %v8463 = vmax.f32 %v8461, %v8462
    %v8464 = vrot.slane %v8463, 1
    %v8465 = vmax.f32 %v8463, %v8464
    %v8466 = vsel %vm6806, %v6480, -inf
    %v8467 = vrot.slane %v8466, 4
    %v8468 = vmax.f32 %v8466, %v8467
    %v8469 = vrot.slane %v8468, 2
    %v8470 = vmax.f32 %v8468, %v8469
    %v8471 = vrot.slane %v8470, 1
    %v8472 = vmax.f32 %v8470, %v8471
    %v8473 = vsel %vm6806, %v6479, -inf
    %v8474 = vrot.slane %v8473, 4
    %v8475 = vmax.f32 %v8473, %v8474
    %v8476 = vrot.slane %v8475, 2
    %v8477 = vmax.f32 %v8475, %v8476
    %v8478 = vrot.slane %v8477, 1
    %v8479 = vmax.f32 %v8477, %v8478
    %v8480 = vsel %vm6806, %v6481, -inf
    %v8481 = vrot.slane %v8480, 4
    %v8482 = vmax.f32 %v8480, %v8481
    %v8483 = vrot.slane %v8482, 2
    %v8484 = vmax.f32 %v8482, %v8483
    %v8485 = vrot.slane %v8484, 1
    %v8486 = vmax.f32 %v8484, %v8485
    %v8487 = vsel %vm6806, %v6489, -inf
    %v8488 = vrot.slane %v8487, 4
    %v8489 = vmax.f32 %v8487, %v8488
    %v8490 = vrot.slane %v8489, 2
    %v8491 = vmax.f32 %v8489, %v8490
    %v8492 = vrot.slane %v8491, 1
    %v8493 = vmax.f32 %v8491, %v8492
    %v8494 = vsel %vm6806, %v6497, -inf
    %v8495 = vrot.slane %v8494, 4
    %v8496 = vmax.f32 %v8494, %v8495
    %v8497 = vrot.slane %v8496, 2
    %v8498 = vmax.f32 %v8496, %v8497
    %v8499 = vrot.slane %v8498, 1
    %v8500 = vmax.f32 %v8498, %v8499
    %v8501 = vsel %vm6806, %v6496, -inf
    %v8502 = vrot.slane %v8501, 4
    %v8503 = vmax.f32 %v8501, %v8502
    %v8504 = vrot.slane %v8503, 2
    %v8505 = vmax.f32 %v8503, %v8504
    %v8506 = vrot.slane %v8505, 1
    %v8507 = vmax.f32 %v8505, %v8506
    %v8508 = vsel %vm6806, %v6498, -inf
    %v8509 = vrot.slane %v8508, 4
    %v8510 = vmax.f32 %v8508, %v8509
    %v8511 = vrot.slane %v8510, 2
    %v8512 = vmax.f32 %v8510, %v8511
    %v8513 = vrot.slane %v8512, 1
    %v8514 = vmax.f32 %v8512, %v8513
    %v8515 = vsel %vm6806, %v6506, -inf
    %v8516 = vrot.slane %v8515, 4
    %v8517 = vmax.f32 %v8515, %v8516
    %v8518 = vrot.slane %v8517, 2
    %v8519 = vmax.f32 %v8517, %v8518
    %v8520 = vrot.slane %v8519, 1
    %v8521 = vmax.f32 %v8519, %v8520
    %v8522 = vsel %vm6806, %v6514, -inf
    %v8523 = vrot.slane %v8522, 4
    %v8524 = vmax.f32 %v8522, %v8523
    %v8525 = vrot.slane %v8524, 2
    %v8526 = vmax.f32 %v8524, %v8525
    %v8527 = vrot.slane %v8526, 1
    %v8528 = vmax.f32 %v8526, %v8527
    %v8529 = vsel %vm6806, %v6513, -inf
    %v8530 = vrot.slane %v8529, 4
    %v8531 = vmax.f32 %v8529, %v8530
    %v8532 = vrot.slane %v8531, 2
    %v8533 = vmax.f32 %v8531, %v8532
    %v8534 = vrot.slane %v8533, 1
    %v8535 = vmax.f32 %v8533, %v8534
    %v8536 = vsel %vm6806, %v6515, -inf
    %v8537 = vrot.slane %v8536, 4
    %v8538 = vmax.f32 %v8536, %v8537
    %v8539 = vrot.slane %v8538, 2
    %v8540 = vmax.f32 %v8538, %v8539
    %v8541 = vrot.slane %v8540, 1
    %v8542 = vmax.f32 %v8540, %v8541
    %v8543 = vsel %vm6806, %v6523, -inf
    %v8544 = vrot.slane %v8543, 4
    %v8545 = vmax.f32 %v8543, %v8544
    %v8546 = vrot.slane %v8545, 2
    %v8547 = vmax.f32 %v8545, %v8546
    %v8548 = vrot.slane %v8547, 1
    %v8549 = vmax.f32 %v8547, %v8548
    %v8550 = vsel %vm6806, %v6531, -inf
    %v8551 = vrot.slane %v8550, 4
    %v8552 = vmax.f32 %v8550, %v8551
    %v8553 = vrot.slane %v8552, 2
    %v8554 = vmax.f32 %v8552, %v8553
    %v8555 = vrot.slane %v8554, 1
    %v8556 = vmax.f32 %v8554, %v8555
    %v8557 = vsel %vm6806, %v6530, -inf
    %v8558 = vrot.slane %v8557, 4
    %v8559 = vmax.f32 %v8557, %v8558
    %v8560 = vrot.slane %v8559, 2
    %v8561 = vmax.f32 %v8559, %v8560
    %v8562 = vrot.slane %v8561, 1
    %v8563 = vmax.f32 %v8561, %v8562
    %v8564 = vsel %vm6806, %v6532, -inf
    %v8565 = vrot.slane %v8564, 4
    %v8566 = vmax.f32 %v8564, %v8565
    %v8567 = vrot.slane %v8566, 2
    %v8568 = vmax.f32 %v8566, %v8567
    %v8569 = vrot.slane %v8568, 1
    %v8570 = vmax.f32 %v8568, %v8569
    %v8571 = vsel %vm6806, %v6540, -inf
    %v8572 = vrot.slane %v8571, 4
    %v8573 = vmax.f32 %v8571, %v8572
    %v8574 = vrot.slane %v8573, 2
    %v8575 = vmax.f32 %v8573, %v8574
    %v8576 = vrot.slane %v8575, 1
    %v8577 = vmax.f32 %v8575, %v8576
    %v8578 = vsel %vm6806, %v6548, -inf
    %v8579 = vrot.slane %v8578, 4
    %v8580 = vmax.f32 %v8578, %v8579
    %v8581 = vrot.slane %v8580, 2
    %v8582 = vmax.f32 %v8580, %v8581
    %v8583 = vrot.slane %v8582, 1
    %v8584 = vmax.f32 %v8582, %v8583
    %v8585 = vsel %vm6806, %v6547, -inf
    %v8586 = vrot.slane %v8585, 4
    %v8587 = vmax.f32 %v8585, %v8586
    %v8588 = vrot.slane %v8587, 2
    %v8589 = vmax.f32 %v8587, %v8588
    %v8590 = vrot.slane %v8589, 1
    %v8591 = vmax.f32 %v8589, %v8590
    %v8592 = vsel %vm6806, %v6549, -inf
    %v8593 = vrot.slane %v8592, 4
    %v8594 = vmax.f32 %v8592, %v8593
    %v8595 = vrot.slane %v8594, 2
    %v8596 = vmax.f32 %v8594, %v8595
    %v8597 = vrot.slane %v8596, 1
    %v8598 = vmax.f32 %v8596, %v8597
    %v8599 = vmax.f32 %v6813, %v6869
    %v8600 = vmax.f32 %v6820, %v6876
    %v8601 = vmax.f32 %v6827, %v6883
    %v8602 = vmax.f32 %v6834, %v6890
    %v8603 = vmax.f32 %v6841, %v6897
    %v8604 = vmax.f32 %v6848, %v6904
    %v8605 = vmax.f32 %v6855, %v6911
    %v8606 = vmax.f32 %v6862, %v6918
    %v8607 = vmax.f32 %v6925, %v6981
    %v8608 = vmax.f32 %v6932, %v6988
    %v8609 = vmax.f32 %v6939, %v6995
    %v8610 = vmax.f32 %v6946, %v7002
    %v8611 = vmax.f32 %v6953, %v7009
    %v8612 = vmax.f32 %v6960, %v7016
    %v8613 = vmax.f32 %v6967, %v7023
    %v8614 = vmax.f32 %v6974, %v7030
    %v8615 = vmax.f32 %v7037, %v7093
    %v8616 = vmax.f32 %v7044, %v7100
    %v8617 = vmax.f32 %v7051, %v7107
    %v8618 = vmax.f32 %v7058, %v7114
    %v8619 = vmax.f32 %v7065, %v7121
    %v8620 = vmax.f32 %v7072, %v7128
    %v8621 = vmax.f32 %v7079, %v7135
    %v8622 = vmax.f32 %v7086, %v7142
    %v8623 = vmax.f32 %v7149, %v7205
    %v8624 = vmax.f32 %v7156, %v7212
    %v8625 = vmax.f32 %v7163, %v7219
    %v8626 = vmax.f32 %v7170, %v7226
    %v8627 = vmax.f32 %v7177, %v7233
    %v8628 = vmax.f32 %v7184, %v7240
    %v8629 = vmax.f32 %v7191, %v7247
    %v8630 = vmax.f32 %v7198, %v7254
    %v8631 = vmax.f32 %v7261, %v7317
    %v8632 = vmax.f32 %v7268, %v7324
    %v8633 = vmax.f32 %v7275, %v7331
    %v8634 = vmax.f32 %v7282, %v7338
    %v8635 = vmax.f32 %v7289, %v7345
    %v8636 = vmax.f32 %v7296, %v7352
    %v8637 = vmax.f32 %v7303, %v7359
    %v8638 = vmax.f32 %v7310, %v7366
    %v8639 = vmax.f32 %v7373, %v7429
    %v8640 = vmax.f32 %v7380, %v7436
    %v8641 = vmax.f32 %v7387, %v7443
    %v8642 = vmax.f32 %v7394, %v7450
    %v8643 = vmax.f32 %v7401, %v7457
    %v8644 = vmax.f32 %v7408, %v7464
    %v8645 = vmax.f32 %v7415, %v7471
    %v8646 = vmax.f32 %v7422, %v7478
    %v8647 = vmax.f32 %v7485, %v7541
    %v8648 = vmax.f32 %v7492, %v7548
    %v8649 = vmax.f32 %v7499, %v7555
    %v8650 = vmax.f32 %v7506, %v7562
    %v8651 = vmax.f32 %v7513, %v7569
    %v8652 = vmax.f32 %v7520, %v7576
    %v8653 = vmax.f32 %v7527, %v7583
    %v8654 = vmax.f32 %v7534, %v7590
    %v8655 = vmax.f32 %v7597, %v7653
    %v8656 = vmax.f32 %v7604, %v7660
    %v8657 = vmax.f32 %v7611, %v7667
    %v8658 = vmax.f32 %v7618, %v7674
    %v8659 = vmax.f32 %v7625, %v7681
    %v8660 = vmax.f32 %v7632, %v7688
    %v8661 = vmax.f32 %v7639, %v7695
    %v8662 = vmax.f32 %v7646, %v7702
    %v8663 = vmax.f32 %v7709, %v7765
    %v8664 = vmax.f32 %v7716, %v7772
    %v8665 = vmax.f32 %v7723, %v7779
    %v8666 = vmax.f32 %v7730, %v7786
    %v8667 = vmax.f32 %v7737, %v7793
    %v8668 = vmax.f32 %v7744, %v7800
    %v8669 = vmax.f32 %v7751, %v7807
    %v8670 = vmax.f32 %v7758, %v7814
    %v8671 = vmax.f32 %v7821, %v7877
    %v8672 = vmax.f32 %v7828, %v7884
    %v8673 = vmax.f32 %v7835, %v7891
    %v8674 = vmax.f32 %v7842, %v7898
    %v8675 = vmax.f32 %v7849, %v7905
    %v8676 = vmax.f32 %v7856, %v7912
    %v8677 = vmax.f32 %v7863, %v7919
    %v8678 = vmax.f32 %v7870, %v7926
    %v8679 = vmax.f32 %v7933, %v7989
    %v8680 = vmax.f32 %v7940, %v7996
    %v8681 = vmax.f32 %v7947, %v8003
    %v8682 = vmax.f32 %v7954, %v8010
    %v8683 = vmax.f32 %v7961, %v8017
    %v8684 = vmax.f32 %v7968, %v8024
    %v8685 = vmax.f32 %v7975, %v8031
    %v8686 = vmax.f32 %v7982, %v8038
    %v8687 = vmax.f32 %v8045, %v8101
    %v8688 = vmax.f32 %v8052, %v8108
    %v8689 = vmax.f32 %v8059, %v8115
    %v8690 = vmax.f32 %v8066, %v8122
    %v8691 = vmax.f32 %v8073, %v8129
    %v8692 = vmax.f32 %v8080, %v8136
    %v8693 = vmax.f32 %v8087, %v8143
    %v8694 = vmax.f32 %v8094, %v8150
    %v8695 = vmax.f32 %v8157, %v8213
    %v8696 = vmax.f32 %v8164, %v8220
    %v8697 = vmax.f32 %v8171, %v8227
    %v8698 = vmax.f32 %v8178, %v8234
    %v8699 = vmax.f32 %v8185, %v8241
    %v8700 = vmax.f32 %v8192, %v8248
    %v8701 = vmax.f32 %v8199, %v8255
    %v8702 = vmax.f32 %v8206, %v8262
    %v8703 = vmax.f32 %v8269, %v8325
    %v8704 = vmax.f32 %v8276, %v8332
    %v8705 = vmax.f32 %v8283, %v8339
    %v8706 = vmax.f32 %v8290, %v8346
    %v8707 = vmax.f32 %v8297, %v8353
    %v8708 = vmax.f32 %v8304, %v8360
    %v8709 = vmax.f32 %v8311, %v8367
    %v8710 = vmax.f32 %v8318, %v8374
    %v8711 = vmax.f32 %v8381, %v8437
    %v8712 = vmax.f32 %v8388, %v8444
    %v8713 = vmax.f32 %v8395, %v8451
    %v8714 = vmax.f32 %v8402, %v8458
    %v8715 = vmax.f32 %v8409, %v8465
    %v8716 = vmax.f32 %v8416, %v8472
    %v8717 = vmax.f32 %v8423, %v8479
    %v8718 = vmax.f32 %v8430, %v8486
    %v8719 = vmax.f32 %v8493, %v8549
    %v8720 = vmax.f32 %v8500, %v8556
    %v8721 = vmax.f32 %v8507, %v8563
    %v8722 = vmax.f32 %v8514, %v8570
    %v8723 = vmax.f32 %v8521, %v8577
    %v8724 = vmax.f32 %v8528, %v8584
    %v8725 = vmax.f32 %v8535, %v8591
    %v8726 = vmax.f32 %v8542, %v8598
    %v8728 = vlaneseq
    %v8729 = vshrl.u32 %v8728, 7
    %v8730 = vsub.s32 0, %v8729
    %v8731 = vrot.slane %v5397, %v8730
    %v8733 = vadd.f32 %v8599, %v8731
    %v8734 = vadd.f32 %v8600, %v8731
    %v8735 = vadd.f32 %v8601, %v8731
    %v8736 = vadd.f32 %v8602, %v8731
    %v8737 = vadd.f32 %v8603, %v8731
    %v8738 = vadd.f32 %v8604, %v8731
    %v8739 = vadd.f32 %v8605, %v8731
    %v8740 = vadd.f32 %v8606, %v8731
    %v8741 = vadd.f32 %v8607, %v8731
    %v8742 = vadd.f32 %v8608, %v8731
    %v8743 = vadd.f32 %v8609, %v8731
    %v8744 = vadd.f32 %v8610, %v8731
    %v8745 = vadd.f32 %v8611, %v8731
    %v8746 = vadd.f32 %v8612, %v8731
    %v8747 = vadd.f32 %v8613, %v8731
    %v8748 = vadd.f32 %v8614, %v8731
    %v8749 = vadd.f32 %v8615, %v8731
    %v8750 = vadd.f32 %v8616, %v8731
    %v8751 = vadd.f32 %v8617, %v8731
    %v8752 = vadd.f32 %v8618, %v8731
    %v8753 = vadd.f32 %v8619, %v8731
    %v8754 = vadd.f32 %v8620, %v8731
    %v8755 = vadd.f32 %v8621, %v8731
    %v8756 = vadd.f32 %v8622, %v8731
    %v8757 = vadd.f32 %v8623, %v8731
    %v8758 = vadd.f32 %v8624, %v8731
    %v8759 = vadd.f32 %v8625, %v8731
    %v8760 = vadd.f32 %v8626, %v8731
    %v8761 = vadd.f32 %v8627, %v8731
    %v8762 = vadd.f32 %v8628, %v8731
    %v8763 = vadd.f32 %v8629, %v8731
    %v8764 = vadd.f32 %v8630, %v8731
    %v8765 = vadd.f32 %v8631, %v8731
    %v8766 = vadd.f32 %v8632, %v8731
    %v8767 = vadd.f32 %v8633, %v8731
    %v8768 = vadd.f32 %v8634, %v8731
    %v8769 = vadd.f32 %v8635, %v8731
    %v8770 = vadd.f32 %v8636, %v8731
    %v8771 = vadd.f32 %v8637, %v8731
    %v8772 = vadd.f32 %v8638, %v8731
    %v8773 = vadd.f32 %v8639, %v8731
    %v8774 = vadd.f32 %v8640, %v8731
    %v8775 = vadd.f32 %v8641, %v8731
    %v8776 = vadd.f32 %v8642, %v8731
    %v8777 = vadd.f32 %v8643, %v8731
    %v8778 = vadd.f32 %v8644, %v8731
    %v8779 = vadd.f32 %v8645, %v8731
    %v8780 = vadd.f32 %v8646, %v8731
    %v8781 = vadd.f32 %v8647, %v8731
    %v8782 = vadd.f32 %v8648, %v8731
    %v8783 = vadd.f32 %v8649, %v8731
    %v8784 = vadd.f32 %v8650, %v8731
    %v8785 = vadd.f32 %v8651, %v8731
    %v8786 = vadd.f32 %v8652, %v8731
    %v8787 = vadd.f32 %v8653, %v8731
    %v8788 = vadd.f32 %v8654, %v8731
    %v8789 = vadd.f32 %v8655, %v8731
    %v8790 = vadd.f32 %v8656, %v8731
    %v8791 = vadd.f32 %v8657, %v8731
    %v8792 = vadd.f32 %v8658, %v8731
    %v8793 = vadd.f32 %v8659, %v8731
    %v8794 = vadd.f32 %v8660, %v8731
    %v8795 = vadd.f32 %v8661, %v8731
    %v8796 = vadd.f32 %v8662, %v8731
    %v8797 = vadd.f32 %v8663, %v8731
    %v8798 = vadd.f32 %v8664, %v8731
    %v8799 = vadd.f32 %v8665, %v8731
    %v8800 = vadd.f32 %v8666, %v8731
    %v8801 = vadd.f32 %v8667, %v8731
    %v8802 = vadd.f32 %v8668, %v8731
    %v8803 = vadd.f32 %v8669, %v8731
    %v8804 = vadd.f32 %v8670, %v8731
    %v8805 = vadd.f32 %v8671, %v8731
    %v8806 = vadd.f32 %v8672, %v8731
    %v8807 = vadd.f32 %v8673, %v8731
    %v8808 = vadd.f32 %v8674, %v8731
    %v8809 = vadd.f32 %v8675, %v8731
    %v8810 = vadd.f32 %v8676, %v8731
    %v8811 = vadd.f32 %v8677, %v8731
    %v8812 = vadd.f32 %v8678, %v8731
    %v8813 = vadd.f32 %v8679, %v8731
    %v8814 = vadd.f32 %v8680, %v8731
    %v8815 = vadd.f32 %v8681, %v8731
    %v8816 = vadd.f32 %v8682, %v8731
    %v8817 = vadd.f32 %v8683, %v8731
    %v8818 = vadd.f32 %v8684, %v8731
    %v8819 = vadd.f32 %v8685, %v8731
    %v8820 = vadd.f32 %v8686, %v8731
    %v8821 = vadd.f32 %v8687, %v8731
    %v8822 = vadd.f32 %v8688, %v8731
    %v8823 = vadd.f32 %v8689, %v8731
    %v8824 = vadd.f32 %v8690, %v8731
    %v8825 = vadd.f32 %v8691, %v8731
    %v8826 = vadd.f32 %v8692, %v8731
    %v8827 = vadd.f32 %v8693, %v8731
    %v8828 = vadd.f32 %v8694, %v8731
    %v8829 = vadd.f32 %v8695, %v8731
    %v8830 = vadd.f32 %v8696, %v8731
    %v8831 = vadd.f32 %v8697, %v8731
    %v8832 = vadd.f32 %v8698, %v8731
    %v8833 = vadd.f32 %v8699, %v8731
    %v8834 = vadd.f32 %v8700, %v8731
    %v8835 = vadd.f32 %v8701, %v8731
    %v8836 = vadd.f32 %v8702, %v8731
    %v8837 = vadd.f32 %v8703, %v8731
    %v8838 = vadd.f32 %v8704, %v8731
    %v8839 = vadd.f32 %v8705, %v8731
    %v8840 = vadd.f32 %v8706, %v8731
    %v8841 = vadd.f32 %v8707, %v8731
    %v8842 = vadd.f32 %v8708, %v8731
    %v8843 = vadd.f32 %v8709, %v8731
    %v8844 = vadd.f32 %v8710, %v8731
    %v8845 = vadd.f32 %v8711, %v8731
    %v8846 = vadd.f32 %v8712, %v8731
    %v8847 = vadd.f32 %v8713, %v8731
    %v8848 = vadd.f32 %v8714, %v8731
    %v8849 = vadd.f32 %v8715, %v8731
    %v8850 = vadd.f32 %v8716, %v8731
    %v8851 = vadd.f32 %v8717, %v8731
    %v8852 = vadd.f32 %v8718, %v8731
    %v8853 = vadd.f32 %v8719, %v8731
    %v8854 = vadd.f32 %v8720, %v8731
    %v8855 = vadd.f32 %v8721, %v8731
    %v8856 = vadd.f32 %v8722, %v8731
    %v8857 = vadd.f32 %v8723, %v8731
    %v8858 = vadd.f32 %v8724, %v8731
    %v8859 = vadd.f32 %v8725, %v8731
    %v8860 = vadd.f32 %v8726, %v8731
    %v8861 = vmax.f32 %v8733, 0.0
    %v8862 = vmax.f32 %v8734, 0.0
    %v8863 = vmax.f32 %v8735, 0.0
    %v8864 = vmax.f32 %v8736, 0.0
    %v8865 = vmax.f32 %v8737, 0.0
    %v8866 = vmax.f32 %v8738, 0.0
    %v8867 = vmax.f32 %v8739, 0.0
    %v8868 = vmax.f32 %v8740, 0.0
    %v8869 = vmax.f32 %v8741, 0.0
    %v8870 = vmax.f32 %v8742, 0.0
    %v8871 = vmax.f32 %v8743, 0.0
    %v8872 = vmax.f32 %v8744, 0.0
    %v8873 = vmax.f32 %v8745, 0.0
    %v8874 = vmax.f32 %v8746, 0.0
    %v8875 = vmax.f32 %v8747, 0.0
    %v8876 = vmax.f32 %v8748, 0.0
    %v8877 = vmax.f32 %v8749, 0.0
    %v8878 = vmax.f32 %v8750, 0.0
    %v8879 = vmax.f32 %v8751, 0.0
    %v8880 = vmax.f32 %v8752, 0.0
    %v8881 = vmax.f32 %v8753, 0.0
    %v8882 = vmax.f32 %v8754, 0.0
    %v8883 = vmax.f32 %v8755, 0.0
    %v8884 = vmax.f32 %v8756, 0.0
    %v8885 = vmax.f32 %v8757, 0.0
    %v8886 = vmax.f32 %v8758, 0.0
    %v8887 = vmax.f32 %v8759, 0.0
    %v8888 = vmax.f32 %v8760, 0.0
    %v8889 = vmax.f32 %v8761, 0.0
    %v8890 = vmax.f32 %v8762, 0.0
    %v8891 = vmax.f32 %v8763, 0.0
    %v8892 = vmax.f32 %v8764, 0.0
    %v8893 = vmax.f32 %v8765, 0.0
    %v8894 = vmax.f32 %v8766, 0.0
    %v8895 = vmax.f32 %v8767, 0.0
    %v8896 = vmax.f32 %v8768, 0.0
    %v8897 = vmax.f32 %v8769, 0.0
    %v8898 = vmax.f32 %v8770, 0.0
    %v8899 = vmax.f32 %v8771, 0.0
    %v8900 = vmax.f32 %v8772, 0.0
    %v8901 = vmax.f32 %v8773, 0.0
    %v8902 = vmax.f32 %v8774, 0.0
    %v8903 = vmax.f32 %v8775, 0.0
    %v8904 = vmax.f32 %v8776, 0.0
    %v8905 = vmax.f32 %v8777, 0.0
    %v8906 = vmax.f32 %v8778, 0.0
    %v8907 = vmax.f32 %v8779, 0.0
    %v8908 = vmax.f32 %v8780, 0.0
    %v8909 = vmax.f32 %v8781, 0.0
    %v8910 = vmax.f32 %v8782, 0.0
    %v8911 = vmax.f32 %v8783, 0.0
    %v8912 = vmax.f32 %v8784, 0.0
    %v8913 = vmax.f32 %v8785, 0.0
    %v8914 = vmax.f32 %v8786, 0.0
    %v8915 = vmax.f32 %v8787, 0.0
    %v8916 = vmax.f32 %v8788, 0.0
    %v8917 = vmax.f32 %v8789, 0.0
    %v8918 = vmax.f32 %v8790, 0.0
    %v8919 = vmax.f32 %v8791, 0.0
    %v8920 = vmax.f32 %v8792, 0.0
    %v8921 = vmax.f32 %v8793, 0.0
    %v8922 = vmax.f32 %v8794, 0.0
    %v8923 = vmax.f32 %v8795, 0.0
    %v8924 = vmax.f32 %v8796, 0.0
    %v8925 = vmax.f32 %v8797, 0.0
    %v8926 = vmax.f32 %v8798, 0.0
    %v8927 = vmax.f32 %v8799, 0.0
    %v8928 = vmax.f32 %v8800, 0.0
    %v8929 = vmax.f32 %v8801, 0.0
    %v8930 = vmax.f32 %v8802, 0.0
    %v8931 = vmax.f32 %v8803, 0.0
    %v8932 = vmax.f32 %v8804, 0.0
    %v8933 = vmax.f32 %v8805, 0.0
    %v8934 = vmax.f32 %v8806, 0.0
    %v8935 = vmax.f32 %v8807, 0.0
    %v8936 = vmax.f32 %v8808, 0.0
    %v8937 = vmax.f32 %v8809, 0.0
    %v8938 = vmax.f32 %v8810, 0.0
    %v8939 = vmax.f32 %v8811, 0.0
    %v8940 = vmax.f32 %v8812, 0.0
    %v8941 = vmax.f32 %v8813, 0.0
    %v8942 = vmax.f32 %v8814, 0.0
    %v8943 = vmax.f32 %v8815, 0.0
    %v8944 = vmax.f32 %v8816, 0.0
    %v8945 = vmax.f32 %v8817, 0.0
    %v8946 = vmax.f32 %v8818, 0.0
    %v8947 = vmax.f32 %v8819, 0.0
    %v8948 = vmax.f32 %v8820, 0.0
    %v8949 = vmax.f32 %v8821, 0.0
    %v8950 = vmax.f32 %v8822, 0.0
    %v8951 = vmax.f32 %v8823, 0.0
    %v8952 = vmax.f32 %v8824, 0.0
    %v8953 = vmax.f32 %v8825, 0.0
    %v8954 = vmax.f32 %v8826, 0.0
    %v8955 = vmax.f32 %v8827, 0.0
    %v8956 = vmax.f32 %v8828, 0.0
    %v8957 = vmax.f32 %v8829, 0.0
    %v8958 = vmax.f32 %v8830, 0.0
    %v8959 = vmax.f32 %v8831, 0.0
    %v8960 = vmax.f32 %v8832, 0.0
    %v8961 = vmax.f32 %v8833, 0.0
    %v8962 = vmax.f32 %v8834, 0.0
    %v8963 = vmax.f32 %v8835, 0.0
    %v8964 = vmax.f32 %v8836, 0.0
    %v8965 = vmax.f32 %v8837, 0.0
    %v8966 = vmax.f32 %v8838, 0.0
    %v8967 = vmax.f32 %v8839, 0.0
    %v8968 = vmax.f32 %v8840, 0.0
    %v8969 = vmax.f32 %v8841, 0.0
    %v8970 = vmax.f32 %v8842, 0.0
    %v8971 = vmax.f32 %v8843, 0.0
    %v8972 = vmax.f32 %v8844, 0.0
    %v8973 = vmax.f32 %v8845, 0.0
    %v8974 = vmax.f32 %v8846, 0.0
    %v8975 = vmax.f32 %v8847, 0.0
    %v8976 = vmax.f32 %v8848, 0.0
    %v8977 = vmax.f32 %v8849, 0.0
    %v8978 = vmax.f32 %v8850, 0.0
    %v8979 = vmax.f32 %v8851, 0.0
    %v8980 = vmax.f32 %v8852, 0.0
    %v8981 = vmax.f32 %v8853, 0.0
    %v8982 = vmax.f32 %v8854, 0.0
    %v8983 = vmax.f32 %v8855, 0.0
    %v8984 = vmax.f32 %v8856, 0.0
    %v8985 = vmax.f32 %v8857, 0.0
    %v8986 = vmax.f32 %v8858, 0.0
    %v8987 = vmax.f32 %v8859, 0.0
    %v8988 = vmax.f32 %v8860, 0.0
    %v9117 = vrot.slane %v8862, 7
    %vm9118 = vcmask 1041409
    %v9119 = vsel %vm9118, %v9117, %v8861
    %v9120 = vrot.slane %v8863, 6
    %vm9121 = vcmask 1042434
    %v9122 = vsel %vm9121, %v9120, %v9119
    %v9123 = vrot.slane %v8864, 5
    %vm9124 = vcmask 1043459
    %v9125 = vsel %vm9124, %v9123, %v9122
    %v9126 = vrot.slane %v8865, 4
    %vm9127 = vcmask 1044484
    %v9128 = vsel %vm9127, %v9126, %v9125
    %v9129 = vrot.slane %v8866, 3
    %vm9130 = vcmask 1045509
    %v9131 = vsel %vm9130, %v9129, %v9128
    %v9132 = vrot.slane %v8867, 2
    %vm9133 = vcmask 1046534
    %v9134 = vsel %vm9133, %v9132, %v9131
    %v9135 = vrot.slane %v8868, 1
    %vm9136 = vcmask 1047559
    %v9137 = vsel %vm9136, %v9135, %v9134
    %v9138 = vrot.slane %v8870, 7
    %v9139 = vsel %vm9118, %v9138, %v8869
    %v9140 = vrot.slane %v8871, 6
    %v9141 = vsel %vm9121, %v9140, %v9139
    %v9142 = vrot.slane %v8872, 5
    %v9143 = vsel %vm9124, %v9142, %v9141
    %v9144 = vrot.slane %v8873, 4
    %v9145 = vsel %vm9127, %v9144, %v9143
    %v9146 = vrot.slane %v8874, 3
    %v9147 = vsel %vm9130, %v9146, %v9145
    %v9148 = vrot.slane %v8875, 2
    %v9149 = vsel %vm9133, %v9148, %v9147
    %v9150 = vrot.slane %v8876, 1
    %v9151 = vsel %vm9136, %v9150, %v9149
    %v9152 = vrot.slane %v8878, 7
    %v9153 = vsel %vm9118, %v9152, %v8877
    %v9154 = vrot.slane %v8879, 6
    %v9155 = vsel %vm9121, %v9154, %v9153
    %v9156 = vrot.slane %v8880, 5
    %v9157 = vsel %vm9124, %v9156, %v9155
    %v9158 = vrot.slane %v8881, 4
    %v9159 = vsel %vm9127, %v9158, %v9157
    %v9160 = vrot.slane %v8882, 3
    %v9161 = vsel %vm9130, %v9160, %v9159
    %v9162 = vrot.slane %v8883, 2
    %v9163 = vsel %vm9133, %v9162, %v9161
    %v9164 = vrot.slane %v8884, 1
    %v9165 = vsel %vm9136, %v9164, %v9163
    %v9166 = vrot.slane %v8886, 7
    %v9167 = vsel %vm9118, %v9166, %v8885
    %v9168 = vrot.slane %v8887, 6
    %v9169 = vsel %vm9121, %v9168, %v9167
    %v9170 = vrot.slane %v8888, 5
    %v9171 = vsel %vm9124, %v9170, %v9169
    %v9172 = vrot.slane %v8889, 4
    %v9173 = vsel %vm9127, %v9172, %v9171
    %v9174 = vrot.slane %v8890, 3
    %v9175 = vsel %vm9130, %v9174, %v9173
    %v9176 = vrot.slane %v8891, 2
    %v9177 = vsel %vm9133, %v9176, %v9175
    %v9178 = vrot.slane %v8892, 1
    %v9179 = vsel %vm9136, %v9178, %v9177
    %v9180 = vrot.slane %v8894, 7
    %v9181 = vsel %vm9118, %v9180, %v8893
    %v9182 = vrot.slane %v8895, 6
    %v9183 = vsel %vm9121, %v9182, %v9181
    %v9184 = vrot.slane %v8896, 5
    %v9185 = vsel %vm9124, %v9184, %v9183
    %v9186 = vrot.slane %v8897, 4
    %v9187 = vsel %vm9127, %v9186, %v9185
    %v9188 = vrot.slane %v8898, 3
    %v9189 = vsel %vm9130, %v9188, %v9187
    %v9190 = vrot.slane %v8899, 2
    %v9191 = vsel %vm9133, %v9190, %v9189
    %v9192 = vrot.slane %v8900, 1
    %v9193 = vsel %vm9136, %v9192, %v9191
    %v9194 = vrot.slane %v8902, 7
    %v9195 = vsel %vm9118, %v9194, %v8901
    %v9196 = vrot.slane %v8903, 6
    %v9197 = vsel %vm9121, %v9196, %v9195
    %v9198 = vrot.slane %v8904, 5
    %v9199 = vsel %vm9124, %v9198, %v9197
    %v9200 = vrot.slane %v8905, 4
    %v9201 = vsel %vm9127, %v9200, %v9199
    %v9202 = vrot.slane %v8906, 3
    %v9203 = vsel %vm9130, %v9202, %v9201
    %v9204 = vrot.slane %v8907, 2
    %v9205 = vsel %vm9133, %v9204, %v9203
    %v9206 = vrot.slane %v8908, 1
    %v9207 = vsel %vm9136, %v9206, %v9205
    %v9208 = vrot.slane %v8910, 7
    %v9209 = vsel %vm9118, %v9208, %v8909
    %v9210 = vrot.slane %v8911, 6
    %v9211 = vsel %vm9121, %v9210, %v9209
    %v9212 = vrot.slane %v8912, 5
    %v9213 = vsel %vm9124, %v9212, %v9211
    %v9214 = vrot.slane %v8913, 4
    %v9215 = vsel %vm9127, %v9214, %v9213
    %v9216 = vrot.slane %v8914, 3
    %v9217 = vsel %vm9130, %v9216, %v9215
    %v9218 = vrot.slane %v8915, 2
    %v9219 = vsel %vm9133, %v9218, %v9217
    %v9220 = vrot.slane %v8916, 1
    %v9221 = vsel %vm9136, %v9220, %v9219
    %v9222 = vrot.slane %v8918, 7
    %v9223 = vsel %vm9118, %v9222, %v8917
    %v9224 = vrot.slane %v8919, 6
    %v9225 = vsel %vm9121, %v9224, %v9223
    %v9226 = vrot.slane %v8920, 5
    %v9227 = vsel %vm9124, %v9226, %v9225
    %v9228 = vrot.slane %v8921, 4
    %v9229 = vsel %vm9127, %v9228, %v9227
    %v9230 = vrot.slane %v8922, 3
    %v9231 = vsel %vm9130, %v9230, %v9229
    %v9232 = vrot.slane %v8923, 2
    %v9233 = vsel %vm9133, %v9232, %v9231
    %v9234 = vrot.slane %v8924, 1
    %v9235 = vsel %vm9136, %v9234, %v9233
    %v9236 = vrot.slane %v8926, 7
    %v9237 = vsel %vm9118, %v9236, %v8925
    %v9238 = vrot.slane %v8927, 6
    %v9239 = vsel %vm9121, %v9238, %v9237
    %v9240 = vrot.slane %v8928, 5
    %v9241 = vsel %vm9124, %v9240, %v9239
    %v9242 = vrot.slane %v8929, 4
    %v9243 = vsel %vm9127, %v9242, %v9241
    %v9244 = vrot.slane %v8930, 3
    %v9245 = vsel %vm9130, %v9244, %v9243
    %v9246 = vrot.slane %v8931, 2
    %v9247 = vsel %vm9133, %v9246, %v9245
    %v9248 = vrot.slane %v8932, 1
    %v9249 = vsel %vm9136, %v9248, %v9247
    %v9250 = vrot.slane %v8934, 7
    %v9251 = vsel %vm9118, %v9250, %v8933
    %v9252 = vrot.slane %v8935, 6
    %v9253 = vsel %vm9121, %v9252, %v9251
    %v9254 = vrot.slane %v8936, 5
    %v9255 = vsel %vm9124, %v9254, %v9253
    %v9256 = vrot.slane %v8937, 4
    %v9257 = vsel %vm9127, %v9256, %v9255
    %v9258 = vrot.slane %v8938, 3
    %v9259 = vsel %vm9130, %v9258, %v9257
    %v9260 = vrot.slane %v8939, 2
    %v9261 = vsel %vm9133, %v9260, %v9259
    %v9262 = vrot.slane %v8940, 1
    %v9263 = vsel %vm9136, %v9262, %v9261
    %v9264 = vrot.slane %v8942, 7
    %v9265 = vsel %vm9118, %v9264, %v8941
    %v9266 = vrot.slane %v8943, 6
    %v9267 = vsel %vm9121, %v9266, %v9265
    %v9268 = vrot.slane %v8944, 5
    %v9269 = vsel %vm9124, %v9268, %v9267
    %v9270 = vrot.slane %v8945, 4
    %v9271 = vsel %vm9127, %v9270, %v9269
    %v9272 = vrot.slane %v8946, 3
    %v9273 = vsel %vm9130, %v9272, %v9271
    %v9274 = vrot.slane %v8947, 2
    %v9275 = vsel %vm9133, %v9274, %v9273
    %v9276 = vrot.slane %v8948, 1
    %v9277 = vsel %vm9136, %v9276, %v9275
    %v9278 = vrot.slane %v8950, 7
    %v9279 = vsel %vm9118, %v9278, %v8949
    %v9280 = vrot.slane %v8951, 6
    %v9281 = vsel %vm9121, %v9280, %v9279
    %v9282 = vrot.slane %v8952, 5
    %v9283 = vsel %vm9124, %v9282, %v9281
    %v9284 = vrot.slane %v8953, 4
    %v9285 = vsel %vm9127, %v9284, %v9283
    %v9286 = vrot.slane %v8954, 3
    %v9287 = vsel %vm9130, %v9286, %v9285
    %v9288 = vrot.slane %v8955, 2
    %v9289 = vsel %vm9133, %v9288, %v9287
    %v9290 = vrot.slane %v8956, 1
    %v9291 = vsel %vm9136, %v9290, %v9289
    %v9292 = vrot.slane %v8958, 7
    %v9293 = vsel %vm9118, %v9292, %v8957
    %v9294 = vrot.slane %v8959, 6
    %v9295 = vsel %vm9121, %v9294, %v9293
    %v9296 = vrot.slane %v8960, 5
    %v9297 = vsel %vm9124, %v9296, %v9295
    %v9298 = vrot.slane %v8961, 4
    %v9299 = vsel %vm9127, %v9298, %v9297
    %v9300 = vrot.slane %v8962, 3
    %v9301 = vsel %vm9130, %v9300, %v9299
    %v9302 = vrot.slane %v8963, 2
    %v9303 = vsel %vm9133, %v9302, %v9301
    %v9304 = vrot.slane %v8964, 1
    %v9305 = vsel %vm9136, %v9304, %v9303
    %v9306 = vrot.slane %v8966, 7
    %v9307 = vsel %vm9118, %v9306, %v8965
    %v9308 = vrot.slane %v8967, 6
    %v9309 = vsel %vm9121, %v9308, %v9307
    %v9310 = vrot.slane %v8968, 5
    %v9311 = vsel %vm9124, %v9310, %v9309
    %v9312 = vrot.slane %v8969, 4
    %v9313 = vsel %vm9127, %v9312, %v9311
    %v9314 = vrot.slane %v8970, 3
    %v9315 = vsel %vm9130, %v9314, %v9313
    %v9316 = vrot.slane %v8971, 2
    %v9317 = vsel %vm9133, %v9316, %v9315
    %v9318 = vrot.slane %v8972, 1
    %v9319 = vsel %vm9136, %v9318, %v9317
    %v9320 = vrot.slane %v8974, 7
    %v9321 = vsel %vm9118, %v9320, %v8973
    %v9322 = vrot.slane %v8975, 6
    %v9323 = vsel %vm9121, %v9322, %v9321
    %v9324 = vrot.slane %v8976, 5
    %v9325 = vsel %vm9124, %v9324, %v9323
    %v9326 = vrot.slane %v8977, 4
    %v9327 = vsel %vm9127, %v9326, %v9325
    %v9328 = vrot.slane %v8978, 3
    %v9329 = vsel %vm9130, %v9328, %v9327
    %v9330 = vrot.slane %v8979, 2
    %v9331 = vsel %vm9133, %v9330, %v9329
    %v9332 = vrot.slane %v8980, 1
    %v9333 = vsel %vm9136, %v9332, %v9331
    %v9334 = vrot.slane %v8982, 7
    %v9335 = vsel %vm9118, %v9334, %v8981
    %v9336 = vrot.slane %v8983, 6
    %v9337 = vsel %vm9121, %v9336, %v9335
    %v9338 = vrot.slane %v8984, 5
    %v9339 = vsel %vm9124, %v9338, %v9337
    %v9340 = vrot.slane %v8985, 4
    %v9341 = vsel %vm9127, %v9340, %v9339
    %v9342 = vrot.slane %v8986, 3
    %v9343 = vsel %vm9130, %v9342, %v9341
    %v9344 = vrot.slane %v8987, 2
    %v9345 = vsel %vm9133, %v9344, %v9343
    %v9346 = vrot.slane %v8988, 1
    %v9347 = vsel %vm9136, %v9346, %v9345
    %9364 = vst [vmem:[#allocation3] sm:$0xff] %v9137
    %9365 = vst [vmem:[#allocation3 + $0x8] sm:$0xff] %v9151
    %9366 = vst [vmem:[#allocation3 + $0x10] sm:$0xff] %v9165
    %9367 = vst [vmem:[#allocation3 + $0x18] sm:$0xff] %v9179
    %9368 = vst [vmem:[#allocation3 + $0x20] sm:$0xff] %v9193
    %9369 = vst [vmem:[#allocation3 + $0x28] sm:$0xff] %v9207
    %9370 = vst [vmem:[#allocation3 + $0x30] sm:$0xff] %v9221
    %9371 = vst [vmem:[#allocation3 + $0x38] sm:$0xff] %v9235
    %9372 = vst [vmem:[#allocation3 + $0x40] sm:$0xff] %v9249
    %9373 = vst [vmem:[#allocation3 + $0x48] sm:$0xff] %v9263
    %9374 = vst [vmem:[#allocation3 + $0x50] sm:$0xff] %v9277
    %9375 = vst [vmem:[#allocation3 + $0x58] sm:$0xff] %v9291
    %9376 = vst [vmem:[#allocation3 + $0x60] sm:$0xff] %v9305
    %9377 = vst [vmem:[#allocation3 + $0x68] sm:$0xff] %v9319
    %9378 = vst [vmem:[#allocation3 + $0x70] sm:$0xff] %v9333
    %9379 = vst [vmem:[#allocation3 + $0x78] sm:$0xff] %v9347
    // Predicated region
    $region14: #{tpu_custom_call.1} parent=1 // pred_check
      _
    $region15: #{tpu_custom_call.1} parent=1 // pred_check_branch
      %9381 = sbr.rel (0) target = $region17
    $region16: #{tpu_custom_call.1} parent=1 // pred_region
      %s9383 = ssub.s32 2048, 2048
      %9384 = vsyncadd [#allocation4], %s9383
      %s9385 = sshll.u32 [#allocation3], 4
      %s9386 = int_to_ptr.vmem [resolvable:$true] %s9385
      %9391 = dma.vmem_to_hbm [thread:$0]  %s9386, 2048, %s3, [#allocation4], 128, 128, 8
    $region17: #{tpu_custom_call.1} parent=1 // pred_fallthru
      _
    // Predicated region
    $region18: #{tpu_custom_call.1} parent=1 // pred_check
      _
    $region19: #{tpu_custom_call.1} parent=1 // pred_check_branch
      %9393 = sbr.rel (0) target = $region21
    $region20: #{tpu_custom_call.1} parent=1 // pred_region
      %9394 = dma.done [#allocation4], 2048
    $region21: #{tpu_custom_call.1} parent=1 // pred_fallthru
      _
    %9395 = vsyncpa [#allocation4], 1

</llo_original>
